<compile_context>
chip_gen: v7x
topology: tpu7x:2x2x1
jax: 0.10.0
libtpu: 0.0.40
codegen_flags: <defaults>
</compile_context>

<pallas_src>
import functools

import jax
import jax.numpy as jnp
from jax.experimental import pallas as pl
from jax.experimental.pallas import tpu as pltpu


# ---------------------------------------------------------------------------
# Fused residual-block kernel (one grid step == one sample)
# ---------------------------------------------------------------------------
def _residual_block_kernel(xp_ref, w1_ref, w2_ref, o_ref, acc_ref, hp_ref, *,
                           H, W, C):
    # xp_ref : (1, H+2, W+2, C) bf16   reflect-padded input sample
    # w*_ref : (3, 3C, C)       bf16   row-tap weight layout (kh, kw*cin, cout)
    # o_ref  : (1, H, W, C)     f32    block output
    # acc_ref: (H*W, C)         f32    conv accumulator (VMEM scratch)
    # hp_ref : (H+2, W+2, C)    f32    reflect-padded intermediate (VMEM scratch)
    P = H * W

    def conv3x3(load, w_ref):
        # 3x3 conv as 3 row-tap matmuls: for each kh, concat the three
        # width-shifted (H, W, C) windows along channels (K = 3C) and hit the
        # MXU once; accumulate into the f32 scratch.
        for kh in range(3):
            taps = jnp.concatenate(
                [load(kh, 0), load(kh, 1), load(kh, 2)], axis=-1)  # (H, W, 3C)
            taps = taps.astype(jnp.bfloat16).reshape(P, 3 * C)
            contrib = jnp.dot(taps, w_ref[kh],
                              preferred_element_type=jnp.float32)  # (P, C) f32
            if kh == 0:
                acc_ref[...] = contrib
            else:
                acc_ref[...] += contrib

    def instance_norm(y):
        # InstanceNorm2d(affine=False); two-pass variance, all f32.
        mean = jnp.mean(y, axis=0, keepdims=True)
        yc = y - mean
        var = jnp.mean(yc * yc, axis=0, keepdims=True)
        return yc * jax.lax.rsqrt(var + 1e-5)

    # ---- conv1 -> IN -> ReLU ------------------------------------------------
    conv3x3(lambda kh, kw: xp_ref[0, kh:kh + H, kw:kw + W, :], w1_ref)
    h = jnp.maximum(instance_norm(acc_ref[...]), 0.0)          # (P, C) f32
    h = h.reshape(H, W, C)

    # ---- in-kernel ReflectionPad2d(1) of h into f32 scratch ------------------
    hp_ref[1:H + 1, 1:W + 1, :] = h                             # centre
    hp_ref[0:1, 1:W + 1, :] = h[1:2]                            # top:    row 1
    hp_ref[H + 1:H + 2, 1:W + 1, :] = h[H - 2:H - 1]            # bottom: row H-2
    hp_ref[:, 0:1, :] = hp_ref[:, 2:3, :]                       # left:   col 2
    hp_ref[:, W + 1:W + 2, :] = hp_ref[:, W - 1:W, :]           # right:  col W-1

    # ---- conv2 -> IN ----------------------------------------------------------
    conv3x3(lambda kh, kw: hp_ref[kh:kh + H, kw:kw + W, :], w2_ref)
    y2 = instance_norm(acc_ref[...])                            # (P, C) f32

    # ---- residual add: reuse the centre of padded x already in VMEM ----------
    xres = xp_ref[0, 1:H + 1, 1:W + 1, :].astype(jnp.float32).reshape(P, C)
    o_ref[...] = (xres + y2).reshape(1, H, W, C).astype(o_ref.dtype)
    # TODO(synk): nn.Dropout2d() treated as identity (eval-mode semantics).


# ---------------------------------------------------------------------------
# JAX glue
# ---------------------------------------------------------------------------
def prepare_weights(w1, w2):
    """(3, 3, Cin, Cout) f32 -> (3, 3*Cin, Cout) bf16 row-tap layout (once)."""
    def prep(w):
        kh, kw, cin, cout = w.shape
        return w.reshape(kh, kw * cin, cout).astype(jnp.bfloat16)
    return prep(w1), prep(w2)


@jax.jit
def residual_block_forward(w1r, w2r, x_nchw):
    # NCHW -> NHWC glue to match the PyTorch module interface.
    # TODO(synk): keep the surrounding model NHWC so these transposes disappear.
    x = jnp.transpose(x_nchw, (0, 2, 3, 1)).astype(jnp.float32)
    N, H, W, C = x.shape
    assert C % 128 == 0 and (H * W) % 8 == 0, "demo kernel assumes aligned sizes"

    # Only the reflect-padded input is DMA'd (bf16); no im2col expansion.
    xp = jnp.pad(x, ((0, 0), (1, 1), (1, 1), (0, 0)),
                 mode="reflect").astype(jnp.bfloat16)

    y = pl.pallas_call(
        functools.partial(_residual_block_kernel, H=H, W=W, C=C),
        out_shape=jax.ShapeDtypeStruct((N, H, W, C), jnp.float32),
        grid=(N,),
        in_specs=[
            pl.BlockSpec((1, H + 2, W + 2, C), lambda i: (i, 0, 0, 0)),
            pl.BlockSpec((3, 3 * C, C), lambda i: (0, 0, 0)),
            pl.BlockSpec((3, 3 * C, C), lambda i: (0, 0, 0)),
        ],
        out_specs=pl.BlockSpec((1, H, W, C), lambda i: (i, 0, 0, 0)),
        scratch_shapes=[
            pltpu.VMEM((H * W, C), jnp.float32),          # conv accumulator
            pltpu.VMEM((H + 2, W + 2, C), jnp.float32),   # reflect-padded h
        ],
        compiler_params=pltpu.CompilerParams(
            dimension_semantics=("parallel",),
            vmem_limit_bytes=32 * 1024 * 1024,
        ),
    )(xp, w1r, w2r)
    return jnp.transpose(y, (0, 3, 1, 2))                       # back to NCHW


# ---------------------------------------------------------------------------
# Pure-JAX f32 reference for the correctness check
# ---------------------------------------------------------------------------
def residual_block_reference(w1, w2, x_nchw):
    x = jnp.transpose(x_nchw, (0, 2, 3, 1)).astype(jnp.float32)

    def conv_in(z, w):
        zp = jnp.pad(z, ((0, 0), (1, 1), (1, 1), (0, 0)), mode="reflect")
        y = jax.lax.conv_general_dilated(
            zp, w, window_strides=(1, 1), padding="VALID",
            dimension_numbers=("NHWC", "HWIO", "NHWC"))
        mean = jnp.mean(y, axis=(1, 2), keepdims=True)
        var = jnp.mean((y - mean) ** 2, axis=(1, 2), keepdims=True)
        return (y - mean) * jax.lax.rsqrt(var + 1e-5)

    h = jax.nn.relu(conv_in(x, w1))
    y = conv_in(h, w2)
    return jnp.transpose(x + y, (0, 3, 1, 2))


# ---------------------------------------------------------------------------
if __name__ == "__main__":
    key = jax.random.PRNGKey(0)
    kx, k1, k2 = jax.random.split(key, 3)

    N, C, H, W = 2, 128, 16, 16              # ResidualBlock(in_features=128)
    x = jax.random.normal(kx, (N, C, H, W), jnp.float32)        # NCHW, like PyTorch
    # Conv weights, layout (kh, kw, cin, cout), ~N(0, 0.02).  Conv biases are
    # omitted: InstanceNorm2d(affine=False) cancels them exactly.
    w1 = 0.02 * jax.random.normal(k1, (3, 3, C, C), jnp.float32)
    w2 = 0.02 * jax.random.normal(k2, (3, 3, C, C), jnp.float32)

    # Pre-reshape / pre-cast the weights once, outside the hot path.
    w1r, w2r = prepare_weights(w1, w2)

    y = residual_block_forward(w1r, w2r, x)
    jax.block_until_ready(y)

    assert y.shape == (N, C, H, W), y.shape
    assert bool(jnp.all(jnp.isfinite(y)))

    # Check against a pure-f32 JAX reference.  bf16 MXU operands in the kernel
    # -> mixed relative/absolute tolerance (tightened vs. the previous 0.25).
    y_ref = residual_block_reference(w1, w2, x)
    err = float(jnp.max(jnp.abs(y - y_ref) / (1.0 + jnp.abs(y_ref))))
    assert err < 0.05, f"max mixed rel/abs err {err}"

    print("KERNEL_OK")
</pallas_src>

<mosaic_0001>
module attributes {stable_mosaic.version = 11 : i64} {
  func.func @_residual_block_kernel(%arg0: i32, %arg1: memref<1x18x18x128xbf16, #tpu.memory_space<vmem>>, %arg2: memref<3x384x128xbf16, #tpu.memory_space<vmem>>, %arg3: memref<3x384x128xbf16, #tpu.memory_space<vmem>>, %arg4: memref<1x16x16x128xf32, #tpu.memory_space<vmem>>, %arg5: memref<256x128xf32, #tpu.memory_space<vmem>>, %arg6: memref<18x18x128xf32, #tpu.memory_space<vmem>>) attributes {dimension_semantics = [#tpu.dimension_semantics<parallel>], iteration_bounds = array<i64: 2>, scalar_prefetch = 0 : i64, scratch_operands = 2 : i64, tpu.core_type = #tpu.core_type<tc>, window_params = [{transform_indices = @transform_0, window_bounds = array<i64: 1, 18, 18, 128>}, {pipeline_mode = #tpu.pipeline_mode<synchronous>, transform_indices = @transform_1, window_bounds = array<i64: 3, 384, 128>}, {pipeline_mode = #tpu.pipeline_mode<synchronous>, transform_indices = @transform_2, window_bounds = array<i64: 3, 384, 128>}, {transform_indices = @transform_3, window_bounds = array<i64: 1, 16, 16, 128>}]} {
    %c0 = arith.constant 0 : index
    %c0_0 = arith.constant 0 : index
    %c0_1 = arith.constant 0 : index
    %c0_2 = arith.constant 0 : index
    %0 = vector.load %arg1[%c0, %c0_0, %c0_1, %c0_2] : memref<1x18x18x128xbf16, #tpu.memory_space<vmem>>, vector<1x16x16x128xbf16>
    %1 = vector.shape_cast %0 : vector<1x16x16x128xbf16> to vector<16x16x128xbf16>
    %c0_3 = arith.constant 0 : index
    %c0_4 = arith.constant 0 : index
    %c1 = arith.constant 1 : index
    %c0_5 = arith.constant 0 : index
    %2 = vector.load %arg1[%c0_3, %c0_4, %c1, %c0_5] : memref<1x18x18x128xbf16, #tpu.memory_space<vmem>>, vector<1x16x16x128xbf16>
    %3 = vector.shape_cast %2 : vector<1x16x16x128xbf16> to vector<16x16x128xbf16>
    %c0_6 = arith.constant 0 : index
    %c0_7 = arith.constant 0 : index
    %c2 = arith.constant 2 : index
    %c0_8 = arith.constant 0 : index
    %4 = vector.load %arg1[%c0_6, %c0_7, %c2, %c0_8] : memref<1x18x18x128xbf16, #tpu.memory_space<vmem>>, vector<1x16x16x128xbf16>
    %5 = vector.shape_cast %4 : vector<1x16x16x128xbf16> to vector<16x16x128xbf16>
    %6 = tpu.concatenate %1, %3, %5 in 2 : vector<16x16x128xbf16>, vector<16x16x128xbf16>, vector<16x16x128xbf16> -> vector<16x16x384xbf16>
    %7 = vector.shape_cast %6 : vector<16x16x384xbf16> to vector<256x384xbf16>
    %c0_9 = arith.constant 0 : index
    %c0_10 = arith.constant 0 : index
    %c0_11 = arith.constant 0 : index
    %8 = vector.load %arg2[%c0_9, %c0_10, %c0_11] : memref<3x384x128xbf16, #tpu.memory_space<vmem>>, vector<1x384x128xbf16>
    %9 = vector.shape_cast %8 : vector<1x384x128xbf16> to vector<384x128xbf16>
    %cst = arith.constant dense<0.000000e+00> : vector<256x128xf32>
    %10 = tpu.matmul %7, %9, %cst {dimension_numbers = #tpu.dot_dimension_numbers<[1], [0], [0], [1], [0, 0, 1, 1], [], []>} : vector<256x384xbf16>, vector<384x128xbf16>, vector<256x128xf32> -> vector<256x128xf32>
    %c0_12 = arith.constant 0 : index
    %c0_13 = arith.constant 0 : index
    %11 = vector.load %arg5[%c0_12, %c0_13] : memref<256x128xf32, #tpu.memory_space<vmem>>, vector<256x128xf32>
    tpu.vector_store %arg5[%c0_12, %c0_13], %10 {strides = array<i32>} : memref<256x128xf32, #tpu.memory_space<vmem>>, vector<256x128xf32>,
    %c0_14 = arith.constant 0 : index
    %c1_15 = arith.constant 1 : index
    %c0_16 = arith.constant 0 : index
    %c0_17 = arith.constant 0 : index
    %12 = vector.load %arg1[%c0_14, %c1_15, %c0_16, %c0_17] : memref<1x18x18x128xbf16, #tpu.memory_space<vmem>>, vector<1x16x16x128xbf16>
    %13 = vector.shape_cast %12 : vector<1x16x16x128xbf16> to vector<16x16x128xbf16>
    %c0_18 = arith.constant 0 : index
    %c1_19 = arith.constant 1 : index
    %c1_20 = arith.constant 1 : index
    %c0_21 = arith.constant 0 : index
    %14 = vector.load %arg1[%c0_18, %c1_19, %c1_20, %c0_21] : memref<1x18x18x128xbf16, #tpu.memory_space<vmem>>, vector<1x16x16x128xbf16>
    %15 = vector.shape_cast %14 : vector<1x16x16x128xbf16> to vector<16x16x128xbf16>
    %c0_22 = arith.constant 0 : index
    %c1_23 = arith.constant 1 : index
    %c2_24 = arith.constant 2 : index
    %c0_25 = arith.constant 0 : index
    %16 = vector.load %arg1[%c0_22, %c1_23, %c2_24, %c0_25] : memref<1x18x18x128xbf16, #tpu.memory_space<vmem>>, vector<1x16x16x128xbf16>
    %17 = vector.shape_cast %16 : vector<1x16x16x128xbf16> to vector<16x16x128xbf16>
    %18 = tpu.concatenate %13, %15, %17 in 2 : vector<16x16x128xbf16>, vector<16x16x128xbf16>, vector<16x16x128xbf16> -> vector<16x16x384xbf16>
    %19 = vector.shape_cast %18 : vector<16x16x384xbf16> to vector<256x384xbf16>
    %c1_26 = arith.constant 1 : index
    %c0_27 = arith.constant 0 : index
    %c0_28 = arith.constant 0 : index
    %20 = vector.load %arg2[%c1_26, %c0_27, %c0_28] : memref<3x384x128xbf16, #tpu.memory_space<vmem>>, vector<1x384x128xbf16>
    %21 = vector.shape_cast %20 : vector<1x384x128xbf16> to vector<384x128xbf16>
    %cst_29 = arith.constant dense<0.000000e+00> : vector<256x128xf32>
    %22 = tpu.matmul %19, %21, %cst_29 {dimension_numbers = #tpu.dot_dimension_numbers<[1], [0], [0], [1], [0, 0, 1, 1], [], []>} : vector<256x384xbf16>, vector<384x128xbf16>, vector<256x128xf32> -> vector<256x128xf32>
    %c0_30 = arith.constant 0 : index
    %c0_31 = arith.constant 0 : index
    %23 = vector.load %arg5[%c0_30, %c0_31] : memref<256x128xf32, #tpu.memory_space<vmem>>, vector<256x128xf32>
    %24 = arith.addf %23, %22 : vector<256x128xf32>
    %c0_32 = arith.constant 0 : index
    %c0_33 = arith.constant 0 : index
    %25 = vector.load %arg5[%c0_32, %c0_33] : memref<256x128xf32, #tpu.memory_space<vmem>>, vector<256x128xf32>
    tpu.vector_store %arg5[%c0_32, %c0_33], %24 {strides = array<i32>} : memref<256x128xf32, #tpu.memory_space<vmem>>, vector<256x128xf32>,
    %c0_34 = arith.constant 0 : index
    %c2_35 = arith.constant 2 : index
    %c0_36 = arith.constant 0 : index
    %c0_37 = arith.constant 0 : index
    %26 = vector.load %arg1[%c0_34, %c2_35, %c0_36, %c0_37] : memref<1x18x18x128xbf16, #tpu.memory_space<vmem>>, vector<1x16x16x128xbf16>
    %27 = vector.shape_cast %26 : vector<1x16x16x128xbf16> to vector<16x16x128xbf16>
    %c0_38 = arith.constant 0 : index
    %c2_39 = arith.constant 2 : index
    %c1_40 = arith.constant 1 : index
    %c0_41 = arith.constant 0 : index
    %28 = vector.load %arg1[%c0_38, %c2_39, %c1_40, %c0_41] : memref<1x18x18x128xbf16, #tpu.memory_space<vmem>>, vector<1x16x16x128xbf16>
    %29 = vector.shape_cast %28 : vector<1x16x16x128xbf16> to vector<16x16x128xbf16>
    %c0_42 = arith.constant 0 : index
    %c2_43 = arith.constant 2 : index
    %c2_44 = arith.constant 2 : index
    %c0_45 = arith.constant 0 : index
    %30 = vector.load %arg1[%c0_42, %c2_43, %c2_44, %c0_45] : memref<1x18x18x128xbf16, #tpu.memory_space<vmem>>, vector<1x16x16x128xbf16>
    %31 = vector.shape_cast %30 : vector<1x16x16x128xbf16> to vector<16x16x128xbf16>
    %32 = tpu.concatenate %27, %29, %31 in 2 : vector<16x16x128xbf16>, vector<16x16x128xbf16>, vector<16x16x128xbf16> -> vector<16x16x384xbf16>
    %33 = vector.shape_cast %32 : vector<16x16x384xbf16> to vector<256x384xbf16>
    %c2_46 = arith.constant 2 : index
    %c0_47 = arith.constant 0 : index
    %c0_48 = arith.constant 0 : index
    %34 = vector.load %arg2[%c2_46, %c0_47, %c0_48] : memref<3x384x128xbf16, #tpu.memory_space<vmem>>, vector<1x384x128xbf16>
    %35 = vector.shape_cast %34 : vector<1x384x128xbf16> to vector<384x128xbf16>
    %cst_49 = arith.constant dense<0.000000e+00> : vector<256x128xf32>
    %36 = tpu.matmul %33, %35, %cst_49 {dimension_numbers = #tpu.dot_dimension_numbers<[1], [0], [0], [1], [0, 0, 1, 1], [], []>} : vector<256x384xbf16>, vector<384x128xbf16>, vector<256x128xf32> -> vector<256x128xf32>
    %c0_50 = arith.constant 0 : index
    %c0_51 = arith.constant 0 : index
    %37 = vector.load %arg5[%c0_50, %c0_51] : memref<256x128xf32, #tpu.memory_space<vmem>>, vector<256x128xf32>
    %38 = arith.addf %37, %36 : vector<256x128xf32>
    %c0_52 = arith.constant 0 : index
    %c0_53 = arith.constant 0 : index
    %39 = vector.load %arg5[%c0_52, %c0_53] : memref<256x128xf32, #tpu.memory_space<vmem>>, vector<256x128xf32>
    tpu.vector_store %arg5[%c0_52, %c0_53], %38 {strides = array<i32>} : memref<256x128xf32, #tpu.memory_space<vmem>>, vector<256x128xf32>,
    %c0_54 = arith.constant 0 : index
    %c0_55 = arith.constant 0 : index
    %40 = vector.load %arg5[%c0_54, %c0_55] : memref<256x128xf32, #tpu.memory_space<vmem>>, vector<256x128xf32>
    %cst_56 = arith.constant dense<0.000000e+00> : vector<128xf32>
    %41 = vector.multi_reduction <add>, %40, %cst_56 [0] : vector<256x128xf32> to vector<128xf32>
    %42 = vector.shape_cast %41 : vector<128xf32> to vector<1x128xf32>
    %cst_57 = arith.constant 2.560000e+02 : f32
    %43 = vector.broadcast %cst_57 : f32 to vector<1x128xf32>
    %44 = arith.divf %42, %43 : vector<1x128xf32>
    %45 = vector.broadcast %44 : vector<1x128xf32> to vector<256x128xf32>
    %46 = arith.subf %40, %45 : vector<256x128xf32>
    %47 = arith.mulf %46, %46 : vector<256x128xf32>
    %cst_58 = arith.constant dense<0.000000e+00> : vector<128xf32>
    %48 = vector.multi_reduction <add>, %47, %cst_58 [0] : vector<256x128xf32> to vector<128xf32>
    %49 = vector.shape_cast %48 : vector<128xf32> to vector<1x128xf32>
    %cst_59 = arith.constant 2.560000e+02 : f32
    %50 = vector.broadcast %cst_59 : f32 to vector<1x128xf32>
    %51 = arith.divf %49, %50 : vector<1x128xf32>
    %cst_60 = arith.constant 9.99999974E-6 : f32
    %52 = vector.broadcast %cst_60 : f32 to vector<1x128xf32>
    %53 = arith.addf %51, %52 : vector<1x128xf32>
    %54 = math.rsqrt %53 : vector<1x128xf32>
    %55 = vector.broadcast %54 : vector<1x128xf32> to vector<256x128xf32>
    %56 = arith.mulf %46, %55 : vector<256x128xf32>
    %cst_61 = arith.constant 0.000000e+00 : f32
    %57 = vector.broadcast %cst_61 : f32 to vector<256x128xf32>
    %58 = arith.maximumf %56, %57 : vector<256x128xf32>
    %59 = vector.shape_cast %58 : vector<256x128xf32> to vector<16x16x128xf32>
    %c1_62 = arith.constant 1 : index
    %c1_63 = arith.constant 1 : index
    %c0_64 = arith.constant 0 : index
    %60 = vector.load %arg6[%c1_62, %c1_63, %c0_64] : memref<18x18x128xf32, #tpu.memory_space<vmem>>, vector<16x16x128xf32>
    tpu.vector_store %arg6[%c1_62, %c1_63, %c0_64], %59 {strides = array<i32>} : memref<18x18x128xf32, #tpu.memory_space<vmem>>, vector<16x16x128xf32>,
    %61 = vector.extract_strided_slice %59 {offsets = [1, 0, 0], sizes = [1, 16, 128], strides = [1, 1, 1]} : vector<16x16x128xf32> to vector<1x16x128xf32>
    %c0_65 = arith.constant 0 : index
    %c1_66 = arith.constant 1 : index
    %c0_67 = arith.constant 0 : index
    %62 = vector.load %arg6[%c0_65, %c1_66, %c0_67] : memref<18x18x128xf32, #tpu.memory_space<vmem>>, vector<1x16x128xf32>
    tpu.vector_store %arg6[%c0_65, %c1_66, %c0_67], %61 {strides = array<i32>} : memref<18x18x128xf32, #tpu.memory_space<vmem>>, vector<1x16x128xf32>,
    %63 = vector.extract_strided_slice %59 {offsets = [14, 0, 0], sizes = [1, 16, 128], strides = [1, 1, 1]} : vector<16x16x128xf32> to vector<1x16x128xf32>
    %c17 = arith.constant 17 : index
    %c1_68 = arith.constant 1 : index
    %c0_69 = arith.constant 0 : index
    %64 = vector.load %arg6[%c17, %c1_68, %c0_69] : memref<18x18x128xf32, #tpu.memory_space<vmem>>, vector<1x16x128xf32>
    tpu.vector_store %arg6[%c17, %c1_68, %c0_69], %63 {strides = array<i32>} : memref<18x18x128xf32, #tpu.memory_space<vmem>>, vector<1x16x128xf32>,
    %c0_70 = arith.constant 0 : index
    %c2_71 = arith.constant 2 : index
    %c0_72 = arith.constant 0 : index
    %65 = vector.load %arg6[%c0_70, %c2_71, %c0_72] : memref<18x18x128xf32, #tpu.memory_space<vmem>>, vector<18x1x128xf32>
    %c0_73 = arith.constant 0 : index
    %c0_74 = arith.constant 0 : index
    %c0_75 = arith.constant 0 : index
    %66 = vector.load %arg6[%c0_73, %c0_74, %c0_75] : memref<18x18x128xf32, #tpu.memory_space<vmem>>, vector<18x1x128xf32>
    tpu.vector_store %arg6[%c0_73, %c0_74, %c0_75], %65 {strides = array<i32>} : memref<18x18x128xf32, #tpu.memory_space<vmem>>, vector<18x1x128xf32>,
    %c0_76 = arith.constant 0 : index
    %c15 = arith.constant 15 : index
    %c0_77 = arith.constant 0 : index
    %67 = vector.load %arg6[%c0_76, %c15, %c0_77] : memref<18x18x128xf32, #tpu.memory_space<vmem>>, vector<18x1x128xf32>
    %c0_78 = arith.constant 0 : index
    %c17_79 = arith.constant 17 : index
    %c0_80 = arith.constant 0 : index
    %68 = vector.load %arg6[%c0_78, %c17_79, %c0_80] : memref<18x18x128xf32, #tpu.memory_space<vmem>>, vector<18x1x128xf32>
    tpu.vector_store %arg6[%c0_78, %c17_79, %c0_80], %67 {strides = array<i32>} : memref<18x18x128xf32, #tpu.memory_space<vmem>>, vector<18x1x128xf32>,
    %c0_81 = arith.constant 0 : index
    %c0_82 = arith.constant 0 : index
    %c0_83 = arith.constant 0 : index
    %69 = vector.load %arg6[%c0_81, %c0_82, %c0_83] : memref<18x18x128xf32, #tpu.memory_space<vmem>>, vector<16x16x128xf32>
    %c0_84 = arith.constant 0 : index
    %c1_85 = arith.constant 1 : index
    %c0_86 = arith.constant 0 : index
    %70 = vector.load %arg6[%c0_84, %c1_85, %c0_86] : memref<18x18x128xf32, #tpu.memory_space<vmem>>, vector<16x16x128xf32>
    %c0_87 = arith.constant 0 : index
    %c2_88 = arith.constant 2 : index
    %c0_89 = arith.constant 0 : index
    %71 = vector.load %arg6[%c0_87, %c2_88, %c0_89] : memref<18x18x128xf32, #tpu.memory_space<vmem>>, vector<16x16x128xf32>
    %72 = tpu.concatenate %69, %70, %71 in 2 : vector<16x16x128xf32>, vector<16x16x128xf32>, vector<16x16x128xf32> -> vector<16x16x384xf32>
    %73 = arith.truncf %72 : vector<16x16x384xf32> to vector<16x16x384xbf16>
    %74 = vector.shape_cast %73 : vector<16x16x384xbf16> to vector<256x384xbf16>
    %c0_90 = arith.constant 0 : index
    %c0_91 = arith.constant 0 : index
    %c0_92 = arith.constant 0 : index
    %75 = vector.load %arg3[%c0_90, %c0_91, %c0_92] : memref<3x384x128xbf16, #tpu.memory_space<vmem>>, vector<1x384x128xbf16>
    %76 = vector.shape_cast %75 : vector<1x384x128xbf16> to vector<384x128xbf16>
    %cst_93 = arith.constant dense<0.000000e+00> : vector<256x128xf32>
    %77 = tpu.matmul %74, %76, %cst_93 {dimension_numbers = #tpu.dot_dimension_numbers<[1], [0], [0], [1], [0, 0, 1, 1], [], []>} : vector<256x384xbf16>, vector<384x128xbf16>, vector<256x128xf32> -> vector<256x128xf32>
    %c0_94 = arith.constant 0 : index
    %c0_95 = arith.constant 0 : index
    %78 = vector.load %arg5[%c0_94, %c0_95] : memref<256x128xf32, #tpu.memory_space<vmem>>, vector<256x128xf32>
    tpu.vector_store %arg5[%c0_94, %c0_95], %77 {strides = array<i32>} : memref<256x128xf32, #tpu.memory_space<vmem>>, vector<256x128xf32>,
    %c1_96 = arith.constant 1 : index
    %c0_97 = arith.constant 0 : index
    %c0_98 = arith.constant 0 : index
    %79 = vector.load %arg6[%c1_96, %c0_97, %c0_98] : memref<18x18x128xf32, #tpu.memory_space<vmem>>, vector<16x16x128xf32>
    %c1_99 = arith.constant 1 : index
    %c1_100 = arith.constant 1 : index
    %c0_101 = arith.constant 0 : index
    %80 = vector.load %arg6[%c1_99, %c1_100, %c0_101] : memref<18x18x128xf32, #tpu.memory_space<vmem>>, vector<16x16x128xf32>
    %c1_102 = arith.constant 1 : index
    %c2_103 = arith.constant 2 : index
    %c0_104 = arith.constant 0 : index
    %81 = vector.load %arg6[%c1_102, %c2_103, %c0_104] : memref<18x18x128xf32, #tpu.memory_space<vmem>>, vector<16x16x128xf32>
    %82 = tpu.concatenate %79, %80, %81 in 2 : vector<16x16x128xf32>, vector<16x16x128xf32>, vector<16x16x128xf32> -> vector<16x16x384xf32>
    %83 = arith.truncf %82 : vector<16x16x384xf32> to vector<16x16x384xbf16>
    %84 = vector.shape_cast %83 : vector<16x16x384xbf16> to vector<256x384xbf16>
    %c1_105 = arith.constant 1 : index
    %c0_106 = arith.constant 0 : index
    %c0_107 = arith.constant 0 : index
    %85 = vector.load %arg3[%c1_105, %c0_106, %c0_107] : memref<3x384x128xbf16, #tpu.memory_space<vmem>>, vector<1x384x128xbf16>
    %86 = vector.shape_cast %85 : vector<1x384x128xbf16> to vector<384x128xbf16>
    %cst_108 = arith.constant dense<0.000000e+00> : vector<256x128xf32>
    %87 = tpu.matmul %84, %86, %cst_108 {dimension_numbers = #tpu.dot_dimension_numbers<[1], [0], [0], [1], [0, 0, 1, 1], [], []>} : vector<256x384xbf16>, vector<384x128xbf16>, vector<256x128xf32> -> vector<256x128xf32>
    %c0_109 = arith.constant 0 : index
    %c0_110 = arith.constant 0 : index
    %88 = vector.load %arg5[%c0_109, %c0_110] : memref<256x128xf32, #tpu.memory_space<vmem>>, vector<256x128xf32>
    %89 = arith.addf %88, %87 : vector<256x128xf32>
    %c0_111 = arith.constant 0 : index
    %c0_112 = arith.constant 0 : index
    %90 = vector.load %arg5[%c0_111, %c0_112] : memref<256x128xf32, #tpu.memory_space<vmem>>, vector<256x128xf32>
    tpu.vector_store %arg5[%c0_111, %c0_112], %89 {strides = array<i32>} : memref<256x128xf32, #tpu.memory_space<vmem>>, vector<256x128xf32>,
    %c2_113 = arith.constant 2 : index
    %c0_114 = arith.constant 0 : index
    %c0_115 = arith.constant 0 : index
    %91 = vector.load %arg6[%c2_113, %c0_114, %c0_115] : memref<18x18x128xf32, #tpu.memory_space<vmem>>, vector<16x16x128xf32>
    %c2_116 = arith.constant 2 : index
    %c1_117 = arith.constant 1 : index
    %c0_118 = arith.constant 0 : index
    %92 = vector.load %arg6[%c2_116, %c1_117, %c0_118] : memref<18x18x128xf32, #tpu.memory_space<vmem>>, vector<16x16x128xf32>
    %c2_119 = arith.constant 2 : index
    %c2_120 = arith.constant 2 : index
    %c0_121 = arith.constant 0 : index
    %93 = vector.load %arg6[%c2_119, %c2_120, %c0_121] : memref<18x18x128xf32, #tpu.memory_space<vmem>>, vector<16x16x128xf32>
    %94 = tpu.concatenate %91, %92, %93 in 2 : vector<16x16x128xf32>, vector<16x16x128xf32>, vector<16x16x128xf32> -> vector<16x16x384xf32>
    %95 = arith.truncf %94 : vector<16x16x384xf32> to vector<16x16x384xbf16>
    %96 = vector.shape_cast %95 : vector<16x16x384xbf16> to vector<256x384xbf16>
    %c2_122 = arith.constant 2 : index
    %c0_123 = arith.constant 0 : index
    %c0_124 = arith.constant 0 : index
    %97 = vector.load %arg3[%c2_122, %c0_123, %c0_124] : memref<3x384x128xbf16, #tpu.memory_space<vmem>>, vector<1x384x128xbf16>
    %98 = vector.shape_cast %97 : vector<1x384x128xbf16> to vector<384x128xbf16>
    %cst_125 = arith.constant dense<0.000000e+00> : vector<256x128xf32>
    %99 = tpu.matmul %96, %98, %cst_125 {dimension_numbers = #tpu.dot_dimension_numbers<[1], [0], [0], [1], [0, 0, 1, 1], [], []>} : vector<256x384xbf16>, vector<384x128xbf16>, vector<256x128xf32> -> vector<256x128xf32>
    %c0_126 = arith.constant 0 : index
    %c0_127 = arith.constant 0 : index
    %100 = vector.load %arg5[%c0_126, %c0_127] : memref<256x128xf32, #tpu.memory_space<vmem>>, vector<256x128xf32>
    %101 = arith.addf %100, %99 : vector<256x128xf32>
    %c0_128 = arith.constant 0 : index
    %c0_129 = arith.constant 0 : index
    %102 = vector.load %arg5[%c0_128, %c0_129] : memref<256x128xf32, #tpu.memory_space<vmem>>, vector<256x128xf32>
    tpu.vector_store %arg5[%c0_128, %c0_129], %101 {strides = array<i32>} : memref<256x128xf32, #tpu.memory_space<vmem>>, vector<256x128xf32>,
    %c0_130 = arith.constant 0 : index
    %c0_131 = arith.constant 0 : index
    %103 = vector.load %arg5[%c0_130, %c0_131] : memref<256x128xf32, #tpu.memory_space<vmem>>, vector<256x128xf32>
    %cst_132 = arith.constant dense<0.000000e+00> : vector<128xf32>
    %104 = vector.multi_reduction <add>, %103, %cst_132 [0] : vector<256x128xf32> to vector<128xf32>
    %105 = vector.shape_cast %104 : vector<128xf32> to vector<1x128xf32>
    %cst_133 = arith.constant 2.560000e+02 : f32
    %106 = vector.broadcast %cst_133 : f32 to vector<1x128xf32>
    %107 = arith.divf %105, %106 : vector<1x128xf32>
    %108 = vector.broadcast %107 : vector<1x128xf32> to vector<256x128xf32>
    %109 = arith.subf %103, %108 : vector<256x128xf32>
    %110 = arith.mulf %109, %109 : vector<256x128xf32>
    %cst_134 = arith.constant dense<0.000000e+00> : vector<128xf32>
    %111 = vector.multi_reduction <add>, %110, %cst_134 [0] : vector<256x128xf32> to vector<128xf32>
    %112 = vector.shape_cast %111 : vector<128xf32> to vector<1x128xf32>
    %cst_135 = arith.constant 2.560000e+02 : f32
    %113 = vector.broadcast %cst_135 : f32 to vector<1x128xf32>
    %114 = arith.divf %112, %113 : vector<1x128xf32>
    %cst_136 = arith.constant 9.99999974E-6 : f32
    %115 = vector.broadcast %cst_136 : f32 to vector<1x128xf32>
    %116 = arith.addf %114, %115 : vector<1x128xf32>
    %117 = math.rsqrt %116 : vector<1x128xf32>
    %118 = vector.broadcast %117 : vector<1x128xf32> to vector<256x128xf32>
    %119 = arith.mulf %109, %118 : vector<256x128xf32>
    %c0_137 = arith.constant 0 : index
    %c1_138 = arith.constant 1 : index
    %c1_139 = arith.constant 1 : index
    %c0_140 = arith.constant 0 : index
    %120 = vector.load %arg1[%c0_137, %c1_138, %c1_139, %c0_140] : memref<1x18x18x128xbf16, #tpu.memory_space<vmem>>, vector<1x16x16x128xbf16>
    %121 = vector.shape_cast %120 : vector<1x16x16x128xbf16> to vector<16x16x128xbf16>
    %122 = arith.extf %121 : vector<16x16x128xbf16> to vector<16x16x128xf32>
    %123 = vector.shape_cast %122 : vector<16x16x128xf32> to vector<256x128xf32>
    %124 = arith.addf %123, %119 : vector<256x128xf32>
    %125 = vector.shape_cast %124 : vector<256x128xf32> to vector<1x16x16x128xf32>
    %c0_141 = arith.constant 0 : index
    %c0_142 = arith.constant 0 : index
    %c0_143 = arith.constant 0 : index
    %c0_144 = arith.constant 0 : index
    %126 = vector.load %arg4[%c0_141, %c0_142, %c0_143, %c0_144] : memref<1x16x16x128xf32, #tpu.memory_space<vmem>>, vector<1x16x16x128xf32>
    tpu.vector_store %arg4[%c0_141, %c0_142, %c0_143, %c0_144], %125 {strides = array<i32>} : memref<1x16x16x128xf32, #tpu.memory_space<vmem>>, vector<1x16x16x128xf32>,
    return
  }
  func.func @transform_0(%arg0: i32) -> (i32, i32, i32, i32) {
    %c0_i32 = arith.constant 0 : i32
    %c0_i32_0 = arith.constant 0 : i32
    %c0_i32_1 = arith.constant 0 : i32
    %c0_i32_2 = arith.constant 0 : i32
    return %arg0, %c0_i32, %c0_i32_0, %c0_i32_1 : i32, i32, i32, i32
  }
  func.func @transform_1(%arg0: i32) -> (i32, i32, i32) {
    %c0_i32 = arith.constant 0 : i32
    %c0_i32_0 = arith.constant 0 : i32
    %c0_i32_1 = arith.constant 0 : i32
    %c0_i32_2 = arith.constant 0 : i32
    return %c0_i32, %c0_i32_0, %c0_i32_1 : i32, i32, i32
  }
  func.func @transform_2(%arg0: i32) -> (i32, i32, i32) {
    %c0_i32 = arith.constant 0 : i32
    %c0_i32_0 = arith.constant 0 : i32
    %c0_i32_1 = arith.constant 0 : i32
    %c0_i32_2 = arith.constant 0 : i32
    return %c0_i32, %c0_i32_0, %c0_i32_1 : i32, i32, i32
  }
  func.func @transform_3(%arg0: i32) -> (i32, i32, i32, i32) {
    %c0_i32 = arith.constant 0 : i32
    %c0_i32_0 = arith.constant 0 : i32
    %c0_i32_1 = arith.constant 0 : i32
    %c0_i32_2 = arith.constant 0 : i32
    return %arg0, %c0_i32, %c0_i32_0, %c0_i32_1 : i32, i32, i32, i32
  }
}

</mosaic_0001>

<llo_original>
// kernel: residual_block_forward.1
$region0: #{residual_block_forward.1}
  #allocation0 [shape = 'u32[]', space=smem, size = 0x4, offset = 0x4, fixed_abs, tag = 'smem constant byte address 0x4 - core index']
  #allocation1 [shape = 'u32[144,128]{1,0:T(1,128)}', space=vmem, size = 0x12000, scoped, tag = 'internal scratch']
  #allocation2 [shape = 'f32[256,128]{1,0:T(8,128)}', space=vmem, size = 0x20000, scoped, tag = 'scratch operand']
  #allocation3 [shape = 'f32[18,18,128]{2,1,0:T(8,128)}', space=vmem, size = 0x36000, scoped, tag = 'scratch operand']
  %s0 = inlined_call_operand.vmem [shape: bf16[2,18,18,128], index: 0, kind: input, shape index: {}]
  %s1 = inlined_call_operand.vmem [shape: bf16[3,384,128], index: 1, kind: input, shape index: {}]
  %s2 = inlined_call_operand.vmem [shape: bf16[3,384,128], index: 2, kind: input, shape index: {}]
  %s3 = inlined_call_operand.hbm [shape: f32[2,16,16,128], index: 3, kind: output, shape index: {}]
  %s4 = sld [smem:[#allocation0]]
  $region45: #{residual_block_forward.1} parent=0
    _
  %s6 = ssub.s32 1, %s4
  %s7 = scalar_select 0, %s6, %s4
  $region1: #{residual_block_forward.1} parent=0
    #allocation4 [shape = 'u8[262144]{0}', space=vmem, size = 0x40000, scoped, tag = 'output window, operand 0']
    #allocation5 [shape = 's32[2]{0}', space=sflag, size = 0x8, scoped, tag = 'scoped memory for residual_block_forward.1']
    %8 = vsyncpa [#allocation5], 0
    %s9 = scalar_lea.sflag [#allocation5], 1
    %10 = vsyncpa %s9, 0
    loop: start=0, step=1, limit=4
    $region2: #{residual_block_forward.1} parent=1 // loop_pre_header
      _
    $region3: #{residual_block_forward.1} parent=1 // loop_header
      %s12 = sphi 0, %s16
      %p13 = scmp.ge.s32.totalorder %s12, 4
      %s22 = sphi 0, %s24
      %s25 = sphi 0, %s22
      %s26 = sphi 0, %s25
      %s42 = sphi 0, %s26
      %s46 = sphi 0, %s46
      %s48 = sphi 0, %s46
      %s49 = sphi 0, %s48
      %s63 = sphi 0, %s49
      %s67 = sphi 0, %s67
      %s69 = sphi 0, %s67
      %s70 = sphi 0, %s69
      %s84 = sphi 0, %s70
      %s90 = sphi 0, %s92
      %s93 = sphi 0, %s90
      %s94 = sphi 0, %s93
      %s110 = sphi 0, %s94
    $region4: #{residual_block_forward.1} parent=1 // loop_header_branch
      %15 = sbr.rel (%p13) target = $region8
    $region5: #{residual_block_forward.1} parent=1 // loop_body
      %s17 = ssub.s32 %s12, 1
      %s18 = ssub.s32 %s12, 2
      %s19 = sadd.s32 %s12, 1
      %s20 = ssub.s32 %s12, %s19
      %p21 = scmp.eq.s32.totalorder %s20, 0
      %s23 = sadd.s32 %s22, 1
      %s24 = scalar_select %p21, %s22, %s23
      %p27 = pneg %p21
      %p28 = scmp.eq.s32.totalorder %s12, 1
      %p29 = por %p27, %p28
      %p30 = scmp.ne.s32.totalorder %s22, %s25
      %p31 = scmp.eq.s32.totalorder %s12, 0
      %p32 = por %p30, %p31
      %p33 = scmp.ne.s32.totalorder %s22, %s25
      %p34 = scmp.eq.s32.totalorder %s17, 1
      %p35 = por %p33, %p34
      %p36 = scmp.ne.s32.totalorder %s25, %s26
      %p37 = scmp.eq.s32.totalorder %s17, 0
      %p38 = por %p36, %p37
      %p39 = scmp.ne.s32.totalorder %s25, %s26
      %p40 = scmp.eq.s32.totalorder %s18, 1
      %p41 = por %p39, %p40
      %p43 = scmp.ne.s32.totalorder %s26, %s42
      %p44 = scmp.eq.s32.totalorder %s18, 0
      %p45 = por %p43, %p44
      %s47 = sadd.s32 %s46, 1
      %p50 = scmp.eq.s32.totalorder %s12, 1
      %p51 = scmp.ne.s32.totalorder %s46, %s48
      %p52 = scmp.eq.s32.totalorder %s12, 0
      %p53 = por %p51, %p52
      %p54 = scmp.ne.s32.totalorder %s46, %s48
      %p55 = scmp.eq.s32.totalorder %s17, 1
      %p56 = por %p54, %p55
      %p57 = scmp.ne.s32.totalorder %s48, %s49
      %p58 = scmp.eq.s32.totalorder %s17, 0
      %p59 = por %p57, %p58
      %p60 = scmp.ne.s32.totalorder %s48, %s49
      %p61 = scmp.eq.s32.totalorder %s18, 1
      %p62 = por %p60, %p61
      %p64 = scmp.ne.s32.totalorder %s49, %s63
      %p65 = scmp.eq.s32.totalorder %s18, 0
      %p66 = por %p64, %p65
      %s68 = sadd.s32 %s67, 1
      %p71 = scmp.eq.s32.totalorder %s12, 1
      %p72 = scmp.ne.s32.totalorder %s67, %s69
      %p73 = scmp.eq.s32.totalorder %s12, 0
      %p74 = por %p72, %p73
      %p75 = scmp.ne.s32.totalorder %s67, %s69
      %p76 = scmp.eq.s32.totalorder %s17, 1
      %p77 = por %p75, %p76
      %p78 = scmp.ne.s32.totalorder %s69, %s70
      %p79 = scmp.eq.s32.totalorder %s17, 0
      %p80 = por %p78, %p79
      %p81 = scmp.ne.s32.totalorder %s69, %s70
      %p82 = scmp.eq.s32.totalorder %s18, 1
      %p83 = por %p81, %p82
      %p85 = scmp.ne.s32.totalorder %s70, %s84
      %p86 = scmp.eq.s32.totalorder %s18, 0
      %p87 = por %p85, %p86
      %s88 = ssub.s32 %s12, %s19
      %p89 = scmp.eq.s32.totalorder %s88, 0
      %s91 = sadd.s32 %s90, 1
      %s92 = scalar_select %p89, %s90, %s91
      %p95 = pneg %p89
      %p96 = scmp.eq.s32.totalorder %s12, 1
      %p97 = por %p95, %p96
      %p98 = scmp.ne.s32.totalorder %s90, %s93
      %p99 = scmp.eq.s32.totalorder %s12, 0
      %p100 = por %p98, %p99
      %p101 = scmp.ne.s32.totalorder %s90, %s93
      %p102 = scmp.eq.s32.totalorder %s17, 1
      %p103 = por %p101, %p102
      %p104 = scmp.ne.s32.totalorder %s93, %s94
      %p105 = scmp.eq.s32.totalorder %s17, 0
      %p106 = por %p104, %p105
      %p107 = scmp.ne.s32.totalorder %s93, %s94
      %p108 = scmp.eq.s32.totalorder %s18, 1
      %p109 = por %p107, %p108
      %p111 = scmp.ne.s32.totalorder %s94, %s110
      %p112 = scmp.eq.s32.totalorder %s18, 0
      %p113 = por %p111, %p112
      %p114 = scmp.le.s32.totalorder 1, %s12
      %p115 = scmp.lt.s32.totalorder %s12, 3
      %p116 = pnand %p114, %p115
      %p117 = pneg %p116
      // Predicated region
      $region9: #{residual_block_forward.1} parent=5 // pred_check
        _
      $region10: #{residual_block_forward.1} parent=5 // pred_check_branch
        %119 = sbr.rel (%p116) target = $region12
      $region11: #{residual_block_forward.1} parent=5 // pred_region
        %s120 = ssub.s32 %s12, 1
        // Predicated region
        $region13: #{residual_block_forward.1} parent=11 // pred_check
          %p121 = pneg %p59
        $region14: #{residual_block_forward.1} parent=11 // pred_check_branch
          %123 = sbr.rel (%p121) target = $region16
        $region15: #{residual_block_forward.1} parent=11 // pred_region
          _
        $region16: #{residual_block_forward.1} parent=11 // pred_fallthru
          _
        // Predicated region
        $region17: #{residual_block_forward.1} parent=11 // pred_check
          %p124 = pneg %p80
        $region18: #{residual_block_forward.1} parent=11 // pred_check_branch
          %126 = sbr.rel (%p124) target = $region20
        $region19: #{residual_block_forward.1} parent=11 // pred_region
          _
        $region20: #{residual_block_forward.1} parent=11 // pred_fallthru
          _
      $region12: #{residual_block_forward.1} parent=5 // pred_fallthru
        _
      %p127 = scmp.lt.s32.totalorder %s12, 2
      // Predicated region
      $region21: #{residual_block_forward.1} parent=5 // pred_check
        %p128 = pneg %p127
      $region22: #{residual_block_forward.1} parent=5 // pred_check_branch
        %130 = sbr.rel (%p128) target = $region24
      $region23: #{residual_block_forward.1} parent=5 // pred_region
        // Predicated region
        $region25: #{residual_block_forward.1} parent=23 // pred_check
          %p131 = pneg %p32
        $region26: #{residual_block_forward.1} parent=23 // pred_check_branch
          %133 = sbr.rel (%p131) target = $region28
        $region27: #{residual_block_forward.1} parent=23 // pred_region
          %p134 = scmp.lt.s32.totalorder %s12, 1
          %s135 = scalar_select %p134, %s12, 1
          %s136 = smul.addr %s135, 54
          %s137 = smul.addr %s136, 4
          %s138 = scalar_lea.vmem %s0, %s137
        $region28: #{residual_block_forward.1} parent=23 // pred_fallthru
          _
      $region24: #{residual_block_forward.1} parent=5 // pred_fallthru
        _
      %p139 = scmp.le.s32.totalorder 1, %s12
      %p140 = scmp.lt.s32.totalorder %s12, 3
      %p141 = pnand %p139, %p140
      %p142 = pneg %p141
      // Predicated region
      $region29: #{residual_block_forward.1} parent=5 // pred_check
        _
      $region30: #{residual_block_forward.1} parent=5 // pred_check_branch
        %144 = sbr.rel (%p141) target = $region32
      $region31: #{residual_block_forward.1} parent=5 // pred_region
        %s145 = ssub.s32 %s12, 1
        %p146 = scmp.lt.s32.totalorder %s17, 1
        %s147 = scalar_select %p146, %s17, 1
        %s148 = smul.addr %s147, 54
        %s149 = smul.addr %s148, 4
        %s150 = scalar_lea.vmem %s0, %s149
        %p151 = pneg %p38
        %p152 = pneg %p35
        %p153 = pneg %p59
        %p154 = pneg %p56
        %p155 = pneg %p80
        %p156 = pneg %p77
        %p157 = pneg %p106
        %p158 = pneg %p103
        %s159 = sand.u32 %s93, 1
        %s160 = scalar_lea.sflag [#allocation5], %s159
        %s161 = sand.u32 %s93, 1
        %s162 = smul.addr %s161, 256
        %s163 = scalar_lea.vmem [#allocation4], %s162
        %p164 = scmp.lt.s32.totalorder %s17, 1
        %s165 = scalar_select %p164, %s17, 1
        %s166 = smul.addr %s165, 54
        %s167 = smul.addr %s166, 4
        %s168 = scalar_lea.vmem %s0, %s167
        %v170 = vld [vmem:[%s168] sm:$0xf]
        %v171 = vld [vmem:[%s168 + $0x4] sm:$0xf]
        %v172 = vld [vmem:[%s168 + $0xc] sm:$0xf]
        %v173 = vld [vmem:[%s168 + $0x10] sm:$0xf]
        %v174 = vld [vmem:[%s168 + $0x18] sm:$0xf]
        %v175 = vld [vmem:[%s168 + $0x1c] sm:$0xf]
        %v176 = vld [vmem:[%s168 + $0x24] sm:$0xf]
        %v177 = vld [vmem:[%s168 + $0x28] sm:$0xf]
        %v178 = vld [vmem:[%s168 + $0x30] sm:$0xf]
        %v179 = vld [vmem:[%s168 + $0x34] sm:$0xf]
        %v180 = vld [vmem:[%s168 + $0x3c] sm:$0xf]
        %v181 = vld [vmem:[%s168 + $0x40] sm:$0xf]
        %v182 = vld [vmem:[%s168 + $0x48] sm:$0xf]
        %v183 = vld [vmem:[%s168 + $0x4c] sm:$0xf]
        %v184 = vld [vmem:[%s168 + $0x54] sm:$0xf]
        %v185 = vld [vmem:[%s168 + $0x58] sm:$0xf]
        %v186 = vld [vmem:[%s168 + $0x60] sm:$0xf]
        %v187 = vld [vmem:[%s168 + $0x64] sm:$0xf]
        %v188 = vld [vmem:[%s168 + $0x6c] sm:$0xf]
        %v189 = vld [vmem:[%s168 + $0x70] sm:$0xf]
        %v190 = vld [vmem:[%s168 + $0x78] sm:$0xf]
        %v191 = vld [vmem:[%s168 + $0x7c] sm:$0xf]
        %v192 = vld [vmem:[%s168 + $0x84] sm:$0xf]
        %v193 = vld [vmem:[%s168 + $0x88] sm:$0xf]
        %v194 = vld [vmem:[%s168 + $0x90] sm:$0xf]
        %v195 = vld [vmem:[%s168 + $0x94] sm:$0xf]
        %v196 = vld [vmem:[%s168 + $0x9c] sm:$0xf]
        %v197 = vld [vmem:[%s168 + $0xa0] sm:$0xf]
        %v198 = vld [vmem:[%s168 + $0xa8] sm:$0xf]
        %v199 = vld [vmem:[%s168 + $0xac] sm:$0xf]
        %v200 = vld [vmem:[%s168 + $0xb4] sm:$0xf]
        %v201 = vld [vmem:[%s168 + $0xb8] sm:$0xf]
        %v202 = vld [vmem:[%s168 + $0x8] sm:$0x1]
        %v203 = vld [vmem:[%s168 + $0x14] sm:$0x1]
        %v204 = vld [vmem:[%s168 + $0x20] sm:$0x1]
        %v205 = vld [vmem:[%s168 + $0x2c] sm:$0x1]
        %v206 = vld [vmem:[%s168 + $0x38] sm:$0x1]
        %v207 = vld [vmem:[%s168 + $0x44] sm:$0x1]
        %v208 = vld [vmem:[%s168 + $0x50] sm:$0x1]
        %v209 = vld [vmem:[%s168 + $0x5c] sm:$0x1]
        %v210 = vld [vmem:[%s168 + $0x68] sm:$0x1]
        %v211 = vld [vmem:[%s168 + $0x74] sm:$0x1]
        %v212 = vld [vmem:[%s168 + $0x80] sm:$0x1]
        %v213 = vld [vmem:[%s168 + $0x8c] sm:$0x1]
        %v214 = vld [vmem:[%s168 + $0x98] sm:$0x1]
        %v215 = vld [vmem:[%s168 + $0xa4] sm:$0x1]
        %v216 = vld [vmem:[%s168 + $0xb0] sm:$0x1]
        %v217 = vld [vmem:[%s168 + $0xbc] sm:$0x1]
        %v218 = vld [vmem:[%s168] sm:$0xe]
        %v219 = vld [vmem:[%s168 + $0xc] sm:$0xe]
        %v220 = vld [vmem:[%s168 + $0x18] sm:$0xe]
        %v221 = vld [vmem:[%s168 + $0x24] sm:$0xe]
        %v222 = vld [vmem:[%s168 + $0x30] sm:$0xe]
        %v223 = vld [vmem:[%s168 + $0x3c] sm:$0xe]
        %v224 = vld [vmem:[%s168 + $0x48] sm:$0xe]
        %v225 = vld [vmem:[%s168 + $0x54] sm:$0xe]
        %v226 = vld [vmem:[%s168 + $0x60] sm:$0xe]
        %v227 = vld [vmem:[%s168 + $0x6c] sm:$0xe]
        %v228 = vld [vmem:[%s168 + $0x78] sm:$0xe]
        %v229 = vld [vmem:[%s168 + $0x84] sm:$0xe]
        %v230 = vld [vmem:[%s168 + $0x90] sm:$0xe]
        %v231 = vld [vmem:[%s168 + $0x9c] sm:$0xe]
        %v232 = vld [vmem:[%s168 + $0xa8] sm:$0xe]
        %v233 = vld [vmem:[%s168 + $0xb4] sm:$0xe]
        %v266 = vunpack.c.l.b16 %v170
        %v267 = vunpack.c.l.b16 %v171
        %v268 = vunpack.c.l.b16 %v172
        %v269 = vunpack.c.l.b16 %v173
        %v270 = vunpack.c.l.b16 %v174
        %v271 = vunpack.c.l.b16 %v175
        %v272 = vunpack.c.l.b16 %v176
        %v273 = vunpack.c.l.b16 %v177
        %v274 = vunpack.c.l.b16 %v178
        %v275 = vunpack.c.l.b16 %v179
        %v276 = vunpack.c.l.b16 %v180
        %v277 = vunpack.c.l.b16 %v181
        %v278 = vunpack.c.l.b16 %v182
        %v279 = vunpack.c.l.b16 %v183
        %v280 = vunpack.c.l.b16 %v184
        %v281 = vunpack.c.l.b16 %v185
        %v282 = vunpack.c.l.b16 %v186
        %v283 = vunpack.c.l.b16 %v187
        %v284 = vunpack.c.l.b16 %v188
        %v285 = vunpack.c.l.b16 %v189
        %v286 = vunpack.c.l.b16 %v190
        %v287 = vunpack.c.l.b16 %v191
        %v288 = vunpack.c.l.b16 %v192
        %v289 = vunpack.c.l.b16 %v193
        %v290 = vunpack.c.l.b16 %v194
        %v291 = vunpack.c.l.b16 %v195
        %v292 = vunpack.c.l.b16 %v196
        %v293 = vunpack.c.l.b16 %v197
        %v294 = vunpack.c.l.b16 %v198
        %v295 = vunpack.c.l.b16 %v199
        %v296 = vunpack.c.l.b16 %v200
        %v297 = vunpack.c.l.b16 %v201
        %v298 = vpack.c.b16 %v267, %v266
        %v299 = vpack.c.b16 %v269, %v268
        %v300 = vpack.c.b16 %v271, %v270
        %v301 = vpack.c.b16 %v273, %v272
        %v302 = vpack.c.b16 %v275, %v274
        %v303 = vpack.c.b16 %v277, %v276
        %v304 = vpack.c.b16 %v279, %v278
        %v305 = vpack.c.b16 %v281, %v280
        %v306 = vpack.c.b16 %v283, %v282
        %v307 = vpack.c.b16 %v285, %v284
        %v308 = vpack.c.b16 %v287, %v286
        %v309 = vpack.c.b16 %v289, %v288
        %v310 = vpack.c.b16 %v291, %v290
        %v311 = vpack.c.b16 %v293, %v292
        %v312 = vpack.c.b16 %v295, %v294
        %v313 = vpack.c.b16 %v297, %v296
        %v346 = vunpack.c.l.b16 %v202
        %v347 = vunpack.c.l.b16 %v203
        %v348 = vunpack.c.l.b16 %v204
        %v349 = vunpack.c.l.b16 %v205
        %v350 = vunpack.c.l.b16 %v206
        %v351 = vunpack.c.l.b16 %v207
        %v352 = vunpack.c.l.b16 %v208
        %v353 = vunpack.c.l.b16 %v209
        %v354 = vunpack.c.l.b16 %v210
        %v355 = vunpack.c.l.b16 %v211
        %v356 = vunpack.c.l.b16 %v212
        %v357 = vunpack.c.l.b16 %v213
        %v358 = vunpack.c.l.b16 %v214
        %v359 = vunpack.c.l.b16 %v215
        %v360 = vunpack.c.l.b16 %v216
        %v361 = vunpack.c.l.b16 %v217
        %v362 = vpack.c.b16 %v346, %v346
        %v363 = vpack.c.b16 %v347, %v347
        %v364 = vpack.c.b16 %v348, %v348
        %v365 = vpack.c.b16 %v349, %v349
        %v366 = vpack.c.b16 %v350, %v350
        %v367 = vpack.c.b16 %v351, %v351
        %v368 = vpack.c.b16 %v352, %v352
        %v369 = vpack.c.b16 %v353, %v353
        %v370 = vpack.c.b16 %v354, %v354
        %v371 = vpack.c.b16 %v355, %v355
        %v372 = vpack.c.b16 %v356, %v356
        %v373 = vpack.c.b16 %v357, %v357
        %v374 = vpack.c.b16 %v358, %v358
        %v375 = vpack.c.b16 %v359, %v359
        %v376 = vpack.c.b16 %v360, %v360
        %v377 = vpack.c.b16 %v361, %v361
        %vm378 = vsmask.f32 7424
        %v380 = vshrl.u32 %v298, 16
        %v382 = vshll.u32 %v298, 16
        %v384 = vrot.slane %v382, 1
        %v385 = vor.u32 %v380, %v384
        %v387 = vshll.u32 %v362, 16
        %v389 = vrot.slane %v387, 1
        %v390 = vsel %vm378, %v385, %v389
        %v392 = vshrl.u32 %v299, 16
        %v394 = vshll.u32 %v299, 16
        %v396 = vrot.slane %v394, 1
        %v397 = vor.u32 %v392, %v396
        %v399 = vshll.u32 %v363, 16
        %v401 = vrot.slane %v399, 1
        %v402 = vsel %vm378, %v397, %v401
        %v404 = vshrl.u32 %v300, 16
        %v406 = vshll.u32 %v300, 16
        %v408 = vrot.slane %v406, 1
        %v409 = vor.u32 %v404, %v408
        %v411 = vshll.u32 %v364, 16
        %v413 = vrot.slane %v411, 1
        %v414 = vsel %vm378, %v409, %v413
        %v416 = vshrl.u32 %v301, 16
        %v418 = vshll.u32 %v301, 16
        %v420 = vrot.slane %v418, 1
        %v421 = vor.u32 %v416, %v420
        %v423 = vshll.u32 %v365, 16
        %v425 = vrot.slane %v423, 1
        %v426 = vsel %vm378, %v421, %v425
        %v428 = vshrl.u32 %v302, 16
        %v430 = vshll.u32 %v302, 16
        %v432 = vrot.slane %v430, 1
        %v433 = vor.u32 %v428, %v432
        %v435 = vshll.u32 %v366, 16
        %v437 = vrot.slane %v435, 1
        %v438 = vsel %vm378, %v433, %v437
        %v440 = vshrl.u32 %v303, 16
        %v442 = vshll.u32 %v303, 16
        %v444 = vrot.slane %v442, 1
        %v445 = vor.u32 %v440, %v444
        %v447 = vshll.u32 %v367, 16
        %v449 = vrot.slane %v447, 1
        %v450 = vsel %vm378, %v445, %v449
        %v452 = vshrl.u32 %v304, 16
        %v454 = vshll.u32 %v304, 16
        %v456 = vrot.slane %v454, 1
        %v457 = vor.u32 %v452, %v456
        %v459 = vshll.u32 %v368, 16
        %v461 = vrot.slane %v459, 1
        %v462 = vsel %vm378, %v457, %v461
        %v464 = vshrl.u32 %v305, 16
        %v466 = vshll.u32 %v305, 16
        %v468 = vrot.slane %v466, 1
        %v469 = vor.u32 %v464, %v468
        %v471 = vshll.u32 %v369, 16
        %v473 = vrot.slane %v471, 1
        %v474 = vsel %vm378, %v469, %v473
        %v476 = vshrl.u32 %v306, 16
        %v478 = vshll.u32 %v306, 16
        %v480 = vrot.slane %v478, 1
        %v481 = vor.u32 %v476, %v480
        %v483 = vshll.u32 %v370, 16
        %v485 = vrot.slane %v483, 1
        %v486 = vsel %vm378, %v481, %v485
        %v488 = vshrl.u32 %v307, 16
        %v490 = vshll.u32 %v307, 16
        %v492 = vrot.slane %v490, 1
        %v493 = vor.u32 %v488, %v492
        %v495 = vshll.u32 %v371, 16
        %v497 = vrot.slane %v495, 1
        %v498 = vsel %vm378, %v493, %v497
        %v500 = vshrl.u32 %v308, 16
        %v502 = vshll.u32 %v308, 16
        %v504 = vrot.slane %v502, 1
        %v505 = vor.u32 %v500, %v504
        %v507 = vshll.u32 %v372, 16
        %v509 = vrot.slane %v507, 1
        %v510 = vsel %vm378, %v505, %v509
        %v512 = vshrl.u32 %v309, 16
        %v514 = vshll.u32 %v309, 16
        %v516 = vrot.slane %v514, 1
        %v517 = vor.u32 %v512, %v516
        %v519 = vshll.u32 %v373, 16
        %v521 = vrot.slane %v519, 1
        %v522 = vsel %vm378, %v517, %v521
        %v524 = vshrl.u32 %v310, 16
        %v526 = vshll.u32 %v310, 16
        %v528 = vrot.slane %v526, 1
        %v529 = vor.u32 %v524, %v528
        %v531 = vshll.u32 %v374, 16
        %v533 = vrot.slane %v531, 1
        %v534 = vsel %vm378, %v529, %v533
        %v536 = vshrl.u32 %v311, 16
        %v538 = vshll.u32 %v311, 16
        %v540 = vrot.slane %v538, 1
        %v541 = vor.u32 %v536, %v540
        %v543 = vshll.u32 %v375, 16
        %v545 = vrot.slane %v543, 1
        %v546 = vsel %vm378, %v541, %v545
        %v548 = vshrl.u32 %v312, 16
        %v550 = vshll.u32 %v312, 16
        %v552 = vrot.slane %v550, 1
        %v553 = vor.u32 %v548, %v552
        %v555 = vshll.u32 %v376, 16
        %v557 = vrot.slane %v555, 1
        %v558 = vsel %vm378, %v553, %v557
        %v560 = vshrl.u32 %v313, 16
        %v562 = vshll.u32 %v313, 16
        %v564 = vrot.slane %v562, 1
        %v565 = vor.u32 %v560, %v564
        %v567 = vshll.u32 %v377, 16
        %v569 = vrot.slane %v567, 1
        %v570 = vsel %vm378, %v565, %v569
        %v603 = vunpack.c.l.b16 %v218
        %v604 = vunpack.c.l.b16 %v219
        %v605 = vunpack.c.l.b16 %v220
        %v606 = vunpack.c.l.b16 %v221
        %v607 = vunpack.c.l.b16 %v222
        %v608 = vunpack.c.l.b16 %v223
        %v609 = vunpack.c.l.b16 %v224
        %v610 = vunpack.c.l.b16 %v225
        %v611 = vunpack.c.l.b16 %v226
        %v612 = vunpack.c.l.b16 %v227
        %v613 = vunpack.c.l.b16 %v228
        %v614 = vunpack.c.l.b16 %v229
        %v615 = vunpack.c.l.b16 %v230
        %v616 = vunpack.c.l.b16 %v231
        %v617 = vunpack.c.l.b16 %v232
        %v618 = vunpack.c.l.b16 %v233
        %v619 = vpack.c.b16 %v267, %v603
        %v620 = vpack.c.b16 %v269, %v604
        %v621 = vpack.c.b16 %v271, %v605
        %v622 = vpack.c.b16 %v273, %v606
        %v623 = vpack.c.b16 %v275, %v607
        %v624 = vpack.c.b16 %v277, %v608
        %v625 = vpack.c.b16 %v279, %v609
        %v626 = vpack.c.b16 %v281, %v610
        %v627 = vpack.c.b16 %v283, %v611
        %v628 = vpack.c.b16 %v285, %v612
        %v629 = vpack.c.b16 %v287, %v613
        %v630 = vpack.c.b16 %v289, %v614
        %v631 = vpack.c.b16 %v291, %v615
        %v632 = vpack.c.b16 %v293, %v616
        %v633 = vpack.c.b16 %v295, %v617
        %v634 = vpack.c.b16 %v297, %v618
        %vm635 = vcmask 1046528
        %v636 = vrot.slane %v619, 1
        %v637 = vrot.slane %v362, 1
        %v638 = vsel %vm635, %v636, %v637
        %v639 = vrot.slane %v620, 1
        %v640 = vrot.slane %v363, 1
        %v641 = vsel %vm635, %v639, %v640
        %v642 = vrot.slane %v621, 1
        %v643 = vrot.slane %v364, 1
        %v644 = vsel %vm635, %v642, %v643
        %v645 = vrot.slane %v622, 1
        %v646 = vrot.slane %v365, 1
        %v647 = vsel %vm635, %v645, %v646
        %v648 = vrot.slane %v623, 1
        %v649 = vrot.slane %v366, 1
        %v650 = vsel %vm635, %v648, %v649
        %v651 = vrot.slane %v624, 1
        %v652 = vrot.slane %v367, 1
        %v653 = vsel %vm635, %v651, %v652
        %v654 = vrot.slane %v625, 1
        %v655 = vrot.slane %v368, 1
        %v656 = vsel %vm635, %v654, %v655
        %v657 = vrot.slane %v626, 1
        %v658 = vrot.slane %v369, 1
        %v659 = vsel %vm635, %v657, %v658
        %v660 = vrot.slane %v627, 1
        %v661 = vrot.slane %v370, 1
        %v662 = vsel %vm635, %v660, %v661
        %v663 = vrot.slane %v628, 1
        %v664 = vrot.slane %v371, 1
        %v665 = vsel %vm635, %v663, %v664
        %v666 = vrot.slane %v629, 1
        %v667 = vrot.slane %v372, 1
        %v668 = vsel %vm635, %v666, %v667
        %v669 = vrot.slane %v630, 1
        %v670 = vrot.slane %v373, 1
        %v671 = vsel %vm635, %v669, %v670
        %v672 = vrot.slane %v631, 1
        %v673 = vrot.slane %v374, 1
        %v674 = vsel %vm635, %v672, %v673
        %v675 = vrot.slane %v632, 1
        %v676 = vrot.slane %v375, 1
        %v677 = vsel %vm635, %v675, %v676
        %v678 = vrot.slane %v633, 1
        %v679 = vrot.slane %v376, 1
        %v680 = vsel %vm635, %v678, %v679
        %v681 = vrot.slane %v634, 1
        %v682 = vrot.slane %v377, 1
        %v683 = vsel %vm635, %v681, %v682
        %v700 = vld [vmem:[%s1] sm:$0xf]
        %v701 = vld [vmem:[%s1 + $0x4] sm:$0xf]
        %v702 = vld [vmem:[%s1 + $0x8] sm:$0xf]
        %v703 = vld [vmem:[%s1 + $0xc] sm:$0xf]
        %v704 = vld [vmem:[%s1 + $0x10] sm:$0xf]
        %v705 = vld [vmem:[%s1 + $0x14] sm:$0xf]
        %v706 = vld [vmem:[%s1 + $0x18] sm:$0xf]
        %v707 = vld [vmem:[%s1 + $0x1c] sm:$0xf]
        %v708 = vld [vmem:[%s1 + $0x20] sm:$0xf]
        %v709 = vld [vmem:[%s1 + $0x24] sm:$0xf]
        %v710 = vld [vmem:[%s1 + $0x28] sm:$0xf]
        %v711 = vld [vmem:[%s1 + $0x2c] sm:$0xf]
        %v712 = vld [vmem:[%s1 + $0x30] sm:$0xf]
        %v713 = vld [vmem:[%s1 + $0x34] sm:$0xf]
        %v714 = vld [vmem:[%s1 + $0x38] sm:$0xf]
        %v715 = vld [vmem:[%s1 + $0x3c] sm:$0xf]
        %v716 = vld [vmem:[%s1 + $0x40] sm:$0xf]
        %v717 = vld [vmem:[%s1 + $0x44] sm:$0xf]
        %v718 = vld [vmem:[%s1 + $0x48] sm:$0xf]
        %v719 = vld [vmem:[%s1 + $0x4c] sm:$0xf]
        %v720 = vld [vmem:[%s1 + $0x50] sm:$0xf]
        %v721 = vld [vmem:[%s1 + $0x54] sm:$0xf]
        %v722 = vld [vmem:[%s1 + $0x58] sm:$0xf]
        %v723 = vld [vmem:[%s1 + $0x5c] sm:$0xf]
        %v724 = vld [vmem:[%s1 + $0x60] sm:$0xf]
        %v725 = vld [vmem:[%s1 + $0x64] sm:$0xf]
        %v726 = vld [vmem:[%s1 + $0x68] sm:$0xf]
        %v727 = vld [vmem:[%s1 + $0x6c] sm:$0xf]
        %v728 = vld [vmem:[%s1 + $0x70] sm:$0xf]
        %v729 = vld [vmem:[%s1 + $0x74] sm:$0xf]
        %v730 = vld [vmem:[%s1 + $0x78] sm:$0xf]
        %v731 = vld [vmem:[%s1 + $0x7c] sm:$0xf]
        %v732 = vld [vmem:[%s1 + $0x80] sm:$0xf]
        %v733 = vld [vmem:[%s1 + $0x84] sm:$0xf]
        %v734 = vld [vmem:[%s1 + $0x88] sm:$0xf]
        %v735 = vld [vmem:[%s1 + $0x8c] sm:$0xf]
        %v736 = vld [vmem:[%s1 + $0x90] sm:$0xf]
        %v737 = vld [vmem:[%s1 + $0x94] sm:$0xf]
        %v738 = vld [vmem:[%s1 + $0x98] sm:$0xf]
        %v739 = vld [vmem:[%s1 + $0x9c] sm:$0xf]
        %v740 = vld [vmem:[%s1 + $0xa0] sm:$0xf]
        %v741 = vld [vmem:[%s1 + $0xa4] sm:$0xf]
        %v742 = vld [vmem:[%s1 + $0xa8] sm:$0xf]
        %v743 = vld [vmem:[%s1 + $0xac] sm:$0xf]
        %v744 = vld [vmem:[%s1 + $0xb0] sm:$0xf]
        %v745 = vld [vmem:[%s1 + $0xb4] sm:$0xf]
        %v746 = vld [vmem:[%s1 + $0xb8] sm:$0xf]
        %v747 = vld [vmem:[%s1 + $0xbc] sm:$0xf]
        %v796 = vunpack.c.l.b16 %v700
        %v797 = vunpack.c.l.b16 %v701
        %v798 = vunpack.c.l.b16 %v702
        %v799 = vunpack.c.l.b16 %v703
        %v800 = vunpack.c.l.b16 %v704
        %v801 = vunpack.c.l.b16 %v705
        %v802 = vunpack.c.l.b16 %v706
        %v803 = vunpack.c.l.b16 %v707
        %v804 = vunpack.c.l.b16 %v708
        %v805 = vunpack.c.l.b16 %v709
        %v806 = vunpack.c.l.b16 %v710
        %v807 = vunpack.c.l.b16 %v711
        %v808 = vunpack.c.l.b16 %v712
        %v809 = vunpack.c.l.b16 %v713
        %v810 = vunpack.c.l.b16 %v714
        %v811 = vunpack.c.l.b16 %v715
        %v812 = vunpack.c.l.b16 %v716
        %v813 = vunpack.c.l.b16 %v717
        %v814 = vunpack.c.l.b16 %v718
        %v815 = vunpack.c.l.b16 %v719
        %v816 = vunpack.c.l.b16 %v720
        %v817 = vunpack.c.l.b16 %v721
        %v818 = vunpack.c.l.b16 %v722
        %v819 = vunpack.c.l.b16 %v723
        %v820 = vunpack.c.l.b16 %v724
        %v821 = vunpack.c.l.b16 %v725
        %v822 = vunpack.c.l.b16 %v726
        %v823 = vunpack.c.l.b16 %v727
        %v824 = vunpack.c.l.b16 %v728
        %v825 = vunpack.c.l.b16 %v729
        %v826 = vunpack.c.l.b16 %v730
        %v827 = vunpack.c.l.b16 %v731
        %v828 = vunpack.c.l.b16 %v732
        %v829 = vunpack.c.l.b16 %v733
        %v830 = vunpack.c.l.b16 %v734
        %v831 = vunpack.c.l.b16 %v735
        %v832 = vunpack.c.l.b16 %v736
        %v833 = vunpack.c.l.b16 %v737
        %v834 = vunpack.c.l.b16 %v738
        %v835 = vunpack.c.l.b16 %v739
        %v836 = vunpack.c.l.b16 %v740
        %v837 = vunpack.c.l.b16 %v741
        %v838 = vunpack.c.l.b16 %v742
        %v839 = vunpack.c.l.b16 %v743
        %v840 = vunpack.c.l.b16 %v744
        %v841 = vunpack.c.l.b16 %v745
        %v842 = vunpack.c.l.b16 %v746
        %v843 = vunpack.c.l.b16 %v747
        %v844 = vpack.c.b16 %v797, %v796
        %v845 = vpack.c.b16 %v799, %v798
        %v846 = vpack.c.b16 %v801, %v800
        %v847 = vpack.c.b16 %v803, %v802
        %v848 = vpack.c.b16 %v805, %v804
        %v849 = vpack.c.b16 %v807, %v806
        %v850 = vpack.c.b16 %v809, %v808
        %v851 = vpack.c.b16 %v811, %v810
        %v852 = vpack.c.b16 %v813, %v812
        %v853 = vpack.c.b16 %v815, %v814
        %v854 = vpack.c.b16 %v817, %v816
        %v855 = vpack.c.b16 %v819, %v818
        %v856 = vpack.c.b16 %v821, %v820
        %v857 = vpack.c.b16 %v823, %v822
        %v858 = vpack.c.b16 %v825, %v824
        %v859 = vpack.c.b16 %v827, %v826
        %v860 = vpack.c.b16 %v829, %v828
        %v861 = vpack.c.b16 %v831, %v830
        %v862 = vpack.c.b16 %v833, %v832
        %v863 = vpack.c.b16 %v835, %v834
        %v864 = vpack.c.b16 %v837, %v836
        %v865 = vpack.c.b16 %v839, %v838
        %v866 = vpack.c.b16 %v841, %v840
        %v867 = vpack.c.b16 %v843, %v842
        %892 = vmatprep.subr.bf16.mxu0 0
        %893 = vmatpush1.bf16.msra.mxu0 %v844
        %894 = vmatprep.subr.bf16.mxu0 0
        %895 = vmatpush1.bf16.msra.mxu0 %v845
        %896 = vmatprep.subr.bf16.mxu0 0
        %897 = vmatpush1.bf16.msra.mxu0 %v846
        %898 = vmatprep.subr.bf16.mxu0 0
        %899 = vmatpush1.bf16.msra.mxu0 %v847
        %900 = vmatprep.subr.bf16.mxu0 0
        %901 = vmatpush1.bf16.msra.mxu0 %v848
        %902 = vmatprep.subr.bf16.mxu0 0
        %903 = vmatpush1.bf16.msra.mxu0 %v849
        %904 = vmatprep.subr.bf16.mxu0 0
        %905 = vmatpush1.bf16.msra.mxu0 %v850
        %906 = vmatprep.subr.bf16.mxu0 0
        %907 = vmatpush1.bf16.msra.mxu0 %v851
        %908 = vmatprep.subr.bf16.mxu0 0
        %909 = vmatpush1.bf16.msra.mxu0 %v852
        %910 = vmatprep.subr.bf16.mxu0 0
        %911 = vmatpush1.bf16.msra.mxu0 %v853
        %912 = vmatprep.subr.bf16.mxu0 0
        %913 = vmatpush1.bf16.msra.mxu0 %v854
        %914 = vmatprep.subr.bf16.mxu0 0
        %915 = vmatpush1.bf16.msra.mxu0 %v855
        %916 = vmatprep.subr.bf16.mxu0 0
        %917 = vmatpush1.bf16.msra.mxu0 %v856
        %918 = vmatprep.subr.bf16.mxu0 0
        %919 = vmatpush1.bf16.msra.mxu0 %v857
        %920 = vmatprep.subr.bf16.mxu0 0
        %921 = vmatpush1.bf16.msra.mxu0 %v858
        %922 = vmatprep.subr.bf16.mxu0 0
        %923 = vmatpush1.bf16.msra.mxu0 %v859
        %924 = vmatprep.mubr.bf16.mxu0 %v390
        %925 = vmatmul.mubr.bf16.gmra.mrb[0].mxu0 %v298
        %v926 = vpop.f32.mrb[0].mxu0
        %v927 = vadd.f32 0.0, %v926
        %v928 = vpop.f32.mrb[0].mxu0
        %v929 = vpop.f32.mrb[0].mxu0
        %v930 = vadd.f32 0.0, %v929
        %v931 = vpop.f32.mrb[0].mxu0
        %932 = vmatprep.mubr.bf16.mxu0 %v402
        %933 = vmatmul.mubr.bf16.gmra.mrb[0].mxu0 %v299
        %v934 = vpop.f32.mrb[0].mxu0
        %v935 = vadd.f32 0.0, %v934
        %v936 = vpop.f32.mrb[0].mxu0
        %v937 = vpop.f32.mrb[0].mxu0
        %v938 = vadd.f32 0.0, %v937
        %v939 = vpop.f32.mrb[0].mxu0
        %940 = vmatprep.mubr.bf16.mxu0 %v414
        %941 = vmatmul.mubr.bf16.gmra.mrb[0].mxu0 %v300
        %v942 = vpop.f32.mrb[0].mxu0
        %v943 = vadd.f32 0.0, %v942
        %v944 = vpop.f32.mrb[0].mxu0
        %v945 = vpop.f32.mrb[0].mxu0
        %v946 = vadd.f32 0.0, %v945
        %v947 = vpop.f32.mrb[0].mxu0
        %948 = vmatprep.mubr.bf16.mxu0 %v426
        %949 = vmatmul.mubr.bf16.gmra.mrb[0].mxu0 %v301
        %v950 = vpop.f32.mrb[0].mxu0
        %v951 = vadd.f32 0.0, %v950
        %v952 = vpop.f32.mrb[0].mxu0
        %v953 = vpop.f32.mrb[0].mxu0
        %v954 = vadd.f32 0.0, %v953
        %v955 = vpop.f32.mrb[0].mxu0
        %956 = vmatprep.mubr.bf16.mxu0 %v438
        %957 = vmatmul.mubr.bf16.gmra.mrb[0].mxu0 %v302
        %v958 = vpop.f32.mrb[0].mxu0
        %v959 = vadd.f32 0.0, %v958
        %v960 = vpop.f32.mrb[0].mxu0
        %v961 = vpop.f32.mrb[0].mxu0
        %v962 = vadd.f32 0.0, %v961
        %v963 = vpop.f32.mrb[0].mxu0
        %964 = vmatprep.mubr.bf16.mxu0 %v450
        %965 = vmatmul.mubr.bf16.gmra.mrb[0].mxu0 %v303
        %v966 = vpop.f32.mrb[0].mxu0
        %v967 = vadd.f32 0.0, %v966
        %v968 = vpop.f32.mrb[0].mxu0
        %v969 = vpop.f32.mrb[0].mxu0
        %v970 = vadd.f32 0.0, %v969
        %v971 = vpop.f32.mrb[0].mxu0
        %972 = vmatprep.mubr.bf16.mxu0 %v462
        %973 = vmatmul.mubr.bf16.gmra.mrb[0].mxu0 %v304
        %v974 = vpop.f32.mrb[0].mxu0
        %v975 = vadd.f32 0.0, %v974
        %v976 = vpop.f32.mrb[0].mxu0
        %v977 = vpop.f32.mrb[0].mxu0
        %v978 = vadd.f32 0.0, %v977
        %v979 = vpop.f32.mrb[0].mxu0
        %980 = vmatprep.mubr.bf16.mxu0 %v474
        %981 = vmatmul.mubr.bf16.gmra.mrb[0].mxu0 %v305
        %v982 = vpop.f32.mrb[0].mxu0
        %v983 = vadd.f32 0.0, %v982
        %v984 = vpop.f32.mrb[0].mxu0
        %v985 = vpop.f32.mrb[0].mxu0
        %v986 = vadd.f32 0.0, %v985
        %v987 = vpop.f32.mrb[0].mxu0
        %988 = vmatprep.mubr.bf16.mxu0 %v486
        %989 = vmatmul.mubr.bf16.gmra.mrb[0].mxu0 %v306
        %v990 = vpop.f32.mrb[0].mxu0
        %v991 = vadd.f32 0.0, %v990
        %v992 = vpop.f32.mrb[0].mxu0
        %v993 = vpop.f32.mrb[0].mxu0
        %v994 = vadd.f32 0.0, %v993
        %v995 = vpop.f32.mrb[0].mxu0
        %996 = vmatprep.mubr.bf16.mxu0 %v498
        %997 = vmatmul.mubr.bf16.gmra.mrb[0].mxu0 %v307
        %v998 = vpop.f32.mrb[0].mxu0
        %v999 = vadd.f32 0.0, %v998
        %v1000 = vpop.f32.mrb[0].mxu0
        %v1001 = vpop.f32.mrb[0].mxu0
        %v1002 = vadd.f32 0.0, %v1001
        %v1003 = vpop.f32.mrb[0].mxu0
        %1004 = vmatprep.mubr.bf16.mxu0 %v510
        %1005 = vmatmul.mubr.bf16.gmra.mrb[0].mxu0 %v308
        %v1006 = vpop.f32.mrb[0].mxu0
        %v1007 = vadd.f32 0.0, %v1006
        %v1008 = vpop.f32.mrb[0].mxu0
        %v1009 = vpop.f32.mrb[0].mxu0
        %v1010 = vadd.f32 0.0, %v1009
        %v1011 = vpop.f32.mrb[0].mxu0
        %1012 = vmatprep.mubr.bf16.mxu0 %v522
        %1013 = vmatmul.mubr.bf16.gmra.mrb[0].mxu0 %v309
        %v1014 = vpop.f32.mrb[0].mxu0
        %v1015 = vadd.f32 0.0, %v1014
        %v1016 = vpop.f32.mrb[0].mxu0
        %v1017 = vpop.f32.mrb[0].mxu0
        %v1018 = vadd.f32 0.0, %v1017
        %v1019 = vpop.f32.mrb[0].mxu0
        %1020 = vmatprep.mubr.bf16.mxu0 %v534
        %1021 = vmatmul.mubr.bf16.gmra.mrb[0].mxu0 %v310
        %v1022 = vpop.f32.mrb[0].mxu0
        %v1023 = vadd.f32 0.0, %v1022
        %v1024 = vpop.f32.mrb[0].mxu0
        %v1025 = vpop.f32.mrb[0].mxu0
        %v1026 = vadd.f32 0.0, %v1025
        %v1027 = vpop.f32.mrb[0].mxu0
        %1028 = vmatprep.mubr.bf16.mxu0 %v546
        %1029 = vmatmul.mubr.bf16.gmra.mrb[0].mxu0 %v311
        %v1030 = vpop.f32.mrb[0].mxu0
        %v1031 = vadd.f32 0.0, %v1030
        %v1032 = vpop.f32.mrb[0].mxu0
        %v1033 = vpop.f32.mrb[0].mxu0
        %v1034 = vadd.f32 0.0, %v1033
        %v1035 = vpop.f32.mrb[0].mxu0
        %1036 = vmatprep.mubr.bf16.mxu0 %v558
        %1037 = vmatmul.mubr.bf16.gmra.mrb[0].mxu0 %v312
        %v1038 = vpop.f32.mrb[0].mxu0
        %v1039 = vadd.f32 0.0, %v1038
        %v1040 = vpop.f32.mrb[0].mxu0
        %v1041 = vpop.f32.mrb[0].mxu0
        %v1042 = vadd.f32 0.0, %v1041
        %v1043 = vpop.f32.mrb[0].mxu0
        %1044 = vmatprep.mubr.bf16.mxu0 %v570
        %1045 = vmatmul.mubr.bf16.gmra.mrb[0].mxu0 %v313
        %v1046 = vpop.f32.mrb[0].mxu0
        %v1047 = vadd.f32 0.0, %v1046
        %v1048 = vpop.f32.mrb[0].mxu0
        %v1049 = vpop.f32.mrb[0].mxu0
        %v1050 = vadd.f32 0.0, %v1049
        %v1051 = vpop.f32.mrb[0].mxu0
        %1052 = vdwg.mxu0
        %1053 = vmatprep.subr.bf16.mxu0 0
        %1054 = vmatpush1.bf16.msra.mxu0 %v860
        %1055 = vmatprep.subr.bf16.mxu0 0
        %1056 = vmatpush1.bf16.msra.mxu0 %v861
        %1057 = vmatprep.subr.bf16.mxu0 0
        %1058 = vmatpush1.bf16.msra.mxu0 %v862
        %1059 = vmatprep.subr.bf16.mxu0 0
        %1060 = vmatpush1.bf16.msra.mxu0 %v863
        %1061 = vmatprep.subr.bf16.mxu0 0
        %1062 = vmatpush1.bf16.msra.mxu0 %v864
        %1063 = vmatprep.subr.bf16.mxu0 0
        %1064 = vmatpush1.bf16.msra.mxu0 %v865
        %1065 = vmatprep.subr.bf16.mxu0 0
        %1066 = vmatpush1.bf16.msra.mxu0 %v866
        %1067 = vmatprep.subr.bf16.mxu0 0
        %1068 = vmatpush1.bf16.msra.mxu0 %v867
        %1069 = vmatprep.subr.bf16.mxu0 0
        %1070 = vmatpush1.bf16.msra.mxu0 0
        %1071 = vmatprep.subr.bf16.mxu0 0
        %1072 = vmatpush1.bf16.msra.mxu0 0
        %1073 = vmatprep.subr.bf16.mxu0 0
        %1074 = vmatpush1.bf16.msra.mxu0 0
        %1075 = vmatprep.subr.bf16.mxu0 0
        %1076 = vmatpush1.bf16.msra.mxu0 0
        %1077 = vmatprep.subr.bf16.mxu0 0
        %1078 = vmatpush1.bf16.msra.mxu0 0
        %1079 = vmatprep.subr.bf16.mxu0 0
        %1080 = vmatpush1.bf16.msra.mxu0 0
        %1081 = vmatprep.subr.bf16.mxu0 0
        %1082 = vmatpush1.bf16.msra.mxu0 0
        %1083 = vmatprep.subr.bf16.mxu0 0
        %1084 = vmatpush1.bf16.msra.mxu0 0
        %1085 = vmatprep.mubr.bf16.mxu0 0
        %1086 = vmatmul.mubr.bf16.gmra.mrb[0].mxu0 %v638
        %v1087 = vpop.f32.mrb[0].mxu0
        %v1088 = vadd.f32 %v927, %v1087
        %v1089 = vpop.f32.mrb[0].mxu0
        %v1090 = vpop.f32.mrb[0].mxu0
        %v1091 = vadd.f32 %v930, %v1090
        %v1092 = vpop.f32.mrb[0].mxu0
        %1093 = vmatprep.mubr.bf16.mxu0 0
        %1094 = vmatmul.mubr.bf16.gmra.mrb[0].mxu0 %v641
        %v1095 = vpop.f32.mrb[0].mxu0
        %v1096 = vadd.f32 %v935, %v1095
        %v1097 = vpop.f32.mrb[0].mxu0
        %v1098 = vpop.f32.mrb[0].mxu0
        %v1099 = vadd.f32 %v938, %v1098
        %v1100 = vpop.f32.mrb[0].mxu0
        %1101 = vmatprep.mubr.bf16.mxu0 0
        %1102 = vmatmul.mubr.bf16.gmra.mrb[0].mxu0 %v644
        %v1103 = vpop.f32.mrb[0].mxu0
        %v1104 = vadd.f32 %v943, %v1103
        %v1105 = vpop.f32.mrb[0].mxu0
        %v1106 = vpop.f32.mrb[0].mxu0
        %v1107 = vadd.f32 %v946, %v1106
        %v1108 = vpop.f32.mrb[0].mxu0
        %1109 = vmatprep.mubr.bf16.mxu0 0
        %1110 = vmatmul.mubr.bf16.gmra.mrb[0].mxu0 %v647
        %v1111 = vpop.f32.mrb[0].mxu0
        %v1112 = vadd.f32 %v951, %v1111
        %v1113 = vpop.f32.mrb[0].mxu0
        %v1114 = vpop.f32.mrb[0].mxu0
        %v1115 = vadd.f32 %v954, %v1114
        %v1116 = vpop.f32.mrb[0].mxu0
        %1117 = vmatprep.mubr.bf16.mxu0 0
        %1118 = vmatmul.mubr.bf16.gmra.mrb[0].mxu0 %v650
        %v1119 = vpop.f32.mrb[0].mxu0
        %v1120 = vadd.f32 %v959, %v1119
        %v1121 = vpop.f32.mrb[0].mxu0
        %v1122 = vpop.f32.mrb[0].mxu0
        %v1123 = vadd.f32 %v962, %v1122
        %v1124 = vpop.f32.mrb[0].mxu0
        %1125 = vmatprep.mubr.bf16.mxu0 0
        %1126 = vmatmul.mubr.bf16.gmra.mrb[0].mxu0 %v653
        %v1127 = vpop.f32.mrb[0].mxu0
        %v1128 = vadd.f32 %v967, %v1127
        %v1129 = vpop.f32.mrb[0].mxu0
        %v1130 = vpop.f32.mrb[0].mxu0
        %v1131 = vadd.f32 %v970, %v1130
        %v1132 = vpop.f32.mrb[0].mxu0
        %1133 = vmatprep.mubr.bf16.mxu0 0
        %1134 = vmatmul.mubr.bf16.gmra.mrb[0].mxu0 %v656
        %v1135 = vpop.f32.mrb[0].mxu0
        %v1136 = vadd.f32 %v975, %v1135
        %v1137 = vpop.f32.mrb[0].mxu0
        %v1138 = vpop.f32.mrb[0].mxu0
        %v1139 = vadd.f32 %v978, %v1138
        %v1140 = vpop.f32.mrb[0].mxu0
        %1141 = vmatprep.mubr.bf16.mxu0 0
        %1142 = vmatmul.mubr.bf16.gmra.mrb[0].mxu0 %v659
        %v1143 = vpop.f32.mrb[0].mxu0
        %v1144 = vadd.f32 %v983, %v1143
        %v1145 = vpop.f32.mrb[0].mxu0
        %v1146 = vpop.f32.mrb[0].mxu0
        %v1147 = vadd.f32 %v986, %v1146
        %v1148 = vpop.f32.mrb[0].mxu0
        %1149 = vmatprep.mubr.bf16.mxu0 0
        %1150 = vmatmul.mubr.bf16.gmra.mrb[0].mxu0 %v662
        %v1151 = vpop.f32.mrb[0].mxu0
        %v1152 = vadd.f32 %v991, %v1151
        %v1153 = vpop.f32.mrb[0].mxu0
        %v1154 = vpop.f32.mrb[0].mxu0
        %v1155 = vadd.f32 %v994, %v1154
        %v1156 = vpop.f32.mrb[0].mxu0
        %1157 = vmatprep.mubr.bf16.mxu0 0
        %1158 = vmatmul.mubr.bf16.gmra.mrb[0].mxu0 %v665
        %v1159 = vpop.f32.mrb[0].mxu0
        %v1160 = vadd.f32 %v999, %v1159
        %v1161 = vpop.f32.mrb[0].mxu0
        %v1162 = vpop.f32.mrb[0].mxu0
        %v1163 = vadd.f32 %v1002, %v1162
        %v1164 = vpop.f32.mrb[0].mxu0
        %1165 = vmatprep.mubr.bf16.mxu0 0
        %1166 = vmatmul.mubr.bf16.gmra.mrb[0].mxu0 %v668
        %v1167 = vpop.f32.mrb[0].mxu0
        %v1168 = vadd.f32 %v1007, %v1167
        %v1169 = vpop.f32.mrb[0].mxu0
        %v1170 = vpop.f32.mrb[0].mxu0
        %v1171 = vadd.f32 %v1010, %v1170
        %v1172 = vpop.f32.mrb[0].mxu0
        %1173 = vmatprep.mubr.bf16.mxu0 0
        %1174 = vmatmul.mubr.bf16.gmra.mrb[0].mxu0 %v671
        %v1175 = vpop.f32.mrb[0].mxu0
        %v1176 = vadd.f32 %v1015, %v1175
        %v1177 = vpop.f32.mrb[0].mxu0
        %v1178 = vpop.f32.mrb[0].mxu0
        %v1179 = vadd.f32 %v1018, %v1178
        %v1180 = vpop.f32.mrb[0].mxu0
        %1181 = vmatprep.mubr.bf16.mxu0 0
        %1182 = vmatmul.mubr.bf16.gmra.mrb[0].mxu0 %v674
        %v1183 = vpop.f32.mrb[0].mxu0
        %v1184 = vadd.f32 %v1023, %v1183
        %v1185 = vpop.f32.mrb[0].mxu0
        %v1186 = vpop.f32.mrb[0].mxu0
        %v1187 = vadd.f32 %v1026, %v1186
        %v1188 = vpop.f32.mrb[0].mxu0
        %1189 = vmatprep.mubr.bf16.mxu0 0
        %1190 = vmatmul.mubr.bf16.gmra.mrb[0].mxu0 %v677
        %v1191 = vpop.f32.mrb[0].mxu0
        %v1192 = vadd.f32 %v1031, %v1191
        %v1193 = vpop.f32.mrb[0].mxu0
        %v1194 = vpop.f32.mrb[0].mxu0
        %v1195 = vadd.f32 %v1034, %v1194
        %v1196 = vpop.f32.mrb[0].mxu0
        %1197 = vmatprep.mubr.bf16.mxu0 0
        %1198 = vmatmul.mubr.bf16.gmra.mrb[0].mxu0 %v680
        %v1199 = vpop.f32.mrb[0].mxu0
        %v1200 = vadd.f32 %v1039, %v1199
        %v1201 = vpop.f32.mrb[0].mxu0
        %v1202 = vpop.f32.mrb[0].mxu0
        %v1203 = vadd.f32 %v1042, %v1202
        %v1204 = vpop.f32.mrb[0].mxu0
        %1205 = vmatprep.mubr.bf16.mxu0 0
        %1206 = vmatmul.mubr.bf16.gmra.mrb[0].mxu0 %v683
        %v1207 = vpop.f32.mrb[0].mxu0
        %v1208 = vadd.f32 %v1047, %v1207
        %v1209 = vpop.f32.mrb[0].mxu0
        %v1210 = vpop.f32.mrb[0].mxu0
        %v1211 = vadd.f32 %v1050, %v1210
        %v1212 = vpop.f32.mrb[0].mxu0
        %1213 = vdwg.mxu0
        %1214 = vst [vmem:[#allocation2] sm:$0xff] %v1088
        %1215 = vst [vmem:[#allocation2 + $0x8] sm:$0xff] %v1091
        %1216 = vst [vmem:[#allocation2 + $0x10] sm:$0xff] %v1096
        %1217 = vst [vmem:[#allocation2 + $0x18] sm:$0xff] %v1099
        %1218 = vst [vmem:[#allocation2 + $0x20] sm:$0xff] %v1104
        %1219 = vst [vmem:[#allocation2 + $0x28] sm:$0xff] %v1107
        %1220 = vst [vmem:[#allocation2 + $0x30] sm:$0xff] %v1112
        %1221 = vst [vmem:[#allocation2 + $0x38] sm:$0xff] %v1115
        %1222 = vst [vmem:[#allocation2 + $0x40] sm:$0xff] %v1120
        %1223 = vst [vmem:[#allocation2 + $0x48] sm:$0xff] %v1123
        %1224 = vst [vmem:[#allocation2 + $0x50] sm:$0xff] %v1128
        %1225 = vst [vmem:[#allocation2 + $0x58] sm:$0xff] %v1131
        %1226 = vst [vmem:[#allocation2 + $0x60] sm:$0xff] %v1136
        %1227 = vst [vmem:[#allocation2 + $0x68] sm:$0xff] %v1139
        %1228 = vst [vmem:[#allocation2 + $0x70] sm:$0xff] %v1144
        %1229 = vst [vmem:[#allocation2 + $0x78] sm:$0xff] %v1147
        %1230 = vst [vmem:[#allocation2 + $0x80] sm:$0xff] %v1152
        %1231 = vst [vmem:[#allocation2 + $0x88] sm:$0xff] %v1155
        %1232 = vst [vmem:[#allocation2 + $0x90] sm:$0xff] %v1160
        %1233 = vst [vmem:[#allocation2 + $0x98] sm:$0xff] %v1163
        %1234 = vst [vmem:[#allocation2 + $0xa0] sm:$0xff] %v1168
        %1235 = vst [vmem:[#allocation2 + $0xa8] sm:$0xff] %v1171
        %1236 = vst [vmem:[#allocation2 + $0xb0] sm:$0xff] %v1176
        %1237 = vst [vmem:[#allocation2 + $0xb8] sm:$0xff] %v1179
        %1238 = vst [vmem:[#allocation2 + $0xc0] sm:$0xff] %v1184
        %1239 = vst [vmem:[#allocation2 + $0xc8] sm:$0xff] %v1187
        %1240 = vst [vmem:[#allocation2 + $0xd0] sm:$0xff] %v1192
        %1241 = vst [vmem:[#allocation2 + $0xd8] sm:$0xff] %v1195
        %1242 = vst [vmem:[#allocation2 + $0xe0] sm:$0xff] %v1200
        %1243 = vst [vmem:[#allocation2 + $0xe8] sm:$0xff] %v1203
        %1244 = vst [vmem:[#allocation2 + $0xf0] sm:$0xff] %v1208
        %1245 = vst [vmem:[#allocation2 + $0xf8] sm:$0xff] %v1211
        %s1246 = scalar_lea.vmem %s168, 12
        %v1247 = vld [vmem:[%s1246] sm:$0xf]
        %v1248 = vld [vmem:[%s1246 + $0x4] sm:$0xf]
        %v1249 = vld [vmem:[%s1246 + $0xc] sm:$0xf]
        %v1250 = vld [vmem:[%s1246 + $0x10] sm:$0xf]
        %v1251 = vld [vmem:[%s1246 + $0x18] sm:$0xf]
        %v1252 = vld [vmem:[%s1246 + $0x1c] sm:$0xf]
        %v1253 = vld [vmem:[%s1246 + $0x24] sm:$0xf]
        %v1254 = vld [vmem:[%s1246 + $0x28] sm:$0xf]
        %v1255 = vld [vmem:[%s1246 + $0x30] sm:$0xf]
        %v1256 = vld [vmem:[%s1246 + $0x34] sm:$0xf]
        %v1257 = vld [vmem:[%s1246 + $0x3c] sm:$0xf]
        %v1258 = vld [vmem:[%s1246 + $0x40] sm:$0xf]
        %v1259 = vld [vmem:[%s1246 + $0x48] sm:$0xf]
        %v1260 = vld [vmem:[%s1246 + $0x4c] sm:$0xf]
        %v1261 = vld [vmem:[%s1246 + $0x54] sm:$0xf]
        %v1262 = vld [vmem:[%s1246 + $0x58] sm:$0xf]
        %v1263 = vld [vmem:[%s1246 + $0x60] sm:$0xf]
        %v1264 = vld [vmem:[%s1246 + $0x64] sm:$0xf]
        %v1265 = vld [vmem:[%s1246 + $0x6c] sm:$0xf]
        %v1266 = vld [vmem:[%s1246 + $0x70] sm:$0xf]
        %v1267 = vld [vmem:[%s1246 + $0x78] sm:$0xf]
        %v1268 = vld [vmem:[%s1246 + $0x7c] sm:$0xf]
        %v1269 = vld [vmem:[%s1246 + $0x84] sm:$0xf]
        %v1270 = vld [vmem:[%s1246 + $0x88] sm:$0xf]
        %v1271 = vld [vmem:[%s1246 + $0x90] sm:$0xf]
        %v1272 = vld [vmem:[%s1246 + $0x94] sm:$0xf]
        %v1273 = vld [vmem:[%s1246 + $0x9c] sm:$0xf]
        %v1274 = vld [vmem:[%s1246 + $0xa0] sm:$0xf]
        %v1275 = vld [vmem:[%s1246 + $0xa8] sm:$0xf]
        %v1276 = vld [vmem:[%s1246 + $0xac] sm:$0xf]
        %v1277 = vld [vmem:[%s1246 + $0xb4] sm:$0xf]
        %v1278 = vld [vmem:[%s1246 + $0xb8] sm:$0xf]
        %v1279 = vld [vmem:[%s1246 + $0x8] sm:$0x1]
        %v1280 = vld [vmem:[%s1246 + $0x14] sm:$0x1]
        %v1281 = vld [vmem:[%s1246 + $0x20] sm:$0x1]
        %v1282 = vld [vmem:[%s1246 + $0x2c] sm:$0x1]
        %v1283 = vld [vmem:[%s1246 + $0x38] sm:$0x1]
        %v1284 = vld [vmem:[%s1246 + $0x44] sm:$0x1]
        %v1285 = vld [vmem:[%s1246 + $0x50] sm:$0x1]
        %v1286 = vld [vmem:[%s1246 + $0x5c] sm:$0x1]
        %v1287 = vld [vmem:[%s1246 + $0x68] sm:$0x1]
        %v1288 = vld [vmem:[%s1246 + $0x74] sm:$0x1]
        %v1289 = vld [vmem:[%s1246 + $0x80] sm:$0x1]
        %v1290 = vld [vmem:[%s1246 + $0x8c] sm:$0x1]
        %v1291 = vld [vmem:[%s1246 + $0x98] sm:$0x1]
        %v1292 = vld [vmem:[%s1246 + $0xa4] sm:$0x1]
        %v1293 = vld [vmem:[%s1246 + $0xb0] sm:$0x1]
        %v1294 = vld [vmem:[%s1246 + $0xbc] sm:$0x1]
        %v1295 = vld [vmem:[%s1246] sm:$0xe]
        %v1296 = vld [vmem:[%s1246 + $0xc] sm:$0xe]
        %v1297 = vld [vmem:[%s1246 + $0x18] sm:$0xe]
        %v1298 = vld [vmem:[%s1246 + $0x24] sm:$0xe]
        %v1299 = vld [vmem:[%s1246 + $0x30] sm:$0xe]
        %v1300 = vld [vmem:[%s1246 + $0x3c] sm:$0xe]
        %v1301 = vld [vmem:[%s1246 + $0x48] sm:$0xe]
        %v1302 = vld [vmem:[%s1246 + $0x54] sm:$0xe]
        %v1303 = vld [vmem:[%s1246 + $0x60] sm:$0xe]
        %v1304 = vld [vmem:[%s1246 + $0x6c] sm:$0xe]
        %v1305 = vld [vmem:[%s1246 + $0x78] sm:$0xe]
        %v1306 = vld [vmem:[%s1246 + $0x84] sm:$0xe]
        %v1307 = vld [vmem:[%s1246 + $0x90] sm:$0xe]
        %v1308 = vld [vmem:[%s1246 + $0x9c] sm:$0xe]
        %v1309 = vld [vmem:[%s1246 + $0xa8] sm:$0xe]
        %v1310 = vld [vmem:[%s1246 + $0xb4] sm:$0xe]
        %v1343 = vunpack.c.l.b16 %v1247
        %v1344 = vunpack.c.l.b16 %v1248
        %v1345 = vunpack.c.l.b16 %v1249
        %v1346 = vunpack.c.l.b16 %v1250
        %v1347 = vunpack.c.l.b16 %v1251
        %v1348 = vunpack.c.l.b16 %v1252
        %v1349 = vunpack.c.l.b16 %v1253
        %v1350 = vunpack.c.l.b16 %v1254
        %v1351 = vunpack.c.l.b16 %v1255
        %v1352 = vunpack.c.l.b16 %v1256
        %v1353 = vunpack.c.l.b16 %v1257
        %v1354 = vunpack.c.l.b16 %v1258
        %v1355 = vunpack.c.l.b16 %v1259
        %v1356 = vunpack.c.l.b16 %v1260
        %v1357 = vunpack.c.l.b16 %v1261
        %v1358 = vunpack.c.l.b16 %v1262
        %v1359 = vunpack.c.l.b16 %v1263
        %v1360 = vunpack.c.l.b16 %v1264
        %v1361 = vunpack.c.l.b16 %v1265
        %v1362 = vunpack.c.l.b16 %v1266
        %v1363 = vunpack.c.l.b16 %v1267
        %v1364 = vunpack.c.l.b16 %v1268
        %v1365 = vunpack.c.l.b16 %v1269
        %v1366 = vunpack.c.l.b16 %v1270
        %v1367 = vunpack.c.l.b16 %v1271
        %v1368 = vunpack.c.l.b16 %v1272
        %v1369 = vunpack.c.l.b16 %v1273
        %v1370 = vunpack.c.l.b16 %v1274
        %v1371 = vunpack.c.l.b16 %v1275
        %v1372 = vunpack.c.l.b16 %v1276
        %v1373 = vunpack.c.l.b16 %v1277
        %v1374 = vunpack.c.l.b16 %v1278
        %v1375 = vpack.c.b16 %v1344, %v1343
        %v1376 = vpack.c.b16 %v1346, %v1345
        %v1377 = vpack.c.b16 %v1348, %v1347
        %v1378 = vpack.c.b16 %v1350, %v1349
        %v1379 = vpack.c.b16 %v1352, %v1351
        %v1380 = vpack.c.b16 %v1354, %v1353
        %v1381 = vpack.c.b16 %v1356, %v1355
        %v1382 = vpack.c.b16 %v1358, %v1357
        %v1383 = vpack.c.b16 %v1360, %v1359
        %v1384 = vpack.c.b16 %v1362, %v1361
        %v1385 = vpack.c.b16 %v1364, %v1363
        %v1386 = vpack.c.b16 %v1366, %v1365
        %v1387 = vpack.c.b16 %v1368, %v1367
        %v1388 = vpack.c.b16 %v1370, %v1369
        %v1389 = vpack.c.b16 %v1372, %v1371
        %v1390 = vpack.c.b16 %v1374, %v1373
        %v1423 = vunpack.c.l.b16 %v1279
        %v1424 = vunpack.c.l.b16 %v1280
        %v1425 = vunpack.c.l.b16 %v1281
        %v1426 = vunpack.c.l.b16 %v1282
        %v1427 = vunpack.c.l.b16 %v1283
        %v1428 = vunpack.c.l.b16 %v1284
        %v1429 = vunpack.c.l.b16 %v1285
        %v1430 = vunpack.c.l.b16 %v1286
        %v1431 = vunpack.c.l.b16 %v1287
        %v1432 = vunpack.c.l.b16 %v1288
        %v1433 = vunpack.c.l.b16 %v1289
        %v1434 = vunpack.c.l.b16 %v1290
        %v1435 = vunpack.c.l.b16 %v1291
        %v1436 = vunpack.c.l.b16 %v1292
        %v1437 = vunpack.c.l.b16 %v1293
        %v1438 = vunpack.c.l.b16 %v1294
        %v1439 = vpack.c.b16 %v1423, %v1423
        %v1440 = vpack.c.b16 %v1424, %v1424
        %v1441 = vpack.c.b16 %v1425, %v1425
        %v1442 = vpack.c.b16 %v1426, %v1426
        %v1443 = vpack.c.b16 %v1427, %v1427
        %v1444 = vpack.c.b16 %v1428, %v1428
        %v1445 = vpack.c.b16 %v1429, %v1429
        %v1446 = vpack.c.b16 %v1430, %v1430
        %v1447 = vpack.c.b16 %v1431, %v1431
        %v1448 = vpack.c.b16 %v1432, %v1432
        %v1449 = vpack.c.b16 %v1433, %v1433
        %v1450 = vpack.c.b16 %v1434, %v1434
        %v1451 = vpack.c.b16 %v1435, %v1435
        %v1452 = vpack.c.b16 %v1436, %v1436
        %v1453 = vpack.c.b16 %v1437, %v1437
        %v1454 = vpack.c.b16 %v1438, %v1438
        %v1456 = vshrl.u32 %v1375, 16
        %v1458 = vshll.u32 %v1375, 16
        %v1460 = vrot.slane %v1458, 1
        %v1461 = vor.u32 %v1456, %v1460
        %v1463 = vshll.u32 %v1439, 16
        %v1465 = vrot.slane %v1463, 1
        %v1466 = vsel %vm378, %v1461, %v1465
        %v1468 = vshrl.u32 %v1376, 16
        %v1470 = vshll.u32 %v1376, 16
        %v1472 = vrot.slane %v1470, 1
        %v1473 = vor.u32 %v1468, %v1472
        %v1475 = vshll.u32 %v1440, 16
        %v1477 = vrot.slane %v1475, 1
        %v1478 = vsel %vm378, %v1473, %v1477
        %v1480 = vshrl.u32 %v1377, 16
        %v1482 = vshll.u32 %v1377, 16
        %v1484 = vrot.slane %v1482, 1
        %v1485 = vor.u32 %v1480, %v1484
        %v1487 = vshll.u32 %v1441, 16
        %v1489 = vrot.slane %v1487, 1
        %v1490 = vsel %vm378, %v1485, %v1489
        %v1492 = vshrl.u32 %v1378, 16
        %v1494 = vshll.u32 %v1378, 16
        %v1496 = vrot.slane %v1494, 1
        %v1497 = vor.u32 %v1492, %v1496
        %v1499 = vshll.u32 %v1442, 16
        %v1501 = vrot.slane %v1499, 1
        %v1502 = vsel %vm378, %v1497, %v1501
        %v1504 = vshrl.u32 %v1379, 16
        %v1506 = vshll.u32 %v1379, 16
        %v1508 = vrot.slane %v1506, 1
        %v1509 = vor.u32 %v1504, %v1508
        %v1511 = vshll.u32 %v1443, 16
        %v1513 = vrot.slane %v1511, 1
        %v1514 = vsel %vm378, %v1509, %v1513
        %v1516 = vshrl.u32 %v1380, 16
        %v1518 = vshll.u32 %v1380, 16
        %v1520 = vrot.slane %v1518, 1
        %v1521 = vor.u32 %v1516, %v1520
        %v1523 = vshll.u32 %v1444, 16
        %v1525 = vrot.slane %v1523, 1
        %v1526 = vsel %vm378, %v1521, %v1525
        %v1528 = vshrl.u32 %v1381, 16
        %v1530 = vshll.u32 %v1381, 16
        %v1532 = vrot.slane %v1530, 1
        %v1533 = vor.u32 %v1528, %v1532
        %v1535 = vshll.u32 %v1445, 16
        %v1537 = vrot.slane %v1535, 1
        %v1538 = vsel %vm378, %v1533, %v1537
        %v1540 = vshrl.u32 %v1382, 16
        %v1542 = vshll.u32 %v1382, 16
        %v1544 = vrot.slane %v1542, 1
        %v1545 = vor.u32 %v1540, %v1544
        %v1547 = vshll.u32 %v1446, 16
        %v1549 = vrot.slane %v1547, 1
        %v1550 = vsel %vm378, %v1545, %v1549
        %v1552 = vshrl.u32 %v1383, 16
        %v1554 = vshll.u32 %v1383, 16
        %v1556 = vrot.slane %v1554, 1
        %v1557 = vor.u32 %v1552, %v1556
        %v1559 = vshll.u32 %v1447, 16
        %v1561 = vrot.slane %v1559, 1
        %v1562 = vsel %vm378, %v1557, %v1561
        %v1564 = vshrl.u32 %v1384, 16
        %v1566 = vshll.u32 %v1384, 16
        %v1568 = vrot.slane %v1566, 1
        %v1569 = vor.u32 %v1564, %v1568
        %v1571 = vshll.u32 %v1448, 16
        %v1573 = vrot.slane %v1571, 1
        %v1574 = vsel %vm378, %v1569, %v1573
        %v1576 = vshrl.u32 %v1385, 16
        %v1578 = vshll.u32 %v1385, 16
        %v1580 = vrot.slane %v1578, 1
        %v1581 = vor.u32 %v1576, %v1580
        %v1583 = vshll.u32 %v1449, 16
        %v1585 = vrot.slane %v1583, 1
        %v1586 = vsel %vm378, %v1581, %v1585
        %v1588 = vshrl.u32 %v1386, 16
        %v1590 = vshll.u32 %v1386, 16
        %v1592 = vrot.slane %v1590, 1
        %v1593 = vor.u32 %v1588, %v1592
        %v1595 = vshll.u32 %v1450, 16
        %v1597 = vrot.slane %v1595, 1
        %v1598 = vsel %vm378, %v1593, %v1597
        %v1600 = vshrl.u32 %v1387, 16
        %v1602 = vshll.u32 %v1387, 16
        %v1604 = vrot.slane %v1602, 1
        %v1605 = vor.u32 %v1600, %v1604
        %v1607 = vshll.u32 %v1451, 16
        %v1609 = vrot.slane %v1607, 1
        %v1610 = vsel %vm378, %v1605, %v1609
        %v1612 = vshrl.u32 %v1388, 16
        %v1614 = vshll.u32 %v1388, 16
        %v1616 = vrot.slane %v1614, 1
        %v1617 = vor.u32 %v1612, %v1616
        %v1619 = vshll.u32 %v1452, 16
        %v1621 = vrot.slane %v1619, 1
        %v1622 = vsel %vm378, %v1617, %v1621
        %v1624 = vshrl.u32 %v1389, 16
        %v1626 = vshll.u32 %v1389, 16
        %v1628 = vrot.slane %v1626, 1
        %v1629 = vor.u32 %v1624, %v1628
        %v1631 = vshll.u32 %v1453, 16
        %v1633 = vrot.slane %v1631, 1
        %v1634 = vsel %vm378, %v1629, %v1633
        %v1636 = vshrl.u32 %v1390, 16
        %v1638 = vshll.u32 %v1390, 16
        %v1640 = vrot.slane %v1638, 1
        %v1641 = vor.u32 %v1636, %v1640
        %v1643 = vshll.u32 %v1454, 16
        %v1645 = vrot.slane %v1643, 1
        %v1646 = vsel %vm378, %v1641, %v1645
        %v1679 = vunpack.c.l.b16 %v1295
        %v1680 = vunpack.c.l.b16 %v1296
        %v1681 = vunpack.c.l.b16 %v1297
        %v1682 = vunpack.c.l.b16 %v1298
        %v1683 = vunpack.c.l.b16 %v1299
        %v1684 = vunpack.c.l.b16 %v1300
        %v1685 = vunpack.c.l.b16 %v1301
        %v1686 = vunpack.c.l.b16 %v1302
        %v1687 = vunpack.c.l.b16 %v1303
        %v1688 = vunpack.c.l.b16 %v1304
        %v1689 = vunpack.c.l.b16 %v1305
        %v1690 = vunpack.c.l.b16 %v1306
        %v1691 = vunpack.c.l.b16 %v1307
        %v1692 = vunpack.c.l.b16 %v1308
        %v1693 = vunpack.c.l.b16 %v1309
        %v1694 = vunpack.c.l.b16 %v1310
        %v1695 = vpack.c.b16 %v1344, %v1679
        %v1696 = vpack.c.b16 %v1346, %v1680
        %v1697 = vpack.c.b16 %v1348, %v1681
        %v1698 = vpack.c.b16 %v1350, %v1682
        %v1699 = vpack.c.b16 %v1352, %v1683
        %v1700 = vpack.c.b16 %v1354, %v1684
        %v1701 = vpack.c.b16 %v1356, %v1685
        %v1702 = vpack.c.b16 %v1358, %v1686
        %v1703 = vpack.c.b16 %v1360, %v1687
        %v1704 = vpack.c.b16 %v1362, %v1688
        %v1705 = vpack.c.b16 %v1364, %v1689
        %v1706 = vpack.c.b16 %v1366, %v1690
        %v1707 = vpack.c.b16 %v1368, %v1691
        %v1708 = vpack.c.b16 %v1370, %v1692
        %v1709 = vpack.c.b16 %v1372, %v1693
        %v1710 = vpack.c.b16 %v1374, %v1694
        %v1711 = vrot.slane %v1695, 1
        %v1712 = vrot.slane %v1439, 1
        %v1713 = vsel %vm635, %v1711, %v1712
        %v1714 = vrot.slane %v1696, 1
        %v1715 = vrot.slane %v1440, 1
        %v1716 = vsel %vm635, %v1714, %v1715
        %v1717 = vrot.slane %v1697, 1
        %v1718 = vrot.slane %v1441, 1
        %v1719 = vsel %vm635, %v1717, %v1718
        %v1720 = vrot.slane %v1698, 1
        %v1721 = vrot.slane %v1442, 1
        %v1722 = vsel %vm635, %v1720, %v1721
        %v1723 = vrot.slane %v1699, 1
        %v1724 = vrot.slane %v1443, 1
        %v1725 = vsel %vm635, %v1723, %v1724
        %v1726 = vrot.slane %v1700, 1
        %v1727 = vrot.slane %v1444, 1
        %v1728 = vsel %vm635, %v1726, %v1727
        %v1729 = vrot.slane %v1701, 1
        %v1730 = vrot.slane %v1445, 1
        %v1731 = vsel %vm635, %v1729, %v1730
        %v1732 = vrot.slane %v1702, 1
        %v1733 = vrot.slane %v1446, 1
        %v1734 = vsel %vm635, %v1732, %v1733
        %v1735 = vrot.slane %v1703, 1
        %v1736 = vrot.slane %v1447, 1
        %v1737 = vsel %vm635, %v1735, %v1736
        %v1738 = vrot.slane %v1704, 1
        %v1739 = vrot.slane %v1448, 1
        %v1740 = vsel %vm635, %v1738, %v1739
        %v1741 = vrot.slane %v1705, 1
        %v1742 = vrot.slane %v1449, 1
        %v1743 = vsel %vm635, %v1741, %v1742
        %v1744 = vrot.slane %v1706, 1
        %v1745 = vrot.slane %v1450, 1
        %v1746 = vsel %vm635, %v1744, %v1745
        %v1747 = vrot.slane %v1707, 1
        %v1748 = vrot.slane %v1451, 1
        %v1749 = vsel %vm635, %v1747, %v1748
        %v1750 = vrot.slane %v1708, 1
        %v1751 = vrot.slane %v1452, 1
        %v1752 = vsel %vm635, %v1750, %v1751
        %v1753 = vrot.slane %v1709, 1
        %v1754 = vrot.slane %v1453, 1
        %v1755 = vsel %vm635, %v1753, %v1754
        %v1756 = vrot.slane %v1710, 1
        %v1757 = vrot.slane %v1454, 1
        %v1758 = vsel %vm635, %v1756, %v1757
        %s1775 = scalar_lea.vmem %s1, 192
        %v1776 = vld [vmem:[%s1775] sm:$0xf]
        %v1777 = vld [vmem:[%s1775 + $0x4] sm:$0xf]
        %v1778 = vld [vmem:[%s1775 + $0x8] sm:$0xf]
        %v1779 = vld [vmem:[%s1775 + $0xc] sm:$0xf]
        %v1780 = vld [vmem:[%s1775 + $0x10] sm:$0xf]
        %v1781 = vld [vmem:[%s1775 + $0x14] sm:$0xf]
        %v1782 = vld [vmem:[%s1775 + $0x18] sm:$0xf]
        %v1783 = vld [vmem:[%s1775 + $0x1c] sm:$0xf]
        %v1784 = vld [vmem:[%s1775 + $0x20] sm:$0xf]
        %v1785 = vld [vmem:[%s1775 + $0x24] sm:$0xf]
        %v1786 = vld [vmem:[%s1775 + $0x28] sm:$0xf]
        %v1787 = vld [vmem:[%s1775 + $0x2c] sm:$0xf]
        %v1788 = vld [vmem:[%s1775 + $0x30] sm:$0xf]
        %v1789 = vld [vmem:[%s1775 + $0x34] sm:$0xf]
        %v1790 = vld [vmem:[%s1775 + $0x38] sm:$0xf]
        %v1791 = vld [vmem:[%s1775 + $0x3c] sm:$0xf]
        %v1792 = vld [vmem:[%s1775 + $0x40] sm:$0xf]
        %v1793 = vld [vmem:[%s1775 + $0x44] sm:$0xf]
        %v1794 = vld [vmem:[%s1775 + $0x48] sm:$0xf]
        %v1795 = vld [vmem:[%s1775 + $0x4c] sm:$0xf]
        %v1796 = vld [vmem:[%s1775 + $0x50] sm:$0xf]
        %v1797 = vld [vmem:[%s1775 + $0x54] sm:$0xf]
        %v1798 = vld [vmem:[%s1775 + $0x58] sm:$0xf]
        %v1799 = vld [vmem:[%s1775 + $0x5c] sm:$0xf]
        %v1800 = vld [vmem:[%s1775 + $0x60] sm:$0xf]
        %v1801 = vld [vmem:[%s1775 + $0x64] sm:$0xf]
        %v1802 = vld [vmem:[%s1775 + $0x68] sm:$0xf]
        %v1803 = vld [vmem:[%s1775 + $0x6c] sm:$0xf]
        %v1804 = vld [vmem:[%s1775 + $0x70] sm:$0xf]
        %v1805 = vld [vmem:[%s1775 + $0x74] sm:$0xf]
        %v1806 = vld [vmem:[%s1775 + $0x78] sm:$0xf]
        %v1807 = vld [vmem:[%s1775 + $0x7c] sm:$0xf]
        %v1808 = vld [vmem:[%s1775 + $0x80] sm:$0xf]
        %v1809 = vld [vmem:[%s1775 + $0x84] sm:$0xf]
        %v1810 = vld [vmem:[%s1775 + $0x88] sm:$0xf]
        %v1811 = vld [vmem:[%s1775 + $0x8c] sm:$0xf]
        %v1812 = vld [vmem:[%s1775 + $0x90] sm:$0xf]
        %v1813 = vld [vmem:[%s1775 + $0x94] sm:$0xf]
        %v1814 = vld [vmem:[%s1775 + $0x98] sm:$0xf]
        %v1815 = vld [vmem:[%s1775 + $0x9c] sm:$0xf]
        %v1816 = vld [vmem:[%s1775 + $0xa0] sm:$0xf]
        %v1817 = vld [vmem:[%s1775 + $0xa4] sm:$0xf]
        %v1818 = vld [vmem:[%s1775 + $0xa8] sm:$0xf]
        %v1819 = vld [vmem:[%s1775 + $0xac] sm:$0xf]
        %v1820 = vld [vmem:[%s1775 + $0xb0] sm:$0xf]
        %v1821 = vld [vmem:[%s1775 + $0xb4] sm:$0xf]
        %v1822 = vld [vmem:[%s1775 + $0xb8] sm:$0xf]
        %v1823 = vld [vmem:[%s1775 + $0xbc] sm:$0xf]
        %v1872 = vunpack.c.l.b16 %v1776
        %v1873 = vunpack.c.l.b16 %v1777
        %v1874 = vunpack.c.l.b16 %v1778
        %v1875 = vunpack.c.l.b16 %v1779
        %v1876 = vunpack.c.l.b16 %v1780
        %v1877 = vunpack.c.l.b16 %v1781
        %v1878 = vunpack.c.l.b16 %v1782
        %v1879 = vunpack.c.l.b16 %v1783
        %v1880 = vunpack.c.l.b16 %v1784
        %v1881 = vunpack.c.l.b16 %v1785
        %v1882 = vunpack.c.l.b16 %v1786
        %v1883 = vunpack.c.l.b16 %v1787
        %v1884 = vunpack.c.l.b16 %v1788
        %v1885 = vunpack.c.l.b16 %v1789
        %v1886 = vunpack.c.l.b16 %v1790
        %v1887 = vunpack.c.l.b16 %v1791
        %v1888 = vunpack.c.l.b16 %v1792
        %v1889 = vunpack.c.l.b16 %v1793
        %v1890 = vunpack.c.l.b16 %v1794
        %v1891 = vunpack.c.l.b16 %v1795
        %v1892 = vunpack.c.l.b16 %v1796
        %v1893 = vunpack.c.l.b16 %v1797
        %v1894 = vunpack.c.l.b16 %v1798
        %v1895 = vunpack.c.l.b16 %v1799
        %v1896 = vunpack.c.l.b16 %v1800
        %v1897 = vunpack.c.l.b16 %v1801
        %v1898 = vunpack.c.l.b16 %v1802
        %v1899 = vunpack.c.l.b16 %v1803
        %v1900 = vunpack.c.l.b16 %v1804
        %v1901 = vunpack.c.l.b16 %v1805
        %v1902 = vunpack.c.l.b16 %v1806
        %v1903 = vunpack.c.l.b16 %v1807
        %v1904 = vunpack.c.l.b16 %v1808
        %v1905 = vunpack.c.l.b16 %v1809
        %v1906 = vunpack.c.l.b16 %v1810
        %v1907 = vunpack.c.l.b16 %v1811
        %v1908 = vunpack.c.l.b16 %v1812
        %v1909 = vunpack.c.l.b16 %v1813
        %v1910 = vunpack.c.l.b16 %v1814
        %v1911 = vunpack.c.l.b16 %v1815
        %v1912 = vunpack.c.l.b16 %v1816
        %v1913 = vunpack.c.l.b16 %v1817
        %v1914 = vunpack.c.l.b16 %v1818
        %v1915 = vunpack.c.l.b16 %v1819
        %v1916 = vunpack.c.l.b16 %v1820
        %v1917 = vunpack.c.l.b16 %v1821
        %v1918 = vunpack.c.l.b16 %v1822
        %v1919 = vunpack.c.l.b16 %v1823
        %v1920 = vpack.c.b16 %v1873, %v1872
        %v1921 = vpack.c.b16 %v1875, %v1874
        %v1922 = vpack.c.b16 %v1877, %v1876
        %v1923 = vpack.c.b16 %v1879, %v1878
        %v1924 = vpack.c.b16 %v1881, %v1880
        %v1925 = vpack.c.b16 %v1883, %v1882
        %v1926 = vpack.c.b16 %v1885, %v1884
        %v1927 = vpack.c.b16 %v1887, %v1886
        %v1928 = vpack.c.b16 %v1889, %v1888
        %v1929 = vpack.c.b16 %v1891, %v1890
        %v1930 = vpack.c.b16 %v1893, %v1892
        %v1931 = vpack.c.b16 %v1895, %v1894
        %v1932 = vpack.c.b16 %v1897, %v1896
        %v1933 = vpack.c.b16 %v1899, %v1898
        %v1934 = vpack.c.b16 %v1901, %v1900
        %v1935 = vpack.c.b16 %v1903, %v1902
        %v1936 = vpack.c.b16 %v1905, %v1904
        %v1937 = vpack.c.b16 %v1907, %v1906
        %v1938 = vpack.c.b16 %v1909, %v1908
        %v1939 = vpack.c.b16 %v1911, %v1910
        %v1940 = vpack.c.b16 %v1913, %v1912
        %v1941 = vpack.c.b16 %v1915, %v1914
        %v1942 = vpack.c.b16 %v1917, %v1916
        %v1943 = vpack.c.b16 %v1919, %v1918
        %1968 = vmatprep.subr.bf16.mxu0 0
        %1969 = vmatpush1.bf16.msra.mxu0 %v1920
        %1970 = vmatprep.subr.bf16.mxu0 0
        %1971 = vmatpush1.bf16.msra.mxu0 %v1921
        %1972 = vmatprep.subr.bf16.mxu0 0
        %1973 = vmatpush1.bf16.msra.mxu0 %v1922
        %1974 = vmatprep.subr.bf16.mxu0 0
        %1975 = vmatpush1.bf16.msra.mxu0 %v1923
        %1976 = vmatprep.subr.bf16.mxu0 0
        %1977 = vmatpush1.bf16.msra.mxu0 %v1924
        %1978 = vmatprep.subr.bf16.mxu0 0
        %1979 = vmatpush1.bf16.msra.mxu0 %v1925
        %1980 = vmatprep.subr.bf16.mxu0 0
        %1981 = vmatpush1.bf16.msra.mxu0 %v1926
        %1982 = vmatprep.subr.bf16.mxu0 0
        %1983 = vmatpush1.bf16.msra.mxu0 %v1927
        %1984 = vmatprep.subr.bf16.mxu0 0
        %1985 = vmatpush1.bf16.msra.mxu0 %v1928
        %1986 = vmatprep.subr.bf16.mxu0 0
        %1987 = vmatpush1.bf16.msra.mxu0 %v1929
        %1988 = vmatprep.subr.bf16.mxu0 0
        %1989 = vmatpush1.bf16.msra.mxu0 %v1930
        %1990 = vmatprep.subr.bf16.mxu0 0
        %1991 = vmatpush1.bf16.msra.mxu0 %v1931
        %1992 = vmatprep.subr.bf16.mxu0 0
        %1993 = vmatpush1.bf16.msra.mxu0 %v1932
        %1994 = vmatprep.subr.bf16.mxu0 0
        %1995 = vmatpush1.bf16.msra.mxu0 %v1933
        %1996 = vmatprep.subr.bf16.mxu0 0
        %1997 = vmatpush1.bf16.msra.mxu0 %v1934
        %1998 = vmatprep.subr.bf16.mxu0 0
        %1999 = vmatpush1.bf16.msra.mxu0 %v1935
        %2000 = vmatprep.mubr.bf16.mxu0 %v1466
        %2001 = vmatmul.mubr.bf16.gmra.mrb[0].mxu0 %v1375
        %v2002 = vpop.f32.mrb[0].mxu0
        %v2003 = vadd.f32 0.0, %v2002
        %v2004 = vpop.f32.mrb[0].mxu0
        %v2005 = vpop.f32.mrb[0].mxu0
        %v2006 = vadd.f32 0.0, %v2005
        %v2007 = vpop.f32.mrb[0].mxu0
        %2008 = vmatprep.mubr.bf16.mxu0 %v1478
        %2009 = vmatmul.mubr.bf16.gmra.mrb[0].mxu0 %v1376
        %v2010 = vpop.f32.mrb[0].mxu0
        %v2011 = vadd.f32 0.0, %v2010
        %v2012 = vpop.f32.mrb[0].mxu0
        %v2013 = vpop.f32.mrb[0].mxu0
        %v2014 = vadd.f32 0.0, %v2013
        %v2015 = vpop.f32.mrb[0].mxu0
        %2016 = vmatprep.mubr.bf16.mxu0 %v1490
        %2017 = vmatmul.mubr.bf16.gmra.mrb[0].mxu0 %v1377
        %v2018 = vpop.f32.mrb[0].mxu0
        %v2019 = vadd.f32 0.0, %v2018
        %v2020 = vpop.f32.mrb[0].mxu0
        %v2021 = vpop.f32.mrb[0].mxu0
        %v2022 = vadd.f32 0.0, %v2021
        %v2023 = vpop.f32.mrb[0].mxu0
        %2024 = vmatprep.mubr.bf16.mxu0 %v1502
        %2025 = vmatmul.mubr.bf16.gmra.mrb[0].mxu0 %v1378
        %v2026 = vpop.f32.mrb[0].mxu0
        %v2027 = vadd.f32 0.0, %v2026
        %v2028 = vpop.f32.mrb[0].mxu0
        %v2029 = vpop.f32.mrb[0].mxu0
        %v2030 = vadd.f32 0.0, %v2029
        %v2031 = vpop.f32.mrb[0].mxu0
        %2032 = vmatprep.mubr.bf16.mxu0 %v1514
        %2033 = vmatmul.mubr.bf16.gmra.mrb[0].mxu0 %v1379
        %v2034 = vpop.f32.mrb[0].mxu0
        %v2035 = vadd.f32 0.0, %v2034
        %v2036 = vpop.f32.mrb[0].mxu0
        %v2037 = vpop.f32.mrb[0].mxu0
        %v2038 = vadd.f32 0.0, %v2037
        %v2039 = vpop.f32.mrb[0].mxu0
        %2040 = vmatprep.mubr.bf16.mxu0 %v1526
        %2041 = vmatmul.mubr.bf16.gmra.mrb[0].mxu0 %v1380
        %v2042 = vpop.f32.mrb[0].mxu0
        %v2043 = vadd.f32 0.0, %v2042
        %v2044 = vpop.f32.mrb[0].mxu0
        %v2045 = vpop.f32.mrb[0].mxu0
        %v2046 = vadd.f32 0.0, %v2045
        %v2047 = vpop.f32.mrb[0].mxu0
        %2048 = vmatprep.mubr.bf16.mxu0 %v1538
        %2049 = vmatmul.mubr.bf16.gmra.mrb[0].mxu0 %v1381
        %v2050 = vpop.f32.mrb[0].mxu0
        %v2051 = vadd.f32 0.0, %v2050
        %v2052 = vpop.f32.mrb[0].mxu0
        %v2053 = vpop.f32.mrb[0].mxu0
        %v2054 = vadd.f32 0.0, %v2053
        %v2055 = vpop.f32.mrb[0].mxu0
        %2056 = vmatprep.mubr.bf16.mxu0 %v1550
        %2057 = vmatmul.mubr.bf16.gmra.mrb[0].mxu0 %v1382
        %v2058 = vpop.f32.mrb[0].mxu0
        %v2059 = vadd.f32 0.0, %v2058
        %v2060 = vpop.f32.mrb[0].mxu0
        %v2061 = vpop.f32.mrb[0].mxu0
        %v2062 = vadd.f32 0.0, %v2061
        %v2063 = vpop.f32.mrb[0].mxu0
        %2064 = vmatprep.mubr.bf16.mxu0 %v1562
        %2065 = vmatmul.mubr.bf16.gmra.mrb[0].mxu0 %v1383
        %v2066 = vpop.f32.mrb[0].mxu0
        %v2067 = vadd.f32 0.0, %v2066
        %v2068 = vpop.f32.mrb[0].mxu0
        %v2069 = vpop.f32.mrb[0].mxu0
        %v2070 = vadd.f32 0.0, %v2069
        %v2071 = vpop.f32.mrb[0].mxu0
        %2072 = vmatprep.mubr.bf16.mxu0 %v1574
        %2073 = vmatmul.mubr.bf16.gmra.mrb[0].mxu0 %v1384
        %v2074 = vpop.f32.mrb[0].mxu0
        %v2075 = vadd.f32 0.0, %v2074
        %v2076 = vpop.f32.mrb[0].mxu0
        %v2077 = vpop.f32.mrb[0].mxu0
        %v2078 = vadd.f32 0.0, %v2077
        %v2079 = vpop.f32.mrb[0].mxu0
        %2080 = vmatprep.mubr.bf16.mxu0 %v1586
        %2081 = vmatmul.mubr.bf16.gmra.mrb[0].mxu0 %v1385
        %v2082 = vpop.f32.mrb[0].mxu0
        %v2083 = vadd.f32 0.0, %v2082
        %v2084 = vpop.f32.mrb[0].mxu0
        %v2085 = vpop.f32.mrb[0].mxu0
        %v2086 = vadd.f32 0.0, %v2085
        %v2087 = vpop.f32.mrb[0].mxu0
        %2088 = vmatprep.mubr.bf16.mxu0 %v1598
        %2089 = vmatmul.mubr.bf16.gmra.mrb[0].mxu0 %v1386
        %v2090 = vpop.f32.mrb[0].mxu0
        %v2091 = vadd.f32 0.0, %v2090
        %v2092 = vpop.f32.mrb[0].mxu0
        %v2093 = vpop.f32.mrb[0].mxu0
        %v2094 = vadd.f32 0.0, %v2093
        %v2095 = vpop.f32.mrb[0].mxu0
        %2096 = vmatprep.mubr.bf16.mxu0 %v1610
        %2097 = vmatmul.mubr.bf16.gmra.mrb[0].mxu0 %v1387
        %v2098 = vpop.f32.mrb[0].mxu0
        %v2099 = vadd.f32 0.0, %v2098
        %v2100 = vpop.f32.mrb[0].mxu0
        %v2101 = vpop.f32.mrb[0].mxu0
        %v2102 = vadd.f32 0.0, %v2101
        %v2103 = vpop.f32.mrb[0].mxu0
        %2104 = vmatprep.mubr.bf16.mxu0 %v1622
        %2105 = vmatmul.mubr.bf16.gmra.mrb[0].mxu0 %v1388
        %v2106 = vpop.f32.mrb[0].mxu0
        %v2107 = vadd.f32 0.0, %v2106
        %v2108 = vpop.f32.mrb[0].mxu0
        %v2109 = vpop.f32.mrb[0].mxu0
        %v2110 = vadd.f32 0.0, %v2109
        %v2111 = vpop.f32.mrb[0].mxu0
        %2112 = vmatprep.mubr.bf16.mxu0 %v1634
        %2113 = vmatmul.mubr.bf16.gmra.mrb[0].mxu0 %v1389
        %v2114 = vpop.f32.mrb[0].mxu0
        %v2115 = vadd.f32 0.0, %v2114
        %v2116 = vpop.f32.mrb[0].mxu0
        %v2117 = vpop.f32.mrb[0].mxu0
        %v2118 = vadd.f32 0.0, %v2117
        %v2119 = vpop.f32.mrb[0].mxu0
        %2120 = vmatprep.mubr.bf16.mxu0 %v1646
        %2121 = vmatmul.mubr.bf16.gmra.mrb[0].mxu0 %v1390
        %v2122 = vpop.f32.mrb[0].mxu0
        %v2123 = vadd.f32 0.0, %v2122
        %v2124 = vpop.f32.mrb[0].mxu0
        %v2125 = vpop.f32.mrb[0].mxu0
        %v2126 = vadd.f32 0.0, %v2125
        %v2127 = vpop.f32.mrb[0].mxu0
        %2128 = vdwg.mxu0
        %2129 = vmatprep.subr.bf16.mxu0 0
        %2130 = vmatpush1.bf16.msra.mxu0 %v1936
        %2131 = vmatprep.subr.bf16.mxu0 0
        %2132 = vmatpush1.bf16.msra.mxu0 %v1937
        %2133 = vmatprep.subr.bf16.mxu0 0
        %2134 = vmatpush1.bf16.msra.mxu0 %v1938
        %2135 = vmatprep.subr.bf16.mxu0 0
        %2136 = vmatpush1.bf16.msra.mxu0 %v1939
        %2137 = vmatprep.subr.bf16.mxu0 0
        %2138 = vmatpush1.bf16.msra.mxu0 %v1940
        %2139 = vmatprep.subr.bf16.mxu0 0
        %2140 = vmatpush1.bf16.msra.mxu0 %v1941
        %2141 = vmatprep.subr.bf16.mxu0 0
        %2142 = vmatpush1.bf16.msra.mxu0 %v1942
        %2143 = vmatprep.subr.bf16.mxu0 0
        %2144 = vmatpush1.bf16.msra.mxu0 %v1943
        %2145 = vmatprep.subr.bf16.mxu0 0
        %2146 = vmatpush1.bf16.msra.mxu0 0
        %2147 = vmatprep.subr.bf16.mxu0 0
        %2148 = vmatpush1.bf16.msra.mxu0 0
        %2149 = vmatprep.subr.bf16.mxu0 0
        %2150 = vmatpush1.bf16.msra.mxu0 0
        %2151 = vmatprep.subr.bf16.mxu0 0
        %2152 = vmatpush1.bf16.msra.mxu0 0
        %2153 = vmatprep.subr.bf16.mxu0 0
        %2154 = vmatpush1.bf16.msra.mxu0 0
        %2155 = vmatprep.subr.bf16.mxu0 0
        %2156 = vmatpush1.bf16.msra.mxu0 0
        %2157 = vmatprep.subr.bf16.mxu0 0
        %2158 = vmatpush1.bf16.msra.mxu0 0
        %2159 = vmatprep.subr.bf16.mxu0 0
        %2160 = vmatpush1.bf16.msra.mxu0 0
        %2161 = vmatprep.mubr.bf16.mxu0 0
        %2162 = vmatmul.mubr.bf16.gmra.mrb[0].mxu0 %v1713
        %v2163 = vpop.f32.mrb[0].mxu0
        %v2164 = vadd.f32 %v2003, %v2163
        %v2165 = vpop.f32.mrb[0].mxu0
        %v2166 = vpop.f32.mrb[0].mxu0
        %v2167 = vadd.f32 %v2006, %v2166
        %v2168 = vpop.f32.mrb[0].mxu0
        %2169 = vmatprep.mubr.bf16.mxu0 0
        %2170 = vmatmul.mubr.bf16.gmra.mrb[0].mxu0 %v1716
        %v2171 = vpop.f32.mrb[0].mxu0
        %v2172 = vadd.f32 %v2011, %v2171
        %v2173 = vpop.f32.mrb[0].mxu0
        %v2174 = vpop.f32.mrb[0].mxu0
        %v2175 = vadd.f32 %v2014, %v2174
        %v2176 = vpop.f32.mrb[0].mxu0
        %2177 = vmatprep.mubr.bf16.mxu0 0
        %2178 = vmatmul.mubr.bf16.gmra.mrb[0].mxu0 %v1719
        %v2179 = vpop.f32.mrb[0].mxu0
        %v2180 = vadd.f32 %v2019, %v2179
        %v2181 = vpop.f32.mrb[0].mxu0
        %v2182 = vpop.f32.mrb[0].mxu0
        %v2183 = vadd.f32 %v2022, %v2182
        %v2184 = vpop.f32.mrb[0].mxu0
        %2185 = vmatprep.mubr.bf16.mxu0 0
        %2186 = vmatmul.mubr.bf16.gmra.mrb[0].mxu0 %v1722
        %v2187 = vpop.f32.mrb[0].mxu0
        %v2188 = vadd.f32 %v2027, %v2187
        %v2189 = vpop.f32.mrb[0].mxu0
        %v2190 = vpop.f32.mrb[0].mxu0
        %v2191 = vadd.f32 %v2030, %v2190
        %v2192 = vpop.f32.mrb[0].mxu0
        %2193 = vmatprep.mubr.bf16.mxu0 0
        %2194 = vmatmul.mubr.bf16.gmra.mrb[0].mxu0 %v1725
        %v2195 = vpop.f32.mrb[0].mxu0
        %v2196 = vadd.f32 %v2035, %v2195
        %v2197 = vpop.f32.mrb[0].mxu0
        %v2198 = vpop.f32.mrb[0].mxu0
        %v2199 = vadd.f32 %v2038, %v2198
        %v2200 = vpop.f32.mrb[0].mxu0
        %2201 = vmatprep.mubr.bf16.mxu0 0
        %2202 = vmatmul.mubr.bf16.gmra.mrb[0].mxu0 %v1728
        %v2203 = vpop.f32.mrb[0].mxu0
        %v2204 = vadd.f32 %v2043, %v2203
        %v2205 = vpop.f32.mrb[0].mxu0
        %v2206 = vpop.f32.mrb[0].mxu0
        %v2207 = vadd.f32 %v2046, %v2206
        %v2208 = vpop.f32.mrb[0].mxu0
        %2209 = vmatprep.mubr.bf16.mxu0 0
        %2210 = vmatmul.mubr.bf16.gmra.mrb[0].mxu0 %v1731
        %v2211 = vpop.f32.mrb[0].mxu0
        %v2212 = vadd.f32 %v2051, %v2211
        %v2213 = vpop.f32.mrb[0].mxu0
        %v2214 = vpop.f32.mrb[0].mxu0
        %v2215 = vadd.f32 %v2054, %v2214
        %v2216 = vpop.f32.mrb[0].mxu0
        %2217 = vmatprep.mubr.bf16.mxu0 0
        %2218 = vmatmul.mubr.bf16.gmra.mrb[0].mxu0 %v1734
        %v2219 = vpop.f32.mrb[0].mxu0
        %v2220 = vadd.f32 %v2059, %v2219
        %v2221 = vpop.f32.mrb[0].mxu0
        %v2222 = vpop.f32.mrb[0].mxu0
        %v2223 = vadd.f32 %v2062, %v2222
        %v2224 = vpop.f32.mrb[0].mxu0
        %2225 = vmatprep.mubr.bf16.mxu0 0
        %2226 = vmatmul.mubr.bf16.gmra.mrb[0].mxu0 %v1737
        %v2227 = vpop.f32.mrb[0].mxu0
        %v2228 = vadd.f32 %v2067, %v2227
        %v2229 = vpop.f32.mrb[0].mxu0
        %v2230 = vpop.f32.mrb[0].mxu0
        %v2231 = vadd.f32 %v2070, %v2230
        %v2232 = vpop.f32.mrb[0].mxu0
        %2233 = vmatprep.mubr.bf16.mxu0 0
        %2234 = vmatmul.mubr.bf16.gmra.mrb[0].mxu0 %v1740
        %v2235 = vpop.f32.mrb[0].mxu0
        %v2236 = vadd.f32 %v2075, %v2235
        %v2237 = vpop.f32.mrb[0].mxu0
        %v2238 = vpop.f32.mrb[0].mxu0
        %v2239 = vadd.f32 %v2078, %v2238
        %v2240 = vpop.f32.mrb[0].mxu0
        %2241 = vmatprep.mubr.bf16.mxu0 0
        %2242 = vmatmul.mubr.bf16.gmra.mrb[0].mxu0 %v1743
        %v2243 = vpop.f32.mrb[0].mxu0
        %v2244 = vadd.f32 %v2083, %v2243
        %v2245 = vpop.f32.mrb[0].mxu0
        %v2246 = vpop.f32.mrb[0].mxu0
        %v2247 = vadd.f32 %v2086, %v2246
        %v2248 = vpop.f32.mrb[0].mxu0
        %2249 = vmatprep.mubr.bf16.mxu0 0
        %2250 = vmatmul.mubr.bf16.gmra.mrb[0].mxu0 %v1746
        %v2251 = vpop.f32.mrb[0].mxu0
        %v2252 = vadd.f32 %v2091, %v2251
        %v2253 = vpop.f32.mrb[0].mxu0
        %v2254 = vpop.f32.mrb[0].mxu0
        %v2255 = vadd.f32 %v2094, %v2254
        %v2256 = vpop.f32.mrb[0].mxu0
        %2257 = vmatprep.mubr.bf16.mxu0 0
        %2258 = vmatmul.mubr.bf16.gmra.mrb[0].mxu0 %v1749
        %v2259 = vpop.f32.mrb[0].mxu0
        %v2260 = vadd.f32 %v2099, %v2259
        %v2261 = vpop.f32.mrb[0].mxu0
        %v2262 = vpop.f32.mrb[0].mxu0
        %v2263 = vadd.f32 %v2102, %v2262
        %v2264 = vpop.f32.mrb[0].mxu0
        %2265 = vmatprep.mubr.bf16.mxu0 0
        %2266 = vmatmul.mubr.bf16.gmra.mrb[0].mxu0 %v1752
        %v2267 = vpop.f32.mrb[0].mxu0
        %v2268 = vadd.f32 %v2107, %v2267
        %v2269 = vpop.f32.mrb[0].mxu0
        %v2270 = vpop.f32.mrb[0].mxu0
        %v2271 = vadd.f32 %v2110, %v2270
        %v2272 = vpop.f32.mrb[0].mxu0
        %2273 = vmatprep.mubr.bf16.mxu0 0
        %2274 = vmatmul.mubr.bf16.gmra.mrb[0].mxu0 %v1755
        %v2275 = vpop.f32.mrb[0].mxu0
        %v2276 = vadd.f32 %v2115, %v2275
        %v2277 = vpop.f32.mrb[0].mxu0
        %v2278 = vpop.f32.mrb[0].mxu0
        %v2279 = vadd.f32 %v2118, %v2278
        %v2280 = vpop.f32.mrb[0].mxu0
        %2281 = vmatprep.mubr.bf16.mxu0 0
        %2282 = vmatmul.mubr.bf16.gmra.mrb[0].mxu0 %v1758
        %v2283 = vpop.f32.mrb[0].mxu0
        %v2284 = vadd.f32 %v2123, %v2283
        %v2285 = vpop.f32.mrb[0].mxu0
        %v2286 = vpop.f32.mrb[0].mxu0
        %v2287 = vadd.f32 %v2126, %v2286
        %v2288 = vpop.f32.mrb[0].mxu0
        %2289 = vdwg.mxu0
        %v2290 = vld [vmem:[#allocation2] sm:$0xff]
        %v2291 = vld [vmem:[#allocation2 + $0x8] sm:$0xff]
        %v2292 = vld [vmem:[#allocation2 + $0x10] sm:$0xff]
        %v2293 = vld [vmem:[#allocation2 + $0x18] sm:$0xff]
        %v2294 = vld [vmem:[#allocation2 + $0x20] sm:$0xff]
        %v2295 = vld [vmem:[#allocation2 + $0x28] sm:$0xff]
        %v2296 = vld [vmem:[#allocation2 + $0x30] sm:$0xff]
        %v2297 = vld [vmem:[#allocation2 + $0x38] sm:$0xff]
        %v2298 = vld [vmem:[#allocation2 + $0x40] sm:$0xff]
        %v2299 = vld [vmem:[#allocation2 + $0x48] sm:$0xff]
        %v2300 = vld [vmem:[#allocation2 + $0x50] sm:$0xff]
        %v2301 = vld [vmem:[#allocation2 + $0x58] sm:$0xff]
        %v2302 = vld [vmem:[#allocation2 + $0x60] sm:$0xff]
        %v2303 = vld [vmem:[#allocation2 + $0x68] sm:$0xff]
        %v2304 = vld [vmem:[#allocation2 + $0x70] sm:$0xff]
        %v2305 = vld [vmem:[#allocation2 + $0x78] sm:$0xff]
        %v2306 = vld [vmem:[#allocation2 + $0x80] sm:$0xff]
        %v2307 = vld [vmem:[#allocation2 + $0x88] sm:$0xff]
        %v2308 = vld [vmem:[#allocation2 + $0x90] sm:$0xff]
        %v2309 = vld [vmem:[#allocation2 + $0x98] sm:$0xff]
        %v2310 = vld [vmem:[#allocation2 + $0xa0] sm:$0xff]
        %v2311 = vld [vmem:[#allocation2 + $0xa8] sm:$0xff]
        %v2312 = vld [vmem:[#allocation2 + $0xb0] sm:$0xff]
        %v2313 = vld [vmem:[#allocation2 + $0xb8] sm:$0xff]
        %v2314 = vld [vmem:[#allocation2 + $0xc0] sm:$0xff]
        %v2315 = vld [vmem:[#allocation2 + $0xc8] sm:$0xff]
        %v2316 = vld [vmem:[#allocation2 + $0xd0] sm:$0xff]
        %v2317 = vld [vmem:[#allocation2 + $0xd8] sm:$0xff]
        %v2318 = vld [vmem:[#allocation2 + $0xe0] sm:$0xff]
        %v2319 = vld [vmem:[#allocation2 + $0xe8] sm:$0xff]
        %v2320 = vld [vmem:[#allocation2 + $0xf0] sm:$0xff]
        %v2321 = vld [vmem:[#allocation2 + $0xf8] sm:$0xff]
        %v2322 = vadd.f32 %v2290, %v2164
        %v2323 = vadd.f32 %v2291, %v2167
        %v2324 = vadd.f32 %v2292, %v2172
        %v2325 = vadd.f32 %v2293, %v2175
        %v2326 = vadd.f32 %v2294, %v2180
        %v2327 = vadd.f32 %v2295, %v2183
        %v2328 = vadd.f32 %v2296, %v2188
        %v2329 = vadd.f32 %v2297, %v2191
        %v2330 = vadd.f32 %v2298, %v2196
        %v2331 = vadd.f32 %v2299, %v2199
        %v2332 = vadd.f32 %v2300, %v2204
        %v2333 = vadd.f32 %v2301, %v2207
        %v2334 = vadd.f32 %v2302, %v2212
        %v2335 = vadd.f32 %v2303, %v2215
        %v2336 = vadd.f32 %v2304, %v2220
        %v2337 = vadd.f32 %v2305, %v2223
        %v2338 = vadd.f32 %v2306, %v2228
        %v2339 = vadd.f32 %v2307, %v2231
        %v2340 = vadd.f32 %v2308, %v2236
        %v2341 = vadd.f32 %v2309, %v2239
        %v2342 = vadd.f32 %v2310, %v2244
        %v2343 = vadd.f32 %v2311, %v2247
        %v2344 = vadd.f32 %v2312, %v2252
        %v2345 = vadd.f32 %v2313, %v2255
        %v2346 = vadd.f32 %v2314, %v2260
        %v2347 = vadd.f32 %v2315, %v2263
        %v2348 = vadd.f32 %v2316, %v2268
        %v2349 = vadd.f32 %v2317, %v2271
        %v2350 = vadd.f32 %v2318, %v2276
        %v2351 = vadd.f32 %v2319, %v2279
        %v2352 = vadd.f32 %v2320, %v2284
        %v2353 = vadd.f32 %v2321, %v2287
        %2354 = vst [vmem:[#allocation2] sm:$0xff] %v2322
        %2355 = vst [vmem:[#allocation2 + $0x8] sm:$0xff] %v2323
        %2356 = vst [vmem:[#allocation2 + $0x10] sm:$0xff] %v2324
        %2357 = vst [vmem:[#allocation2 + $0x18] sm:$0xff] %v2325
        %2358 = vst [vmem:[#allocation2 + $0x20] sm:$0xff] %v2326
        %2359 = vst [vmem:[#allocation2 + $0x28] sm:$0xff] %v2327
        %2360 = vst [vmem:[#allocation2 + $0x30] sm:$0xff] %v2328
        %2361 = vst [vmem:[#allocation2 + $0x38] sm:$0xff] %v2329
        %2362 = vst [vmem:[#allocation2 + $0x40] sm:$0xff] %v2330
        %2363 = vst [vmem:[#allocation2 + $0x48] sm:$0xff] %v2331
        %2364 = vst [vmem:[#allocation2 + $0x50] sm:$0xff] %v2332
        %2365 = vst [vmem:[#allocation2 + $0x58] sm:$0xff] %v2333
        %2366 = vst [vmem:[#allocation2 + $0x60] sm:$0xff] %v2334
        %2367 = vst [vmem:[#allocation2 + $0x68] sm:$0xff] %v2335
        %2368 = vst [vmem:[#allocation2 + $0x70] sm:$0xff] %v2336
        %2369 = vst [vmem:[#allocation2 + $0x78] sm:$0xff] %v2337
        %2370 = vst [vmem:[#allocation2 + $0x80] sm:$0xff] %v2338
        %2371 = vst [vmem:[#allocation2 + $0x88] sm:$0xff] %v2339
        %2372 = vst [vmem:[#allocation2 + $0x90] sm:$0xff] %v2340
        %2373 = vst [vmem:[#allocation2 + $0x98] sm:$0xff] %v2341
        %2374 = vst [vmem:[#allocation2 + $0xa0] sm:$0xff] %v2342
        %2375 = vst [vmem:[#allocation2 + $0xa8] sm:$0xff] %v2343
        %2376 = vst [vmem:[#allocation2 + $0xb0] sm:$0xff] %v2344
        %2377 = vst [vmem:[#allocation2 + $0xb8] sm:$0xff] %v2345
        %2378 = vst [vmem:[#allocation2 + $0xc0] sm:$0xff] %v2346
        %2379 = vst [vmem:[#allocation2 + $0xc8] sm:$0xff] %v2347
        %2380 = vst [vmem:[#allocation2 + $0xd0] sm:$0xff] %v2348
        %2381 = vst [vmem:[#allocation2 + $0xd8] sm:$0xff] %v2349
        %2382 = vst [vmem:[#allocation2 + $0xe0] sm:$0xff] %v2350
        %2383 = vst [vmem:[#allocation2 + $0xe8] sm:$0xff] %v2351
        %2384 = vst [vmem:[#allocation2 + $0xf0] sm:$0xff] %v2352
        %2385 = vst [vmem:[#allocation2 + $0xf8] sm:$0xff] %v2353
        %s2386 = scalar_lea.vmem %s168, 24
        %v2387 = vld [vmem:[%s2386] sm:$0xf]
        %v2388 = vld [vmem:[%s2386 + $0x4] sm:$0xf]
        %v2389 = vld [vmem:[%s2386 + $0xc] sm:$0xf]
        %v2390 = vld [vmem:[%s2386 + $0x10] sm:$0xf]
        %v2391 = vld [vmem:[%s2386 + $0x18] sm:$0xf]
        %v2392 = vld [vmem:[%s2386 + $0x1c] sm:$0xf]
        %v2393 = vld [vmem:[%s2386 + $0x24] sm:$0xf]
        %v2394 = vld [vmem:[%s2386 + $0x28] sm:$0xf]
        %v2395 = vld [vmem:[%s2386 + $0x30] sm:$0xf]
        %v2396 = vld [vmem:[%s2386 + $0x34] sm:$0xf]
        %v2397 = vld [vmem:[%s2386 + $0x3c] sm:$0xf]
        %v2398 = vld [vmem:[%s2386 + $0x40] sm:$0xf]
        %v2399 = vld [vmem:[%s2386 + $0x48] sm:$0xf]
        %v2400 = vld [vmem:[%s2386 + $0x4c] sm:$0xf]
        %v2401 = vld [vmem:[%s2386 + $0x54] sm:$0xf]
        %v2402 = vld [vmem:[%s2386 + $0x58] sm:$0xf]
        %v2403 = vld [vmem:[%s2386 + $0x60] sm:$0xf]
        %v2404 = vld [vmem:[%s2386 + $0x64] sm:$0xf]
        %v2405 = vld [vmem:[%s2386 + $0x6c] sm:$0xf]
        %v2406 = vld [vmem:[%s2386 + $0x70] sm:$0xf]
        %v2407 = vld [vmem:[%s2386 + $0x78] sm:$0xf]
        %v2408 = vld [vmem:[%s2386 + $0x7c] sm:$0xf]
        %v2409 = vld [vmem:[%s2386 + $0x84] sm:$0xf]
        %v2410 = vld [vmem:[%s2386 + $0x88] sm:$0xf]
        %v2411 = vld [vmem:[%s2386 + $0x90] sm:$0xf]
        %v2412 = vld [vmem:[%s2386 + $0x94] sm:$0xf]
        %v2413 = vld [vmem:[%s2386 + $0x9c] sm:$0xf]
        %v2414 = vld [vmem:[%s2386 + $0xa0] sm:$0xf]
        %v2415 = vld [vmem:[%s2386 + $0xa8] sm:$0xf]
        %v2416 = vld [vmem:[%s2386 + $0xac] sm:$0xf]
        %v2417 = vld [vmem:[%s2386 + $0xb4] sm:$0xf]
        %v2418 = vld [vmem:[%s2386 + $0xb8] sm:$0xf]
        %v2419 = vld [vmem:[%s2386 + $0x8] sm:$0x1]
        %v2420 = vld [vmem:[%s2386 + $0x14] sm:$0x1]
        %v2421 = vld [vmem:[%s2386 + $0x20] sm:$0x1]
        %v2422 = vld [vmem:[%s2386 + $0x2c] sm:$0x1]
        %v2423 = vld [vmem:[%s2386 + $0x38] sm:$0x1]
        %v2424 = vld [vmem:[%s2386 + $0x44] sm:$0x1]
        %v2425 = vld [vmem:[%s2386 + $0x50] sm:$0x1]
        %v2426 = vld [vmem:[%s2386 + $0x5c] sm:$0x1]
        %v2427 = vld [vmem:[%s2386 + $0x68] sm:$0x1]
        %v2428 = vld [vmem:[%s2386 + $0x74] sm:$0x1]
        %v2429 = vld [vmem:[%s2386 + $0x80] sm:$0x1]
        %v2430 = vld [vmem:[%s2386 + $0x8c] sm:$0x1]
        %v2431 = vld [vmem:[%s2386 + $0x98] sm:$0x1]
        %v2432 = vld [vmem:[%s2386 + $0xa4] sm:$0x1]
        %v2433 = vld [vmem:[%s2386 + $0xb0] sm:$0x1]
        %v2434 = vld [vmem:[%s2386 + $0xbc] sm:$0x1]
        %v2435 = vld [vmem:[%s2386] sm:$0xe]
        %v2436 = vld [vmem:[%s2386 + $0xc] sm:$0xe]
        %v2437 = vld [vmem:[%s2386 + $0x18] sm:$0xe]
        %v2438 = vld [vmem:[%s2386 + $0x24] sm:$0xe]
        %v2439 = vld [vmem:[%s2386 + $0x30] sm:$0xe]
        %v2440 = vld [vmem:[%s2386 + $0x3c] sm:$0xe]
        %v2441 = vld [vmem:[%s2386 + $0x48] sm:$0xe]
        %v2442 = vld [vmem:[%s2386 + $0x54] sm:$0xe]
        %v2443 = vld [vmem:[%s2386 + $0x60] sm:$0xe]
        %v2444 = vld [vmem:[%s2386 + $0x6c] sm:$0xe]
        %v2445 = vld [vmem:[%s2386 + $0x78] sm:$0xe]
        %v2446 = vld [vmem:[%s2386 + $0x84] sm:$0xe]
        %v2447 = vld [vmem:[%s2386 + $0x90] sm:$0xe]
        %v2448 = vld [vmem:[%s2386 + $0x9c] sm:$0xe]
        %v2449 = vld [vmem:[%s2386 + $0xa8] sm:$0xe]
        %v2450 = vld [vmem:[%s2386 + $0xb4] sm:$0xe]
        %v2483 = vunpack.c.l.b16 %v2387
        %v2484 = vunpack.c.l.b16 %v2388
        %v2485 = vunpack.c.l.b16 %v2389
        %v2486 = vunpack.c.l.b16 %v2390
        %v2487 = vunpack.c.l.b16 %v2391
        %v2488 = vunpack.c.l.b16 %v2392
        %v2489 = vunpack.c.l.b16 %v2393
        %v2490 = vunpack.c.l.b16 %v2394
        %v2491 = vunpack.c.l.b16 %v2395
        %v2492 = vunpack.c.l.b16 %v2396
        %v2493 = vunpack.c.l.b16 %v2397
        %v2494 = vunpack.c.l.b16 %v2398
        %v2495 = vunpack.c.l.b16 %v2399
        %v2496 = vunpack.c.l.b16 %v2400
        %v2497 = vunpack.c.l.b16 %v2401
        %v2498 = vunpack.c.l.b16 %v2402
        %v2499 = vunpack.c.l.b16 %v2403
        %v2500 = vunpack.c.l.b16 %v2404
        %v2501 = vunpack.c.l.b16 %v2405
        %v2502 = vunpack.c.l.b16 %v2406
        %v2503 = vunpack.c.l.b16 %v2407
        %v2504 = vunpack.c.l.b16 %v2408
        %v2505 = vunpack.c.l.b16 %v2409
        %v2506 = vunpack.c.l.b16 %v2410
        %v2507 = vunpack.c.l.b16 %v2411
        %v2508 = vunpack.c.l.b16 %v2412
        %v2509 = vunpack.c.l.b16 %v2413
        %v2510 = vunpack.c.l.b16 %v2414
        %v2511 = vunpack.c.l.b16 %v2415
        %v2512 = vunpack.c.l.b16 %v2416
        %v2513 = vunpack.c.l.b16 %v2417
        %v2514 = vunpack.c.l.b16 %v2418
        %v2515 = vpack.c.b16 %v2484, %v2483
        %v2516 = vpack.c.b16 %v2486, %v2485
        %v2517 = vpack.c.b16 %v2488, %v2487
        %v2518 = vpack.c.b16 %v2490, %v2489
        %v2519 = vpack.c.b16 %v2492, %v2491
        %v2520 = vpack.c.b16 %v2494, %v2493
        %v2521 = vpack.c.b16 %v2496, %v2495
        %v2522 = vpack.c.b16 %v2498, %v2497
        %v2523 = vpack.c.b16 %v2500, %v2499
        %v2524 = vpack.c.b16 %v2502, %v2501
        %v2525 = vpack.c.b16 %v2504, %v2503
        %v2526 = vpack.c.b16 %v2506, %v2505
        %v2527 = vpack.c.b16 %v2508, %v2507
        %v2528 = vpack.c.b16 %v2510, %v2509
        %v2529 = vpack.c.b16 %v2512, %v2511
        %v2530 = vpack.c.b16 %v2514, %v2513
        %v2563 = vunpack.c.l.b16 %v2419
        %v2564 = vunpack.c.l.b16 %v2420
        %v2565 = vunpack.c.l.b16 %v2421
        %v2566 = vunpack.c.l.b16 %v2422
        %v2567 = vunpack.c.l.b16 %v2423
        %v2568 = vunpack.c.l.b16 %v2424
        %v2569 = vunpack.c.l.b16 %v2425
        %v2570 = vunpack.c.l.b16 %v2426
        %v2571 = vunpack.c.l.b16 %v2427
        %v2572 = vunpack.c.l.b16 %v2428
        %v2573 = vunpack.c.l.b16 %v2429
        %v2574 = vunpack.c.l.b16 %v2430
        %v2575 = vunpack.c.l.b16 %v2431
        %v2576 = vunpack.c.l.b16 %v2432
        %v2577 = vunpack.c.l.b16 %v2433
        %v2578 = vunpack.c.l.b16 %v2434
        %v2579 = vpack.c.b16 %v2563, %v2563
        %v2580 = vpack.c.b16 %v2564, %v2564
        %v2581 = vpack.c.b16 %v2565, %v2565
        %v2582 = vpack.c.b16 %v2566, %v2566
        %v2583 = vpack.c.b16 %v2567, %v2567
        %v2584 = vpack.c.b16 %v2568, %v2568
        %v2585 = vpack.c.b16 %v2569, %v2569
        %v2586 = vpack.c.b16 %v2570, %v2570
        %v2587 = vpack.c.b16 %v2571, %v2571
        %v2588 = vpack.c.b16 %v2572, %v2572
        %v2589 = vpack.c.b16 %v2573, %v2573
        %v2590 = vpack.c.b16 %v2574, %v2574
        %v2591 = vpack.c.b16 %v2575, %v2575
        %v2592 = vpack.c.b16 %v2576, %v2576
        %v2593 = vpack.c.b16 %v2577, %v2577
        %v2594 = vpack.c.b16 %v2578, %v2578
        %v2596 = vshrl.u32 %v2515, 16
        %v2598 = vshll.u32 %v2515, 16
        %v2600 = vrot.slane %v2598, 1
        %v2601 = vor.u32 %v2596, %v2600
        %v2603 = vshll.u32 %v2579, 16
        %v2605 = vrot.slane %v2603, 1
        %v2606 = vsel %vm378, %v2601, %v2605
        %v2608 = vshrl.u32 %v2516, 16
        %v2610 = vshll.u32 %v2516, 16
        %v2612 = vrot.slane %v2610, 1
        %v2613 = vor.u32 %v2608, %v2612
        %v2615 = vshll.u32 %v2580, 16
        %v2617 = vrot.slane %v2615, 1
        %v2618 = vsel %vm378, %v2613, %v2617
        %v2620 = vshrl.u32 %v2517, 16
        %v2622 = vshll.u32 %v2517, 16
        %v2624 = vrot.slane %v2622, 1
        %v2625 = vor.u32 %v2620, %v2624
        %v2627 = vshll.u32 %v2581, 16
        %v2629 = vrot.slane %v2627, 1
        %v2630 = vsel %vm378, %v2625, %v2629
        %v2632 = vshrl.u32 %v2518, 16
        %v2634 = vshll.u32 %v2518, 16
        %v2636 = vrot.slane %v2634, 1
        %v2637 = vor.u32 %v2632, %v2636
        %v2639 = vshll.u32 %v2582, 16
        %v2641 = vrot.slane %v2639, 1
        %v2642 = vsel %vm378, %v2637, %v2641
        %v2644 = vshrl.u32 %v2519, 16
        %v2646 = vshll.u32 %v2519, 16
        %v2648 = vrot.slane %v2646, 1
        %v2649 = vor.u32 %v2644, %v2648
        %v2651 = vshll.u32 %v2583, 16
        %v2653 = vrot.slane %v2651, 1
        %v2654 = vsel %vm378, %v2649, %v2653
        %v2656 = vshrl.u32 %v2520, 16
        %v2658 = vshll.u32 %v2520, 16
        %v2660 = vrot.slane %v2658, 1
        %v2661 = vor.u32 %v2656, %v2660
        %v2663 = vshll.u32 %v2584, 16
        %v2665 = vrot.slane %v2663, 1
        %v2666 = vsel %vm378, %v2661, %v2665
        %v2668 = vshrl.u32 %v2521, 16
        %v2670 = vshll.u32 %v2521, 16
        %v2672 = vrot.slane %v2670, 1
        %v2673 = vor.u32 %v2668, %v2672
        %v2675 = vshll.u32 %v2585, 16
        %v2677 = vrot.slane %v2675, 1
        %v2678 = vsel %vm378, %v2673, %v2677
        %v2680 = vshrl.u32 %v2522, 16
        %v2682 = vshll.u32 %v2522, 16
        %v2684 = vrot.slane %v2682, 1
        %v2685 = vor.u32 %v2680, %v2684
        %v2687 = vshll.u32 %v2586, 16
        %v2689 = vrot.slane %v2687, 1
        %v2690 = vsel %vm378, %v2685, %v2689
        %v2692 = vshrl.u32 %v2523, 16
        %v2694 = vshll.u32 %v2523, 16
        %v2696 = vrot.slane %v2694, 1
        %v2697 = vor.u32 %v2692, %v2696
        %v2699 = vshll.u32 %v2587, 16
        %v2701 = vrot.slane %v2699, 1
        %v2702 = vsel %vm378, %v2697, %v2701
        %v2704 = vshrl.u32 %v2524, 16
        %v2706 = vshll.u32 %v2524, 16
        %v2708 = vrot.slane %v2706, 1
        %v2709 = vor.u32 %v2704, %v2708
        %v2711 = vshll.u32 %v2588, 16
        %v2713 = vrot.slane %v2711, 1
        %v2714 = vsel %vm378, %v2709, %v2713
        %v2716 = vshrl.u32 %v2525, 16
        %v2718 = vshll.u32 %v2525, 16
        %v2720 = vrot.slane %v2718, 1
        %v2721 = vor.u32 %v2716, %v2720
        %v2723 = vshll.u32 %v2589, 16
        %v2725 = vrot.slane %v2723, 1
        %v2726 = vsel %vm378, %v2721, %v2725
        %v2728 = vshrl.u32 %v2526, 16
        %v2730 = vshll.u32 %v2526, 16
        %v2732 = vrot.slane %v2730, 1
        %v2733 = vor.u32 %v2728, %v2732
        %v2735 = vshll.u32 %v2590, 16
        %v2737 = vrot.slane %v2735, 1
        %v2738 = vsel %vm378, %v2733, %v2737
        %v2740 = vshrl.u32 %v2527, 16
        %v2742 = vshll.u32 %v2527, 16
        %v2744 = vrot.slane %v2742, 1
        %v2745 = vor.u32 %v2740, %v2744
        %v2747 = vshll.u32 %v2591, 16
        %v2749 = vrot.slane %v2747, 1
        %v2750 = vsel %vm378, %v2745, %v2749
        %v2752 = vshrl.u32 %v2528, 16
        %v2754 = vshll.u32 %v2528, 16
        %v2756 = vrot.slane %v2754, 1
        %v2757 = vor.u32 %v2752, %v2756
        %v2759 = vshll.u32 %v2592, 16
        %v2761 = vrot.slane %v2759, 1
        %v2762 = vsel %vm378, %v2757, %v2761
        %v2764 = vshrl.u32 %v2529, 16
        %v2766 = vshll.u32 %v2529, 16
        %v2768 = vrot.slane %v2766, 1
        %v2769 = vor.u32 %v2764, %v2768
        %v2771 = vshll.u32 %v2593, 16
        %v2773 = vrot.slane %v2771, 1
        %v2774 = vsel %vm378, %v2769, %v2773
        %v2776 = vshrl.u32 %v2530, 16
        %v2778 = vshll.u32 %v2530, 16
        %v2780 = vrot.slane %v2778, 1
        %v2781 = vor.u32 %v2776, %v2780
        %v2783 = vshll.u32 %v2594, 16
        %v2785 = vrot.slane %v2783, 1
        %v2786 = vsel %vm378, %v2781, %v2785
        %v2819 = vunpack.c.l.b16 %v2435
        %v2820 = vunpack.c.l.b16 %v2436
        %v2821 = vunpack.c.l.b16 %v2437
        %v2822 = vunpack.c.l.b16 %v2438
        %v2823 = vunpack.c.l.b16 %v2439
        %v2824 = vunpack.c.l.b16 %v2440
        %v2825 = vunpack.c.l.b16 %v2441
        %v2826 = vunpack.c.l.b16 %v2442
        %v2827 = vunpack.c.l.b16 %v2443
        %v2828 = vunpack.c.l.b16 %v2444
        %v2829 = vunpack.c.l.b16 %v2445
        %v2830 = vunpack.c.l.b16 %v2446
        %v2831 = vunpack.c.l.b16 %v2447
        %v2832 = vunpack.c.l.b16 %v2448
        %v2833 = vunpack.c.l.b16 %v2449
        %v2834 = vunpack.c.l.b16 %v2450
        %v2835 = vpack.c.b16 %v2484, %v2819
        %v2836 = vpack.c.b16 %v2486, %v2820
        %v2837 = vpack.c.b16 %v2488, %v2821
        %v2838 = vpack.c.b16 %v2490, %v2822
        %v2839 = vpack.c.b16 %v2492, %v2823
        %v2840 = vpack.c.b16 %v2494, %v2824
        %v2841 = vpack.c.b16 %v2496, %v2825
        %v2842 = vpack.c.b16 %v2498, %v2826
        %v2843 = vpack.c.b16 %v2500, %v2827
        %v2844 = vpack.c.b16 %v2502, %v2828
        %v2845 = vpack.c.b16 %v2504, %v2829
        %v2846 = vpack.c.b16 %v2506, %v2830
        %v2847 = vpack.c.b16 %v2508, %v2831
        %v2848 = vpack.c.b16 %v2510, %v2832
        %v2849 = vpack.c.b16 %v2512, %v2833
        %v2850 = vpack.c.b16 %v2514, %v2834
        %v2851 = vrot.slane %v2835, 1
        %v2852 = vrot.slane %v2579, 1
        %v2853 = vsel %vm635, %v2851, %v2852
        %v2854 = vrot.slane %v2836, 1
        %v2855 = vrot.slane %v2580, 1
        %v2856 = vsel %vm635, %v2854, %v2855
        %v2857 = vrot.slane %v2837, 1
        %v2858 = vrot.slane %v2581, 1
        %v2859 = vsel %vm635, %v2857, %v2858
        %v2860 = vrot.slane %v2838, 1
        %v2861 = vrot.slane %v2582, 1
        %v2862 = vsel %vm635, %v2860, %v2861
        %v2863 = vrot.slane %v2839, 1
        %v2864 = vrot.slane %v2583, 1
        %v2865 = vsel %vm635, %v2863, %v2864
        %v2866 = vrot.slane %v2840, 1
        %v2867 = vrot.slane %v2584, 1
        %v2868 = vsel %vm635, %v2866, %v2867
        %v2869 = vrot.slane %v2841, 1
        %v2870 = vrot.slane %v2585, 1
        %v2871 = vsel %vm635, %v2869, %v2870
        %v2872 = vrot.slane %v2842, 1
        %v2873 = vrot.slane %v2586, 1
        %v2874 = vsel %vm635, %v2872, %v2873
        %v2875 = vrot.slane %v2843, 1
        %v2876 = vrot.slane %v2587, 1
        %v2877 = vsel %vm635, %v2875, %v2876
        %v2878 = vrot.slane %v2844, 1
        %v2879 = vrot.slane %v2588, 1
        %v2880 = vsel %vm635, %v2878, %v2879
        %v2881 = vrot.slane %v2845, 1
        %v2882 = vrot.slane %v2589, 1
        %v2883 = vsel %vm635, %v2881, %v2882
        %v2884 = vrot.slane %v2846, 1
        %v2885 = vrot.slane %v2590, 1
        %v2886 = vsel %vm635, %v2884, %v2885
        %v2887 = vrot.slane %v2847, 1
        %v2888 = vrot.slane %v2591, 1
        %v2889 = vsel %vm635, %v2887, %v2888
        %v2890 = vrot.slane %v2848, 1
        %v2891 = vrot.slane %v2592, 1
        %v2892 = vsel %vm635, %v2890, %v2891
        %v2893 = vrot.slane %v2849, 1
        %v2894 = vrot.slane %v2593, 1
        %v2895 = vsel %vm635, %v2893, %v2894
        %v2896 = vrot.slane %v2850, 1
        %v2897 = vrot.slane %v2594, 1
        %v2898 = vsel %vm635, %v2896, %v2897
        %s2915 = scalar_lea.vmem %s1, 384
        %v2916 = vld [vmem:[%s2915] sm:$0xf]
        %v2917 = vld [vmem:[%s2915 + $0x4] sm:$0xf]
        %v2918 = vld [vmem:[%s2915 + $0x8] sm:$0xf]
        %v2919 = vld [vmem:[%s2915 + $0xc] sm:$0xf]
        %v2920 = vld [vmem:[%s2915 + $0x10] sm:$0xf]
        %v2921 = vld [vmem:[%s2915 + $0x14] sm:$0xf]
        %v2922 = vld [vmem:[%s2915 + $0x18] sm:$0xf]
        %v2923 = vld [vmem:[%s2915 + $0x1c] sm:$0xf]
        %v2924 = vld [vmem:[%s2915 + $0x20] sm:$0xf]
        %v2925 = vld [vmem:[%s2915 + $0x24] sm:$0xf]
        %v2926 = vld [vmem:[%s2915 + $0x28] sm:$0xf]
        %v2927 = vld [vmem:[%s2915 + $0x2c] sm:$0xf]
        %v2928 = vld [vmem:[%s2915 + $0x30] sm:$0xf]
        %v2929 = vld [vmem:[%s2915 + $0x34] sm:$0xf]
        %v2930 = vld [vmem:[%s2915 + $0x38] sm:$0xf]
        %v2931 = vld [vmem:[%s2915 + $0x3c] sm:$0xf]
        %v2932 = vld [vmem:[%s2915 + $0x40] sm:$0xf]
        %v2933 = vld [vmem:[%s2915 + $0x44] sm:$0xf]
        %v2934 = vld [vmem:[%s2915 + $0x48] sm:$0xf]
        %v2935 = vld [vmem:[%s2915 + $0x4c] sm:$0xf]
        %v2936 = vld [vmem:[%s2915 + $0x50] sm:$0xf]
        %v2937 = vld [vmem:[%s2915 + $0x54] sm:$0xf]
        %v2938 = vld [vmem:[%s2915 + $0x58] sm:$0xf]
        %v2939 = vld [vmem:[%s2915 + $0x5c] sm:$0xf]
        %v2940 = vld [vmem:[%s2915 + $0x60] sm:$0xf]
        %v2941 = vld [vmem:[%s2915 + $0x64] sm:$0xf]
        %v2942 = vld [vmem:[%s2915 + $0x68] sm:$0xf]
        %v2943 = vld [vmem:[%s2915 + $0x6c] sm:$0xf]
        %v2944 = vld [vmem:[%s2915 + $0x70] sm:$0xf]
        %v2945 = vld [vmem:[%s2915 + $0x74] sm:$0xf]
        %v2946 = vld [vmem:[%s2915 + $0x78] sm:$0xf]
        %v2947 = vld [vmem:[%s2915 + $0x7c] sm:$0xf]
        %v2948 = vld [vmem:[%s2915 + $0x80] sm:$0xf]
        %v2949 = vld [vmem:[%s2915 + $0x84] sm:$0xf]
        %v2950 = vld [vmem:[%s2915 + $0x88] sm:$0xf]
        %v2951 = vld [vmem:[%s2915 + $0x8c] sm:$0xf]
        %v2952 = vld [vmem:[%s2915 + $0x90] sm:$0xf]
        %v2953 = vld [vmem:[%s2915 + $0x94] sm:$0xf]
        %v2954 = vld [vmem:[%s2915 + $0x98] sm:$0xf]
        %v2955 = vld [vmem:[%s2915 + $0x9c] sm:$0xf]
        %v2956 = vld [vmem:[%s2915 + $0xa0] sm:$0xf]
        %v2957 = vld [vmem:[%s2915 + $0xa4] sm:$0xf]
        %v2958 = vld [vmem:[%s2915 + $0xa8] sm:$0xf]
        %v2959 = vld [vmem:[%s2915 + $0xac] sm:$0xf]
        %v2960 = vld [vmem:[%s2915 + $0xb0] sm:$0xf]
        %v2961 = vld [vmem:[%s2915 + $0xb4] sm:$0xf]
        %v2962 = vld [vmem:[%s2915 + $0xb8] sm:$0xf]
        %v2963 = vld [vmem:[%s2915 + $0xbc] sm:$0xf]
        %v3012 = vunpack.c.l.b16 %v2916
        %v3013 = vunpack.c.l.b16 %v2917
        %v3014 = vunpack.c.l.b16 %v2918
        %v3015 = vunpack.c.l.b16 %v2919
        %v3016 = vunpack.c.l.b16 %v2920
        %v3017 = vunpack.c.l.b16 %v2921
        %v3018 = vunpack.c.l.b16 %v2922
        %v3019 = vunpack.c.l.b16 %v2923
        %v3020 = vunpack.c.l.b16 %v2924
        %v3021 = vunpack.c.l.b16 %v2925
        %v3022 = vunpack.c.l.b16 %v2926
        %v3023 = vunpack.c.l.b16 %v2927
        %v3024 = vunpack.c.l.b16 %v2928
        %v3025 = vunpack.c.l.b16 %v2929
        %v3026 = vunpack.c.l.b16 %v2930
        %v3027 = vunpack.c.l.b16 %v2931
        %v3028 = vunpack.c.l.b16 %v2932
        %v3029 = vunpack.c.l.b16 %v2933
        %v3030 = vunpack.c.l.b16 %v2934
        %v3031 = vunpack.c.l.b16 %v2935
        %v3032 = vunpack.c.l.b16 %v2936
        %v3033 = vunpack.c.l.b16 %v2937
        %v3034 = vunpack.c.l.b16 %v2938
        %v3035 = vunpack.c.l.b16 %v2939
        %v3036 = vunpack.c.l.b16 %v2940
        %v3037 = vunpack.c.l.b16 %v2941
        %v3038 = vunpack.c.l.b16 %v2942
        %v3039 = vunpack.c.l.b16 %v2943
        %v3040 = vunpack.c.l.b16 %v2944
        %v3041 = vunpack.c.l.b16 %v2945
        %v3042 = vunpack.c.l.b16 %v2946
        %v3043 = vunpack.c.l.b16 %v2947
        %v3044 = vunpack.c.l.b16 %v2948
        %v3045 = vunpack.c.l.b16 %v2949
        %v3046 = vunpack.c.l.b16 %v2950
        %v3047 = vunpack.c.l.b16 %v2951
        %v3048 = vunpack.c.l.b16 %v2952
        %v3049 = vunpack.c.l.b16 %v2953
        %v3050 = vunpack.c.l.b16 %v2954
        %v3051 = vunpack.c.l.b16 %v2955
        %v3052 = vunpack.c.l.b16 %v2956
        %v3053 = vunpack.c.l.b16 %v2957
        %v3054 = vunpack.c.l.b16 %v2958
        %v3055 = vunpack.c.l.b16 %v2959
        %v3056 = vunpack.c.l.b16 %v2960
        %v3057 = vunpack.c.l.b16 %v2961
        %v3058 = vunpack.c.l.b16 %v2962
        %v3059 = vunpack.c.l.b16 %v2963
        %v3060 = vpack.c.b16 %v3013, %v3012
        %v3061 = vpack.c.b16 %v3015, %v3014
        %v3062 = vpack.c.b16 %v3017, %v3016
        %v3063 = vpack.c.b16 %v3019, %v3018
        %v3064 = vpack.c.b16 %v3021, %v3020
        %v3065 = vpack.c.b16 %v3023, %v3022
        %v3066 = vpack.c.b16 %v3025, %v3024
        %v3067 = vpack.c.b16 %v3027, %v3026
        %v3068 = vpack.c.b16 %v3029, %v3028
        %v3069 = vpack.c.b16 %v3031, %v3030
        %v3070 = vpack.c.b16 %v3033, %v3032
        %v3071 = vpack.c.b16 %v3035, %v3034
        %v3072 = vpack.c.b16 %v3037, %v3036
        %v3073 = vpack.c.b16 %v3039, %v3038
        %v3074 = vpack.c.b16 %v3041, %v3040
        %v3075 = vpack.c.b16 %v3043, %v3042
        %v3076 = vpack.c.b16 %v3045, %v3044
        %v3077 = vpack.c.b16 %v3047, %v3046
        %v3078 = vpack.c.b16 %v3049, %v3048
        %v3079 = vpack.c.b16 %v3051, %v3050
        %v3080 = vpack.c.b16 %v3053, %v3052
        %v3081 = vpack.c.b16 %v3055, %v3054
        %v3082 = vpack.c.b16 %v3057, %v3056
        %v3083 = vpack.c.b16 %v3059, %v3058
        %3108 = vmatprep.subr.bf16.mxu0 0
        %3109 = vmatpush1.bf16.msra.mxu0 %v3060
        %3110 = vmatprep.subr.bf16.mxu0 0
        %3111 = vmatpush1.bf16.msra.mxu0 %v3061
        %3112 = vmatprep.subr.bf16.mxu0 0
        %3113 = vmatpush1.bf16.msra.mxu0 %v3062
        %3114 = vmatprep.subr.bf16.mxu0 0
        %3115 = vmatpush1.bf16.msra.mxu0 %v3063
        %3116 = vmatprep.subr.bf16.mxu0 0
        %3117 = vmatpush1.bf16.msra.mxu0 %v3064
        %3118 = vmatprep.subr.bf16.mxu0 0
        %3119 = vmatpush1.bf16.msra.mxu0 %v3065
        %3120 = vmatprep.subr.bf16.mxu0 0
        %3121 = vmatpush1.bf16.msra.mxu0 %v3066
        %3122 = vmatprep.subr.bf16.mxu0 0
        %3123 = vmatpush1.bf16.msra.mxu0 %v3067
        %3124 = vmatprep.subr.bf16.mxu0 0
        %3125 = vmatpush1.bf16.msra.mxu0 %v3068
        %3126 = vmatprep.subr.bf16.mxu0 0
        %3127 = vmatpush1.bf16.msra.mxu0 %v3069
        %3128 = vmatprep.subr.bf16.mxu0 0
        %3129 = vmatpush1.bf16.msra.mxu0 %v3070
        %3130 = vmatprep.subr.bf16.mxu0 0
        %3131 = vmatpush1.bf16.msra.mxu0 %v3071
        %3132 = vmatprep.subr.bf16.mxu0 0
        %3133 = vmatpush1.bf16.msra.mxu0 %v3072
        %3134 = vmatprep.subr.bf16.mxu0 0
        %3135 = vmatpush1.bf16.msra.mxu0 %v3073
        %3136 = vmatprep.subr.bf16.mxu0 0
        %3137 = vmatpush1.bf16.msra.mxu0 %v3074
        %3138 = vmatprep.subr.bf16.mxu0 0
        %3139 = vmatpush1.bf16.msra.mxu0 %v3075
        %3140 = vmatprep.mubr.bf16.mxu0 %v2606
        %3141 = vmatmul.mubr.bf16.gmra.mrb[0].mxu0 %v2515
        %v3142 = vpop.f32.mrb[0].mxu0
        %v3143 = vadd.f32 0.0, %v3142
        %v3144 = vpop.f32.mrb[0].mxu0
        %v3145 = vpop.f32.mrb[0].mxu0
        %v3146 = vadd.f32 0.0, %v3145
        %v3147 = vpop.f32.mrb[0].mxu0
        %3148 = vmatprep.mubr.bf16.mxu0 %v2618
        %3149 = vmatmul.mubr.bf16.gmra.mrb[0].mxu0 %v2516
        %v3150 = vpop.f32.mrb[0].mxu0
        %v3151 = vadd.f32 0.0, %v3150
        %v3152 = vpop.f32.mrb[0].mxu0
        %v3153 = vpop.f32.mrb[0].mxu0
        %v3154 = vadd.f32 0.0, %v3153
        %v3155 = vpop.f32.mrb[0].mxu0
        %3156 = vmatprep.mubr.bf16.mxu0 %v2630
        %3157 = vmatmul.mubr.bf16.gmra.mrb[0].mxu0 %v2517
        %v3158 = vpop.f32.mrb[0].mxu0
        %v3159 = vadd.f32 0.0, %v3158
        %v3160 = vpop.f32.mrb[0].mxu0
        %v3161 = vpop.f32.mrb[0].mxu0
        %v3162 = vadd.f32 0.0, %v3161
        %v3163 = vpop.f32.mrb[0].mxu0
        %3164 = vmatprep.mubr.bf16.mxu0 %v2642
        %3165 = vmatmul.mubr.bf16.gmra.mrb[0].mxu0 %v2518
        %v3166 = vpop.f32.mrb[0].mxu0
        %v3167 = vadd.f32 0.0, %v3166
        %v3168 = vpop.f32.mrb[0].mxu0
        %v3169 = vpop.f32.mrb[0].mxu0
        %v3170 = vadd.f32 0.0, %v3169
        %v3171 = vpop.f32.mrb[0].mxu0
        %3172 = vmatprep.mubr.bf16.mxu0 %v2654
        %3173 = vmatmul.mubr.bf16.gmra.mrb[0].mxu0 %v2519
        %v3174 = vpop.f32.mrb[0].mxu0
        %v3175 = vadd.f32 0.0, %v3174
        %v3176 = vpop.f32.mrb[0].mxu0
        %v3177 = vpop.f32.mrb[0].mxu0
        %v3178 = vadd.f32 0.0, %v3177
        %v3179 = vpop.f32.mrb[0].mxu0
        %3180 = vmatprep.mubr.bf16.mxu0 %v2666
        %3181 = vmatmul.mubr.bf16.gmra.mrb[0].mxu0 %v2520
        %v3182 = vpop.f32.mrb[0].mxu0
        %v3183 = vadd.f32 0.0, %v3182
        %v3184 = vpop.f32.mrb[0].mxu0
        %v3185 = vpop.f32.mrb[0].mxu0
        %v3186 = vadd.f32 0.0, %v3185
        %v3187 = vpop.f32.mrb[0].mxu0
        %3188 = vmatprep.mubr.bf16.mxu0 %v2678
        %3189 = vmatmul.mubr.bf16.gmra.mrb[0].mxu0 %v2521
        %v3190 = vpop.f32.mrb[0].mxu0
        %v3191 = vadd.f32 0.0, %v3190
        %v3192 = vpop.f32.mrb[0].mxu0
        %v3193 = vpop.f32.mrb[0].mxu0
        %v3194 = vadd.f32 0.0, %v3193
        %v3195 = vpop.f32.mrb[0].mxu0
        %3196 = vmatprep.mubr.bf16.mxu0 %v2690
        %3197 = vmatmul.mubr.bf16.gmra.mrb[0].mxu0 %v2522
        %v3198 = vpop.f32.mrb[0].mxu0
        %v3199 = vadd.f32 0.0, %v3198
        %v3200 = vpop.f32.mrb[0].mxu0
        %v3201 = vpop.f32.mrb[0].mxu0
        %v3202 = vadd.f32 0.0, %v3201
        %v3203 = vpop.f32.mrb[0].mxu0
        %3204 = vmatprep.mubr.bf16.mxu0 %v2702
        %3205 = vmatmul.mubr.bf16.gmra.mrb[0].mxu0 %v2523
        %v3206 = vpop.f32.mrb[0].mxu0
        %v3207 = vadd.f32 0.0, %v3206
        %v3208 = vpop.f32.mrb[0].mxu0
        %v3209 = vpop.f32.mrb[0].mxu0
        %v3210 = vadd.f32 0.0, %v3209
        %v3211 = vpop.f32.mrb[0].mxu0
        %3212 = vmatprep.mubr.bf16.mxu0 %v2714
        %3213 = vmatmul.mubr.bf16.gmra.mrb[0].mxu0 %v2524
        %v3214 = vpop.f32.mrb[0].mxu0
        %v3215 = vadd.f32 0.0, %v3214
        %v3216 = vpop.f32.mrb[0].mxu0
        %v3217 = vpop.f32.mrb[0].mxu0
        %v3218 = vadd.f32 0.0, %v3217
        %v3219 = vpop.f32.mrb[0].mxu0
        %3220 = vmatprep.mubr.bf16.mxu0 %v2726
        %3221 = vmatmul.mubr.bf16.gmra.mrb[0].mxu0 %v2525
        %v3222 = vpop.f32.mrb[0].mxu0
        %v3223 = vadd.f32 0.0, %v3222
        %v3224 = vpop.f32.mrb[0].mxu0
        %v3225 = vpop.f32.mrb[0].mxu0
        %v3226 = vadd.f32 0.0, %v3225
        %v3227 = vpop.f32.mrb[0].mxu0
        %3228 = vmatprep.mubr.bf16.mxu0 %v2738
        %3229 = vmatmul.mubr.bf16.gmra.mrb[0].mxu0 %v2526
        %v3230 = vpop.f32.mrb[0].mxu0
        %v3231 = vadd.f32 0.0, %v3230
        %v3232 = vpop.f32.mrb[0].mxu0
        %v3233 = vpop.f32.mrb[0].mxu0
        %v3234 = vadd.f32 0.0, %v3233
        %v3235 = vpop.f32.mrb[0].mxu0
        %3236 = vmatprep.mubr.bf16.mxu0 %v2750
        %3237 = vmatmul.mubr.bf16.gmra.mrb[0].mxu0 %v2527
        %v3238 = vpop.f32.mrb[0].mxu0
        %v3239 = vadd.f32 0.0, %v3238
        %v3240 = vpop.f32.mrb[0].mxu0
        %v3241 = vpop.f32.mrb[0].mxu0
        %v3242 = vadd.f32 0.0, %v3241
        %v3243 = vpop.f32.mrb[0].mxu0
        %3244 = vmatprep.mubr.bf16.mxu0 %v2762
        %3245 = vmatmul.mubr.bf16.gmra.mrb[0].mxu0 %v2528
        %v3246 = vpop.f32.mrb[0].mxu0
        %v3247 = vadd.f32 0.0, %v3246
        %v3248 = vpop.f32.mrb[0].mxu0
        %v3249 = vpop.f32.mrb[0].mxu0
        %v3250 = vadd.f32 0.0, %v3249
        %v3251 = vpop.f32.mrb[0].mxu0
        %3252 = vmatprep.mubr.bf16.mxu0 %v2774
        %3253 = vmatmul.mubr.bf16.gmra.mrb[0].mxu0 %v2529
        %v3254 = vpop.f32.mrb[0].mxu0
        %v3255 = vadd.f32 0.0, %v3254
        %v3256 = vpop.f32.mrb[0].mxu0
        %v3257 = vpop.f32.mrb[0].mxu0
        %v3258 = vadd.f32 0.0, %v3257
        %v3259 = vpop.f32.mrb[0].mxu0
        %3260 = vmatprep.mubr.bf16.mxu0 %v2786
        %3261 = vmatmul.mubr.bf16.gmra.mrb[0].mxu0 %v2530
        %v3262 = vpop.f32.mrb[0].mxu0
        %v3263 = vadd.f32 0.0, %v3262
        %v3264 = vpop.f32.mrb[0].mxu0
        %v3265 = vpop.f32.mrb[0].mxu0
        %v3266 = vadd.f32 0.0, %v3265
        %v3267 = vpop.f32.mrb[0].mxu0
        %3268 = vdwg.mxu0
        %3269 = vmatprep.subr.bf16.mxu0 0
        %3270 = vmatpush1.bf16.msra.mxu0 %v3076
        %3271 = vmatprep.subr.bf16.mxu0 0
        %3272 = vmatpush1.bf16.msra.mxu0 %v3077
        %3273 = vmatprep.subr.bf16.mxu0 0
        %3274 = vmatpush1.bf16.msra.mxu0 %v3078
        %3275 = vmatprep.subr.bf16.mxu0 0
        %3276 = vmatpush1.bf16.msra.mxu0 %v3079
        %3277 = vmatprep.subr.bf16.mxu0 0
        %3278 = vmatpush1.bf16.msra.mxu0 %v3080
        %3279 = vmatprep.subr.bf16.mxu0 0
        %3280 = vmatpush1.bf16.msra.mxu0 %v3081
        %3281 = vmatprep.subr.bf16.mxu0 0
        %3282 = vmatpush1.bf16.msra.mxu0 %v3082
        %3283 = vmatprep.subr.bf16.mxu0 0
        %3284 = vmatpush1.bf16.msra.mxu0 %v3083
        %3285 = vmatprep.subr.bf16.mxu0 0
        %3286 = vmatpush1.bf16.msra.mxu0 0
        %3287 = vmatprep.subr.bf16.mxu0 0
        %3288 = vmatpush1.bf16.msra.mxu0 0
        %3289 = vmatprep.subr.bf16.mxu0 0
        %3290 = vmatpush1.bf16.msra.mxu0 0
        %3291 = vmatprep.subr.bf16.mxu0 0
        %3292 = vmatpush1.bf16.msra.mxu0 0
        %3293 = vmatprep.subr.bf16.mxu0 0
        %3294 = vmatpush1.bf16.msra.mxu0 0
        %3295 = vmatprep.subr.bf16.mxu0 0
        %3296 = vmatpush1.bf16.msra.mxu0 0
        %3297 = vmatprep.subr.bf16.mxu0 0
        %3298 = vmatpush1.bf16.msra.mxu0 0
        %3299 = vmatprep.subr.bf16.mxu0 0
        %3300 = vmatpush1.bf16.msra.mxu0 0
        %3301 = vmatprep.mubr.bf16.mxu0 0
        %3302 = vmatmul.mubr.bf16.gmra.mrb[0].mxu0 %v2853
        %v3303 = vpop.f32.mrb[0].mxu0
        %v3304 = vadd.f32 %v3143, %v3303
        %v3305 = vpop.f32.mrb[0].mxu0
        %v3306 = vpop.f32.mrb[0].mxu0
        %v3307 = vadd.f32 %v3146, %v3306
        %v3308 = vpop.f32.mrb[0].mxu0
        %3309 = vmatprep.mubr.bf16.mxu0 0
        %3310 = vmatmul.mubr.bf16.gmra.mrb[0].mxu0 %v2856
        %v3311 = vpop.f32.mrb[0].mxu0
        %v3312 = vadd.f32 %v3151, %v3311
        %v3313 = vpop.f32.mrb[0].mxu0
        %v3314 = vpop.f32.mrb[0].mxu0
        %v3315 = vadd.f32 %v3154, %v3314
        %v3316 = vpop.f32.mrb[0].mxu0
        %3317 = vmatprep.mubr.bf16.mxu0 0
        %3318 = vmatmul.mubr.bf16.gmra.mrb[0].mxu0 %v2859
        %v3319 = vpop.f32.mrb[0].mxu0
        %v3320 = vadd.f32 %v3159, %v3319
        %v3321 = vpop.f32.mrb[0].mxu0
        %v3322 = vpop.f32.mrb[0].mxu0
        %v3323 = vadd.f32 %v3162, %v3322
        %v3324 = vpop.f32.mrb[0].mxu0
        %3325 = vmatprep.mubr.bf16.mxu0 0
        %3326 = vmatmul.mubr.bf16.gmra.mrb[0].mxu0 %v2862
        %v3327 = vpop.f32.mrb[0].mxu0
        %v3328 = vadd.f32 %v3167, %v3327
        %v3329 = vpop.f32.mrb[0].mxu0
        %v3330 = vpop.f32.mrb[0].mxu0
        %v3331 = vadd.f32 %v3170, %v3330
        %v3332 = vpop.f32.mrb[0].mxu0
        %3333 = vmatprep.mubr.bf16.mxu0 0
        %3334 = vmatmul.mubr.bf16.gmra.mrb[0].mxu0 %v2865
        %v3335 = vpop.f32.mrb[0].mxu0
        %v3336 = vadd.f32 %v3175, %v3335
        %v3337 = vpop.f32.mrb[0].mxu0
        %v3338 = vpop.f32.mrb[0].mxu0
        %v3339 = vadd.f32 %v3178, %v3338
        %v3340 = vpop.f32.mrb[0].mxu0
        %3341 = vmatprep.mubr.bf16.mxu0 0
        %3342 = vmatmul.mubr.bf16.gmra.mrb[0].mxu0 %v2868
        %v3343 = vpop.f32.mrb[0].mxu0
        %v3344 = vadd.f32 %v3183, %v3343
        %v3345 = vpop.f32.mrb[0].mxu0
        %v3346 = vpop.f32.mrb[0].mxu0
        %v3347 = vadd.f32 %v3186, %v3346
        %v3348 = vpop.f32.mrb[0].mxu0
        %3349 = vmatprep.mubr.bf16.mxu0 0
        %3350 = vmatmul.mubr.bf16.gmra.mrb[0].mxu0 %v2871
        %v3351 = vpop.f32.mrb[0].mxu0
        %v3352 = vadd.f32 %v3191, %v3351
        %v3353 = vpop.f32.mrb[0].mxu0
        %v3354 = vpop.f32.mrb[0].mxu0
        %v3355 = vadd.f32 %v3194, %v3354
        %v3356 = vpop.f32.mrb[0].mxu0
        %3357 = vmatprep.mubr.bf16.mxu0 0
        %3358 = vmatmul.mubr.bf16.gmra.mrb[0].mxu0 %v2874
        %v3359 = vpop.f32.mrb[0].mxu0
        %v3360 = vadd.f32 %v3199, %v3359
        %v3361 = vpop.f32.mrb[0].mxu0
        %v3362 = vpop.f32.mrb[0].mxu0
        %v3363 = vadd.f32 %v3202, %v3362
        %v3364 = vpop.f32.mrb[0].mxu0
        %3365 = vmatprep.mubr.bf16.mxu0 0
        %3366 = vmatmul.mubr.bf16.gmra.mrb[0].mxu0 %v2877
        %v3367 = vpop.f32.mrb[0].mxu0
        %v3368 = vadd.f32 %v3207, %v3367
        %v3369 = vpop.f32.mrb[0].mxu0
        %v3370 = vpop.f32.mrb[0].mxu0
        %v3371 = vadd.f32 %v3210, %v3370
        %v3372 = vpop.f32.mrb[0].mxu0
        %3373 = vmatprep.mubr.bf16.mxu0 0
        %3374 = vmatmul.mubr.bf16.gmra.mrb[0].mxu0 %v2880
        %v3375 = vpop.f32.mrb[0].mxu0
        %v3376 = vadd.f32 %v3215, %v3375
        %v3377 = vpop.f32.mrb[0].mxu0
        %v3378 = vpop.f32.mrb[0].mxu0
        %v3379 = vadd.f32 %v3218, %v3378
        %v3380 = vpop.f32.mrb[0].mxu0
        %3381 = vmatprep.mubr.bf16.mxu0 0
        %3382 = vmatmul.mubr.bf16.gmra.mrb[0].mxu0 %v2883
        %v3383 = vpop.f32.mrb[0].mxu0
        %v3384 = vadd.f32 %v3223, %v3383
        %v3385 = vpop.f32.mrb[0].mxu0
        %v3386 = vpop.f32.mrb[0].mxu0
        %v3387 = vadd.f32 %v3226, %v3386
        %v3388 = vpop.f32.mrb[0].mxu0
        %3389 = vmatprep.mubr.bf16.mxu0 0
        %3390 = vmatmul.mubr.bf16.gmra.mrb[0].mxu0 %v2886
        %v3391 = vpop.f32.mrb[0].mxu0
        %v3392 = vadd.f32 %v3231, %v3391
        %v3393 = vpop.f32.mrb[0].mxu0
        %v3394 = vpop.f32.mrb[0].mxu0
        %v3395 = vadd.f32 %v3234, %v3394
        %v3396 = vpop.f32.mrb[0].mxu0
        %3397 = vmatprep.mubr.bf16.mxu0 0
        %3398 = vmatmul.mubr.bf16.gmra.mrb[0].mxu0 %v2889
        %v3399 = vpop.f32.mrb[0].mxu0
        %v3400 = vadd.f32 %v3239, %v3399
        %v3401 = vpop.f32.mrb[0].mxu0
        %v3402 = vpop.f32.mrb[0].mxu0
        %v3403 = vadd.f32 %v3242, %v3402
        %v3404 = vpop.f32.mrb[0].mxu0
        %3405 = vmatprep.mubr.bf16.mxu0 0
        %3406 = vmatmul.mubr.bf16.gmra.mrb[0].mxu0 %v2892
        %v3407 = vpop.f32.mrb[0].mxu0
        %v3408 = vadd.f32 %v3247, %v3407
        %v3409 = vpop.f32.mrb[0].mxu0
        %v3410 = vpop.f32.mrb[0].mxu0
        %v3411 = vadd.f32 %v3250, %v3410
        %v3412 = vpop.f32.mrb[0].mxu0
        %3413 = vmatprep.mubr.bf16.mxu0 0
        %3414 = vmatmul.mubr.bf16.gmra.mrb[0].mxu0 %v2895
        %v3415 = vpop.f32.mrb[0].mxu0
        %v3416 = vadd.f32 %v3255, %v3415
        %v3417 = vpop.f32.mrb[0].mxu0
        %v3418 = vpop.f32.mrb[0].mxu0
        %v3419 = vadd.f32 %v3258, %v3418
        %v3420 = vpop.f32.mrb[0].mxu0
        %3421 = vmatprep.mubr.bf16.mxu0 0
        %3422 = vmatmul.mubr.bf16.gmra.mrb[0].mxu0 %v2898
        %v3423 = vpop.f32.mrb[0].mxu0
        %v3424 = vadd.f32 %v3263, %v3423
        %v3425 = vpop.f32.mrb[0].mxu0
        %v3426 = vpop.f32.mrb[0].mxu0
        %v3427 = vadd.f32 %v3266, %v3426
        %v3428 = vpop.f32.mrb[0].mxu0
        %3429 = vdwg.mxu0
        %v3430 = vld [vmem:[#allocation2] sm:$0xff]
        %v3431 = vld [vmem:[#allocation2 + $0x8] sm:$0xff]
        %v3432 = vld [vmem:[#allocation2 + $0x10] sm:$0xff]
        %v3433 = vld [vmem:[#allocation2 + $0x18] sm:$0xff]
        %v3434 = vld [vmem:[#allocation2 + $0x20] sm:$0xff]
        %v3435 = vld [vmem:[#allocation2 + $0x28] sm:$0xff]
        %v3436 = vld [vmem:[#allocation2 + $0x30] sm:$0xff]
        %v3437 = vld [vmem:[#allocation2 + $0x38] sm:$0xff]
        %v3438 = vld [vmem:[#allocation2 + $0x40] sm:$0xff]
        %v3439 = vld [vmem:[#allocation2 + $0x48] sm:$0xff]
        %v3440 = vld [vmem:[#allocation2 + $0x50] sm:$0xff]
        %v3441 = vld [vmem:[#allocation2 + $0x58] sm:$0xff]
        %v3442 = vld [vmem:[#allocation2 + $0x60] sm:$0xff]
        %v3443 = vld [vmem:[#allocation2 + $0x68] sm:$0xff]
        %v3444 = vld [vmem:[#allocation2 + $0x70] sm:$0xff]
        %v3445 = vld [vmem:[#allocation2 + $0x78] sm:$0xff]
        %v3446 = vld [vmem:[#allocation2 + $0x80] sm:$0xff]
        %v3447 = vld [vmem:[#allocation2 + $0x88] sm:$0xff]
        %v3448 = vld [vmem:[#allocation2 + $0x90] sm:$0xff]
        %v3449 = vld [vmem:[#allocation2 + $0x98] sm:$0xff]
        %v3450 = vld [vmem:[#allocation2 + $0xa0] sm:$0xff]
        %v3451 = vld [vmem:[#allocation2 + $0xa8] sm:$0xff]
        %v3452 = vld [vmem:[#allocation2 + $0xb0] sm:$0xff]
        %v3453 = vld [vmem:[#allocation2 + $0xb8] sm:$0xff]
        %v3454 = vld [vmem:[#allocation2 + $0xc0] sm:$0xff]
        %v3455 = vld [vmem:[#allocation2 + $0xc8] sm:$0xff]
        %v3456 = vld [vmem:[#allocation2 + $0xd0] sm:$0xff]
        %v3457 = vld [vmem:[#allocation2 + $0xd8] sm:$0xff]
        %v3458 = vld [vmem:[#allocation2 + $0xe0] sm:$0xff]
        %v3459 = vld [vmem:[#allocation2 + $0xe8] sm:$0xff]
        %v3460 = vld [vmem:[#allocation2 + $0xf0] sm:$0xff]
        %v3461 = vld [vmem:[#allocation2 + $0xf8] sm:$0xff]
        %v3462 = vadd.f32 %v3430, %v3304
        %v3463 = vadd.f32 %v3431, %v3307
        %v3464 = vadd.f32 %v3432, %v3312
        %v3465 = vadd.f32 %v3433, %v3315
        %v3466 = vadd.f32 %v3434, %v3320
        %v3467 = vadd.f32 %v3435, %v3323
        %v3468 = vadd.f32 %v3436, %v3328
        %v3469 = vadd.f32 %v3437, %v3331
        %v3470 = vadd.f32 %v3438, %v3336
        %v3471 = vadd.f32 %v3439, %v3339
        %v3472 = vadd.f32 %v3440, %v3344
        %v3473 = vadd.f32 %v3441, %v3347
        %v3474 = vadd.f32 %v3442, %v3352
        %v3475 = vadd.f32 %v3443, %v3355
        %v3476 = vadd.f32 %v3444, %v3360
        %v3477 = vadd.f32 %v3445, %v3363
        %v3478 = vadd.f32 %v3446, %v3368
        %v3479 = vadd.f32 %v3447, %v3371
        %v3480 = vadd.f32 %v3448, %v3376
        %v3481 = vadd.f32 %v3449, %v3379
        %v3482 = vadd.f32 %v3450, %v3384
        %v3483 = vadd.f32 %v3451, %v3387
        %v3484 = vadd.f32 %v3452, %v3392
        %v3485 = vadd.f32 %v3453, %v3395
        %v3486 = vadd.f32 %v3454, %v3400
        %v3487 = vadd.f32 %v3455, %v3403
        %v3488 = vadd.f32 %v3456, %v3408
        %v3489 = vadd.f32 %v3457, %v3411
        %v3490 = vadd.f32 %v3458, %v3416
        %v3491 = vadd.f32 %v3459, %v3419
        %v3492 = vadd.f32 %v3460, %v3424
        %v3493 = vadd.f32 %v3461, %v3427
        %3494 = vst [vmem:[#allocation2] sm:$0xff] %v3462
        %3495 = vst [vmem:[#allocation2 + $0x8] sm:$0xff] %v3463
        %3496 = vst [vmem:[#allocation2 + $0x10] sm:$0xff] %v3464
        %3497 = vst [vmem:[#allocation2 + $0x18] sm:$0xff] %v3465
        %3498 = vst [vmem:[#allocation2 + $0x20] sm:$0xff] %v3466
        %3499 = vst [vmem:[#allocation2 + $0x28] sm:$0xff] %v3467
        %3500 = vst [vmem:[#allocation2 + $0x30] sm:$0xff] %v3468
        %3501 = vst [vmem:[#allocation2 + $0x38] sm:$0xff] %v3469
        %3502 = vst [vmem:[#allocation2 + $0x40] sm:$0xff] %v3470
        %3503 = vst [vmem:[#allocation2 + $0x48] sm:$0xff] %v3471
        %3504 = vst [vmem:[#allocation2 + $0x50] sm:$0xff] %v3472
        %3505 = vst [vmem:[#allocation2 + $0x58] sm:$0xff] %v3473
        %3506 = vst [vmem:[#allocation2 + $0x60] sm:$0xff] %v3474
        %3507 = vst [vmem:[#allocation2 + $0x68] sm:$0xff] %v3475
        %3508 = vst [vmem:[#allocation2 + $0x70] sm:$0xff] %v3476
        %3509 = vst [vmem:[#allocation2 + $0x78] sm:$0xff] %v3477
        %3510 = vst [vmem:[#allocation2 + $0x80] sm:$0xff] %v3478
        %3511 = vst [vmem:[#allocation2 + $0x88] sm:$0xff] %v3479
        %3512 = vst [vmem:[#allocation2 + $0x90] sm:$0xff] %v3480
        %3513 = vst [vmem:[#allocation2 + $0x98] sm:$0xff] %v3481
        %3514 = vst [vmem:[#allocation2 + $0xa0] sm:$0xff] %v3482
        %3515 = vst [vmem:[#allocation2 + $0xa8] sm:$0xff] %v3483
        %3516 = vst [vmem:[#allocation2 + $0xb0] sm:$0xff] %v3484
        %3517 = vst [vmem:[#allocation2 + $0xb8] sm:$0xff] %v3485
        %3518 = vst [vmem:[#allocation2 + $0xc0] sm:$0xff] %v3486
        %3519 = vst [vmem:[#allocation2 + $0xc8] sm:$0xff] %v3487
        %3520 = vst [vmem:[#allocation2 + $0xd0] sm:$0xff] %v3488
        %3521 = vst [vmem:[#allocation2 + $0xd8] sm:$0xff] %v3489
        %3522 = vst [vmem:[#allocation2 + $0xe0] sm:$0xff] %v3490
        %3523 = vst [vmem:[#allocation2 + $0xe8] sm:$0xff] %v3491
        %3524 = vst [vmem:[#allocation2 + $0xf0] sm:$0xff] %v3492
        %3525 = vst [vmem:[#allocation2 + $0xf8] sm:$0xff] %v3493
        %v3526 = vld [vmem:[#allocation2] sm:$0xff]
        %v3527 = vld [vmem:[#allocation2 + $0x8] sm:$0xff]
        %v3528 = vld [vmem:[#allocation2 + $0x10] sm:$0xff]
        %v3529 = vld [vmem:[#allocation2 + $0x18] sm:$0xff]
        %v3530 = vld [vmem:[#allocation2 + $0x20] sm:$0xff]
        %v3531 = vld [vmem:[#allocation2 + $0x28] sm:$0xff]
        %v3532 = vld [vmem:[#allocation2 + $0x30] sm:$0xff]
        %v3533 = vld [vmem:[#allocation2 + $0x38] sm:$0xff]
        %v3534 = vld [vmem:[#allocation2 + $0x40] sm:$0xff]
        %v3535 = vld [vmem:[#allocation2 + $0x48] sm:$0xff]
        %v3536 = vld [vmem:[#allocation2 + $0x50] sm:$0xff]
        %v3537 = vld [vmem:[#allocation2 + $0x58] sm:$0xff]
        %v3538 = vld [vmem:[#allocation2 + $0x60] sm:$0xff]
        %v3539 = vld [vmem:[#allocation2 + $0x68] sm:$0xff]
        %v3540 = vld [vmem:[#allocation2 + $0x70] sm:$0xff]
        %v3541 = vld [vmem:[#allocation2 + $0x78] sm:$0xff]
        %v3542 = vld [vmem:[#allocation2 + $0x80] sm:$0xff]
        %v3543 = vld [vmem:[#allocation2 + $0x88] sm:$0xff]
        %v3544 = vld [vmem:[#allocation2 + $0x90] sm:$0xff]
        %v3545 = vld [vmem:[#allocation2 + $0x98] sm:$0xff]
        %v3546 = vld [vmem:[#allocation2 + $0xa0] sm:$0xff]
        %v3547 = vld [vmem:[#allocation2 + $0xa8] sm:$0xff]
        %v3548 = vld [vmem:[#allocation2 + $0xb0] sm:$0xff]
        %v3549 = vld [vmem:[#allocation2 + $0xb8] sm:$0xff]
        %v3550 = vld [vmem:[#allocation2 + $0xc0] sm:$0xff]
        %v3551 = vld [vmem:[#allocation2 + $0xc8] sm:$0xff]
        %v3552 = vld [vmem:[#allocation2 + $0xd0] sm:$0xff]
        %v3553 = vld [vmem:[#allocation2 + $0xd8] sm:$0xff]
        %v3554 = vld [vmem:[#allocation2 + $0xe0] sm:$0xff]
        %v3555 = vld [vmem:[#allocation2 + $0xe8] sm:$0xff]
        %v3556 = vld [vmem:[#allocation2 + $0xf0] sm:$0xff]
        %v3557 = vld [vmem:[#allocation2 + $0xf8] sm:$0xff]
        %v3558 = vadd.f32 %v3526, %v3527
        %v3559 = vadd.f32 %v3558, %v3528
        %v3560 = vadd.f32 %v3559, %v3529
        %v3561 = vadd.f32 %v3560, %v3530
        %v3562 = vadd.f32 %v3561, %v3531
        %v3563 = vadd.f32 %v3562, %v3532
        %v3564 = vadd.f32 %v3563, %v3533
        %v3565 = vadd.f32 %v3564, %v3534
        %v3566 = vadd.f32 %v3565, %v3535
        %v3567 = vadd.f32 %v3566, %v3536
        %v3568 = vadd.f32 %v3567, %v3537
        %v3569 = vadd.f32 %v3568, %v3538
        %v3570 = vadd.f32 %v3569, %v3539
        %v3571 = vadd.f32 %v3570, %v3540
        %v3572 = vadd.f32 %v3571, %v3541
        %v3573 = vadd.f32 %v3572, %v3542
        %v3574 = vadd.f32 %v3573, %v3543
        %v3575 = vadd.f32 %v3574, %v3544
        %v3576 = vadd.f32 %v3575, %v3545
        %v3577 = vadd.f32 %v3576, %v3546
        %v3578 = vadd.f32 %v3577, %v3547
        %v3579 = vadd.f32 %v3578, %v3548
        %v3580 = vadd.f32 %v3579, %v3549
        %v3581 = vadd.f32 %v3580, %v3550
        %v3582 = vadd.f32 %v3581, %v3551
        %v3583 = vadd.f32 %v3582, %v3552
        %v3584 = vadd.f32 %v3583, %v3553
        %v3585 = vadd.f32 %v3584, %v3554
        %v3586 = vadd.f32 %v3585, %v3555
        %v3587 = vadd.f32 %v3586, %v3556
        %v3588 = vadd.f32 %v3587, %v3557
        %v3589 = vrot.slane %v3588, 4
        %v3590 = vadd.f32 %v3588, %v3589
        %v3591 = vrot.slane %v3590, 2
        %v3592 = vadd.f32 %v3590, %v3591
        %v3593 = vrot.slane %v3592, 1
        %v3594 = vadd.f32 %v3592, %v3593
        %v3595 = vrcp.pop 256.0
        %v3596 = vmul.f32 %v3594, %v3595
        %v3597 = vsub.f32 %v3526, %v3596
        %v3598 = vsub.f32 %v3527, %v3596
        %v3599 = vsub.f32 %v3528, %v3596
        %v3600 = vsub.f32 %v3529, %v3596
        %v3601 = vsub.f32 %v3530, %v3596
        %v3602 = vsub.f32 %v3531, %v3596
        %v3603 = vsub.f32 %v3532, %v3596
        %v3604 = vsub.f32 %v3533, %v3596
        %v3605 = vsub.f32 %v3534, %v3596
        %v3606 = vsub.f32 %v3535, %v3596
        %v3607 = vsub.f32 %v3536, %v3596
        %v3608 = vsub.f32 %v3537, %v3596
        %v3609 = vsub.f32 %v3538, %v3596
        %v3610 = vsub.f32 %v3539, %v3596
        %v3611 = vsub.f32 %v3540, %v3596
        %v3612 = vsub.f32 %v3541, %v3596
        %v3613 = vsub.f32 %v3542, %v3596
        %v3614 = vsub.f32 %v3543, %v3596
        %v3615 = vsub.f32 %v3544, %v3596
        %v3616 = vsub.f32 %v3545, %v3596
        %v3617 = vsub.f32 %v3546, %v3596
        %v3618 = vsub.f32 %v3547, %v3596
        %v3619 = vsub.f32 %v3548, %v3596
        %v3620 = vsub.f32 %v3549, %v3596
        %v3621 = vsub.f32 %v3550, %v3596
        %v3622 = vsub.f32 %v3551, %v3596
        %v3623 = vsub.f32 %v3552, %v3596
        %v3624 = vsub.f32 %v3553, %v3596
        %v3625 = vsub.f32 %v3554, %v3596
        %v3626 = vsub.f32 %v3555, %v3596
        %v3627 = vsub.f32 %v3556, %v3596
        %v3628 = vsub.f32 %v3557, %v3596
        %v3629 = vmul.f32 %v3597, %v3597
        %v3630 = vmul.f32 %v3598, %v3598
        %v3631 = vmul.f32 %v3599, %v3599
        %v3632 = vmul.f32 %v3600, %v3600
        %v3633 = vmul.f32 %v3601, %v3601
        %v3634 = vmul.f32 %v3602, %v3602
        %v3635 = vmul.f32 %v3603, %v3603
        %v3636 = vmul.f32 %v3604, %v3604
        %v3637 = vmul.f32 %v3605, %v3605
        %v3638 = vmul.f32 %v3606, %v3606
        %v3639 = vmul.f32 %v3607, %v3607
        %v3640 = vmul.f32 %v3608, %v3608
        %v3641 = vmul.f32 %v3609, %v3609
        %v3642 = vmul.f32 %v3610, %v3610
        %v3643 = vmul.f32 %v3611, %v3611
        %v3644 = vmul.f32 %v3612, %v3612
        %v3645 = vmul.f32 %v3613, %v3613
        %v3646 = vmul.f32 %v3614, %v3614
        %v3647 = vmul.f32 %v3615, %v3615
        %v3648 = vmul.f32 %v3616, %v3616
        %v3649 = vmul.f32 %v3617, %v3617
        %v3650 = vmul.f32 %v3618, %v3618
        %v3651 = vmul.f32 %v3619, %v3619
        %v3652 = vmul.f32 %v3620, %v3620
        %v3653 = vmul.f32 %v3621, %v3621
        %v3654 = vmul.f32 %v3622, %v3622
        %v3655 = vmul.f32 %v3623, %v3623
        %v3656 = vmul.f32 %v3624, %v3624
        %v3657 = vmul.f32 %v3625, %v3625
        %v3658 = vmul.f32 %v3626, %v3626
        %v3659 = vmul.f32 %v3627, %v3627
        %v3660 = vmul.f32 %v3628, %v3628
        %v3661 = vadd.f32 %v3629, %v3630
        %v3662 = vadd.f32 %v3661, %v3631
        %v3663 = vadd.f32 %v3662, %v3632
        %v3664 = vadd.f32 %v3663, %v3633
        %v3665 = vadd.f32 %v3664, %v3634
        %v3666 = vadd.f32 %v3665, %v3635
        %v3667 = vadd.f32 %v3666, %v3636
        %v3668 = vadd.f32 %v3667, %v3637
        %v3669 = vadd.f32 %v3668, %v3638
        %v3670 = vadd.f32 %v3669, %v3639
        %v3671 = vadd.f32 %v3670, %v3640
        %v3672 = vadd.f32 %v3671, %v3641
        %v3673 = vadd.f32 %v3672, %v3642
        %v3674 = vadd.f32 %v3673, %v3643
        %v3675 = vadd.f32 %v3674, %v3644
        %v3676 = vadd.f32 %v3675, %v3645
        %v3677 = vadd.f32 %v3676, %v3646
        %v3678 = vadd.f32 %v3677, %v3647
        %v3679 = vadd.f32 %v3678, %v3648
        %v3680 = vadd.f32 %v3679, %v3649
        %v3681 = vadd.f32 %v3680, %v3650
        %v3682 = vadd.f32 %v3681, %v3651
        %v3683 = vadd.f32 %v3682, %v3652
        %v3684 = vadd.f32 %v3683, %v3653
        %v3685 = vadd.f32 %v3684, %v3654
        %v3686 = vadd.f32 %v3685, %v3655
        %v3687 = vadd.f32 %v3686, %v3656
        %v3688 = vadd.f32 %v3687, %v3657
        %v3689 = vadd.f32 %v3688, %v3658
        %v3690 = vadd.f32 %v3689, %v3659
        %v3691 = vadd.f32 %v3690, %v3660
        %v3692 = vrot.slane %v3691, 4
        %v3693 = vadd.f32 %v3691, %v3692
        %v3694 = vrot.slane %v3693, 2
        %v3695 = vadd.f32 %v3693, %v3694
        %v3696 = vrot.slane %v3695, 1
        %v3697 = vadd.f32 %v3695, %v3696
        %v3698 = vmul.f32 %v3697, %v3595
        %v3699 = vadd.f32 %v3698, 1e-05
        %v3700 = vrsqrt.pop %v3699
        %v3701 = vmul.f32 %v3597, %v3700
        %v3702 = vmul.f32 %v3598, %v3700
        %v3703 = vmul.f32 %v3599, %v3700
        %v3704 = vmul.f32 %v3600, %v3700
        %v3705 = vmul.f32 %v3601, %v3700
        %v3706 = vmul.f32 %v3602, %v3700
        %v3707 = vmul.f32 %v3603, %v3700
        %v3708 = vmul.f32 %v3604, %v3700
        %v3709 = vmul.f32 %v3605, %v3700
        %v3710 = vmul.f32 %v3606, %v3700
        %v3711 = vmul.f32 %v3607, %v3700
        %v3712 = vmul.f32 %v3608, %v3700
        %v3713 = vmul.f32 %v3609, %v3700
        %v3714 = vmul.f32 %v3610, %v3700
        %v3715 = vmul.f32 %v3611, %v3700
        %v3716 = vmul.f32 %v3612, %v3700
        %v3717 = vmul.f32 %v3613, %v3700
        %v3718 = vmul.f32 %v3614, %v3700
        %v3719 = vmul.f32 %v3615, %v3700
        %v3720 = vmul.f32 %v3616, %v3700
        %v3721 = vmul.f32 %v3617, %v3700
        %v3722 = vmul.f32 %v3618, %v3700
        %v3723 = vmul.f32 %v3619, %v3700
        %v3724 = vmul.f32 %v3620, %v3700
        %v3725 = vmul.f32 %v3621, %v3700
        %v3726 = vmul.f32 %v3622, %v3700
        %v3727 = vmul.f32 %v3623, %v3700
        %v3728 = vmul.f32 %v3624, %v3700
        %v3729 = vmul.f32 %v3625, %v3700
        %v3730 = vmul.f32 %v3626, %v3700
        %v3731 = vmul.f32 %v3627, %v3700
        %v3732 = vmul.f32 %v3628, %v3700
        %v3733 = vmax.f32 %v3701, 0.0
        %v3734 = vmax.f32 %v3702, 0.0
        %v3735 = vmax.f32 %v3703, 0.0
        %v3736 = vmax.f32 %v3704, 0.0
        %v3737 = vmax.f32 %v3705, 0.0
        %v3738 = vmax.f32 %v3706, 0.0
        %v3739 = vmax.f32 %v3707, 0.0
        %v3740 = vmax.f32 %v3708, 0.0
        %v3741 = vmax.f32 %v3709, 0.0
        %v3742 = vmax.f32 %v3710, 0.0
        %v3743 = vmax.f32 %v3711, 0.0
        %v3744 = vmax.f32 %v3712, 0.0
        %v3745 = vmax.f32 %v3713, 0.0
        %v3746 = vmax.f32 %v3714, 0.0
        %v3747 = vmax.f32 %v3715, 0.0
        %v3748 = vmax.f32 %v3716, 0.0
        %v3749 = vmax.f32 %v3717, 0.0
        %v3750 = vmax.f32 %v3718, 0.0
        %v3751 = vmax.f32 %v3719, 0.0
        %v3752 = vmax.f32 %v3720, 0.0
        %v3753 = vmax.f32 %v3721, 0.0
        %v3754 = vmax.f32 %v3722, 0.0
        %v3755 = vmax.f32 %v3723, 0.0
        %v3756 = vmax.f32 %v3724, 0.0
        %v3757 = vmax.f32 %v3725, 0.0
        %v3758 = vmax.f32 %v3726, 0.0
        %v3759 = vmax.f32 %v3727, 0.0
        %v3760 = vmax.f32 %v3728, 0.0
        %v3761 = vmax.f32 %v3729, 0.0
        %v3762 = vmax.f32 %v3730, 0.0
        %v3763 = vmax.f32 %v3731, 0.0
        %v3764 = vmax.f32 %v3732, 0.0
        %s3765 = scalar_lea.vmem [#allocation3], 24
        %3766 = vst [vmem:[%s3765 + $0x1] sm:$0xff] %v3733
        %3767 = vst [vmem:[%s3765 + $0x9] sm:$0xff] %v3734
        %3768 = vst [vmem:[%s3765 + $0x19] sm:$0xff] %v3735
        %3769 = vst [vmem:[%s3765 + $0x21] sm:$0xff] %v3736
        %3770 = vst [vmem:[%s3765 + $0x31] sm:$0xff] %v3737
        %3771 = vst [vmem:[%s3765 + $0x39] sm:$0xff] %v3738
        %3772 = vst [vmem:[%s3765 + $0x49] sm:$0xff] %v3739
        %3773 = vst [vmem:[%s3765 + $0x51] sm:$0xff] %v3740
        %3774 = vst [vmem:[%s3765 + $0x61] sm:$0xff] %v3741
        %3775 = vst [vmem:[%s3765 + $0x69] sm:$0xff] %v3742
        %3776 = vst [vmem:[%s3765 + $0x79] sm:$0xff] %v3743
        %3777 = vst [vmem:[%s3765 + $0x81] sm:$0xff] %v3744
        %3778 = vst [vmem:[%s3765 + $0x91] sm:$0xff] %v3745
        %3779 = vst [vmem:[%s3765 + $0x99] sm:$0xff] %v3746
        %3780 = vst [vmem:[%s3765 + $0xa9] sm:$0xff] %v3747
        %3781 = vst [vmem:[%s3765 + $0xb1] sm:$0xff] %v3748
        %3782 = vst [vmem:[%s3765 + $0xc1] sm:$0xff] %v3749
        %3783 = vst [vmem:[%s3765 + $0xc9] sm:$0xff] %v3750
        %3784 = vst [vmem:[%s3765 + $0xd9] sm:$0xff] %v3751
        %3785 = vst [vmem:[%s3765 + $0xe1] sm:$0xff] %v3752
        %3786 = vst [vmem:[%s3765 + $0xf1] sm:$0xff] %v3753
        %3787 = vst [vmem:[%s3765 + $0xf9] sm:$0xff] %v3754
        %3788 = vst [vmem:[%s3765 + $0x109] sm:$0xff] %v3755
        %3789 = vst [vmem:[%s3765 + $0x111] sm:$0xff] %v3756
        %3790 = vst [vmem:[%s3765 + $0x121] sm:$0xff] %v3757
        %3791 = vst [vmem:[%s3765 + $0x129] sm:$0xff] %v3758
        %3792 = vst [vmem:[%s3765 + $0x139] sm:$0xff] %v3759
        %3793 = vst [vmem:[%s3765 + $0x141] sm:$0xff] %v3760
        %3794 = vst [vmem:[%s3765 + $0x151] sm:$0xff] %v3761
        %3795 = vst [vmem:[%s3765 + $0x159] sm:$0xff] %v3762
        %3796 = vst [vmem:[%s3765 + $0x169] sm:$0xff] %v3763
        %3797 = vst [vmem:[%s3765 + $0x171] sm:$0xff] %v3764
        %3798 = vst [vmem:[#allocation3 + $0x1] sm:$0xff] %v3735
        %3799 = vst [vmem:[#allocation3 + $0x9] sm:$0xff] %v3736
        %s3800 = scalar_lea.vmem [#allocation3], 408
        %3801 = vst [vmem:[%s3800 + $0x1] sm:$0xff] %v3761
        %3802 = vst [vmem:[%s3800 + $0x9] sm:$0xff] %v3762
        %v3803 = vld [vmem:[#allocation3 + $0x2] sm:$0x1]
        %v3804 = vld [vmem:[#allocation3 + $0x1a] sm:$0x1]
        %v3805 = vld [vmem:[#allocation3 + $0x32] sm:$0x1]
        %v3806 = vld [vmem:[#allocation3 + $0x4a] sm:$0x1]
        %v3807 = vld [vmem:[#allocation3 + $0x62] sm:$0x1]
        %v3808 = vld [vmem:[#allocation3 + $0x7a] sm:$0x1]
        %v3809 = vld [vmem:[#allocation3 + $0x92] sm:$0x1]
        %v3810 = vld [vmem:[#allocation3 + $0xaa] sm:$0x1]
        %v3811 = vld [vmem:[#allocation3 + $0xc2] sm:$0x1]
        %v3812 = vld [vmem:[#allocation3 + $0xda] sm:$0x1]
        %v3813 = vld [vmem:[#allocation3 + $0xf2] sm:$0x1]
        %v3814 = vld [vmem:[#allocation3 + $0x10a] sm:$0x1]
        %v3815 = vld [vmem:[#allocation3 + $0x122] sm:$0x1]
        %v3816 = vld [vmem:[#allocation3 + $0x13a] sm:$0x1]
        %v3817 = vld [vmem:[#allocation3 + $0x152] sm:$0x1]
        %v3818 = vld [vmem:[#allocation3 + $0x16a] sm:$0x1]
        %v3819 = vld [vmem:[#allocation3 + $0x182] sm:$0x1]
        %v3820 = vld [vmem:[#allocation3 + $0x19a] sm:$0x1]
        %3821 = vst [vmem:[#allocation3] sm:$0x1] %v3803
        %3822 = vst [vmem:[#allocation3 + $0x18] sm:$0x1] %v3804
        %3823 = vst [vmem:[#allocation3 + $0x30] sm:$0x1] %v3805
        %3824 = vst [vmem:[#allocation3 + $0x48] sm:$0x1] %v3806
        %3825 = vst [vmem:[#allocation3 + $0x60] sm:$0x1] %v3807
        %3826 = vst [vmem:[#allocation3 + $0x78] sm:$0x1] %v3808
        %3827 = vst [vmem:[#allocation3 + $0x90] sm:$0x1] %v3809
        %3828 = vst [vmem:[#allocation3 + $0xa8] sm:$0x1] %v3810
        %3829 = vst [vmem:[#allocation3 + $0xc0] sm:$0x1] %v3811
        %3830 = vst [vmem:[#allocation3 + $0xd8] sm:$0x1] %v3812
        %3831 = vst [vmem:[#allocation3 + $0xf0] sm:$0x1] %v3813
        %3832 = vst [vmem:[#allocation3 + $0x108] sm:$0x1] %v3814
        %3833 = vst [vmem:[#allocation3 + $0x120] sm:$0x1] %v3815
        %3834 = vst [vmem:[#allocation3 + $0x138] sm:$0x1] %v3816
        %3835 = vst [vmem:[#allocation3 + $0x150] sm:$0x1] %v3817
        %3836 = vst [vmem:[#allocation3 + $0x168] sm:$0x1] %v3818
        %3837 = vst [vmem:[#allocation3 + $0x180] sm:$0x1] %v3819
        %3838 = vst [vmem:[#allocation3 + $0x198] sm:$0x1] %v3820
        %v3839 = vld [vmem:[#allocation3 + $0xf] sm:$0x1]
        %v3840 = vld [vmem:[#allocation3 + $0x27] sm:$0x1]
        %v3841 = vld [vmem:[#allocation3 + $0x3f] sm:$0x1]
        %v3842 = vld [vmem:[#allocation3 + $0x57] sm:$0x1]
        %v3843 = vld [vmem:[#allocation3 + $0x6f] sm:$0x1]
        %v3844 = vld [vmem:[#allocation3 + $0x87] sm:$0x1]
        %v3845 = vld [vmem:[#allocation3 + $0x9f] sm:$0x1]
        %v3846 = vld [vmem:[#allocation3 + $0xb7] sm:$0x1]
        %v3847 = vld [vmem:[#allocation3 + $0xcf] sm:$0x1]
        %v3848 = vld [vmem:[#allocation3 + $0xe7] sm:$0x1]
        %v3849 = vld [vmem:[#allocation3 + $0xff] sm:$0x1]
        %v3850 = vld [vmem:[#allocation3 + $0x117] sm:$0x1]
        %v3851 = vld [vmem:[#allocation3 + $0x12f] sm:$0x1]
        %v3852 = vld [vmem:[#allocation3 + $0x147] sm:$0x1]
        %v3853 = vld [vmem:[#allocation3 + $0x15f] sm:$0x1]
        %v3854 = vld [vmem:[#allocation3 + $0x177] sm:$0x1]
        %v3855 = vld [vmem:[#allocation3 + $0x18f] sm:$0x1]
        %v3856 = vld [vmem:[#allocation3 + $0x1a7] sm:$0x1]
        %3857 = vst [vmem:[#allocation3 + $0x11] sm:$0x1] %v3839
        %3858 = vst [vmem:[#allocation3 + $0x29] sm:$0x1] %v3840
        %3859 = vst [vmem:[#allocation3 + $0x41] sm:$0x1] %v3841
        %3860 = vst [vmem:[#allocation3 + $0x59] sm:$0x1] %v3842
        %3861 = vst [vmem:[#allocation3 + $0x71] sm:$0x1] %v3843
        %3862 = vst [vmem:[#allocation3 + $0x89] sm:$0x1] %v3844
        %3863 = vst [vmem:[#allocation3 + $0xa1] sm:$0x1] %v3845
        %3864 = vst [vmem:[#allocation3 + $0xb9] sm:$0x1] %v3846
        %3865 = vst [vmem:[#allocation3 + $0xd1] sm:$0x1] %v3847
        %3866 = vst [vmem:[#allocation3 + $0xe9] sm:$0x1] %v3848
        %3867 = vst [vmem:[#allocation3 + $0x101] sm:$0x1] %v3849
        %3868 = vst [vmem:[#allocation3 + $0x119] sm:$0x1] %v3850
        %3869 = vst [vmem:[#allocation3 + $0x131] sm:$0x1] %v3851
        %3870 = vst [vmem:[#allocation3 + $0x149] sm:$0x1] %v3852
        %3871 = vst [vmem:[#allocation3 + $0x161] sm:$0x1] %v3853
        %3872 = vst [vmem:[#allocation3 + $0x179] sm:$0x1] %v3854
        %3873 = vst [vmem:[#allocation3 + $0x191] sm:$0x1] %v3855
        %3874 = vst [vmem:[#allocation3 + $0x1a9] sm:$0x1] %v3856
        %v3875 = vld [vmem:[#allocation3] sm:$0xff]
        %v3876 = vld [vmem:[#allocation3 + $0x8] sm:$0xff]
        %v3877 = vld [vmem:[#allocation3 + $0x18] sm:$0xff]
        %v3878 = vld [vmem:[#allocation3 + $0x20] sm:$0xff]
        %v3879 = vld [vmem:[#allocation3 + $0x30] sm:$0xff]
        %v3880 = vld [vmem:[#allocation3 + $0x38] sm:$0xff]
        %v3881 = vld [vmem:[#allocation3 + $0x48] sm:$0xff]
        %v3882 = vld [vmem:[#allocation3 + $0x50] sm:$0xff]
        %v3883 = vld [vmem:[#allocation3 + $0x60] sm:$0xff]
        %v3884 = vld [vmem:[#allocation3 + $0x68] sm:$0xff]
        %v3885 = vld [vmem:[#allocation3 + $0x78] sm:$0xff]
        %v3886 = vld [vmem:[#allocation3 + $0x80] sm:$0xff]
        %v3887 = vld [vmem:[#allocation3 + $0x90] sm:$0xff]
        %v3888 = vld [vmem:[#allocation3 + $0x98] sm:$0xff]
        %v3889 = vld [vmem:[#allocation3 + $0xa8] sm:$0xff]
        %v3890 = vld [vmem:[#allocation3 + $0xb0] sm:$0xff]
        %v3891 = vld [vmem:[#allocation3 + $0xc0] sm:$0xff]
        %v3892 = vld [vmem:[#allocation3 + $0xc8] sm:$0xff]
        %v3893 = vld [vmem:[#allocation3 + $0xd8] sm:$0xff]
        %v3894 = vld [vmem:[#allocation3 + $0xe0] sm:$0xff]
        %v3895 = vld [vmem:[#allocation3 + $0xf0] sm:$0xff]
        %v3896 = vld [vmem:[#allocation3 + $0xf8] sm:$0xff]
        %v3897 = vld [vmem:[#allocation3 + $0x108] sm:$0xff]
        %v3898 = vld [vmem:[#allocation3 + $0x110] sm:$0xff]
        %v3899 = vld [vmem:[#allocation3 + $0x120] sm:$0xff]
        %v3900 = vld [vmem:[#allocation3 + $0x128] sm:$0xff]
        %v3901 = vld [vmem:[#allocation3 + $0x138] sm:$0xff]
        %v3902 = vld [vmem:[#allocation3 + $0x140] sm:$0xff]
        %v3903 = vld [vmem:[#allocation3 + $0x150] sm:$0xff]
        %v3904 = vld [vmem:[#allocation3 + $0x158] sm:$0xff]
        %v3905 = vld [vmem:[#allocation3 + $0x168] sm:$0xff]
        %v3906 = vld [vmem:[#allocation3 + $0x170] sm:$0xff]
        %v3907 = vld [vmem:[#allocation3 + $0x1] sm:$0xff]
        %v3908 = vld [vmem:[#allocation3 + $0x9] sm:$0xff]
        %v3909 = vld [vmem:[#allocation3 + $0x19] sm:$0xff]
        %v3910 = vld [vmem:[#allocation3 + $0x21] sm:$0xff]
        %v3911 = vld [vmem:[#allocation3 + $0x31] sm:$0xff]
        %v3912 = vld [vmem:[#allocation3 + $0x39] sm:$0xff]
        %v3913 = vld [vmem:[#allocation3 + $0x49] sm:$0xff]
        %v3914 = vld [vmem:[#allocation3 + $0x51] sm:$0xff]
        %v3915 = vld [vmem:[#allocation3 + $0x61] sm:$0xff]
        %v3916 = vld [vmem:[#allocation3 + $0x69] sm:$0xff]
        %v3917 = vld [vmem:[#allocation3 + $0x79] sm:$0xff]
        %v3918 = vld [vmem:[#allocation3 + $0x81] sm:$0xff]
        %v3919 = vld [vmem:[#allocation3 + $0x91] sm:$0xff]
        %v3920 = vld [vmem:[#allocation3 + $0x99] sm:$0xff]
        %v3921 = vld [vmem:[#allocation3 + $0xa9] sm:$0xff]
        %v3922 = vld [vmem:[#allocation3 + $0xb1] sm:$0xff]
        %v3923 = vld [vmem:[#allocation3 + $0xc1] sm:$0xff]
        %v3924 = vld [vmem:[#allocation3 + $0xc9] sm:$0xff]
        %v3925 = vld [vmem:[#allocation3 + $0xd9] sm:$0xff]
        %v3926 = vld [vmem:[#allocation3 + $0xe1] sm:$0xff]
        %v3927 = vld [vmem:[#allocation3 + $0xf1] sm:$0xff]
        %v3928 = vld [vmem:[#allocation3 + $0xf9] sm:$0xff]
        %v3929 = vld [vmem:[#allocation3 + $0x109] sm:$0xff]
        %v3930 = vld [vmem:[#allocation3 + $0x111] sm:$0xff]
        %v3931 = vld [vmem:[#allocation3 + $0x121] sm:$0xff]
        %v3932 = vld [vmem:[#allocation3 + $0x129] sm:$0xff]
        %v3933 = vld [vmem:[#allocation3 + $0x139] sm:$0xff]
        %v3934 = vld [vmem:[#allocation3 + $0x141] sm:$0xff]
        %v3935 = vld [vmem:[#allocation3 + $0x151] sm:$0xff]
        %v3936 = vld [vmem:[#allocation3 + $0x159] sm:$0xff]
        %v3937 = vld [vmem:[#allocation3 + $0x169] sm:$0xff]
        %v3938 = vld [vmem:[#allocation3 + $0x171] sm:$0xff]
        %v3939 = vld [vmem:[#allocation3 + $0x2] sm:$0xff]
        %v3940 = vld [vmem:[#allocation3 + $0xa] sm:$0xff]
        %v3941 = vld [vmem:[#allocation3 + $0x1a] sm:$0xff]
        %v3942 = vld [vmem:[#allocation3 + $0x22] sm:$0xff]
        %v3943 = vld [vmem:[#allocation3 + $0x32] sm:$0xff]
        %v3944 = vld [vmem:[#allocation3 + $0x3a] sm:$0xff]
        %v3945 = vld [vmem:[#allocation3 + $0x4a] sm:$0xff]
        %v3946 = vld [vmem:[#allocation3 + $0x52] sm:$0xff]
        %v3947 = vld [vmem:[#allocation3 + $0x62] sm:$0xff]
        %v3948 = vld [vmem:[#allocation3 + $0x6a] sm:$0xff]
        %v3949 = vld [vmem:[#allocation3 + $0x7a] sm:$0xff]
        %v3950 = vld [vmem:[#allocation3 + $0x82] sm:$0xff]
        %v3951 = vld [vmem:[#allocation3 + $0x92] sm:$0xff]
        %v3952 = vld [vmem:[#allocation3 + $0x9a] sm:$0xff]
        %v3953 = vld [vmem:[#allocation3 + $0xaa] sm:$0xff]
        %v3954 = vld [vmem:[#allocation3 + $0xb2] sm:$0xff]
        %v3955 = vld [vmem:[#allocation3 + $0xc2] sm:$0xff]
        %v3956 = vld [vmem:[#allocation3 + $0xca] sm:$0xff]
        %v3957 = vld [vmem:[#allocation3 + $0xda] sm:$0xff]
        %v3958 = vld [vmem:[#allocation3 + $0xe2] sm:$0xff]
        %v3959 = vld [vmem:[#allocation3 + $0xf2] sm:$0xff]
        %v3960 = vld [vmem:[#allocation3 + $0xfa] sm:$0xff]
        %v3961 = vld [vmem:[#allocation3 + $0x10a] sm:$0xff]
        %v3962 = vld [vmem:[#allocation3 + $0x112] sm:$0xff]
        %v3963 = vld [vmem:[#allocation3 + $0x122] sm:$0xff]
        %v3964 = vld [vmem:[#allocation3 + $0x12a] sm:$0xff]
        %v3965 = vld [vmem:[#allocation3 + $0x13a] sm:$0xff]
        %v3966 = vld [vmem:[#allocation3 + $0x142] sm:$0xff]
        %v3967 = vld [vmem:[#allocation3 + $0x152] sm:$0xff]
        %v3968 = vld [vmem:[#allocation3 + $0x15a] sm:$0xff]
        %v3969 = vld [vmem:[#allocation3 + $0x16a] sm:$0xff]
        %v3970 = vld [vmem:[#allocation3 + $0x172] sm:$0xff]
        %v3971 = vpack.c.bf16 %v3876, %v3875
        %v3972 = vpack.c.bf16 %v3908, %v3907
        %v3973 = vpack.c.bf16 %v3940, %v3939
        %v3974 = vpack.c.bf16 %v3878, %v3877
        %v3975 = vpack.c.bf16 %v3910, %v3909
        %v3976 = vpack.c.bf16 %v3942, %v3941
        %v3977 = vpack.c.bf16 %v3880, %v3879
        %v3978 = vpack.c.bf16 %v3912, %v3911
        %v3979 = vpack.c.bf16 %v3944, %v3943
        %v3980 = vpack.c.bf16 %v3882, %v3881
        %v3981 = vpack.c.bf16 %v3914, %v3913
        %v3982 = vpack.c.bf16 %v3946, %v3945
        %v3983 = vpack.c.bf16 %v3884, %v3883
        %v3984 = vpack.c.bf16 %v3916, %v3915
        %v3985 = vpack.c.bf16 %v3948, %v3947
        %v3986 = vpack.c.bf16 %v3886, %v3885
        %v3987 = vpack.c.bf16 %v3918, %v3917
        %v3988 = vpack.c.bf16 %v3950, %v3949
        %v3989 = vpack.c.bf16 %v3888, %v3887
        %v3990 = vpack.c.bf16 %v3920, %v3919
        %v3991 = vpack.c.bf16 %v3952, %v3951
        %v3992 = vpack.c.bf16 %v3890, %v3889
        %v3993 = vpack.c.bf16 %v3922, %v3921
        %v3994 = vpack.c.bf16 %v3954, %v3953
        %v3995 = vpack.c.bf16 %v3892, %v3891
        %v3996 = vpack.c.bf16 %v3924, %v3923
        %v3997 = vpack.c.bf16 %v3956, %v3955
        %v3998 = vpack.c.bf16 %v3894, %v3893
        %v3999 = vpack.c.bf16 %v3926, %v3925
        %v4000 = vpack.c.bf16 %v3958, %v3957
        %v4001 = vpack.c.bf16 %v3896, %v3895
        %v4002 = vpack.c.bf16 %v3928, %v3927
        %v4003 = vpack.c.bf16 %v3960, %v3959
        %v4004 = vpack.c.bf16 %v3898, %v3897
        %v4005 = vpack.c.bf16 %v3930, %v3929
        %v4006 = vpack.c.bf16 %v3962, %v3961
        %v4007 = vpack.c.bf16 %v3900, %v3899
        %v4008 = vpack.c.bf16 %v3932, %v3931
        %v4009 = vpack.c.bf16 %v3964, %v3963
        %v4010 = vpack.c.bf16 %v3902, %v3901
        %v4011 = vpack.c.bf16 %v3934, %v3933
        %v4012 = vpack.c.bf16 %v3966, %v3965
        %v4013 = vpack.c.bf16 %v3904, %v3903
        %v4014 = vpack.c.bf16 %v3936, %v3935
        %v4015 = vpack.c.bf16 %v3968, %v3967
        %v4016 = vpack.c.bf16 %v3906, %v3905
        %v4017 = vpack.c.bf16 %v3938, %v3937
        %v4018 = vpack.c.bf16 %v3970, %v3969
        %v4019 = vld [vmem:[%s2] sm:$0xf]
        %v4020 = vld [vmem:[%s2 + $0x4] sm:$0xf]
        %v4021 = vld [vmem:[%s2 + $0x8] sm:$0xf]
        %v4022 = vld [vmem:[%s2 + $0xc] sm:$0xf]
        %v4023 = vld [vmem:[%s2 + $0x10] sm:$0xf]
        %v4024 = vld [vmem:[%s2 + $0x14] sm:$0xf]
        %v4025 = vld [vmem:[%s2 + $0x18] sm:$0xf]
        %v4026 = vld [vmem:[%s2 + $0x1c] sm:$0xf]
        %v4027 = vld [vmem:[%s2 + $0x20] sm:$0xf]
        %v4028 = vld [vmem:[%s2 + $0x24] sm:$0xf]
        %v4029 = vld [vmem:[%s2 + $0x28] sm:$0xf]
        %v4030 = vld [vmem:[%s2 + $0x2c] sm:$0xf]
        %v4031 = vld [vmem:[%s2 + $0x30] sm:$0xf]
        %v4032 = vld [vmem:[%s2 + $0x34] sm:$0xf]
        %v4033 = vld [vmem:[%s2 + $0x38] sm:$0xf]
        %v4034 = vld [vmem:[%s2 + $0x3c] sm:$0xf]
        %v4035 = vld [vmem:[%s2 + $0x40] sm:$0xf]
        %v4036 = vld [vmem:[%s2 + $0x44] sm:$0xf]
        %v4037 = vld [vmem:[%s2 + $0x48] sm:$0xf]
        %v4038 = vld [vmem:[%s2 + $0x4c] sm:$0xf]
        %v4039 = vld [vmem:[%s2 + $0x50] sm:$0xf]
        %v4040 = vld [vmem:[%s2 + $0x54] sm:$0xf]
        %v4041 = vld [vmem:[%s2 + $0x58] sm:$0xf]
        %v4042 = vld [vmem:[%s2 + $0x5c] sm:$0xf]
        %v4043 = vld [vmem:[%s2 + $0x60] sm:$0xf]
        %v4044 = vld [vmem:[%s2 + $0x64] sm:$0xf]
        %v4045 = vld [vmem:[%s2 + $0x68] sm:$0xf]
        %v4046 = vld [vmem:[%s2 + $0x6c] sm:$0xf]
        %v4047 = vld [vmem:[%s2 + $0x70] sm:$0xf]
        %v4048 = vld [vmem:[%s2 + $0x74] sm:$0xf]
        %v4049 = vld [vmem:[%s2 + $0x78] sm:$0xf]
        %v4050 = vld [vmem:[%s2 + $0x7c] sm:$0xf]
        %v4051 = vld [vmem:[%s2 + $0x80] sm:$0xf]
        %v4052 = vld [vmem:[%s2 + $0x84] sm:$0xf]
        %v4053 = vld [vmem:[%s2 + $0x88] sm:$0xf]
        %v4054 = vld [vmem:[%s2 + $0x8c] sm:$0xf]
        %v4055 = vld [vmem:[%s2 + $0x90] sm:$0xf]
        %v4056 = vld [vmem:[%s2 + $0x94] sm:$0xf]
        %v4057 = vld [vmem:[%s2 + $0x98] sm:$0xf]
        %v4058 = vld [vmem:[%s2 + $0x9c] sm:$0xf]
        %v4059 = vld [vmem:[%s2 + $0xa0] sm:$0xf]
        %v4060 = vld [vmem:[%s2 + $0xa4] sm:$0xf]
        %v4061 = vld [vmem:[%s2 + $0xa8] sm:$0xf]
        %v4062 = vld [vmem:[%s2 + $0xac] sm:$0xf]
        %v4063 = vld [vmem:[%s2 + $0xb0] sm:$0xf]
        %v4064 = vld [vmem:[%s2 + $0xb4] sm:$0xf]
        %v4065 = vld [vmem:[%s2 + $0xb8] sm:$0xf]
        %v4066 = vld [vmem:[%s2 + $0xbc] sm:$0xf]
        %v4115 = vunpack.c.l.b16 %v4019
        %v4116 = vunpack.c.l.b16 %v4020
        %v4117 = vunpack.c.l.b16 %v4021
        %v4118 = vunpack.c.l.b16 %v4022
        %v4119 = vunpack.c.l.b16 %v4023
        %v4120 = vunpack.c.l.b16 %v4024
        %v4121 = vunpack.c.l.b16 %v4025
        %v4122 = vunpack.c.l.b16 %v4026
        %v4123 = vunpack.c.l.b16 %v4027
        %v4124 = vunpack.c.l.b16 %v4028
        %v4125 = vunpack.c.l.b16 %v4029
        %v4126 = vunpack.c.l.b16 %v4030
        %v4127 = vunpack.c.l.b16 %v4031
        %v4128 = vunpack.c.l.b16 %v4032
        %v4129 = vunpack.c.l.b16 %v4033
        %v4130 = vunpack.c.l.b16 %v4034
        %v4131 = vunpack.c.l.b16 %v4035
        %v4132 = vunpack.c.l.b16 %v4036
        %v4133 = vunpack.c.l.b16 %v4037
        %v4134 = vunpack.c.l.b16 %v4038
        %v4135 = vunpack.c.l.b16 %v4039
        %v4136 = vunpack.c.l.b16 %v4040
        %v4137 = vunpack.c.l.b16 %v4041
        %v4138 = vunpack.c.l.b16 %v4042
        %v4139 = vunpack.c.l.b16 %v4043
        %v4140 = vunpack.c.l.b16 %v4044
        %v4141 = vunpack.c.l.b16 %v4045
        %v4142 = vunpack.c.l.b16 %v4046
        %v4143 = vunpack.c.l.b16 %v4047
        %v4144 = vunpack.c.l.b16 %v4048
        %v4145 = vunpack.c.l.b16 %v4049
        %v4146 = vunpack.c.l.b16 %v4050
        %v4147 = vunpack.c.l.b16 %v4051
        %v4148 = vunpack.c.l.b16 %v4052
        %v4149 = vunpack.c.l.b16 %v4053
        %v4150 = vunpack.c.l.b16 %v4054
        %v4151 = vunpack.c.l.b16 %v4055
        %v4152 = vunpack.c.l.b16 %v4056
        %v4153 = vunpack.c.l.b16 %v4057
        %v4154 = vunpack.c.l.b16 %v4058
        %v4155 = vunpack.c.l.b16 %v4059
        %v4156 = vunpack.c.l.b16 %v4060
        %v4157 = vunpack.c.l.b16 %v4061
        %v4158 = vunpack.c.l.b16 %v4062
        %v4159 = vunpack.c.l.b16 %v4063
        %v4160 = vunpack.c.l.b16 %v4064
        %v4161 = vunpack.c.l.b16 %v4065
        %v4162 = vunpack.c.l.b16 %v4066
        %v4163 = vpack.c.b16 %v4116, %v4115
        %v4164 = vpack.c.b16 %v4118, %v4117
        %v4165 = vpack.c.b16 %v4120, %v4119
        %v4166 = vpack.c.b16 %v4122, %v4121
        %v4167 = vpack.c.b16 %v4124, %v4123
        %v4168 = vpack.c.b16 %v4126, %v4125
        %v4169 = vpack.c.b16 %v4128, %v4127
        %v4170 = vpack.c.b16 %v4130, %v4129
        %v4171 = vpack.c.b16 %v4132, %v4131
        %v4172 = vpack.c.b16 %v4134, %v4133
        %v4173 = vpack.c.b16 %v4136, %v4135
        %v4174 = vpack.c.b16 %v4138, %v4137
        %v4175 = vpack.c.b16 %v4140, %v4139
        %v4176 = vpack.c.b16 %v4142, %v4141
        %v4177 = vpack.c.b16 %v4144, %v4143
        %v4178 = vpack.c.b16 %v4146, %v4145
        %v4179 = vpack.c.b16 %v4148, %v4147
        %v4180 = vpack.c.b16 %v4150, %v4149
        %v4181 = vpack.c.b16 %v4152, %v4151
        %v4182 = vpack.c.b16 %v4154, %v4153
        %v4183 = vpack.c.b16 %v4156, %v4155
        %v4184 = vpack.c.b16 %v4158, %v4157
        %v4185 = vpack.c.b16 %v4160, %v4159
        %v4186 = vpack.c.b16 %v4162, %v4161
        %4211 = vmatprep.subr.bf16.mxu0 0
        %4212 = vmatpush1.bf16.msra.mxu0 %v4163
        %4213 = vmatprep.subr.bf16.mxu0 0
        %4214 = vmatpush1.bf16.msra.mxu0 %v4164
        %4215 = vmatprep.subr.bf16.mxu0 0
        %4216 = vmatpush1.bf16.msra.mxu0 %v4165
        %4217 = vmatprep.subr.bf16.mxu0 0
        %4218 = vmatpush1.bf16.msra.mxu0 %v4166
        %4219 = vmatprep.subr.bf16.mxu0 0
        %4220 = vmatpush1.bf16.msra.mxu0 %v4167
        %4221 = vmatprep.subr.bf16.mxu0 0
        %4222 = vmatpush1.bf16.msra.mxu0 %v4168
        %4223 = vmatprep.subr.bf16.mxu0 0
        %4224 = vmatpush1.bf16.msra.mxu0 %v4169
        %4225 = vmatprep.subr.bf16.mxu0 0
        %4226 = vmatpush1.bf16.msra.mxu0 %v4170
        %4227 = vmatprep.subr.bf16.mxu0 0
        %4228 = vmatpush1.bf16.msra.mxu0 %v4171
        %4229 = vmatprep.subr.bf16.mxu0 0
        %4230 = vmatpush1.bf16.msra.mxu0 %v4172
        %4231 = vmatprep.subr.bf16.mxu0 0
        %4232 = vmatpush1.bf16.msra.mxu0 %v4173
        %4233 = vmatprep.subr.bf16.mxu0 0
        %4234 = vmatpush1.bf16.msra.mxu0 %v4174
        %4235 = vmatprep.subr.bf16.mxu0 0
        %4236 = vmatpush1.bf16.msra.mxu0 %v4175
        %4237 = vmatprep.subr.bf16.mxu0 0
        %4238 = vmatpush1.bf16.msra.mxu0 %v4176
        %4239 = vmatprep.subr.bf16.mxu0 0
        %4240 = vmatpush1.bf16.msra.mxu0 %v4177
        %4241 = vmatprep.subr.bf16.mxu0 0
        %4242 = vmatpush1.bf16.msra.mxu0 %v4178
        %4243 = vmatprep.mubr.bf16.mxu0 %v3972
        %4244 = vmatmul.mubr.bf16.gmra.mrb[0].mxu0 %v3971
        %v4245 = vpop.f32.mrb[0].mxu0
        %v4246 = vadd.f32 0.0, %v4245
        %v4247 = vpop.f32.mrb[0].mxu0
        %v4248 = vpop.f32.mrb[0].mxu0
        %v4249 = vadd.f32 0.0, %v4248
        %v4250 = vpop.f32.mrb[0].mxu0
        %4251 = vmatprep.mubr.bf16.mxu0 %v3975
        %4252 = vmatmul.mubr.bf16.gmra.mrb[0].mxu0 %v3974
        %v4253 = vpop.f32.mrb[0].mxu0
        %v4254 = vadd.f32 0.0, %v4253
        %v4255 = vpop.f32.mrb[0].mxu0
        %v4256 = vpop.f32.mrb[0].mxu0
        %v4257 = vadd.f32 0.0, %v4256
        %v4258 = vpop.f32.mrb[0].mxu0
        %4259 = vmatprep.mubr.bf16.mxu0 %v3978
        %4260 = vmatmul.mubr.bf16.gmra.mrb[0].mxu0 %v3977
        %v4261 = vpop.f32.mrb[0].mxu0
        %v4262 = vadd.f32 0.0, %v4261
        %v4263 = vpop.f32.mrb[0].mxu0
        %v4264 = vpop.f32.mrb[0].mxu0
        %v4265 = vadd.f32 0.0, %v4264
        %v4266 = vpop.f32.mrb[0].mxu0
        %4267 = vmatprep.mubr.bf16.mxu0 %v3981
        %4268 = vmatmul.mubr.bf16.gmra.mrb[0].mxu0 %v3980
        %v4269 = vpop.f32.mrb[0].mxu0
        %v4270 = vadd.f32 0.0, %v4269
        %v4271 = vpop.f32.mrb[0].mxu0
        %v4272 = vpop.f32.mrb[0].mxu0
        %v4273 = vadd.f32 0.0, %v4272
        %v4274 = vpop.f32.mrb[0].mxu0
        %4275 = vmatprep.mubr.bf16.mxu0 %v3984
        %4276 = vmatmul.mubr.bf16.gmra.mrb[0].mxu0 %v3983
        %v4277 = vpop.f32.mrb[0].mxu0
        %v4278 = vadd.f32 0.0, %v4277
        %v4279 = vpop.f32.mrb[0].mxu0
        %v4280 = vpop.f32.mrb[0].mxu0
        %v4281 = vadd.f32 0.0, %v4280
        %v4282 = vpop.f32.mrb[0].mxu0
        %4283 = vmatprep.mubr.bf16.mxu0 %v3987
        %4284 = vmatmul.mubr.bf16.gmra.mrb[0].mxu0 %v3986
        %v4285 = vpop.f32.mrb[0].mxu0
        %v4286 = vadd.f32 0.0, %v4285
        %v4287 = vpop.f32.mrb[0].mxu0
        %v4288 = vpop.f32.mrb[0].mxu0
        %v4289 = vadd.f32 0.0, %v4288
        %v4290 = vpop.f32.mrb[0].mxu0
        %4291 = vmatprep.mubr.bf16.mxu0 %v3990
        %4292 = vmatmul.mubr.bf16.gmra.mrb[0].mxu0 %v3989
        %v4293 = vpop.f32.mrb[0].mxu0
        %v4294 = vadd.f32 0.0, %v4293
        %v4295 = vpop.f32.mrb[0].mxu0
        %v4296 = vpop.f32.mrb[0].mxu0
        %v4297 = vadd.f32 0.0, %v4296
        %v4298 = vpop.f32.mrb[0].mxu0
        %4299 = vmatprep.mubr.bf16.mxu0 %v3993
        %4300 = vmatmul.mubr.bf16.gmra.mrb[0].mxu0 %v3992
        %v4301 = vpop.f32.mrb[0].mxu0
        %v4302 = vadd.f32 0.0, %v4301
        %v4303 = vpop.f32.mrb[0].mxu0
        %v4304 = vpop.f32.mrb[0].mxu0
        %v4305 = vadd.f32 0.0, %v4304
        %v4306 = vpop.f32.mrb[0].mxu0
        %4307 = vmatprep.mubr.bf16.mxu0 %v3996
        %4308 = vmatmul.mubr.bf16.gmra.mrb[0].mxu0 %v3995
        %v4309 = vpop.f32.mrb[0].mxu0
        %v4310 = vadd.f32 0.0, %v4309
        %v4311 = vpop.f32.mrb[0].mxu0
        %v4312 = vpop.f32.mrb[0].mxu0
        %v4313 = vadd.f32 0.0, %v4312
        %v4314 = vpop.f32.mrb[0].mxu0
        %4315 = vmatprep.mubr.bf16.mxu0 %v3999
        %4316 = vmatmul.mubr.bf16.gmra.mrb[0].mxu0 %v3998
        %v4317 = vpop.f32.mrb[0].mxu0
        %v4318 = vadd.f32 0.0, %v4317
        %v4319 = vpop.f32.mrb[0].mxu0
        %v4320 = vpop.f32.mrb[0].mxu0
        %v4321 = vadd.f32 0.0, %v4320
        %v4322 = vpop.f32.mrb[0].mxu0
        %4323 = vmatprep.mubr.bf16.mxu0 %v4002
        %4324 = vmatmul.mubr.bf16.gmra.mrb[0].mxu0 %v4001
        %v4325 = vpop.f32.mrb[0].mxu0
        %v4326 = vadd.f32 0.0, %v4325
        %v4327 = vpop.f32.mrb[0].mxu0
        %v4328 = vpop.f32.mrb[0].mxu0
        %v4329 = vadd.f32 0.0, %v4328
        %v4330 = vpop.f32.mrb[0].mxu0
        %4331 = vmatprep.mubr.bf16.mxu0 %v4005
        %4332 = vmatmul.mubr.bf16.gmra.mrb[0].mxu0 %v4004
        %v4333 = vpop.f32.mrb[0].mxu0
        %v4334 = vadd.f32 0.0, %v4333
        %v4335 = vpop.f32.mrb[0].mxu0
        %v4336 = vpop.f32.mrb[0].mxu0
        %v4337 = vadd.f32 0.0, %v4336
        %v4338 = vpop.f32.mrb[0].mxu0
        %4339 = vmatprep.mubr.bf16.mxu0 %v4008
        %4340 = vmatmul.mubr.bf16.gmra.mrb[0].mxu0 %v4007
        %v4341 = vpop.f32.mrb[0].mxu0
        %v4342 = vadd.f32 0.0, %v4341
        %v4343 = vpop.f32.mrb[0].mxu0
        %v4344 = vpop.f32.mrb[0].mxu0
        %v4345 = vadd.f32 0.0, %v4344
        %v4346 = vpop.f32.mrb[0].mxu0
        %4347 = vmatprep.mubr.bf16.mxu0 %v4011
        %4348 = vmatmul.mubr.bf16.gmra.mrb[0].mxu0 %v4010
        %v4349 = vpop.f32.mrb[0].mxu0
        %v4350 = vadd.f32 0.0, %v4349
        %v4351 = vpop.f32.mrb[0].mxu0
        %v4352 = vpop.f32.mrb[0].mxu0
        %v4353 = vadd.f32 0.0, %v4352
        %v4354 = vpop.f32.mrb[0].mxu0
        %4355 = vmatprep.mubr.bf16.mxu0 %v4014
        %4356 = vmatmul.mubr.bf16.gmra.mrb[0].mxu0 %v4013
        %v4357 = vpop.f32.mrb[0].mxu0
        %v4358 = vadd.f32 0.0, %v4357
        %v4359 = vpop.f32.mrb[0].mxu0
        %v4360 = vpop.f32.mrb[0].mxu0
        %v4361 = vadd.f32 0.0, %v4360
        %v4362 = vpop.f32.mrb[0].mxu0
        %4363 = vmatprep.mubr.bf16.mxu0 %v4017
        %4364 = vmatmul.mubr.bf16.gmra.mrb[0].mxu0 %v4016
        %v4365 = vpop.f32.mrb[0].mxu0
        %v4366 = vadd.f32 0.0, %v4365
        %v4367 = vpop.f32.mrb[0].mxu0
        %v4368 = vpop.f32.mrb[0].mxu0
        %v4369 = vadd.f32 0.0, %v4368
        %v4370 = vpop.f32.mrb[0].mxu0
        %4371 = vdwg.mxu0
        %4372 = vmatprep.subr.bf16.mxu0 0
        %4373 = vmatpush1.bf16.msra.mxu0 %v4179
        %4374 = vmatprep.subr.bf16.mxu0 0
        %4375 = vmatpush1.bf16.msra.mxu0 %v4180
        %4376 = vmatprep.subr.bf16.mxu0 0
        %4377 = vmatpush1.bf16.msra.mxu0 %v4181
        %4378 = vmatprep.subr.bf16.mxu0 0
        %4379 = vmatpush1.bf16.msra.mxu0 %v4182
        %4380 = vmatprep.subr.bf16.mxu0 0
        %4381 = vmatpush1.bf16.msra.mxu0 %v4183
        %4382 = vmatprep.subr.bf16.mxu0 0
        %4383 = vmatpush1.bf16.msra.mxu0 %v4184
        %4384 = vmatprep.subr.bf16.mxu0 0
        %4385 = vmatpush1.bf16.msra.mxu0 %v4185
        %4386 = vmatprep.subr.bf16.mxu0 0
        %4387 = vmatpush1.bf16.msra.mxu0 %v4186
        %4388 = vmatprep.subr.bf16.mxu0 0
        %4389 = vmatpush1.bf16.msra.mxu0 0
        %4390 = vmatprep.subr.bf16.mxu0 0
        %4391 = vmatpush1.bf16.msra.mxu0 0
        %4392 = vmatprep.subr.bf16.mxu0 0
        %4393 = vmatpush1.bf16.msra.mxu0 0
        %4394 = vmatprep.subr.bf16.mxu0 0
        %4395 = vmatpush1.bf16.msra.mxu0 0
        %4396 = vmatprep.subr.bf16.mxu0 0
        %4397 = vmatpush1.bf16.msra.mxu0 0
        %4398 = vmatprep.subr.bf16.mxu0 0
        %4399 = vmatpush1.bf16.msra.mxu0 0
        %4400 = vmatprep.subr.bf16.mxu0 0
        %4401 = vmatpush1.bf16.msra.mxu0 0
        %4402 = vmatprep.subr.bf16.mxu0 0
        %4403 = vmatpush1.bf16.msra.mxu0 0
        %4404 = vmatprep.mubr.bf16.mxu0 0
        %4405 = vmatmul.mubr.bf16.gmra.mrb[0].mxu0 %v3973
        %v4406 = vpop.f32.mrb[0].mxu0
        %v4407 = vadd.f32 %v4246, %v4406
        %v4408 = vpop.f32.mrb[0].mxu0
        %v4409 = vpop.f32.mrb[0].mxu0
        %v4410 = vadd.f32 %v4249, %v4409
        %v4411 = vpop.f32.mrb[0].mxu0
        %4412 = vmatprep.mubr.bf16.mxu0 0
        %4413 = vmatmul.mubr.bf16.gmra.mrb[0].mxu0 %v3976
        %v4414 = vpop.f32.mrb[0].mxu0
        %v4415 = vadd.f32 %v4254, %v4414
        %v4416 = vpop.f32.mrb[0].mxu0
        %v4417 = vpop.f32.mrb[0].mxu0
        %v4418 = vadd.f32 %v4257, %v4417
        %v4419 = vpop.f32.mrb[0].mxu0
        %4420 = vmatprep.mubr.bf16.mxu0 0
        %4421 = vmatmul.mubr.bf16.gmra.mrb[0].mxu0 %v3979
        %v4422 = vpop.f32.mrb[0].mxu0
        %v4423 = vadd.f32 %v4262, %v4422
        %v4424 = vpop.f32.mrb[0].mxu0
        %v4425 = vpop.f32.mrb[0].mxu0
        %v4426 = vadd.f32 %v4265, %v4425
        %v4427 = vpop.f32.mrb[0].mxu0
        %4428 = vmatprep.mubr.bf16.mxu0 0
        %4429 = vmatmul.mubr.bf16.gmra.mrb[0].mxu0 %v3982
        %v4430 = vpop.f32.mrb[0].mxu0
        %v4431 = vadd.f32 %v4270, %v4430
        %v4432 = vpop.f32.mrb[0].mxu0
        %v4433 = vpop.f32.mrb[0].mxu0
        %v4434 = vadd.f32 %v4273, %v4433
        %v4435 = vpop.f32.mrb[0].mxu0
        %4436 = vmatprep.mubr.bf16.mxu0 0
        %4437 = vmatmul.mubr.bf16.gmra.mrb[0].mxu0 %v3985
        %v4438 = vpop.f32.mrb[0].mxu0
        %v4439 = vadd.f32 %v4278, %v4438
        %v4440 = vpop.f32.mrb[0].mxu0
        %v4441 = vpop.f32.mrb[0].mxu0
        %v4442 = vadd.f32 %v4281, %v4441
        %v4443 = vpop.f32.mrb[0].mxu0
        %4444 = vmatprep.mubr.bf16.mxu0 0
        %4445 = vmatmul.mubr.bf16.gmra.mrb[0].mxu0 %v3988
        %v4446 = vpop.f32.mrb[0].mxu0
        %v4447 = vadd.f32 %v4286, %v4446
        %v4448 = vpop.f32.mrb[0].mxu0
        %v4449 = vpop.f32.mrb[0].mxu0
        %v4450 = vadd.f32 %v4289, %v4449
        %v4451 = vpop.f32.mrb[0].mxu0
        %4452 = vmatprep.mubr.bf16.mxu0 0
        %4453 = vmatmul.mubr.bf16.gmra.mrb[0].mxu0 %v3991
        %v4454 = vpop.f32.mrb[0].mxu0
        %v4455 = vadd.f32 %v4294, %v4454
        %v4456 = vpop.f32.mrb[0].mxu0
        %v4457 = vpop.f32.mrb[0].mxu0
        %v4458 = vadd.f32 %v4297, %v4457
        %v4459 = vpop.f32.mrb[0].mxu0
        %4460 = vmatprep.mubr.bf16.mxu0 0
        %4461 = vmatmul.mubr.bf16.gmra.mrb[0].mxu0 %v3994
        %v4462 = vpop.f32.mrb[0].mxu0
        %v4463 = vadd.f32 %v4302, %v4462
        %v4464 = vpop.f32.mrb[0].mxu0
        %v4465 = vpop.f32.mrb[0].mxu0
        %v4466 = vadd.f32 %v4305, %v4465
        %v4467 = vpop.f32.mrb[0].mxu0
        %4468 = vmatprep.mubr.bf16.mxu0 0
        %4469 = vmatmul.mubr.bf16.gmra.mrb[0].mxu0 %v3997
        %v4470 = vpop.f32.mrb[0].mxu0
        %v4471 = vadd.f32 %v4310, %v4470
        %v4472 = vpop.f32.mrb[0].mxu0
        %v4473 = vpop.f32.mrb[0].mxu0
        %v4474 = vadd.f32 %v4313, %v4473
        %v4475 = vpop.f32.mrb[0].mxu0
        %4476 = vmatprep.mubr.bf16.mxu0 0
        %4477 = vmatmul.mubr.bf16.gmra.mrb[0].mxu0 %v4000
        %v4478 = vpop.f32.mrb[0].mxu0
        %v4479 = vadd.f32 %v4318, %v4478
        %v4480 = vpop.f32.mrb[0].mxu0
        %v4481 = vpop.f32.mrb[0].mxu0
        %v4482 = vadd.f32 %v4321, %v4481
        %v4483 = vpop.f32.mrb[0].mxu0
        %4484 = vmatprep.mubr.bf16.mxu0 0
        %4485 = vmatmul.mubr.bf16.gmra.mrb[0].mxu0 %v4003
        %v4486 = vpop.f32.mrb[0].mxu0
        %v4487 = vadd.f32 %v4326, %v4486
        %v4488 = vpop.f32.mrb[0].mxu0
        %v4489 = vpop.f32.mrb[0].mxu0
        %v4490 = vadd.f32 %v4329, %v4489
        %v4491 = vpop.f32.mrb[0].mxu0
        %4492 = vmatprep.mubr.bf16.mxu0 0
        %4493 = vmatmul.mubr.bf16.gmra.mrb[0].mxu0 %v4006
        %v4494 = vpop.f32.mrb[0].mxu0
        %v4495 = vadd.f32 %v4334, %v4494
        %v4496 = vpop.f32.mrb[0].mxu0
        %v4497 = vpop.f32.mrb[0].mxu0
        %v4498 = vadd.f32 %v4337, %v4497
        %v4499 = vpop.f32.mrb[0].mxu0
        %4500 = vmatprep.mubr.bf16.mxu0 0
        %4501 = vmatmul.mubr.bf16.gmra.mrb[0].mxu0 %v4009
        %v4502 = vpop.f32.mrb[0].mxu0
        %v4503 = vadd.f32 %v4342, %v4502
        %v4504 = vpop.f32.mrb[0].mxu0
        %v4505 = vpop.f32.mrb[0].mxu0
        %v4506 = vadd.f32 %v4345, %v4505
        %v4507 = vpop.f32.mrb[0].mxu0
        %4508 = vmatprep.mubr.bf16.mxu0 0
        %4509 = vmatmul.mubr.bf16.gmra.mrb[0].mxu0 %v4012
        %v4510 = vpop.f32.mrb[0].mxu0
        %v4511 = vadd.f32 %v4350, %v4510
        %v4512 = vpop.f32.mrb[0].mxu0
        %v4513 = vpop.f32.mrb[0].mxu0
        %v4514 = vadd.f32 %v4353, %v4513
        %v4515 = vpop.f32.mrb[0].mxu0
        %4516 = vmatprep.mubr.bf16.mxu0 0
        %4517 = vmatmul.mubr.bf16.gmra.mrb[0].mxu0 %v4015
        %v4518 = vpop.f32.mrb[0].mxu0
        %v4519 = vadd.f32 %v4358, %v4518
        %v4520 = vpop.f32.mrb[0].mxu0
        %v4521 = vpop.f32.mrb[0].mxu0
        %v4522 = vadd.f32 %v4361, %v4521
        %v4523 = vpop.f32.mrb[0].mxu0
        %4524 = vmatprep.mubr.bf16.mxu0 0
        %4525 = vmatmul.mubr.bf16.gmra.mrb[0].mxu0 %v4018
        %v4526 = vpop.f32.mrb[0].mxu0
        %v4527 = vadd.f32 %v4366, %v4526
        %v4528 = vpop.f32.mrb[0].mxu0
        %v4529 = vpop.f32.mrb[0].mxu0
        %v4530 = vadd.f32 %v4369, %v4529
        %v4531 = vpop.f32.mrb[0].mxu0
        %4532 = vdwg.mxu0
        %4533 = vst [vmem:[#allocation2] sm:$0xff] %v4407
        %4534 = vst [vmem:[#allocation2 + $0x8] sm:$0xff] %v4410
        %4535 = vst [vmem:[#allocation2 + $0x10] sm:$0xff] %v4415
        %4536 = vst [vmem:[#allocation2 + $0x18] sm:$0xff] %v4418
        %4537 = vst [vmem:[#allocation2 + $0x20] sm:$0xff] %v4423
        %4538 = vst [vmem:[#allocation2 + $0x28] sm:$0xff] %v4426
        %4539 = vst [vmem:[#allocation2 + $0x30] sm:$0xff] %v4431
        %4540 = vst [vmem:[#allocation2 + $0x38] sm:$0xff] %v4434
        %4541 = vst [vmem:[#allocation2 + $0x40] sm:$0xff] %v4439
        %4542 = vst [vmem:[#allocation2 + $0x48] sm:$0xff] %v4442
        %4543 = vst [vmem:[#allocation2 + $0x50] sm:$0xff] %v4447
        %4544 = vst [vmem:[#allocation2 + $0x58] sm:$0xff] %v4450
        %4545 = vst [vmem:[#allocation2 + $0x60] sm:$0xff] %v4455
        %4546 = vst [vmem:[#allocation2 + $0x68] sm:$0xff] %v4458
        %4547 = vst [vmem:[#allocation2 + $0x70] sm:$0xff] %v4463
        %4548 = vst [vmem:[#allocation2 + $0x78] sm:$0xff] %v4466
        %4549 = vst [vmem:[#allocation2 + $0x80] sm:$0xff] %v4471
        %4550 = vst [vmem:[#allocation2 + $0x88] sm:$0xff] %v4474
        %4551 = vst [vmem:[#allocation2 + $0x90] sm:$0xff] %v4479
        %4552 = vst [vmem:[#allocation2 + $0x98] sm:$0xff] %v4482
        %4553 = vst [vmem:[#allocation2 + $0xa0] sm:$0xff] %v4487
        %4554 = vst [vmem:[#allocation2 + $0xa8] sm:$0xff] %v4490
        %4555 = vst [vmem:[#allocation2 + $0xb0] sm:$0xff] %v4495
        %4556 = vst [vmem:[#allocation2 + $0xb8] sm:$0xff] %v4498
        %4557 = vst [vmem:[#allocation2 + $0xc0] sm:$0xff] %v4503
        %4558 = vst [vmem:[#allocation2 + $0xc8] sm:$0xff] %v4506
        %4559 = vst [vmem:[#allocation2 + $0xd0] sm:$0xff] %v4511
        %4560 = vst [vmem:[#allocation2 + $0xd8] sm:$0xff] %v4514
        %4561 = vst [vmem:[#allocation2 + $0xe0] sm:$0xff] %v4519
        %4562 = vst [vmem:[#allocation2 + $0xe8] sm:$0xff] %v4522
        %4563 = vst [vmem:[#allocation2 + $0xf0] sm:$0xff] %v4527
        %4564 = vst [vmem:[#allocation2 + $0xf8] sm:$0xff] %v4530
        %v4565 = vld [vmem:[%s3765] sm:$0xff]
        %v4566 = vld [vmem:[%s3765 + $0x8] sm:$0xff]
        %v4567 = vld [vmem:[%s3765 + $0x18] sm:$0xff]
        %v4568 = vld [vmem:[%s3765 + $0x20] sm:$0xff]
        %v4569 = vld [vmem:[%s3765 + $0x30] sm:$0xff]
        %v4570 = vld [vmem:[%s3765 + $0x38] sm:$0xff]
        %v4571 = vld [vmem:[%s3765 + $0x48] sm:$0xff]
        %v4572 = vld [vmem:[%s3765 + $0x50] sm:$0xff]
        %v4573 = vld [vmem:[%s3765 + $0x60] sm:$0xff]
        %v4574 = vld [vmem:[%s3765 + $0x68] sm:$0xff]
        %v4575 = vld [vmem:[%s3765 + $0x78] sm:$0xff]
        %v4576 = vld [vmem:[%s3765 + $0x80] sm:$0xff]
        %v4577 = vld [vmem:[%s3765 + $0x90] sm:$0xff]
        %v4578 = vld [vmem:[%s3765 + $0x98] sm:$0xff]
        %v4579 = vld [vmem:[%s3765 + $0xa8] sm:$0xff]
        %v4580 = vld [vmem:[%s3765 + $0xb0] sm:$0xff]
        %v4581 = vld [vmem:[%s3765 + $0xc0] sm:$0xff]
        %v4582 = vld [vmem:[%s3765 + $0xc8] sm:$0xff]
        %v4583 = vld [vmem:[%s3765 + $0xd8] sm:$0xff]
        %v4584 = vld [vmem:[%s3765 + $0xe0] sm:$0xff]
        %v4585 = vld [vmem:[%s3765 + $0xf0] sm:$0xff]
        %v4586 = vld [vmem:[%s3765 + $0xf8] sm:$0xff]
        %v4587 = vld [vmem:[%s3765 + $0x108] sm:$0xff]
        %v4588 = vld [vmem:[%s3765 + $0x110] sm:$0xff]
        %v4589 = vld [vmem:[%s3765 + $0x120] sm:$0xff]
        %v4590 = vld [vmem:[%s3765 + $0x128] sm:$0xff]
        %v4591 = vld [vmem:[%s3765 + $0x138] sm:$0xff]
        %v4592 = vld [vmem:[%s3765 + $0x140] sm:$0xff]
        %v4593 = vld [vmem:[%s3765 + $0x150] sm:$0xff]
        %v4594 = vld [vmem:[%s3765 + $0x158] sm:$0xff]
        %v4595 = vld [vmem:[%s3765 + $0x168] sm:$0xff]
        %v4596 = vld [vmem:[%s3765 + $0x170] sm:$0xff]
        %v4597 = vld [vmem:[%s3765 + $0x1] sm:$0xff]
        %v4598 = vld [vmem:[%s3765 + $0x9] sm:$0xff]
        %v4599 = vld [vmem:[%s3765 + $0x19] sm:$0xff]
        %v4600 = vld [vmem:[%s3765 + $0x21] sm:$0xff]
        %v4601 = vld [vmem:[%s3765 + $0x31] sm:$0xff]
        %v4602 = vld [vmem:[%s3765 + $0x39] sm:$0xff]
        %v4603 = vld [vmem:[%s3765 + $0x49] sm:$0xff]
        %v4604 = vld [vmem:[%s3765 + $0x51] sm:$0xff]
        %v4605 = vld [vmem:[%s3765 + $0x61] sm:$0xff]
        %v4606 = vld [vmem:[%s3765 + $0x69] sm:$0xff]
        %v4607 = vld [vmem:[%s3765 + $0x79] sm:$0xff]
        %v4608 = vld [vmem:[%s3765 + $0x81] sm:$0xff]
        %v4609 = vld [vmem:[%s3765 + $0x91] sm:$0xff]
        %v4610 = vld [vmem:[%s3765 + $0x99] sm:$0xff]
        %v4611 = vld [vmem:[%s3765 + $0xa9] sm:$0xff]
        %v4612 = vld [vmem:[%s3765 + $0xb1] sm:$0xff]
        %v4613 = vld [vmem:[%s3765 + $0xc1] sm:$0xff]
        %v4614 = vld [vmem:[%s3765 + $0xc9] sm:$0xff]
        %v4615 = vld [vmem:[%s3765 + $0xd9] sm:$0xff]
        %v4616 = vld [vmem:[%s3765 + $0xe1] sm:$0xff]
        %v4617 = vld [vmem:[%s3765 + $0xf1] sm:$0xff]
        %v4618 = vld [vmem:[%s3765 + $0xf9] sm:$0xff]
        %v4619 = vld [vmem:[%s3765 + $0x109] sm:$0xff]
        %v4620 = vld [vmem:[%s3765 + $0x111] sm:$0xff]
        %v4621 = vld [vmem:[%s3765 + $0x121] sm:$0xff]
        %v4622 = vld [vmem:[%s3765 + $0x129] sm:$0xff]
        %v4623 = vld [vmem:[%s3765 + $0x139] sm:$0xff]
        %v4624 = vld [vmem:[%s3765 + $0x141] sm:$0xff]
        %v4625 = vld [vmem:[%s3765 + $0x151] sm:$0xff]
        %v4626 = vld [vmem:[%s3765 + $0x159] sm:$0xff]
        %v4627 = vld [vmem:[%s3765 + $0x169] sm:$0xff]
        %v4628 = vld [vmem:[%s3765 + $0x171] sm:$0xff]
        %v4629 = vld [vmem:[%s3765 + $0x2] sm:$0xff]
        %v4630 = vld [vmem:[%s3765 + $0xa] sm:$0xff]
        %v4631 = vld [vmem:[%s3765 + $0x1a] sm:$0xff]
        %v4632 = vld [vmem:[%s3765 + $0x22] sm:$0xff]
        %v4633 = vld [vmem:[%s3765 + $0x32] sm:$0xff]
        %v4634 = vld [vmem:[%s3765 + $0x3a] sm:$0xff]
        %v4635 = vld [vmem:[%s3765 + $0x4a] sm:$0xff]
        %v4636 = vld [vmem:[%s3765 + $0x52] sm:$0xff]
        %v4637 = vld [vmem:[%s3765 + $0x62] sm:$0xff]
        %v4638 = vld [vmem:[%s3765 + $0x6a] sm:$0xff]
        %v4639 = vld [vmem:[%s3765 + $0x7a] sm:$0xff]
        %v4640 = vld [vmem:[%s3765 + $0x82] sm:$0xff]
        %v4641 = vld [vmem:[%s3765 + $0x92] sm:$0xff]
        %v4642 = vld [vmem:[%s3765 + $0x9a] sm:$0xff]
        %v4643 = vld [vmem:[%s3765 + $0xaa] sm:$0xff]
        %v4644 = vld [vmem:[%s3765 + $0xb2] sm:$0xff]
        %v4645 = vld [vmem:[%s3765 + $0xc2] sm:$0xff]
        %v4646 = vld [vmem:[%s3765 + $0xca] sm:$0xff]
        %v4647 = vld [vmem:[%s3765 + $0xda] sm:$0xff]
        %v4648 = vld [vmem:[%s3765 + $0xe2] sm:$0xff]
        %v4649 = vld [vmem:[%s3765 + $0xf2] sm:$0xff]
        %v4650 = vld [vmem:[%s3765 + $0xfa] sm:$0xff]
        %v4651 = vld [vmem:[%s3765 + $0x10a] sm:$0xff]
        %v4652 = vld [vmem:[%s3765 + $0x112] sm:$0xff]
        %v4653 = vld [vmem:[%s3765 + $0x122] sm:$0xff]
        %v4654 = vld [vmem:[%s3765 + $0x12a] sm:$0xff]
        %v4655 = vld [vmem:[%s3765 + $0x13a] sm:$0xff]
        %v4656 = vld [vmem:[%s3765 + $0x142] sm:$0xff]
        %v4657 = vld [vmem:[%s3765 + $0x152] sm:$0xff]
        %v4658 = vld [vmem:[%s3765 + $0x15a] sm:$0xff]
        %v4659 = vld [vmem:[%s3765 + $0x16a] sm:$0xff]
        %v4660 = vld [vmem:[%s3765 + $0x172] sm:$0xff]
        %v4661 = vpack.c.bf16 %v4566, %v4565
        %v4662 = vpack.c.bf16 %v4598, %v4597
        %v4663 = vpack.c.bf16 %v4630, %v4629
        %v4664 = vpack.c.bf16 %v4568, %v4567
        %v4665 = vpack.c.bf16 %v4600, %v4599
        %v4666 = vpack.c.bf16 %v4632, %v4631
        %v4667 = vpack.c.bf16 %v4570, %v4569
        %v4668 = vpack.c.bf16 %v4602, %v4601
        %v4669 = vpack.c.bf16 %v4634, %v4633
        %v4670 = vpack.c.bf16 %v4572, %v4571
        %v4671 = vpack.c.bf16 %v4604, %v4603
        %v4672 = vpack.c.bf16 %v4636, %v4635
        %v4673 = vpack.c.bf16 %v4574, %v4573
        %v4674 = vpack.c.bf16 %v4606, %v4605
        %v4675 = vpack.c.bf16 %v4638, %v4637
        %v4676 = vpack.c.bf16 %v4576, %v4575
        %v4677 = vpack.c.bf16 %v4608, %v4607
        %v4678 = vpack.c.bf16 %v4640, %v4639
        %v4679 = vpack.c.bf16 %v4578, %v4577
        %v4680 = vpack.c.bf16 %v4610, %v4609
        %v4681 = vpack.c.bf16 %v4642, %v4641
        %v4682 = vpack.c.bf16 %v4580, %v4579
        %v4683 = vpack.c.bf16 %v4612, %v4611
        %v4684 = vpack.c.bf16 %v4644, %v4643
        %v4685 = vpack.c.bf16 %v4582, %v4581
        %v4686 = vpack.c.bf16 %v4614, %v4613
        %v4687 = vpack.c.bf16 %v4646, %v4645
        %v4688 = vpack.c.bf16 %v4584, %v4583
        %v4689 = vpack.c.bf16 %v4616, %v4615
        %v4690 = vpack.c.bf16 %v4648, %v4647
        %v4691 = vpack.c.bf16 %v4586, %v4585
        %v4692 = vpack.c.bf16 %v4618, %v4617
        %v4693 = vpack.c.bf16 %v4650, %v4649
        %v4694 = vpack.c.bf16 %v4588, %v4587
        %v4695 = vpack.c.bf16 %v4620, %v4619
        %v4696 = vpack.c.bf16 %v4652, %v4651
        %v4697 = vpack.c.bf16 %v4590, %v4589
        %v4698 = vpack.c.bf16 %v4622, %v4621
        %v4699 = vpack.c.bf16 %v4654, %v4653
        %v4700 = vpack.c.bf16 %v4592, %v4591
        %v4701 = vpack.c.bf16 %v4624, %v4623
        %v4702 = vpack.c.bf16 %v4656, %v4655
        %v4703 = vpack.c.bf16 %v4594, %v4593
        %v4704 = vpack.c.bf16 %v4626, %v4625
        %v4705 = vpack.c.bf16 %v4658, %v4657
        %v4706 = vpack.c.bf16 %v4596, %v4595
        %v4707 = vpack.c.bf16 %v4628, %v4627
        %v4708 = vpack.c.bf16 %v4660, %v4659
        %s4709 = scalar_lea.vmem %s2, 192
        %v4710 = vld [vmem:[%s4709] sm:$0xf]
        %v4711 = vld [vmem:[%s4709 + $0x4] sm:$0xf]
        %v4712 = vld [vmem:[%s4709 + $0x8] sm:$0xf]
        %v4713 = vld [vmem:[%s4709 + $0xc] sm:$0xf]
        %v4714 = vld [vmem:[%s4709 + $0x10] sm:$0xf]
        %v4715 = vld [vmem:[%s4709 + $0x14] sm:$0xf]
        %v4716 = vld [vmem:[%s4709 + $0x18] sm:$0xf]
        %v4717 = vld [vmem:[%s4709 + $0x1c] sm:$0xf]
        %v4718 = vld [vmem:[%s4709 + $0x20] sm:$0xf]
        %v4719 = vld [vmem:[%s4709 + $0x24] sm:$0xf]
        %v4720 = vld [vmem:[%s4709 + $0x28] sm:$0xf]
        %v4721 = vld [vmem:[%s4709 + $0x2c] sm:$0xf]
        %v4722 = vld [vmem:[%s4709 + $0x30] sm:$0xf]
        %v4723 = vld [vmem:[%s4709 + $0x34] sm:$0xf]
        %v4724 = vld [vmem:[%s4709 + $0x38] sm:$0xf]
        %v4725 = vld [vmem:[%s4709 + $0x3c] sm:$0xf]
        %v4726 = vld [vmem:[%s4709 + $0x40] sm:$0xf]
        %v4727 = vld [vmem:[%s4709 + $0x44] sm:$0xf]
        %v4728 = vld [vmem:[%s4709 + $0x48] sm:$0xf]
        %v4729 = vld [vmem:[%s4709 + $0x4c] sm:$0xf]
        %v4730 = vld [vmem:[%s4709 + $0x50] sm:$0xf]
        %v4731 = vld [vmem:[%s4709 + $0x54] sm:$0xf]
        %v4732 = vld [vmem:[%s4709 + $0x58] sm:$0xf]
        %v4733 = vld [vmem:[%s4709 + $0x5c] sm:$0xf]
        %v4734 = vld [vmem:[%s4709 + $0x60] sm:$0xf]
        %v4735 = vld [vmem:[%s4709 + $0x64] sm:$0xf]
        %v4736 = vld [vmem:[%s4709 + $0x68] sm:$0xf]
        %v4737 = vld [vmem:[%s4709 + $0x6c] sm:$0xf]
        %v4738 = vld [vmem:[%s4709 + $0x70] sm:$0xf]
        %v4739 = vld [vmem:[%s4709 + $0x74] sm:$0xf]
        %v4740 = vld [vmem:[%s4709 + $0x78] sm:$0xf]
        %v4741 = vld [vmem:[%s4709 + $0x7c] sm:$0xf]
        %v4742 = vld [vmem:[%s4709 + $0x80] sm:$0xf]
        %v4743 = vld [vmem:[%s4709 + $0x84] sm:$0xf]
        %v4744 = vld [vmem:[%s4709 + $0x88] sm:$0xf]
        %v4745 = vld [vmem:[%s4709 + $0x8c] sm:$0xf]
        %v4746 = vld [vmem:[%s4709 + $0x90] sm:$0xf]
        %v4747 = vld [vmem:[%s4709 + $0x94] sm:$0xf]
        %v4748 = vld [vmem:[%s4709 + $0x98] sm:$0xf]
        %v4749 = vld [vmem:[%s4709 + $0x9c] sm:$0xf]
        %v4750 = vld [vmem:[%s4709 + $0xa0] sm:$0xf]
        %v4751 = vld [vmem:[%s4709 + $0xa4] sm:$0xf]
        %v4752 = vld [vmem:[%s4709 + $0xa8] sm:$0xf]
        %v4753 = vld [vmem:[%s4709 + $0xac] sm:$0xf]
        %v4754 = vld [vmem:[%s4709 + $0xb0] sm:$0xf]
        %v4755 = vld [vmem:[%s4709 + $0xb4] sm:$0xf]
        %v4756 = vld [vmem:[%s4709 + $0xb8] sm:$0xf]
        %v4757 = vld [vmem:[%s4709 + $0xbc] sm:$0xf]
        %v4806 = vunpack.c.l.b16 %v4710
        %v4807 = vunpack.c.l.b16 %v4711
        %v4808 = vunpack.c.l.b16 %v4712
        %v4809 = vunpack.c.l.b16 %v4713
        %v4810 = vunpack.c.l.b16 %v4714
        %v4811 = vunpack.c.l.b16 %v4715
        %v4812 = vunpack.c.l.b16 %v4716
        %v4813 = vunpack.c.l.b16 %v4717
        %v4814 = vunpack.c.l.b16 %v4718
        %v4815 = vunpack.c.l.b16 %v4719
        %v4816 = vunpack.c.l.b16 %v4720
        %v4817 = vunpack.c.l.b16 %v4721
        %v4818 = vunpack.c.l.b16 %v4722
        %v4819 = vunpack.c.l.b16 %v4723
        %v4820 = vunpack.c.l.b16 %v4724
        %v4821 = vunpack.c.l.b16 %v4725
        %v4822 = vunpack.c.l.b16 %v4726
        %v4823 = vunpack.c.l.b16 %v4727
        %v4824 = vunpack.c.l.b16 %v4728
        %v4825 = vunpack.c.l.b16 %v4729
        %v4826 = vunpack.c.l.b16 %v4730
        %v4827 = vunpack.c.l.b16 %v4731
        %v4828 = vunpack.c.l.b16 %v4732
        %v4829 = vunpack.c.l.b16 %v4733
        %v4830 = vunpack.c.l.b16 %v4734
        %v4831 = vunpack.c.l.b16 %v4735
        %v4832 = vunpack.c.l.b16 %v4736
        %v4833 = vunpack.c.l.b16 %v4737
        %v4834 = vunpack.c.l.b16 %v4738
        %v4835 = vunpack.c.l.b16 %v4739
        %v4836 = vunpack.c.l.b16 %v4740
        %v4837 = vunpack.c.l.b16 %v4741
        %v4838 = vunpack.c.l.b16 %v4742
        %v4839 = vunpack.c.l.b16 %v4743
        %v4840 = vunpack.c.l.b16 %v4744
        %v4841 = vunpack.c.l.b16 %v4745
        %v4842 = vunpack.c.l.b16 %v4746
        %v4843 = vunpack.c.l.b16 %v4747
        %v4844 = vunpack.c.l.b16 %v4748
        %v4845 = vunpack.c.l.b16 %v4749
        %v4846 = vunpack.c.l.b16 %v4750
        %v4847 = vunpack.c.l.b16 %v4751
        %v4848 = vunpack.c.l.b16 %v4752
        %v4849 = vunpack.c.l.b16 %v4753
        %v4850 = vunpack.c.l.b16 %v4754
        %v4851 = vunpack.c.l.b16 %v4755
        %v4852 = vunpack.c.l.b16 %v4756
        %v4853 = vunpack.c.l.b16 %v4757
        %v4854 = vpack.c.b16 %v4807, %v4806
        %v4855 = vpack.c.b16 %v4809, %v4808
        %v4856 = vpack.c.b16 %v4811, %v4810
        %v4857 = vpack.c.b16 %v4813, %v4812
        %v4858 = vpack.c.b16 %v4815, %v4814
        %v4859 = vpack.c.b16 %v4817, %v4816
        %v4860 = vpack.c.b16 %v4819, %v4818
        %v4861 = vpack.c.b16 %v4821, %v4820
        %v4862 = vpack.c.b16 %v4823, %v4822
        %v4863 = vpack.c.b16 %v4825, %v4824
        %v4864 = vpack.c.b16 %v4827, %v4826
        %v4865 = vpack.c.b16 %v4829, %v4828
        %v4866 = vpack.c.b16 %v4831, %v4830
        %v4867 = vpack.c.b16 %v4833, %v4832
        %v4868 = vpack.c.b16 %v4835, %v4834
        %v4869 = vpack.c.b16 %v4837, %v4836
        %v4870 = vpack.c.b16 %v4839, %v4838
        %v4871 = vpack.c.b16 %v4841, %v4840
        %v4872 = vpack.c.b16 %v4843, %v4842
        %v4873 = vpack.c.b16 %v4845, %v4844
        %v4874 = vpack.c.b16 %v4847, %v4846
        %v4875 = vpack.c.b16 %v4849, %v4848
        %v4876 = vpack.c.b16 %v4851, %v4850
        %v4877 = vpack.c.b16 %v4853, %v4852
        %4902 = vmatprep.subr.bf16.mxu0 0
        %4903 = vmatpush1.bf16.msra.mxu0 %v4854
        %4904 = vmatprep.subr.bf16.mxu0 0
        %4905 = vmatpush1.bf16.msra.mxu0 %v4855
        %4906 = vmatprep.subr.bf16.mxu0 0
        %4907 = vmatpush1.bf16.msra.mxu0 %v4856
        %4908 = vmatprep.subr.bf16.mxu0 0
        %4909 = vmatpush1.bf16.msra.mxu0 %v4857
        %4910 = vmatprep.subr.bf16.mxu0 0
        %4911 = vmatpush1.bf16.msra.mxu0 %v4858
        %4912 = vmatprep.subr.bf16.mxu0 0
        %4913 = vmatpush1.bf16.msra.mxu0 %v4859
        %4914 = vmatprep.subr.bf16.mxu0 0
        %4915 = vmatpush1.bf16.msra.mxu0 %v4860
        %4916 = vmatprep.subr.bf16.mxu0 0
        %4917 = vmatpush1.bf16.msra.mxu0 %v4861
        %4918 = vmatprep.subr.bf16.mxu0 0
        %4919 = vmatpush1.bf16.msra.mxu0 %v4862
        %4920 = vmatprep.subr.bf16.mxu0 0
        %4921 = vmatpush1.bf16.msra.mxu0 %v4863
        %4922 = vmatprep.subr.bf16.mxu0 0
        %4923 = vmatpush1.bf16.msra.mxu0 %v4864
        %4924 = vmatprep.subr.bf16.mxu0 0
        %4925 = vmatpush1.bf16.msra.mxu0 %v4865
        %4926 = vmatprep.subr.bf16.mxu0 0
        %4927 = vmatpush1.bf16.msra.mxu0 %v4866
        %4928 = vmatprep.subr.bf16.mxu0 0
        %4929 = vmatpush1.bf16.msra.mxu0 %v4867
        %4930 = vmatprep.subr.bf16.mxu0 0
        %4931 = vmatpush1.bf16.msra.mxu0 %v4868
        %4932 = vmatprep.subr.bf16.mxu0 0
        %4933 = vmatpush1.bf16.msra.mxu0 %v4869
        %4934 = vmatprep.mubr.bf16.mxu0 %v4662
        %4935 = vmatmul.mubr.bf16.gmra.mrb[0].mxu0 %v4661
        %v4936 = vpop.f32.mrb[0].mxu0
        %v4937 = vadd.f32 0.0, %v4936
        %v4938 = vpop.f32.mrb[0].mxu0
        %v4939 = vpop.f32.mrb[0].mxu0
        %v4940 = vadd.f32 0.0, %v4939
        %v4941 = vpop.f32.mrb[0].mxu0
        %4942 = vmatprep.mubr.bf16.mxu0 %v4665
        %4943 = vmatmul.mubr.bf16.gmra.mrb[0].mxu0 %v4664
        %v4944 = vpop.f32.mrb[0].mxu0
        %v4945 = vadd.f32 0.0, %v4944
        %v4946 = vpop.f32.mrb[0].mxu0
        %v4947 = vpop.f32.mrb[0].mxu0
        %v4948 = vadd.f32 0.0, %v4947
        %v4949 = vpop.f32.mrb[0].mxu0
        %4950 = vmatprep.mubr.bf16.mxu0 %v4668
        %4951 = vmatmul.mubr.bf16.gmra.mrb[0].mxu0 %v4667
        %v4952 = vpop.f32.mrb[0].mxu0
        %v4953 = vadd.f32 0.0, %v4952
        %v4954 = vpop.f32.mrb[0].mxu0
        %v4955 = vpop.f32.mrb[0].mxu0
        %v4956 = vadd.f32 0.0, %v4955
        %v4957 = vpop.f32.mrb[0].mxu0
        %4958 = vmatprep.mubr.bf16.mxu0 %v4671
        %4959 = vmatmul.mubr.bf16.gmra.mrb[0].mxu0 %v4670
        %v4960 = vpop.f32.mrb[0].mxu0
        %v4961 = vadd.f32 0.0, %v4960
        %v4962 = vpop.f32.mrb[0].mxu0
        %v4963 = vpop.f32.mrb[0].mxu0
        %v4964 = vadd.f32 0.0, %v4963
        %v4965 = vpop.f32.mrb[0].mxu0
        %4966 = vmatprep.mubr.bf16.mxu0 %v4674
        %4967 = vmatmul.mubr.bf16.gmra.mrb[0].mxu0 %v4673
        %v4968 = vpop.f32.mrb[0].mxu0
        %v4969 = vadd.f32 0.0, %v4968
        %v4970 = vpop.f32.mrb[0].mxu0
        %v4971 = vpop.f32.mrb[0].mxu0
        %v4972 = vadd.f32 0.0, %v4971
        %v4973 = vpop.f32.mrb[0].mxu0
        %4974 = vmatprep.mubr.bf16.mxu0 %v4677
        %4975 = vmatmul.mubr.bf16.gmra.mrb[0].mxu0 %v4676
        %v4976 = vpop.f32.mrb[0].mxu0
        %v4977 = vadd.f32 0.0, %v4976
        %v4978 = vpop.f32.mrb[0].mxu0
        %v4979 = vpop.f32.mrb[0].mxu0
        %v4980 = vadd.f32 0.0, %v4979
        %v4981 = vpop.f32.mrb[0].mxu0
        %4982 = vmatprep.mubr.bf16.mxu0 %v4680
        %4983 = vmatmul.mubr.bf16.gmra.mrb[0].mxu0 %v4679
        %v4984 = vpop.f32.mrb[0].mxu0
        %v4985 = vadd.f32 0.0, %v4984
        %v4986 = vpop.f32.mrb[0].mxu0
        %v4987 = vpop.f32.mrb[0].mxu0
        %v4988 = vadd.f32 0.0, %v4987
        %v4989 = vpop.f32.mrb[0].mxu0
        %4990 = vmatprep.mubr.bf16.mxu0 %v4683
        %4991 = vmatmul.mubr.bf16.gmra.mrb[0].mxu0 %v4682
        %v4992 = vpop.f32.mrb[0].mxu0
        %v4993 = vadd.f32 0.0, %v4992
        %v4994 = vpop.f32.mrb[0].mxu0
        %v4995 = vpop.f32.mrb[0].mxu0
        %v4996 = vadd.f32 0.0, %v4995
        %v4997 = vpop.f32.mrb[0].mxu0
        %4998 = vmatprep.mubr.bf16.mxu0 %v4686
        %4999 = vmatmul.mubr.bf16.gmra.mrb[0].mxu0 %v4685
        %v5000 = vpop.f32.mrb[0].mxu0
        %v5001 = vadd.f32 0.0, %v5000
        %v5002 = vpop.f32.mrb[0].mxu0
        %v5003 = vpop.f32.mrb[0].mxu0
        %v5004 = vadd.f32 0.0, %v5003
        %v5005 = vpop.f32.mrb[0].mxu0
        %5006 = vmatprep.mubr.bf16.mxu0 %v4689
        %5007 = vmatmul.mubr.bf16.gmra.mrb[0].mxu0 %v4688
        %v5008 = vpop.f32.mrb[0].mxu0
        %v5009 = vadd.f32 0.0, %v5008
        %v5010 = vpop.f32.mrb[0].mxu0
        %v5011 = vpop.f32.mrb[0].mxu0
        %v5012 = vadd.f32 0.0, %v5011
        %v5013 = vpop.f32.mrb[0].mxu0
        %5014 = vmatprep.mubr.bf16.mxu0 %v4692
        %5015 = vmatmul.mubr.bf16.gmra.mrb[0].mxu0 %v4691
        %v5016 = vpop.f32.mrb[0].mxu0
        %v5017 = vadd.f32 0.0, %v5016
        %v5018 = vpop.f32.mrb[0].mxu0
        %v5019 = vpop.f32.mrb[0].mxu0
        %v5020 = vadd.f32 0.0, %v5019
        %v5021 = vpop.f32.mrb[0].mxu0
        %5022 = vmatprep.mubr.bf16.mxu0 %v4695
        %5023 = vmatmul.mubr.bf16.gmra.mrb[0].mxu0 %v4694
        %v5024 = vpop.f32.mrb[0].mxu0
        %v5025 = vadd.f32 0.0, %v5024
        %v5026 = vpop.f32.mrb[0].mxu0
        %v5027 = vpop.f32.mrb[0].mxu0
        %v5028 = vadd.f32 0.0, %v5027
        %v5029 = vpop.f32.mrb[0].mxu0
        %5030 = vmatprep.mubr.bf16.mxu0 %v4698
        %5031 = vmatmul.mubr.bf16.gmra.mrb[0].mxu0 %v4697
        %v5032 = vpop.f32.mrb[0].mxu0
        %v5033 = vadd.f32 0.0, %v5032
        %v5034 = vpop.f32.mrb[0].mxu0
        %v5035 = vpop.f32.mrb[0].mxu0
        %v5036 = vadd.f32 0.0, %v5035
        %v5037 = vpop.f32.mrb[0].mxu0
        %5038 = vmatprep.mubr.bf16.mxu0 %v4701
        %5039 = vmatmul.mubr.bf16.gmra.mrb[0].mxu0 %v4700
        %v5040 = vpop.f32.mrb[0].mxu0
        %v5041 = vadd.f32 0.0, %v5040
        %v5042 = vpop.f32.mrb[0].mxu0
        %v5043 = vpop.f32.mrb[0].mxu0
        %v5044 = vadd.f32 0.0, %v5043
        %v5045 = vpop.f32.mrb[0].mxu0
        %5046 = vmatprep.mubr.bf16.mxu0 %v4704
        %5047 = vmatmul.mubr.bf16.gmra.mrb[0].mxu0 %v4703
        %v5048 = vpop.f32.mrb[0].mxu0
        %v5049 = vadd.f32 0.0, %v5048
        %v5050 = vpop.f32.mrb[0].mxu0
        %v5051 = vpop.f32.mrb[0].mxu0
        %v5052 = vadd.f32 0.0, %v5051
        %v5053 = vpop.f32.mrb[0].mxu0
        %5054 = vmatprep.mubr.bf16.mxu0 %v4707
        %5055 = vmatmul.mubr.bf16.gmra.mrb[0].mxu0 %v4706
        %v5056 = vpop.f32.mrb[0].mxu0
        %v5057 = vadd.f32 0.0, %v5056
        %v5058 = vpop.f32.mrb[0].mxu0
        %v5059 = vpop.f32.mrb[0].mxu0
        %v5060 = vadd.f32 0.0, %v5059
        %v5061 = vpop.f32.mrb[0].mxu0
        %5062 = vdwg.mxu0
        %5063 = vmatprep.subr.bf16.mxu0 0
        %5064 = vmatpush1.bf16.msra.mxu0 %v4870
        %5065 = vmatprep.subr.bf16.mxu0 0
        %5066 = vmatpush1.bf16.msra.mxu0 %v4871
        %5067 = vmatprep.subr.bf16.mxu0 0
        %5068 = vmatpush1.bf16.msra.mxu0 %v4872
        %5069 = vmatprep.subr.bf16.mxu0 0
        %5070 = vmatpush1.bf16.msra.mxu0 %v4873
        %5071 = vmatprep.subr.bf16.mxu0 0
        %5072 = vmatpush1.bf16.msra.mxu0 %v4874
        %5073 = vmatprep.subr.bf16.mxu0 0
        %5074 = vmatpush1.bf16.msra.mxu0 %v4875
        %5075 = vmatprep.subr.bf16.mxu0 0
        %5076 = vmatpush1.bf16.msra.mxu0 %v4876
        %5077 = vmatprep.subr.bf16.mxu0 0
        %5078 = vmatpush1.bf16.msra.mxu0 %v4877
        %5079 = vmatprep.subr.bf16.mxu0 0
        %5080 = vmatpush1.bf16.msra.mxu0 0
        %5081 = vmatprep.subr.bf16.mxu0 0
        %5082 = vmatpush1.bf16.msra.mxu0 0
        %5083 = vmatprep.subr.bf16.mxu0 0
        %5084 = vmatpush1.bf16.msra.mxu0 0
        %5085 = vmatprep.subr.bf16.mxu0 0
        %5086 = vmatpush1.bf16.msra.mxu0 0
        %5087 = vmatprep.subr.bf16.mxu0 0
        %5088 = vmatpush1.bf16.msra.mxu0 0
        %5089 = vmatprep.subr.bf16.mxu0 0
        %5090 = vmatpush1.bf16.msra.mxu0 0
        %5091 = vmatprep.subr.bf16.mxu0 0
        %5092 = vmatpush1.bf16.msra.mxu0 0
        %5093 = vmatprep.subr.bf16.mxu0 0
        %5094 = vmatpush1.bf16.msra.mxu0 0
        %5095 = vmatprep.mubr.bf16.mxu0 0
        %5096 = vmatmul.mubr.bf16.gmra.mrb[0].mxu0 %v4663
        %v5097 = vpop.f32.mrb[0].mxu0
        %v5098 = vadd.f32 %v4937, %v5097
        %v5099 = vpop.f32.mrb[0].mxu0
        %v5100 = vpop.f32.mrb[0].mxu0
        %v5101 = vadd.f32 %v4940, %v5100
        %v5102 = vpop.f32.mrb[0].mxu0
        %5103 = vmatprep.mubr.bf16.mxu0 0
        %5104 = vmatmul.mubr.bf16.gmra.mrb[0].mxu0 %v4666
        %v5105 = vpop.f32.mrb[0].mxu0
        %v5106 = vadd.f32 %v4945, %v5105
        %v5107 = vpop.f32.mrb[0].mxu0
        %v5108 = vpop.f32.mrb[0].mxu0
        %v5109 = vadd.f32 %v4948, %v5108
        %v5110 = vpop.f32.mrb[0].mxu0
        %5111 = vmatprep.mubr.bf16.mxu0 0
        %5112 = vmatmul.mubr.bf16.gmra.mrb[0].mxu0 %v4669
        %v5113 = vpop.f32.mrb[0].mxu0
        %v5114 = vadd.f32 %v4953, %v5113
        %v5115 = vpop.f32.mrb[0].mxu0
        %v5116 = vpop.f32.mrb[0].mxu0
        %v5117 = vadd.f32 %v4956, %v5116
        %v5118 = vpop.f32.mrb[0].mxu0
        %5119 = vmatprep.mubr.bf16.mxu0 0
        %5120 = vmatmul.mubr.bf16.gmra.mrb[0].mxu0 %v4672
        %v5121 = vpop.f32.mrb[0].mxu0
        %v5122 = vadd.f32 %v4961, %v5121
        %v5123 = vpop.f32.mrb[0].mxu0
        %v5124 = vpop.f32.mrb[0].mxu0
        %v5125 = vadd.f32 %v4964, %v5124
        %v5126 = vpop.f32.mrb[0].mxu0
        %5127 = vmatprep.mubr.bf16.mxu0 0
        %5128 = vmatmul.mubr.bf16.gmra.mrb[0].mxu0 %v4675
        %v5129 = vpop.f32.mrb[0].mxu0
        %v5130 = vadd.f32 %v4969, %v5129
        %v5131 = vpop.f32.mrb[0].mxu0
        %v5132 = vpop.f32.mrb[0].mxu0
        %v5133 = vadd.f32 %v4972, %v5132
        %v5134 = vpop.f32.mrb[0].mxu0
        %5135 = vmatprep.mubr.bf16.mxu0 0
        %5136 = vmatmul.mubr.bf16.gmra.mrb[0].mxu0 %v4678
        %v5137 = vpop.f32.mrb[0].mxu0
        %v5138 = vadd.f32 %v4977, %v5137
        %v5139 = vpop.f32.mrb[0].mxu0
        %v5140 = vpop.f32.mrb[0].mxu0
        %v5141 = vadd.f32 %v4980, %v5140
        %v5142 = vpop.f32.mrb[0].mxu0
        %5143 = vmatprep.mubr.bf16.mxu0 0
        %5144 = vmatmul.mubr.bf16.gmra.mrb[0].mxu0 %v4681
        %v5145 = vpop.f32.mrb[0].mxu0
        %v5146 = vadd.f32 %v4985, %v5145
        %v5147 = vpop.f32.mrb[0].mxu0
        %v5148 = vpop.f32.mrb[0].mxu0
        %v5149 = vadd.f32 %v4988, %v5148
        %v5150 = vpop.f32.mrb[0].mxu0
        %5151 = vmatprep.mubr.bf16.mxu0 0
        %5152 = vmatmul.mubr.bf16.gmra.mrb[0].mxu0 %v4684
        %v5153 = vpop.f32.mrb[0].mxu0
        %v5154 = vadd.f32 %v4993, %v5153
        %v5155 = vpop.f32.mrb[0].mxu0
        %v5156 = vpop.f32.mrb[0].mxu0
        %v5157 = vadd.f32 %v4996, %v5156
        %v5158 = vpop.f32.mrb[0].mxu0
        %5159 = vmatprep.mubr.bf16.mxu0 0
        %5160 = vmatmul.mubr.bf16.gmra.mrb[0].mxu0 %v4687
        %v5161 = vpop.f32.mrb[0].mxu0
        %v5162 = vadd.f32 %v5001, %v5161
        %v5163 = vpop.f32.mrb[0].mxu0
        %v5164 = vpop.f32.mrb[0].mxu0
        %v5165 = vadd.f32 %v5004, %v5164
        %v5166 = vpop.f32.mrb[0].mxu0
        %5167 = vmatprep.mubr.bf16.mxu0 0
        %5168 = vmatmul.mubr.bf16.gmra.mrb[0].mxu0 %v4690
        %v5169 = vpop.f32.mrb[0].mxu0
        %v5170 = vadd.f32 %v5009, %v5169
        %v5171 = vpop.f32.mrb[0].mxu0
        %v5172 = vpop.f32.mrb[0].mxu0
        %v5173 = vadd.f32 %v5012, %v5172
        %v5174 = vpop.f32.mrb[0].mxu0
        %5175 = vmatprep.mubr.bf16.mxu0 0
        %5176 = vmatmul.mubr.bf16.gmra.mrb[0].mxu0 %v4693
        %v5177 = vpop.f32.mrb[0].mxu0
        %v5178 = vadd.f32 %v5017, %v5177
        %v5179 = vpop.f32.mrb[0].mxu0
        %v5180 = vpop.f32.mrb[0].mxu0
        %v5181 = vadd.f32 %v5020, %v5180
        %v5182 = vpop.f32.mrb[0].mxu0
        %5183 = vmatprep.mubr.bf16.mxu0 0
        %5184 = vmatmul.mubr.bf16.gmra.mrb[0].mxu0 %v4696
        %v5185 = vpop.f32.mrb[0].mxu0
        %v5186 = vadd.f32 %v5025, %v5185
        %v5187 = vpop.f32.mrb[0].mxu0
        %v5188 = vpop.f32.mrb[0].mxu0
        %v5189 = vadd.f32 %v5028, %v5188
        %v5190 = vpop.f32.mrb[0].mxu0
        %5191 = vmatprep.mubr.bf16.mxu0 0
        %5192 = vmatmul.mubr.bf16.gmra.mrb[0].mxu0 %v4699
        %v5193 = vpop.f32.mrb[0].mxu0
        %v5194 = vadd.f32 %v5033, %v5193
        %v5195 = vpop.f32.mrb[0].mxu0
        %v5196 = vpop.f32.mrb[0].mxu0
        %v5197 = vadd.f32 %v5036, %v5196
        %v5198 = vpop.f32.mrb[0].mxu0
        %5199 = vmatprep.mubr.bf16.mxu0 0
        %5200 = vmatmul.mubr.bf16.gmra.mrb[0].mxu0 %v4702
        %v5201 = vpop.f32.mrb[0].mxu0
        %v5202 = vadd.f32 %v5041, %v5201
        %v5203 = vpop.f32.mrb[0].mxu0
        %v5204 = vpop.f32.mrb[0].mxu0
        %v5205 = vadd.f32 %v5044, %v5204
        %v5206 = vpop.f32.mrb[0].mxu0
        %5207 = vmatprep.mubr.bf16.mxu0 0
        %5208 = vmatmul.mubr.bf16.gmra.mrb[0].mxu0 %v4705
        %v5209 = vpop.f32.mrb[0].mxu0
        %v5210 = vadd.f32 %v5049, %v5209
        %v5211 = vpop.f32.mrb[0].mxu0
        %v5212 = vpop.f32.mrb[0].mxu0
        %v5213 = vadd.f32 %v5052, %v5212
        %v5214 = vpop.f32.mrb[0].mxu0
        %5215 = vmatprep.mubr.bf16.mxu0 0
        %5216 = vmatmul.mubr.bf16.gmra.mrb[0].mxu0 %v4708
        %v5217 = vpop.f32.mrb[0].mxu0
        %v5218 = vadd.f32 %v5057, %v5217
        %v5219 = vpop.f32.mrb[0].mxu0
        %v5220 = vpop.f32.mrb[0].mxu0
        %v5221 = vadd.f32 %v5060, %v5220
        %v5222 = vpop.f32.mrb[0].mxu0
        %5223 = vdwg.mxu0
        %v5224 = vld [vmem:[#allocation2] sm:$0xff]
        %v5225 = vld [vmem:[#allocation2 + $0x8] sm:$0xff]
        %v5226 = vld [vmem:[#allocation2 + $0x10] sm:$0xff]
        %v5227 = vld [vmem:[#allocation2 + $0x18] sm:$0xff]
        %v5228 = vld [vmem:[#allocation2 + $0x20] sm:$0xff]
        %v5229 = vld [vmem:[#allocation2 + $0x28] sm:$0xff]
        %v5230 = vld [vmem:[#allocation2 + $0x30] sm:$0xff]
        %v5231 = vld [vmem:[#allocation2 + $0x38] sm:$0xff]
        %v5232 = vld [vmem:[#allocation2 + $0x40] sm:$0xff]
        %v5233 = vld [vmem:[#allocation2 + $0x48] sm:$0xff]
        %v5234 = vld [vmem:[#allocation2 + $0x50] sm:$0xff]
        %v5235 = vld [vmem:[#allocation2 + $0x58] sm:$0xff]
        %v5236 = vld [vmem:[#allocation2 + $0x60] sm:$0xff]
        %v5237 = vld [vmem:[#allocation2 + $0x68] sm:$0xff]
        %v5238 = vld [vmem:[#allocation2 + $0x70] sm:$0xff]
        %v5239 = vld [vmem:[#allocation2 + $0x78] sm:$0xff]
        %v5240 = vld [vmem:[#allocation2 + $0x80] sm:$0xff]
        %v5241 = vld [vmem:[#allocation2 + $0x88] sm:$0xff]
        %v5242 = vld [vmem:[#allocation2 + $0x90] sm:$0xff]
        %v5243 = vld [vmem:[#allocation2 + $0x98] sm:$0xff]
        %v5244 = vld [vmem:[#allocation2 + $0xa0] sm:$0xff]
        %v5245 = vld [vmem:[#allocation2 + $0xa8] sm:$0xff]
        %v5246 = vld [vmem:[#allocation2 + $0xb0] sm:$0xff]
        %v5247 = vld [vmem:[#allocation2 + $0xb8] sm:$0xff]
        %v5248 = vld [vmem:[#allocation2 + $0xc0] sm:$0xff]
        %v5249 = vld [vmem:[#allocation2 + $0xc8] sm:$0xff]
        %v5250 = vld [vmem:[#allocation2 + $0xd0] sm:$0xff]
        %v5251 = vld [vmem:[#allocation2 + $0xd8] sm:$0xff]
        %v5252 = vld [vmem:[#allocation2 + $0xe0] sm:$0xff]
        %v5253 = vld [vmem:[#allocation2 + $0xe8] sm:$0xff]
        %v5254 = vld [vmem:[#allocation2 + $0xf0] sm:$0xff]
        %v5255 = vld [vmem:[#allocation2 + $0xf8] sm:$0xff]
        %v5256 = vadd.f32 %v5224, %v5098
        %v5257 = vadd.f32 %v5225, %v5101
        %v5258 = vadd.f32 %v5226, %v5106
        %v5259 = vadd.f32 %v5227, %v5109
        %v5260 = vadd.f32 %v5228, %v5114
        %v5261 = vadd.f32 %v5229, %v5117
        %v5262 = vadd.f32 %v5230, %v5122
        %v5263 = vadd.f32 %v5231, %v5125
        %v5264 = vadd.f32 %v5232, %v5130
        %v5265 = vadd.f32 %v5233, %v5133
        %v5266 = vadd.f32 %v5234, %v5138
        %v5267 = vadd.f32 %v5235, %v5141
        %v5268 = vadd.f32 %v5236, %v5146
        %v5269 = vadd.f32 %v5237, %v5149
        %v5270 = vadd.f32 %v5238, %v5154
        %v5271 = vadd.f32 %v5239, %v5157
        %v5272 = vadd.f32 %v5240, %v5162
        %v5273 = vadd.f32 %v5241, %v5165
        %v5274 = vadd.f32 %v5242, %v5170
        %v5275 = vadd.f32 %v5243, %v5173
        %v5276 = vadd.f32 %v5244, %v5178
        %v5277 = vadd.f32 %v5245, %v5181
        %v5278 = vadd.f32 %v5246, %v5186
        %v5279 = vadd.f32 %v5247, %v5189
        %v5280 = vadd.f32 %v5248, %v5194
        %v5281 = vadd.f32 %v5249, %v5197
        %v5282 = vadd.f32 %v5250, %v5202
        %v5283 = vadd.f32 %v5251, %v5205
        %v5284 = vadd.f32 %v5252, %v5210
        %v5285 = vadd.f32 %v5253, %v5213
        %v5286 = vadd.f32 %v5254, %v5218
        %v5287 = vadd.f32 %v5255, %v5221
        %5288 = vst [vmem:[#allocation2] sm:$0xff] %v5256
        %5289 = vst [vmem:[#allocation2 + $0x8] sm:$0xff] %v5257
        %5290 = vst [vmem:[#allocation2 + $0x10] sm:$0xff] %v5258
        %5291 = vst [vmem:[#allocation2 + $0x18] sm:$0xff] %v5259
        %5292 = vst [vmem:[#allocation2 + $0x20] sm:$0xff] %v5260
        %5293 = vst [vmem:[#allocation2 + $0x28] sm:$0xff] %v5261
        %5294 = vst [vmem:[#allocation2 + $0x30] sm:$0xff] %v5262
        %5295 = vst [vmem:[#allocation2 + $0x38] sm:$0xff] %v5263
        %5296 = vst [vmem:[#allocation2 + $0x40] sm:$0xff] %v5264
        %5297 = vst [vmem:[#allocation2 + $0x48] sm:$0xff] %v5265
        %5298 = vst [vmem:[#allocation2 + $0x50] sm:$0xff] %v5266
        %5299 = vst [vmem:[#allocation2 + $0x58] sm:$0xff] %v5267
        %5300 = vst [vmem:[#allocation2 + $0x60] sm:$0xff] %v5268
        %5301 = vst [vmem:[#allocation2 + $0x68] sm:$0xff] %v5269
        %5302 = vst [vmem:[#allocation2 + $0x70] sm:$0xff] %v5270
        %5303 = vst [vmem:[#allocation2 + $0x78] sm:$0xff] %v5271
        %5304 = vst [vmem:[#allocation2 + $0x80] sm:$0xff] %v5272
        %5305 = vst [vmem:[#allocation2 + $0x88] sm:$0xff] %v5273
        %5306 = vst [vmem:[#allocation2 + $0x90] sm:$0xff] %v5274
        %5307 = vst [vmem:[#allocation2 + $0x98] sm:$0xff] %v5275
        %5308 = vst [vmem:[#allocation2 + $0xa0] sm:$0xff] %v5276
        %5309 = vst [vmem:[#allocation2 + $0xa8] sm:$0xff] %v5277
        %5310 = vst [vmem:[#allocation2 + $0xb0] sm:$0xff] %v5278
        %5311 = vst [vmem:[#allocation2 + $0xb8] sm:$0xff] %v5279
        %5312 = vst [vmem:[#allocation2 + $0xc0] sm:$0xff] %v5280
        %5313 = vst [vmem:[#allocation2 + $0xc8] sm:$0xff] %v5281
        %5314 = vst [vmem:[#allocation2 + $0xd0] sm:$0xff] %v5282
        %5315 = vst [vmem:[#allocation2 + $0xd8] sm:$0xff] %v5283
        %5316 = vst [vmem:[#allocation2 + $0xe0] sm:$0xff] %v5284
        %5317 = vst [vmem:[#allocation2 + $0xe8] sm:$0xff] %v5285
        %5318 = vst [vmem:[#allocation2 + $0xf0] sm:$0xff] %v5286
        %5319 = vst [vmem:[#allocation2 + $0xf8] sm:$0xff] %v5287
        %s5320 = scalar_lea.vmem [#allocation3], 48
        %v5321 = vld [vmem:[%s5320] sm:$0xff]
        %v5322 = vld [vmem:[%s5320 + $0x8] sm:$0xff]
        %v5323 = vld [vmem:[%s5320 + $0x18] sm:$0xff]
        %v5324 = vld [vmem:[%s5320 + $0x20] sm:$0xff]
        %v5325 = vld [vmem:[%s5320 + $0x30] sm:$0xff]
        %v5326 = vld [vmem:[%s5320 + $0x38] sm:$0xff]
        %v5327 = vld [vmem:[%s5320 + $0x48] sm:$0xff]
        %v5328 = vld [vmem:[%s5320 + $0x50] sm:$0xff]
        %v5329 = vld [vmem:[%s5320 + $0x60] sm:$0xff]
        %v5330 = vld [vmem:[%s5320 + $0x68] sm:$0xff]
        %v5331 = vld [vmem:[%s5320 + $0x78] sm:$0xff]
        %v5332 = vld [vmem:[%s5320 + $0x80] sm:$0xff]
        %v5333 = vld [vmem:[%s5320 + $0x90] sm:$0xff]
        %v5334 = vld [vmem:[%s5320 + $0x98] sm:$0xff]
        %v5335 = vld [vmem:[%s5320 + $0xa8] sm:$0xff]
        %v5336 = vld [vmem:[%s5320 + $0xb0] sm:$0xff]
        %v5337 = vld [vmem:[%s5320 + $0xc0] sm:$0xff]
        %v5338 = vld [vmem:[%s5320 + $0xc8] sm:$0xff]
        %v5339 = vld [vmem:[%s5320 + $0xd8] sm:$0xff]
        %v5340 = vld [vmem:[%s5320 + $0xe0] sm:$0xff]
        %v5341 = vld [vmem:[%s5320 + $0xf0] sm:$0xff]
        %v5342 = vld [vmem:[%s5320 + $0xf8] sm:$0xff]
        %v5343 = vld [vmem:[%s5320 + $0x108] sm:$0xff]
        %v5344 = vld [vmem:[%s5320 + $0x110] sm:$0xff]
        %v5345 = vld [vmem:[%s5320 + $0x120] sm:$0xff]
        %v5346 = vld [vmem:[%s5320 + $0x128] sm:$0xff]
        %v5347 = vld [vmem:[%s5320 + $0x138] sm:$0xff]
        %v5348 = vld [vmem:[%s5320 + $0x140] sm:$0xff]
        %v5349 = vld [vmem:[%s5320 + $0x150] sm:$0xff]
        %v5350 = vld [vmem:[%s5320 + $0x158] sm:$0xff]
        %v5351 = vld [vmem:[%s5320 + $0x168] sm:$0xff]
        %v5352 = vld [vmem:[%s5320 + $0x170] sm:$0xff]
        %v5353 = vld [vmem:[%s5320 + $0x1] sm:$0xff]
        %v5354 = vld [vmem:[%s5320 + $0x9] sm:$0xff]
        %v5355 = vld [vmem:[%s5320 + $0x19] sm:$0xff]
        %v5356 = vld [vmem:[%s5320 + $0x21] sm:$0xff]
        %v5357 = vld [vmem:[%s5320 + $0x31] sm:$0xff]
        %v5358 = vld [vmem:[%s5320 + $0x39] sm:$0xff]
        %v5359 = vld [vmem:[%s5320 + $0x49] sm:$0xff]
        %v5360 = vld [vmem:[%s5320 + $0x51] sm:$0xff]
        %v5361 = vld [vmem:[%s5320 + $0x61] sm:$0xff]
        %v5362 = vld [vmem:[%s5320 + $0x69] sm:$0xff]
        %v5363 = vld [vmem:[%s5320 + $0x79] sm:$0xff]
        %v5364 = vld [vmem:[%s5320 + $0x81] sm:$0xff]
        %v5365 = vld [vmem:[%s5320 + $0x91] sm:$0xff]
        %v5366 = vld [vmem:[%s5320 + $0x99] sm:$0xff]
        %v5367 = vld [vmem:[%s5320 + $0xa9] sm:$0xff]
        %v5368 = vld [vmem:[%s5320 + $0xb1] sm:$0xff]
        %v5369 = vld [vmem:[%s5320 + $0xc1] sm:$0xff]
        %v5370 = vld [vmem:[%s5320 + $0xc9] sm:$0xff]
        %v5371 = vld [vmem:[%s5320 + $0xd9] sm:$0xff]
        %v5372 = vld [vmem:[%s5320 + $0xe1] sm:$0xff]
        %v5373 = vld [vmem:[%s5320 + $0xf1] sm:$0xff]
        %v5374 = vld [vmem:[%s5320 + $0xf9] sm:$0xff]
        %v5375 = vld [vmem:[%s5320 + $0x109] sm:$0xff]
        %v5376 = vld [vmem:[%s5320 + $0x111] sm:$0xff]
        %v5377 = vld [vmem:[%s5320 + $0x121] sm:$0xff]
        %v5378 = vld [vmem:[%s5320 + $0x129] sm:$0xff]
        %v5379 = vld [vmem:[%s5320 + $0x139] sm:$0xff]
        %v5380 = vld [vmem:[%s5320 + $0x141] sm:$0xff]
        %v5381 = vld [vmem:[%s5320 + $0x151] sm:$0xff]
        %v5382 = vld [vmem:[%s5320 + $0x159] sm:$0xff]
        %v5383 = vld [vmem:[%s5320 + $0x169] sm:$0xff]
        %v5384 = vld [vmem:[%s5320 + $0x171] sm:$0xff]
        %v5385 = vld [vmem:[%s5320 + $0x2] sm:$0xff]
        %v5386 = vld [vmem:[%s5320 + $0xa] sm:$0xff]
        %v5387 = vld [vmem:[%s5320 + $0x1a] sm:$0xff]
        %v5388 = vld [vmem:[%s5320 + $0x22] sm:$0xff]
        %v5389 = vld [vmem:[%s5320 + $0x32] sm:$0xff]
        %v5390 = vld [vmem:[%s5320 + $0x3a] sm:$0xff]
        %v5391 = vld [vmem:[%s5320 + $0x4a] sm:$0xff]
        %v5392 = vld [vmem:[%s5320 + $0x52] sm:$0xff]
        %v5393 = vld [vmem:[%s5320 + $0x62] sm:$0xff]
        %v5394 = vld [vmem:[%s5320 + $0x6a] sm:$0xff]
        %v5395 = vld [vmem:[%s5320 + $0x7a] sm:$0xff]
        %v5396 = vld [vmem:[%s5320 + $0x82] sm:$0xff]
        %v5397 = vld [vmem:[%s5320 + $0x92] sm:$0xff]
        %v5398 = vld [vmem:[%s5320 + $0x9a] sm:$0xff]
        %v5399 = vld [vmem:[%s5320 + $0xaa] sm:$0xff]
        %v5400 = vld [vmem:[%s5320 + $0xb2] sm:$0xff]
        %v5401 = vld [vmem:[%s5320 + $0xc2] sm:$0xff]
        %v5402 = vld [vmem:[%s5320 + $0xca] sm:$0xff]
        %v5403 = vld [vmem:[%s5320 + $0xda] sm:$0xff]
        %v5404 = vld [vmem:[%s5320 + $0xe2] sm:$0xff]
        %v5405 = vld [vmem:[%s5320 + $0xf2] sm:$0xff]
        %v5406 = vld [vmem:[%s5320 + $0xfa] sm:$0xff]
        %v5407 = vld [vmem:[%s5320 + $0x10a] sm:$0xff]
        %v5408 = vld [vmem:[%s5320 + $0x112] sm:$0xff]
        %v5409 = vld [vmem:[%s5320 + $0x122] sm:$0xff]
        %v5410 = vld [vmem:[%s5320 + $0x12a] sm:$0xff]
        %v5411 = vld [vmem:[%s5320 + $0x13a] sm:$0xff]
        %v5412 = vld [vmem:[%s5320 + $0x142] sm:$0xff]
        %v5413 = vld [vmem:[%s5320 + $0x152] sm:$0xff]
        %v5414 = vld [vmem:[%s5320 + $0x15a] sm:$0xff]
        %v5415 = vld [vmem:[%s5320 + $0x16a] sm:$0xff]
        %v5416 = vld [vmem:[%s5320 + $0x172] sm:$0xff]
        %v5417 = vpack.c.bf16 %v5322, %v5321
        %v5418 = vpack.c.bf16 %v5354, %v5353
        %v5419 = vpack.c.bf16 %v5386, %v5385
        %v5420 = vpack.c.bf16 %v5324, %v5323
        %v5421 = vpack.c.bf16 %v5356, %v5355
        %v5422 = vpack.c.bf16 %v5388, %v5387
        %v5423 = vpack.c.bf16 %v5326, %v5325
        %v5424 = vpack.c.bf16 %v5358, %v5357
        %v5425 = vpack.c.bf16 %v5390, %v5389
        %v5426 = vpack.c.bf16 %v5328, %v5327
        %v5427 = vpack.c.bf16 %v5360, %v5359
        %v5428 = vpack.c.bf16 %v5392, %v5391
        %v5429 = vpack.c.bf16 %v5330, %v5329
        %v5430 = vpack.c.bf16 %v5362, %v5361
        %v5431 = vpack.c.bf16 %v5394, %v5393
        %v5432 = vpack.c.bf16 %v5332, %v5331
        %v5433 = vpack.c.bf16 %v5364, %v5363
        %v5434 = vpack.c.bf16 %v5396, %v5395
        %v5435 = vpack.c.bf16 %v5334, %v5333
        %v5436 = vpack.c.bf16 %v5366, %v5365
        %v5437 = vpack.c.bf16 %v5398, %v5397
        %v5438 = vpack.c.bf16 %v5336, %v5335
        %v5439 = vpack.c.bf16 %v5368, %v5367
        %v5440 = vpack.c.bf16 %v5400, %v5399
        %v5441 = vpack.c.bf16 %v5338, %v5337
        %v5442 = vpack.c.bf16 %v5370, %v5369
        %v5443 = vpack.c.bf16 %v5402, %v5401
        %v5444 = vpack.c.bf16 %v5340, %v5339
        %v5445 = vpack.c.bf16 %v5372, %v5371
        %v5446 = vpack.c.bf16 %v5404, %v5403
        %v5447 = vpack.c.bf16 %v5342, %v5341
        %v5448 = vpack.c.bf16 %v5374, %v5373
        %v5449 = vpack.c.bf16 %v5406, %v5405
        %v5450 = vpack.c.bf16 %v5344, %v5343
        %v5451 = vpack.c.bf16 %v5376, %v5375
        %v5452 = vpack.c.bf16 %v5408, %v5407
        %v5453 = vpack.c.bf16 %v5346, %v5345
        %v5454 = vpack.c.bf16 %v5378, %v5377
        %v5455 = vpack.c.bf16 %v5410, %v5409
        %v5456 = vpack.c.bf16 %v5348, %v5347
        %v5457 = vpack.c.bf16 %v5380, %v5379
        %v5458 = vpack.c.bf16 %v5412, %v5411
        %v5459 = vpack.c.bf16 %v5350, %v5349
        %v5460 = vpack.c.bf16 %v5382, %v5381
        %v5461 = vpack.c.bf16 %v5414, %v5413
        %v5462 = vpack.c.bf16 %v5352, %v5351
        %v5463 = vpack.c.bf16 %v5384, %v5383
        %v5464 = vpack.c.bf16 %v5416, %v5415
        %s5465 = scalar_lea.vmem %s2, 384
        %v5466 = vld [vmem:[%s5465] sm:$0xf]
        %v5467 = vld [vmem:[%s5465 + $0x4] sm:$0xf]
        %v5468 = vld [vmem:[%s5465 + $0x8] sm:$0xf]
        %v5469 = vld [vmem:[%s5465 + $0xc] sm:$0xf]
        %v5470 = vld [vmem:[%s5465 + $0x10] sm:$0xf]
        %v5471 = vld [vmem:[%s5465 + $0x14] sm:$0xf]
        %v5472 = vld [vmem:[%s5465 + $0x18] sm:$0xf]
        %v5473 = vld [vmem:[%s5465 + $0x1c] sm:$0xf]
        %v5474 = vld [vmem:[%s5465 + $0x20] sm:$0xf]
        %v5475 = vld [vmem:[%s5465 + $0x24] sm:$0xf]
        %v5476 = vld [vmem:[%s5465 + $0x28] sm:$0xf]
        %v5477 = vld [vmem:[%s5465 + $0x2c] sm:$0xf]
        %v5478 = vld [vmem:[%s5465 + $0x30] sm:$0xf]
        %v5479 = vld [vmem:[%s5465 + $0x34] sm:$0xf]
        %v5480 = vld [vmem:[%s5465 + $0x38] sm:$0xf]
        %v5481 = vld [vmem:[%s5465 + $0x3c] sm:$0xf]
        %v5482 = vld [vmem:[%s5465 + $0x40] sm:$0xf]
        %v5483 = vld [vmem:[%s5465 + $0x44] sm:$0xf]
        %v5484 = vld [vmem:[%s5465 + $0x48] sm:$0xf]
        %v5485 = vld [vmem:[%s5465 + $0x4c] sm:$0xf]
        %v5486 = vld [vmem:[%s5465 + $0x50] sm:$0xf]
        %v5487 = vld [vmem:[%s5465 + $0x54] sm:$0xf]
        %v5488 = vld [vmem:[%s5465 + $0x58] sm:$0xf]
        %v5489 = vld [vmem:[%s5465 + $0x5c] sm:$0xf]
        %v5490 = vld [vmem:[%s5465 + $0x60] sm:$0xf]
        %v5491 = vld [vmem:[%s5465 + $0x64] sm:$0xf]
        %v5492 = vld [vmem:[%s5465 + $0x68] sm:$0xf]
        %v5493 = vld [vmem:[%s5465 + $0x6c] sm:$0xf]
        %v5494 = vld [vmem:[%s5465 + $0x70] sm:$0xf]
        %v5495 = vld [vmem:[%s5465 + $0x74] sm:$0xf]
        %v5496 = vld [vmem:[%s5465 + $0x78] sm:$0xf]
        %v5497 = vld [vmem:[%s5465 + $0x7c] sm:$0xf]
        %v5498 = vld [vmem:[%s5465 + $0x80] sm:$0xf]
        %v5499 = vld [vmem:[%s5465 + $0x84] sm:$0xf]
        %v5500 = vld [vmem:[%s5465 + $0x88] sm:$0xf]
        %v5501 = vld [vmem:[%s5465 + $0x8c] sm:$0xf]
        %v5502 = vld [vmem:[%s5465 + $0x90] sm:$0xf]
        %v5503 = vld [vmem:[%s5465 + $0x94] sm:$0xf]
        %v5504 = vld [vmem:[%s5465 + $0x98] sm:$0xf]
        %v5505 = vld [vmem:[%s5465 + $0x9c] sm:$0xf]
        %v5506 = vld [vmem:[%s5465 + $0xa0] sm:$0xf]
        %v5507 = vld [vmem:[%s5465 + $0xa4] sm:$0xf]
        %v5508 = vld [vmem:[%s5465 + $0xa8] sm:$0xf]
        %v5509 = vld [vmem:[%s5465 + $0xac] sm:$0xf]
        %v5510 = vld [vmem:[%s5465 + $0xb0] sm:$0xf]
        %v5511 = vld [vmem:[%s5465 + $0xb4] sm:$0xf]
        %v5512 = vld [vmem:[%s5465 + $0xb8] sm:$0xf]
        %v5513 = vld [vmem:[%s5465 + $0xbc] sm:$0xf]
        %v5562 = vunpack.c.l.b16 %v5466
        %v5563 = vunpack.c.l.b16 %v5467
        %v5564 = vunpack.c.l.b16 %v5468
        %v5565 = vunpack.c.l.b16 %v5469
        %v5566 = vunpack.c.l.b16 %v5470
        %v5567 = vunpack.c.l.b16 %v5471
        %v5568 = vunpack.c.l.b16 %v5472
        %v5569 = vunpack.c.l.b16 %v5473
        %v5570 = vunpack.c.l.b16 %v5474
        %v5571 = vunpack.c.l.b16 %v5475
        %v5572 = vunpack.c.l.b16 %v5476
        %v5573 = vunpack.c.l.b16 %v5477
        %v5574 = vunpack.c.l.b16 %v5478
        %v5575 = vunpack.c.l.b16 %v5479
        %v5576 = vunpack.c.l.b16 %v5480
        %v5577 = vunpack.c.l.b16 %v5481
        %v5578 = vunpack.c.l.b16 %v5482
        %v5579 = vunpack.c.l.b16 %v5483
        %v5580 = vunpack.c.l.b16 %v5484
        %v5581 = vunpack.c.l.b16 %v5485
        %v5582 = vunpack.c.l.b16 %v5486
        %v5583 = vunpack.c.l.b16 %v5487
        %v5584 = vunpack.c.l.b16 %v5488
        %v5585 = vunpack.c.l.b16 %v5489
        %v5586 = vunpack.c.l.b16 %v5490
        %v5587 = vunpack.c.l.b16 %v5491
        %v5588 = vunpack.c.l.b16 %v5492
        %v5589 = vunpack.c.l.b16 %v5493
        %v5590 = vunpack.c.l.b16 %v5494
        %v5591 = vunpack.c.l.b16 %v5495
        %v5592 = vunpack.c.l.b16 %v5496
        %v5593 = vunpack.c.l.b16 %v5497
        %v5594 = vunpack.c.l.b16 %v5498
        %v5595 = vunpack.c.l.b16 %v5499
        %v5596 = vunpack.c.l.b16 %v5500
        %v5597 = vunpack.c.l.b16 %v5501
        %v5598 = vunpack.c.l.b16 %v5502
        %v5599 = vunpack.c.l.b16 %v5503
        %v5600 = vunpack.c.l.b16 %v5504
        %v5601 = vunpack.c.l.b16 %v5505
        %v5602 = vunpack.c.l.b16 %v5506
        %v5603 = vunpack.c.l.b16 %v5507
        %v5604 = vunpack.c.l.b16 %v5508
        %v5605 = vunpack.c.l.b16 %v5509
        %v5606 = vunpack.c.l.b16 %v5510
        %v5607 = vunpack.c.l.b16 %v5511
        %v5608 = vunpack.c.l.b16 %v5512
        %v5609 = vunpack.c.l.b16 %v5513
        %v5610 = vpack.c.b16 %v5563, %v5562
        %v5611 = vpack.c.b16 %v5565, %v5564
        %v5612 = vpack.c.b16 %v5567, %v5566
        %v5613 = vpack.c.b16 %v5569, %v5568
        %v5614 = vpack.c.b16 %v5571, %v5570
        %v5615 = vpack.c.b16 %v5573, %v5572
        %v5616 = vpack.c.b16 %v5575, %v5574
        %v5617 = vpack.c.b16 %v5577, %v5576
        %v5618 = vpack.c.b16 %v5579, %v5578
        %v5619 = vpack.c.b16 %v5581, %v5580
        %v5620 = vpack.c.b16 %v5583, %v5582
        %v5621 = vpack.c.b16 %v5585, %v5584
        %v5622 = vpack.c.b16 %v5587, %v5586
        %v5623 = vpack.c.b16 %v5589, %v5588
        %v5624 = vpack.c.b16 %v5591, %v5590
        %v5625 = vpack.c.b16 %v5593, %v5592
        %v5626 = vpack.c.b16 %v5595, %v5594
        %v5627 = vpack.c.b16 %v5597, %v5596
        %v5628 = vpack.c.b16 %v5599, %v5598
        %v5629 = vpack.c.b16 %v5601, %v5600
        %v5630 = vpack.c.b16 %v5603, %v5602
        %v5631 = vpack.c.b16 %v5605, %v5604
        %v5632 = vpack.c.b16 %v5607, %v5606
        %v5633 = vpack.c.b16 %v5609, %v5608
        %5658 = vmatprep.subr.bf16.mxu0 0
        %5659 = vmatpush1.bf16.msra.mxu0 %v5610
        %5660 = vmatprep.subr.bf16.mxu0 0
        %5661 = vmatpush1.bf16.msra.mxu0 %v5611
        %5662 = vmatprep.subr.bf16.mxu0 0
        %5663 = vmatpush1.bf16.msra.mxu0 %v5612
        %5664 = vmatprep.subr.bf16.mxu0 0
        %5665 = vmatpush1.bf16.msra.mxu0 %v5613
        %5666 = vmatprep.subr.bf16.mxu0 0
        %5667 = vmatpush1.bf16.msra.mxu0 %v5614
        %5668 = vmatprep.subr.bf16.mxu0 0
        %5669 = vmatpush1.bf16.msra.mxu0 %v5615
        %5670 = vmatprep.subr.bf16.mxu0 0
        %5671 = vmatpush1.bf16.msra.mxu0 %v5616
        %5672 = vmatprep.subr.bf16.mxu0 0
        %5673 = vmatpush1.bf16.msra.mxu0 %v5617
        %5674 = vmatprep.subr.bf16.mxu0 0
        %5675 = vmatpush1.bf16.msra.mxu0 %v5618
        %5676 = vmatprep.subr.bf16.mxu0 0
        %5677 = vmatpush1.bf16.msra.mxu0 %v5619
        %5678 = vmatprep.subr.bf16.mxu0 0
        %5679 = vmatpush1.bf16.msra.mxu0 %v5620
        %5680 = vmatprep.subr.bf16.mxu0 0
        %5681 = vmatpush1.bf16.msra.mxu0 %v5621
        %5682 = vmatprep.subr.bf16.mxu0 0
        %5683 = vmatpush1.bf16.msra.mxu0 %v5622
        %5684 = vmatprep.subr.bf16.mxu0 0
        %5685 = vmatpush1.bf16.msra.mxu0 %v5623
        %5686 = vmatprep.subr.bf16.mxu0 0
        %5687 = vmatpush1.bf16.msra.mxu0 %v5624
        %5688 = vmatprep.subr.bf16.mxu0 0
        %5689 = vmatpush1.bf16.msra.mxu0 %v5625
        %5690 = vmatprep.mubr.bf16.mxu0 %v5418
        %5691 = vmatmul.mubr.bf16.gmra.mrb[0].mxu0 %v5417
        %v5692 = vpop.f32.mrb[0].mxu0
        %v5693 = vadd.f32 0.0, %v5692
        %v5694 = vpop.f32.mrb[0].mxu0
        %v5695 = vpop.f32.mrb[0].mxu0
        %v5696 = vadd.f32 0.0, %v5695
        %v5697 = vpop.f32.mrb[0].mxu0
        %5698 = vmatprep.mubr.bf16.mxu0 %v5421
        %5699 = vmatmul.mubr.bf16.gmra.mrb[0].mxu0 %v5420
        %v5700 = vpop.f32.mrb[0].mxu0
        %v5701 = vadd.f32 0.0, %v5700
        %v5702 = vpop.f32.mrb[0].mxu0
        %v5703 = vpop.f32.mrb[0].mxu0
        %v5704 = vadd.f32 0.0, %v5703
        %v5705 = vpop.f32.mrb[0].mxu0
        %5706 = vmatprep.mubr.bf16.mxu0 %v5424
        %5707 = vmatmul.mubr.bf16.gmra.mrb[0].mxu0 %v5423
        %v5708 = vpop.f32.mrb[0].mxu0
        %v5709 = vadd.f32 0.0, %v5708
        %v5710 = vpop.f32.mrb[0].mxu0
        %v5711 = vpop.f32.mrb[0].mxu0
        %v5712 = vadd.f32 0.0, %v5711
        %v5713 = vpop.f32.mrb[0].mxu0
        %5714 = vmatprep.mubr.bf16.mxu0 %v5427
        %5715 = vmatmul.mubr.bf16.gmra.mrb[0].mxu0 %v5426
        %v5716 = vpop.f32.mrb[0].mxu0
        %v5717 = vadd.f32 0.0, %v5716
        %v5718 = vpop.f32.mrb[0].mxu0
        %v5719 = vpop.f32.mrb[0].mxu0
        %v5720 = vadd.f32 0.0, %v5719
        %v5721 = vpop.f32.mrb[0].mxu0
        %5722 = vmatprep.mubr.bf16.mxu0 %v5430
        %5723 = vmatmul.mubr.bf16.gmra.mrb[0].mxu0 %v5429
        %v5724 = vpop.f32.mrb[0].mxu0
        %v5725 = vadd.f32 0.0, %v5724
        %v5726 = vpop.f32.mrb[0].mxu0
        %v5727 = vpop.f32.mrb[0].mxu0
        %v5728 = vadd.f32 0.0, %v5727
        %v5729 = vpop.f32.mrb[0].mxu0
        %5730 = vmatprep.mubr.bf16.mxu0 %v5433
        %5731 = vmatmul.mubr.bf16.gmra.mrb[0].mxu0 %v5432
        %v5732 = vpop.f32.mrb[0].mxu0
        %v5733 = vadd.f32 0.0, %v5732
        %v5734 = vpop.f32.mrb[0].mxu0
        %v5735 = vpop.f32.mrb[0].mxu0
        %v5736 = vadd.f32 0.0, %v5735
        %v5737 = vpop.f32.mrb[0].mxu0
        %5738 = vmatprep.mubr.bf16.mxu0 %v5436
        %5739 = vmatmul.mubr.bf16.gmra.mrb[0].mxu0 %v5435
        %v5740 = vpop.f32.mrb[0].mxu0
        %v5741 = vadd.f32 0.0, %v5740
        %v5742 = vpop.f32.mrb[0].mxu0
        %v5743 = vpop.f32.mrb[0].mxu0
        %v5744 = vadd.f32 0.0, %v5743
        %v5745 = vpop.f32.mrb[0].mxu0
        %5746 = vmatprep.mubr.bf16.mxu0 %v5439
        %5747 = vmatmul.mubr.bf16.gmra.mrb[0].mxu0 %v5438
        %v5748 = vpop.f32.mrb[0].mxu0
        %v5749 = vadd.f32 0.0, %v5748
        %v5750 = vpop.f32.mrb[0].mxu0
        %v5751 = vpop.f32.mrb[0].mxu0
        %v5752 = vadd.f32 0.0, %v5751
        %v5753 = vpop.f32.mrb[0].mxu0
        %5754 = vmatprep.mubr.bf16.mxu0 %v5442
        %5755 = vmatmul.mubr.bf16.gmra.mrb[0].mxu0 %v5441
        %v5756 = vpop.f32.mrb[0].mxu0
        %v5757 = vadd.f32 0.0, %v5756
        %v5758 = vpop.f32.mrb[0].mxu0
        %v5759 = vpop.f32.mrb[0].mxu0
        %v5760 = vadd.f32 0.0, %v5759
        %v5761 = vpop.f32.mrb[0].mxu0
        %5762 = vmatprep.mubr.bf16.mxu0 %v5445
        %5763 = vmatmul.mubr.bf16.gmra.mrb[0].mxu0 %v5444
        %v5764 = vpop.f32.mrb[0].mxu0
        %v5765 = vadd.f32 0.0, %v5764
        %v5766 = vpop.f32.mrb[0].mxu0
        %v5767 = vpop.f32.mrb[0].mxu0
        %v5768 = vadd.f32 0.0, %v5767
        %v5769 = vpop.f32.mrb[0].mxu0
        %5770 = vmatprep.mubr.bf16.mxu0 %v5448
        %5771 = vmatmul.mubr.bf16.gmra.mrb[0].mxu0 %v5447
        %v5772 = vpop.f32.mrb[0].mxu0
        %v5773 = vadd.f32 0.0, %v5772
        %v5774 = vpop.f32.mrb[0].mxu0
        %v5775 = vpop.f32.mrb[0].mxu0
        %v5776 = vadd.f32 0.0, %v5775
        %v5777 = vpop.f32.mrb[0].mxu0
        %5778 = vmatprep.mubr.bf16.mxu0 %v5451
        %5779 = vmatmul.mubr.bf16.gmra.mrb[0].mxu0 %v5450
        %v5780 = vpop.f32.mrb[0].mxu0
        %v5781 = vadd.f32 0.0, %v5780
        %v5782 = vpop.f32.mrb[0].mxu0
        %v5783 = vpop.f32.mrb[0].mxu0
        %v5784 = vadd.f32 0.0, %v5783
        %v5785 = vpop.f32.mrb[0].mxu0
        %5786 = vmatprep.mubr.bf16.mxu0 %v5454
        %5787 = vmatmul.mubr.bf16.gmra.mrb[0].mxu0 %v5453
        %v5788 = vpop.f32.mrb[0].mxu0
        %v5789 = vadd.f32 0.0, %v5788
        %v5790 = vpop.f32.mrb[0].mxu0
        %v5791 = vpop.f32.mrb[0].mxu0
        %v5792 = vadd.f32 0.0, %v5791
        %v5793 = vpop.f32.mrb[0].mxu0
        %5794 = vmatprep.mubr.bf16.mxu0 %v5457
        %5795 = vmatmul.mubr.bf16.gmra.mrb[0].mxu0 %v5456
        %v5796 = vpop.f32.mrb[0].mxu0
        %v5797 = vadd.f32 0.0, %v5796
        %v5798 = vpop.f32.mrb[0].mxu0
        %v5799 = vpop.f32.mrb[0].mxu0
        %v5800 = vadd.f32 0.0, %v5799
        %v5801 = vpop.f32.mrb[0].mxu0
        %5802 = vmatprep.mubr.bf16.mxu0 %v5460
        %5803 = vmatmul.mubr.bf16.gmra.mrb[0].mxu0 %v5459
        %v5804 = vpop.f32.mrb[0].mxu0
        %v5805 = vadd.f32 0.0, %v5804
        %v5806 = vpop.f32.mrb[0].mxu0
        %v5807 = vpop.f32.mrb[0].mxu0
        %v5808 = vadd.f32 0.0, %v5807
        %v5809 = vpop.f32.mrb[0].mxu0
        %5810 = vmatprep.mubr.bf16.mxu0 %v5463
        %5811 = vmatmul.mubr.bf16.gmra.mrb[0].mxu0 %v5462
        %v5812 = vpop.f32.mrb[0].mxu0
        %v5813 = vadd.f32 0.0, %v5812
        %v5814 = vpop.f32.mrb[0].mxu0
        %v5815 = vpop.f32.mrb[0].mxu0
        %v5816 = vadd.f32 0.0, %v5815
        %v5817 = vpop.f32.mrb[0].mxu0
        %5818 = vdwg.mxu0
        %5819 = vmatprep.subr.bf16.mxu0 0
        %5820 = vmatpush1.bf16.msra.mxu0 %v5626
        %5821 = vmatprep.subr.bf16.mxu0 0
        %5822 = vmatpush1.bf16.msra.mxu0 %v5627
        %5823 = vmatprep.subr.bf16.mxu0 0
        %5824 = vmatpush1.bf16.msra.mxu0 %v5628
        %5825 = vmatprep.subr.bf16.mxu0 0
        %5826 = vmatpush1.bf16.msra.mxu0 %v5629
        %5827 = vmatprep.subr.bf16.mxu0 0
        %5828 = vmatpush1.bf16.msra.mxu0 %v5630
        %5829 = vmatprep.subr.bf16.mxu0 0
        %5830 = vmatpush1.bf16.msra.mxu0 %v5631
        %5831 = vmatprep.subr.bf16.mxu0 0
        %5832 = vmatpush1.bf16.msra.mxu0 %v5632
        %5833 = vmatprep.subr.bf16.mxu0 0
        %5834 = vmatpush1.bf16.msra.mxu0 %v5633
        %5835 = vmatprep.subr.bf16.mxu0 0
        %5836 = vmatpush1.bf16.msra.mxu0 0
        %5837 = vmatprep.subr.bf16.mxu0 0
        %5838 = vmatpush1.bf16.msra.mxu0 0
        %5839 = vmatprep.subr.bf16.mxu0 0
        %5840 = vmatpush1.bf16.msra.mxu0 0
        %5841 = vmatprep.subr.bf16.mxu0 0
        %5842 = vmatpush1.bf16.msra.mxu0 0
        %5843 = vmatprep.subr.bf16.mxu0 0
        %5844 = vmatpush1.bf16.msra.mxu0 0
        %5845 = vmatprep.subr.bf16.mxu0 0
        %5846 = vmatpush1.bf16.msra.mxu0 0
        %5847 = vmatprep.subr.bf16.mxu0 0
        %5848 = vmatpush1.bf16.msra.mxu0 0
        %5849 = vmatprep.subr.bf16.mxu0 0
        %5850 = vmatpush1.bf16.msra.mxu0 0
        %5851 = vmatprep.mubr.bf16.mxu0 0
        %5852 = vmatmul.mubr.bf16.gmra.mrb[0].mxu0 %v5419
        %v5853 = vpop.f32.mrb[0].mxu0
        %v5854 = vadd.f32 %v5693, %v5853
        %v5855 = vpop.f32.mrb[0].mxu0
        %v5856 = vpop.f32.mrb[0].mxu0
        %v5857 = vadd.f32 %v5696, %v5856
        %v5858 = vpop.f32.mrb[0].mxu0
        %5859 = vmatprep.mubr.bf16.mxu0 0
        %5860 = vmatmul.mubr.bf16.gmra.mrb[0].mxu0 %v5422
        %v5861 = vpop.f32.mrb[0].mxu0
        %v5862 = vadd.f32 %v5701, %v5861
        %v5863 = vpop.f32.mrb[0].mxu0
        %v5864 = vpop.f32.mrb[0].mxu0
        %v5865 = vadd.f32 %v5704, %v5864
        %v5866 = vpop.f32.mrb[0].mxu0
        %5867 = vmatprep.mubr.bf16.mxu0 0
        %5868 = vmatmul.mubr.bf16.gmra.mrb[0].mxu0 %v5425
        %v5869 = vpop.f32.mrb[0].mxu0
        %v5870 = vadd.f32 %v5709, %v5869
        %v5871 = vpop.f32.mrb[0].mxu0
        %v5872 = vpop.f32.mrb[0].mxu0
        %v5873 = vadd.f32 %v5712, %v5872
        %v5874 = vpop.f32.mrb[0].mxu0
        %5875 = vmatprep.mubr.bf16.mxu0 0
        %5876 = vmatmul.mubr.bf16.gmra.mrb[0].mxu0 %v5428
        %v5877 = vpop.f32.mrb[0].mxu0
        %v5878 = vadd.f32 %v5717, %v5877
        %v5879 = vpop.f32.mrb[0].mxu0
        %v5880 = vpop.f32.mrb[0].mxu0
        %v5881 = vadd.f32 %v5720, %v5880
        %v5882 = vpop.f32.mrb[0].mxu0
        %5883 = vmatprep.mubr.bf16.mxu0 0
        %5884 = vmatmul.mubr.bf16.gmra.mrb[0].mxu0 %v5431
        %v5885 = vpop.f32.mrb[0].mxu0
        %v5886 = vadd.f32 %v5725, %v5885
        %v5887 = vpop.f32.mrb[0].mxu0
        %v5888 = vpop.f32.mrb[0].mxu0
        %v5889 = vadd.f32 %v5728, %v5888
        %v5890 = vpop.f32.mrb[0].mxu0
        %5891 = vmatprep.mubr.bf16.mxu0 0
        %5892 = vmatmul.mubr.bf16.gmra.mrb[0].mxu0 %v5434
        %v5893 = vpop.f32.mrb[0].mxu0
        %v5894 = vadd.f32 %v5733, %v5893
        %v5895 = vpop.f32.mrb[0].mxu0
        %v5896 = vpop.f32.mrb[0].mxu0
        %v5897 = vadd.f32 %v5736, %v5896
        %v5898 = vpop.f32.mrb[0].mxu0
        %5899 = vmatprep.mubr.bf16.mxu0 0
        %5900 = vmatmul.mubr.bf16.gmra.mrb[0].mxu0 %v5437
        %v5901 = vpop.f32.mrb[0].mxu0
        %v5902 = vadd.f32 %v5741, %v5901
        %v5903 = vpop.f32.mrb[0].mxu0
        %v5904 = vpop.f32.mrb[0].mxu0
        %v5905 = vadd.f32 %v5744, %v5904
        %v5906 = vpop.f32.mrb[0].mxu0
        %5907 = vmatprep.mubr.bf16.mxu0 0
        %5908 = vmatmul.mubr.bf16.gmra.mrb[0].mxu0 %v5440
        %v5909 = vpop.f32.mrb[0].mxu0
        %v5910 = vadd.f32 %v5749, %v5909
        %v5911 = vpop.f32.mrb[0].mxu0
        %v5912 = vpop.f32.mrb[0].mxu0
        %v5913 = vadd.f32 %v5752, %v5912
        %v5914 = vpop.f32.mrb[0].mxu0
        %5915 = vmatprep.mubr.bf16.mxu0 0
        %5916 = vmatmul.mubr.bf16.gmra.mrb[0].mxu0 %v5443
        %v5917 = vpop.f32.mrb[0].mxu0
        %v5918 = vadd.f32 %v5757, %v5917
        %v5919 = vpop.f32.mrb[0].mxu0
        %v5920 = vpop.f32.mrb[0].mxu0
        %v5921 = vadd.f32 %v5760, %v5920
        %v5922 = vpop.f32.mrb[0].mxu0
        %5923 = vmatprep.mubr.bf16.mxu0 0
        %5924 = vmatmul.mubr.bf16.gmra.mrb[0].mxu0 %v5446
        %v5925 = vpop.f32.mrb[0].mxu0
        %v5926 = vadd.f32 %v5765, %v5925
        %v5927 = vpop.f32.mrb[0].mxu0
        %v5928 = vpop.f32.mrb[0].mxu0
        %v5929 = vadd.f32 %v5768, %v5928
        %v5930 = vpop.f32.mrb[0].mxu0
        %5931 = vmatprep.mubr.bf16.mxu0 0
        %5932 = vmatmul.mubr.bf16.gmra.mrb[0].mxu0 %v5449
        %v5933 = vpop.f32.mrb[0].mxu0
        %v5934 = vadd.f32 %v5773, %v5933
        %v5935 = vpop.f32.mrb[0].mxu0
        %v5936 = vpop.f32.mrb[0].mxu0
        %v5937 = vadd.f32 %v5776, %v5936
        %v5938 = vpop.f32.mrb[0].mxu0
        %5939 = vmatprep.mubr.bf16.mxu0 0
        %5940 = vmatmul.mubr.bf16.gmra.mrb[0].mxu0 %v5452
        %v5941 = vpop.f32.mrb[0].mxu0
        %v5942 = vadd.f32 %v5781, %v5941
        %v5943 = vpop.f32.mrb[0].mxu0
        %v5944 = vpop.f32.mrb[0].mxu0
        %v5945 = vadd.f32 %v5784, %v5944
        %v5946 = vpop.f32.mrb[0].mxu0
        %5947 = vmatprep.mubr.bf16.mxu0 0
        %5948 = vmatmul.mubr.bf16.gmra.mrb[0].mxu0 %v5455
        %v5949 = vpop.f32.mrb[0].mxu0
        %v5950 = vadd.f32 %v5789, %v5949
        %v5951 = vpop.f32.mrb[0].mxu0
        %v5952 = vpop.f32.mrb[0].mxu0
        %v5953 = vadd.f32 %v5792, %v5952
        %v5954 = vpop.f32.mrb[0].mxu0
        %5955 = vmatprep.mubr.bf16.mxu0 0
        %5956 = vmatmul.mubr.bf16.gmra.mrb[0].mxu0 %v5458
        %v5957 = vpop.f32.mrb[0].mxu0
        %v5958 = vadd.f32 %v5797, %v5957
        %v5959 = vpop.f32.mrb[0].mxu0
        %v5960 = vpop.f32.mrb[0].mxu0
        %v5961 = vadd.f32 %v5800, %v5960
        %v5962 = vpop.f32.mrb[0].mxu0
        %5963 = vmatprep.mubr.bf16.mxu0 0
        %5964 = vmatmul.mubr.bf16.gmra.mrb[0].mxu0 %v5461
        %v5965 = vpop.f32.mrb[0].mxu0
        %v5966 = vadd.f32 %v5805, %v5965
        %v5967 = vpop.f32.mrb[0].mxu0
        %v5968 = vpop.f32.mrb[0].mxu0
        %v5969 = vadd.f32 %v5808, %v5968
        %v5970 = vpop.f32.mrb[0].mxu0
        %5971 = vmatprep.mubr.bf16.mxu0 0
        %5972 = vmatmul.mubr.bf16.gmra.mrb[0].mxu0 %v5464
        %v5973 = vpop.f32.mrb[0].mxu0
        %v5974 = vadd.f32 %v5813, %v5973
        %v5975 = vpop.f32.mrb[0].mxu0
        %v5976 = vpop.f32.mrb[0].mxu0
        %v5977 = vadd.f32 %v5816, %v5976
        %v5978 = vpop.f32.mrb[0].mxu0
        %5979 = vdwg.mxu0
        %v5980 = vld [vmem:[#allocation2] sm:$0xff]
        %v5981 = vld [vmem:[#allocation2 + $0x8] sm:$0xff]
        %v5982 = vld [vmem:[#allocation2 + $0x10] sm:$0xff]
        %v5983 = vld [vmem:[#allocation2 + $0x18] sm:$0xff]
        %v5984 = vld [vmem:[#allocation2 + $0x20] sm:$0xff]
        %v5985 = vld [vmem:[#allocation2 + $0x28] sm:$0xff]
        %v5986 = vld [vmem:[#allocation2 + $0x30] sm:$0xff]
        %v5987 = vld [vmem:[#allocation2 + $0x38] sm:$0xff]
        %v5988 = vld [vmem:[#allocation2 + $0x40] sm:$0xff]
        %v5989 = vld [vmem:[#allocation2 + $0x48] sm:$0xff]
        %v5990 = vld [vmem:[#allocation2 + $0x50] sm:$0xff]
        %v5991 = vld [vmem:[#allocation2 + $0x58] sm:$0xff]
        %v5992 = vld [vmem:[#allocation2 + $0x60] sm:$0xff]
        %v5993 = vld [vmem:[#allocation2 + $0x68] sm:$0xff]
        %v5994 = vld [vmem:[#allocation2 + $0x70] sm:$0xff]
        %v5995 = vld [vmem:[#allocation2 + $0x78] sm:$0xff]
        %v5996 = vld [vmem:[#allocation2 + $0x80] sm:$0xff]
        %v5997 = vld [vmem:[#allocation2 + $0x88] sm:$0xff]
        %v5998 = vld [vmem:[#allocation2 + $0x90] sm:$0xff]
        %v5999 = vld [vmem:[#allocation2 + $0x98] sm:$0xff]
        %v6000 = vld [vmem:[#allocation2 + $0xa0] sm:$0xff]
        %v6001 = vld [vmem:[#allocation2 + $0xa8] sm:$0xff]
        %v6002 = vld [vmem:[#allocation2 + $0xb0] sm:$0xff]
        %v6003 = vld [vmem:[#allocation2 + $0xb8] sm:$0xff]
        %v6004 = vld [vmem:[#allocation2 + $0xc0] sm:$0xff]
        %v6005 = vld [vmem:[#allocation2 + $0xc8] sm:$0xff]
        %v6006 = vld [vmem:[#allocation2 + $0xd0] sm:$0xff]
        %v6007 = vld [vmem:[#allocation2 + $0xd8] sm:$0xff]
        %v6008 = vld [vmem:[#allocation2 + $0xe0] sm:$0xff]
        %v6009 = vld [vmem:[#allocation2 + $0xe8] sm:$0xff]
        %v6010 = vld [vmem:[#allocation2 + $0xf0] sm:$0xff]
        %v6011 = vld [vmem:[#allocation2 + $0xf8] sm:$0xff]
        %v6012 = vadd.f32 %v5980, %v5854
        %v6013 = vadd.f32 %v5981, %v5857
        %v6014 = vadd.f32 %v5982, %v5862
        %v6015 = vadd.f32 %v5983, %v5865
        %v6016 = vadd.f32 %v5984, %v5870
        %v6017 = vadd.f32 %v5985, %v5873
        %v6018 = vadd.f32 %v5986, %v5878
        %v6019 = vadd.f32 %v5987, %v5881
        %v6020 = vadd.f32 %v5988, %v5886
        %v6021 = vadd.f32 %v5989, %v5889
        %v6022 = vadd.f32 %v5990, %v5894
        %v6023 = vadd.f32 %v5991, %v5897
        %v6024 = vadd.f32 %v5992, %v5902
        %v6025 = vadd.f32 %v5993, %v5905
        %v6026 = vadd.f32 %v5994, %v5910
        %v6027 = vadd.f32 %v5995, %v5913
        %v6028 = vadd.f32 %v5996, %v5918
        %v6029 = vadd.f32 %v5997, %v5921
        %v6030 = vadd.f32 %v5998, %v5926
        %v6031 = vadd.f32 %v5999, %v5929
        %v6032 = vadd.f32 %v6000, %v5934
        %v6033 = vadd.f32 %v6001, %v5937
        %v6034 = vadd.f32 %v6002, %v5942
        %v6035 = vadd.f32 %v6003, %v5945
        %v6036 = vadd.f32 %v6004, %v5950
        %v6037 = vadd.f32 %v6005, %v5953
        %v6038 = vadd.f32 %v6006, %v5958
        %v6039 = vadd.f32 %v6007, %v5961
        %v6040 = vadd.f32 %v6008, %v5966
        %v6041 = vadd.f32 %v6009, %v5969
        %v6042 = vadd.f32 %v6010, %v5974
        %v6043 = vadd.f32 %v6011, %v5977
        %6044 = vst [vmem:[#allocation2] sm:$0xff] %v6012
        %6045 = vst [vmem:[#allocation2 + $0x8] sm:$0xff] %v6013
        %6046 = vst [vmem:[#allocation2 + $0x10] sm:$0xff] %v6014
        %6047 = vst [vmem:[#allocation2 + $0x18] sm:$0xff] %v6015
        %6048 = vst [vmem:[#allocation2 + $0x20] sm:$0xff] %v6016
        %6049 = vst [vmem:[#allocation2 + $0x28] sm:$0xff] %v6017
        %6050 = vst [vmem:[#allocation2 + $0x30] sm:$0xff] %v6018
        %6051 = vst [vmem:[#allocation2 + $0x38] sm:$0xff] %v6019
        %6052 = vst [vmem:[#allocation2 + $0x40] sm:$0xff] %v6020
        %6053 = vst [vmem:[#allocation2 + $0x48] sm:$0xff] %v6021
        %6054 = vst [vmem:[#allocation2 + $0x50] sm:$0xff] %v6022
        %6055 = vst [vmem:[#allocation2 + $0x58] sm:$0xff] %v6023
        %6056 = vst [vmem:[#allocation2 + $0x60] sm:$0xff] %v6024
        %6057 = vst [vmem:[#allocation2 + $0x68] sm:$0xff] %v6025
        %6058 = vst [vmem:[#allocation2 + $0x70] sm:$0xff] %v6026
        %6059 = vst [vmem:[#allocation2 + $0x78] sm:$0xff] %v6027
        %6060 = vst [vmem:[#allocation2 + $0x80] sm:$0xff] %v6028
        %6061 = vst [vmem:[#allocation2 + $0x88] sm:$0xff] %v6029
        %6062 = vst [vmem:[#allocation2 + $0x90] sm:$0xff] %v6030
        %6063 = vst [vmem:[#allocation2 + $0x98] sm:$0xff] %v6031
        %6064 = vst [vmem:[#allocation2 + $0xa0] sm:$0xff] %v6032
        %6065 = vst [vmem:[#allocation2 + $0xa8] sm:$0xff] %v6033
        %6066 = vst [vmem:[#allocation2 + $0xb0] sm:$0xff] %v6034
        %6067 = vst [vmem:[#allocation2 + $0xb8] sm:$0xff] %v6035
        %6068 = vst [vmem:[#allocation2 + $0xc0] sm:$0xff] %v6036
        %6069 = vst [vmem:[#allocation2 + $0xc8] sm:$0xff] %v6037
        %6070 = vst [vmem:[#allocation2 + $0xd0] sm:$0xff] %v6038
        %6071 = vst [vmem:[#allocation2 + $0xd8] sm:$0xff] %v6039
        %6072 = vst [vmem:[#allocation2 + $0xe0] sm:$0xff] %v6040
        %6073 = vst [vmem:[#allocation2 + $0xe8] sm:$0xff] %v6041
        %6074 = vst [vmem:[#allocation2 + $0xf0] sm:$0xff] %v6042
        %6075 = vst [vmem:[#allocation2 + $0xf8] sm:$0xff] %v6043
        %v6076 = vld [vmem:[#allocation2] sm:$0xff]
        %v6077 = vld [vmem:[#allocation2 + $0x8] sm:$0xff]
        %v6078 = vld [vmem:[#allocation2 + $0x10] sm:$0xff]
        %v6079 = vld [vmem:[#allocation2 + $0x18] sm:$0xff]
        %v6080 = vld [vmem:[#allocation2 + $0x20] sm:$0xff]
        %v6081 = vld [vmem:[#allocation2 + $0x28] sm:$0xff]
        %v6082 = vld [vmem:[#allocation2 + $0x30] sm:$0xff]
        %v6083 = vld [vmem:[#allocation2 + $0x38] sm:$0xff]
        %v6084 = vld [vmem:[#allocation2 + $0x40] sm:$0xff]
        %v6085 = vld [vmem:[#allocation2 + $0x48] sm:$0xff]
        %v6086 = vld [vmem:[#allocation2 + $0x50] sm:$0xff]
        %v6087 = vld [vmem:[#allocation2 + $0x58] sm:$0xff]
        %v6088 = vld [vmem:[#allocation2 + $0x60] sm:$0xff]
        %v6089 = vld [vmem:[#allocation2 + $0x68] sm:$0xff]
        %v6090 = vld [vmem:[#allocation2 + $0x70] sm:$0xff]
        %v6091 = vld [vmem:[#allocation2 + $0x78] sm:$0xff]
        %v6092 = vld [vmem:[#allocation2 + $0x80] sm:$0xff]
        %v6093 = vld [vmem:[#allocation2 + $0x88] sm:$0xff]
        %v6094 = vld [vmem:[#allocation2 + $0x90] sm:$0xff]
        %v6095 = vld [vmem:[#allocation2 + $0x98] sm:$0xff]
        %v6096 = vld [vmem:[#allocation2 + $0xa0] sm:$0xff]
        %v6097 = vld [vmem:[#allocation2 + $0xa8] sm:$0xff]
        %v6098 = vld [vmem:[#allocation2 + $0xb0] sm:$0xff]
        %v6099 = vld [vmem:[#allocation2 + $0xb8] sm:$0xff]
        %v6100 = vld [vmem:[#allocation2 + $0xc0] sm:$0xff]
        %v6101 = vld [vmem:[#allocation2 + $0xc8] sm:$0xff]
        %v6102 = vld [vmem:[#allocation2 + $0xd0] sm:$0xff]
        %v6103 = vld [vmem:[#allocation2 + $0xd8] sm:$0xff]
        %v6104 = vld [vmem:[#allocation2 + $0xe0] sm:$0xff]
        %v6105 = vld [vmem:[#allocation2 + $0xe8] sm:$0xff]
        %v6106 = vld [vmem:[#allocation2 + $0xf0] sm:$0xff]
        %v6107 = vld [vmem:[#allocation2 + $0xf8] sm:$0xff]
        %v6108 = vadd.f32 %v6076, %v6077
        %v6109 = vadd.f32 %v6108, %v6078
        %v6110 = vadd.f32 %v6109, %v6079
        %v6111 = vadd.f32 %v6110, %v6080
        %v6112 = vadd.f32 %v6111, %v6081
        %v6113 = vadd.f32 %v6112, %v6082
        %v6114 = vadd.f32 %v6113, %v6083
        %v6115 = vadd.f32 %v6114, %v6084
        %v6116 = vadd.f32 %v6115, %v6085
        %v6117 = vadd.f32 %v6116, %v6086
        %v6118 = vadd.f32 %v6117, %v6087
        %v6119 = vadd.f32 %v6118, %v6088
        %v6120 = vadd.f32 %v6119, %v6089
        %v6121 = vadd.f32 %v6120, %v6090
        %v6122 = vadd.f32 %v6121, %v6091
        %v6123 = vadd.f32 %v6122, %v6092
        %v6124 = vadd.f32 %v6123, %v6093
        %v6125 = vadd.f32 %v6124, %v6094
        %v6126 = vadd.f32 %v6125, %v6095
        %v6127 = vadd.f32 %v6126, %v6096
        %v6128 = vadd.f32 %v6127, %v6097
        %v6129 = vadd.f32 %v6128, %v6098
        %v6130 = vadd.f32 %v6129, %v6099
        %v6131 = vadd.f32 %v6130, %v6100
        %v6132 = vadd.f32 %v6131, %v6101
        %v6133 = vadd.f32 %v6132, %v6102
        %v6134 = vadd.f32 %v6133, %v6103
        %v6135 = vadd.f32 %v6134, %v6104
        %v6136 = vadd.f32 %v6135, %v6105
        %v6137 = vadd.f32 %v6136, %v6106
        %v6138 = vadd.f32 %v6137, %v6107
        %v6139 = vrot.slane %v6138, 4
        %v6140 = vadd.f32 %v6138, %v6139
        %v6141 = vrot.slane %v6140, 2
        %v6142 = vadd.f32 %v6140, %v6141
        %v6143 = vrot.slane %v6142, 1
        %v6144 = vadd.f32 %v6142, %v6143
        %v6145 = vmul.f32 %v6144, %v3595
        %v6146 = vsub.f32 %v6076, %v6145
        %v6147 = vsub.f32 %v6077, %v6145
        %v6148 = vsub.f32 %v6078, %v6145
        %v6149 = vsub.f32 %v6079, %v6145
        %v6150 = vsub.f32 %v6080, %v6145
        %v6151 = vsub.f32 %v6081, %v6145
        %v6152 = vsub.f32 %v6082, %v6145
        %v6153 = vsub.f32 %v6083, %v6145
        %v6154 = vsub.f32 %v6084, %v6145
        %v6155 = vsub.f32 %v6085, %v6145
        %v6156 = vsub.f32 %v6086, %v6145
        %v6157 = vsub.f32 %v6087, %v6145
        %v6158 = vsub.f32 %v6088, %v6145
        %v6159 = vsub.f32 %v6089, %v6145
        %v6160 = vsub.f32 %v6090, %v6145
        %v6161 = vsub.f32 %v6091, %v6145
        %v6162 = vsub.f32 %v6092, %v6145
        %v6163 = vsub.f32 %v6093, %v6145
        %v6164 = vsub.f32 %v6094, %v6145
        %v6165 = vsub.f32 %v6095, %v6145
        %v6166 = vsub.f32 %v6096, %v6145
        %v6167 = vsub.f32 %v6097, %v6145
        %v6168 = vsub.f32 %v6098, %v6145
        %v6169 = vsub.f32 %v6099, %v6145
        %v6170 = vsub.f32 %v6100, %v6145
        %v6171 = vsub.f32 %v6101, %v6145
        %v6172 = vsub.f32 %v6102, %v6145
        %v6173 = vsub.f32 %v6103, %v6145
        %v6174 = vsub.f32 %v6104, %v6145
        %v6175 = vsub.f32 %v6105, %v6145
        %v6176 = vsub.f32 %v6106, %v6145
        %v6177 = vsub.f32 %v6107, %v6145
        %v6178 = vmul.f32 %v6146, %v6146
        %v6179 = vmul.f32 %v6147, %v6147
        %v6180 = vmul.f32 %v6148, %v6148
        %v6181 = vmul.f32 %v6149, %v6149
        %v6182 = vmul.f32 %v6150, %v6150
        %v6183 = vmul.f32 %v6151, %v6151
        %v6184 = vmul.f32 %v6152, %v6152
        %v6185 = vmul.f32 %v6153, %v6153
        %v6186 = vmul.f32 %v6154, %v6154
        %v6187 = vmul.f32 %v6155, %v6155
        %v6188 = vmul.f32 %v6156, %v6156
        %v6189 = vmul.f32 %v6157, %v6157
        %v6190 = vmul.f32 %v6158, %v6158
        %v6191 = vmul.f32 %v6159, %v6159
        %v6192 = vmul.f32 %v6160, %v6160
        %v6193 = vmul.f32 %v6161, %v6161
        %v6194 = vmul.f32 %v6162, %v6162
        %v6195 = vmul.f32 %v6163, %v6163
        %v6196 = vmul.f32 %v6164, %v6164
        %v6197 = vmul.f32 %v6165, %v6165
        %v6198 = vmul.f32 %v6166, %v6166
        %v6199 = vmul.f32 %v6167, %v6167
        %v6200 = vmul.f32 %v6168, %v6168
        %v6201 = vmul.f32 %v6169, %v6169
        %v6202 = vmul.f32 %v6170, %v6170
        %v6203 = vmul.f32 %v6171, %v6171
        %v6204 = vmul.f32 %v6172, %v6172
        %v6205 = vmul.f32 %v6173, %v6173
        %v6206 = vmul.f32 %v6174, %v6174
        %v6207 = vmul.f32 %v6175, %v6175
        %v6208 = vmul.f32 %v6176, %v6176
        %v6209 = vmul.f32 %v6177, %v6177
        %v6210 = vadd.f32 %v6178, %v6179
        %v6211 = vadd.f32 %v6210, %v6180
        %v6212 = vadd.f32 %v6211, %v6181
        %v6213 = vadd.f32 %v6212, %v6182
        %v6214 = vadd.f32 %v6213, %v6183
        %v6215 = vadd.f32 %v6214, %v6184
        %v6216 = vadd.f32 %v6215, %v6185
        %v6217 = vadd.f32 %v6216, %v6186
        %v6218 = vadd.f32 %v6217, %v6187
        %v6219 = vadd.f32 %v6218, %v6188
        %v6220 = vadd.f32 %v6219, %v6189
        %v6221 = vadd.f32 %v6220, %v6190
        %v6222 = vadd.f32 %v6221, %v6191
        %v6223 = vadd.f32 %v6222, %v6192
        %v6224 = vadd.f32 %v6223, %v6193
        %v6225 = vadd.f32 %v6224, %v6194
        %v6226 = vadd.f32 %v6225, %v6195
        %v6227 = vadd.f32 %v6226, %v6196
        %v6228 = vadd.f32 %v6227, %v6197
        %v6229 = vadd.f32 %v6228, %v6198
        %v6230 = vadd.f32 %v6229, %v6199
        %v6231 = vadd.f32 %v6230, %v6200
        %v6232 = vadd.f32 %v6231, %v6201
        %v6233 = vadd.f32 %v6232, %v6202
        %v6234 = vadd.f32 %v6233, %v6203
        %v6235 = vadd.f32 %v6234, %v6204
        %v6236 = vadd.f32 %v6235, %v6205
        %v6237 = vadd.f32 %v6236, %v6206
        %v6238 = vadd.f32 %v6237, %v6207
        %v6239 = vadd.f32 %v6238, %v6208
        %v6240 = vadd.f32 %v6239, %v6209
        %v6241 = vrot.slane %v6240, 4
        %v6242 = vadd.f32 %v6240, %v6241
        %v6243 = vrot.slane %v6242, 2
        %v6244 = vadd.f32 %v6242, %v6243
        %v6245 = vrot.slane %v6244, 1
        %v6246 = vadd.f32 %v6244, %v6245
        %v6247 = vmul.f32 %v6246, %v3595
        %v6248 = vadd.f32 %v6247, 1e-05
        %v6249 = vrsqrt.pop %v6248
        %v6250 = vmul.f32 %v6146, %v6249
        %v6251 = vmul.f32 %v6147, %v6249
        %v6252 = vmul.f32 %v6148, %v6249
        %v6253 = vmul.f32 %v6149, %v6249
        %v6254 = vmul.f32 %v6150, %v6249
        %v6255 = vmul.f32 %v6151, %v6249
        %v6256 = vmul.f32 %v6152, %v6249
        %v6257 = vmul.f32 %v6153, %v6249
        %v6258 = vmul.f32 %v6154, %v6249
        %v6259 = vmul.f32 %v6155, %v6249
        %v6260 = vmul.f32 %v6156, %v6249
        %v6261 = vmul.f32 %v6157, %v6249
        %v6262 = vmul.f32 %v6158, %v6249
        %v6263 = vmul.f32 %v6159, %v6249
        %v6264 = vmul.f32 %v6160, %v6249
        %v6265 = vmul.f32 %v6161, %v6249
        %v6266 = vmul.f32 %v6162, %v6249
        %v6267 = vmul.f32 %v6163, %v6249
        %v6268 = vmul.f32 %v6164, %v6249
        %v6269 = vmul.f32 %v6165, %v6249
        %v6270 = vmul.f32 %v6166, %v6249
        %v6271 = vmul.f32 %v6167, %v6249
        %v6272 = vmul.f32 %v6168, %v6249
        %v6273 = vmul.f32 %v6169, %v6249
        %v6274 = vmul.f32 %v6170, %v6249
        %v6275 = vmul.f32 %v6171, %v6249
        %v6276 = vmul.f32 %v6172, %v6249
        %v6277 = vmul.f32 %v6173, %v6249
        %v6278 = vmul.f32 %v6174, %v6249
        %v6279 = vmul.f32 %v6175, %v6249
        %v6280 = vmul.f32 %v6176, %v6249
        %v6281 = vmul.f32 %v6177, %v6249
        %v6282 = vld [vmem:[%s1246] sm:$0xf]
        %v6283 = vld [vmem:[%s1246 + $0x4] sm:$0xf]
        %v6284 = vld [vmem:[%s1246 + $0x8] sm:$0x1]
        %v6285 = vld [vmem:[%s1246 + $0xc] sm:$0xf]
        %v6286 = vld [vmem:[%s1246 + $0x10] sm:$0xf]
        %v6287 = vld [vmem:[%s1246 + $0x14] sm:$0x1]
        %v6288 = vld [vmem:[%s1246 + $0x18] sm:$0xf]
        %v6289 = vld [vmem:[%s1246 + $0x1c] sm:$0xf]
        %v6290 = vld [vmem:[%s1246 + $0x20] sm:$0x1]
        %v6291 = vld [vmem:[%s1246 + $0x24] sm:$0xf]
        %v6292 = vld [vmem:[%s1246 + $0x28] sm:$0xf]
        %v6293 = vld [vmem:[%s1246 + $0x2c] sm:$0x1]
        %v6294 = vld [vmem:[%s1246 + $0x30] sm:$0xf]
        %v6295 = vld [vmem:[%s1246 + $0x34] sm:$0xf]
        %v6296 = vld [vmem:[%s1246 + $0x38] sm:$0x1]
        %v6297 = vld [vmem:[%s1246 + $0x3c] sm:$0xf]
        %v6298 = vld [vmem:[%s1246 + $0x40] sm:$0xf]
        %v6299 = vld [vmem:[%s1246 + $0x44] sm:$0x1]
        %v6300 = vld [vmem:[%s1246 + $0x48] sm:$0xf]
        %v6301 = vld [vmem:[%s1246 + $0x4c] sm:$0xf]
        %v6302 = vld [vmem:[%s1246 + $0x50] sm:$0x1]
        %v6303 = vld [vmem:[%s1246 + $0x54] sm:$0xf]
        %v6304 = vld [vmem:[%s1246 + $0x58] sm:$0xf]
        %v6305 = vld [vmem:[%s1246 + $0x5c] sm:$0x1]
        %v6306 = vld [vmem:[%s1246 + $0x60] sm:$0xf]
        %v6307 = vld [vmem:[%s1246 + $0x64] sm:$0xf]
        %v6308 = vld [vmem:[%s1246 + $0x68] sm:$0x1]
        %v6309 = vld [vmem:[%s1246 + $0x6c] sm:$0xf]
        %v6310 = vld [vmem:[%s1246 + $0x70] sm:$0xf]
        %v6311 = vld [vmem:[%s1246 + $0x74] sm:$0x1]
        %v6312 = vld [vmem:[%s1246 + $0x78] sm:$0xf]
        %v6313 = vld [vmem:[%s1246 + $0x7c] sm:$0xf]
        %v6314 = vld [vmem:[%s1246 + $0x80] sm:$0x1]
        %v6315 = vld [vmem:[%s1246 + $0x84] sm:$0xf]
        %v6316 = vld [vmem:[%s1246 + $0x88] sm:$0xf]
        %v6317 = vld [vmem:[%s1246 + $0x8c] sm:$0x1]
        %v6318 = vld [vmem:[%s1246 + $0x90] sm:$0xf]
        %v6319 = vld [vmem:[%s1246 + $0x94] sm:$0xf]
        %v6320 = vld [vmem:[%s1246 + $0x98] sm:$0x1]
        %v6321 = vld [vmem:[%s1246 + $0x9c] sm:$0xf]
        %v6322 = vld [vmem:[%s1246 + $0xa0] sm:$0xf]
        %v6323 = vld [vmem:[%s1246 + $0xa4] sm:$0x1]
        %v6324 = vld [vmem:[%s1246 + $0xa8] sm:$0xf]
        %v6325 = vld [vmem:[%s1246 + $0xac] sm:$0xf]
        %v6326 = vld [vmem:[%s1246 + $0xb0] sm:$0x1]
        %v6327 = vld [vmem:[%s1246 + $0xb4] sm:$0xf]
        %v6328 = vld [vmem:[%s1246 + $0xb8] sm:$0xf]
        %v6329 = vld [vmem:[%s1246 + $0xbc] sm:$0x1]
        %v6330 = vunpack.c.l.bf16 %v6282
        %v6331 = vunpack.c.l.bf16 %v6283
        %v6332 = vunpack.c.l.bf16 %v6284
        %v6333 = vunpack.c.l.bf16 %v6285
        %v6334 = vunpack.c.l.bf16 %v6286
        %v6335 = vunpack.c.l.bf16 %v6287
        %v6336 = vunpack.c.l.bf16 %v6288
        %v6337 = vunpack.c.l.bf16 %v6289
        %v6338 = vunpack.c.l.bf16 %v6290
        %v6339 = vunpack.c.l.bf16 %v6291
        %v6340 = vunpack.c.l.bf16 %v6292
        %v6341 = vunpack.c.l.bf16 %v6293
        %v6342 = vunpack.c.l.bf16 %v6294
        %v6343 = vunpack.c.l.bf16 %v6295
        %v6344 = vunpack.c.l.bf16 %v6296
        %v6345 = vunpack.c.l.bf16 %v6297
        %v6346 = vunpack.c.l.bf16 %v6298
        %v6347 = vunpack.c.l.bf16 %v6299
        %v6348 = vunpack.c.l.bf16 %v6300
        %v6349 = vunpack.c.l.bf16 %v6301
        %v6350 = vunpack.c.l.bf16 %v6302
        %v6351 = vunpack.c.l.bf16 %v6303
        %v6352 = vunpack.c.l.bf16 %v6304
        %v6353 = vunpack.c.l.bf16 %v6305
        %v6354 = vunpack.c.l.bf16 %v6306
        %v6355 = vunpack.c.l.bf16 %v6307
        %v6356 = vunpack.c.l.bf16 %v6308
        %v6357 = vunpack.c.l.bf16 %v6309
        %v6358 = vunpack.c.l.bf16 %v6310
        %v6359 = vunpack.c.l.bf16 %v6311
        %v6360 = vunpack.c.l.bf16 %v6312
        %v6361 = vunpack.c.l.bf16 %v6313
        %v6362 = vunpack.c.l.bf16 %v6314
        %v6363 = vunpack.c.l.bf16 %v6315
        %v6364 = vunpack.c.l.bf16 %v6316
        %v6365 = vunpack.c.l.bf16 %v6317
        %v6366 = vunpack.c.l.bf16 %v6318
        %v6367 = vunpack.c.l.bf16 %v6319
        %v6368 = vunpack.c.l.bf16 %v6320
        %v6369 = vunpack.c.l.bf16 %v6321
        %v6370 = vunpack.c.l.bf16 %v6322
        %v6371 = vunpack.c.l.bf16 %v6323
        %v6372 = vunpack.c.l.bf16 %v6324
        %v6373 = vunpack.c.l.bf16 %v6325
        %v6374 = vunpack.c.l.bf16 %v6326
        %v6375 = vunpack.c.l.bf16 %v6327
        %v6376 = vunpack.c.l.bf16 %v6328
        %v6377 = vunpack.c.l.bf16 %v6329
        %vm6426 = vcmask 1046528
        %v6427 = vrot.slane %v6330, 1
        %v6428 = vrot.slane %v6331, 1
        %v6429 = vsel %vm6426, %v6427, %v6428
        %v6430 = vrot.slane %v6332, 1
        %v6431 = vsel %vm6426, %v6428, %v6430
        %v6432 = vrot.slane %v6333, 1
        %v6433 = vrot.slane %v6334, 1
        %v6434 = vsel %vm6426, %v6432, %v6433
        %v6435 = vrot.slane %v6335, 1
        %v6436 = vsel %vm6426, %v6433, %v6435
        %v6437 = vrot.slane %v6336, 1
        %v6438 = vrot.slane %v6337, 1
        %v6439 = vsel %vm6426, %v6437, %v6438
        %v6440 = vrot.slane %v6338, 1
        %v6441 = vsel %vm6426, %v6438, %v6440
        %v6442 = vrot.slane %v6339, 1
        %v6443 = vrot.slane %v6340, 1
        %v6444 = vsel %vm6426, %v6442, %v6443
        %v6445 = vrot.slane %v6341, 1
        %v6446 = vsel %vm6426, %v6443, %v6445
        %v6447 = vrot.slane %v6342, 1
        %v6448 = vrot.slane %v6343, 1
        %v6449 = vsel %vm6426, %v6447, %v6448
        %v6450 = vrot.slane %v6344, 1
        %v6451 = vsel %vm6426, %v6448, %v6450
        %v6452 = vrot.slane %v6345, 1
        %v6453 = vrot.slane %v6346, 1
        %v6454 = vsel %vm6426, %v6452, %v6453
        %v6455 = vrot.slane %v6347, 1
        %v6456 = vsel %vm6426, %v6453, %v6455
        %v6457 = vrot.slane %v6348, 1
        %v6458 = vrot.slane %v6349, 1
        %v6459 = vsel %vm6426, %v6457, %v6458
        %v6460 = vrot.slane %v6350, 1
        %v6461 = vsel %vm6426, %v6458, %v6460
        %v6462 = vrot.slane %v6351, 1
        %v6463 = vrot.slane %v6352, 1
        %v6464 = vsel %vm6426, %v6462, %v6463
        %v6465 = vrot.slane %v6353, 1
        %v6466 = vsel %vm6426, %v6463, %v6465
        %v6467 = vrot.slane %v6354, 1
        %v6468 = vrot.slane %v6355, 1
        %v6469 = vsel %vm6426, %v6467, %v6468
        %v6470 = vrot.slane %v6356, 1
        %v6471 = vsel %vm6426, %v6468, %v6470
        %v6472 = vrot.slane %v6357, 1
        %v6473 = vrot.slane %v6358, 1
        %v6474 = vsel %vm6426, %v6472, %v6473
        %v6475 = vrot.slane %v6359, 1
        %v6476 = vsel %vm6426, %v6473, %v6475
        %v6477 = vrot.slane %v6360, 1
        %v6478 = vrot.slane %v6361, 1
        %v6479 = vsel %vm6426, %v6477, %v6478
        %v6480 = vrot.slane %v6362, 1
        %v6481 = vsel %vm6426, %v6478, %v6480
        %v6482 = vrot.slane %v6363, 1
        %v6483 = vrot.slane %v6364, 1
        %v6484 = vsel %vm6426, %v6482, %v6483
        %v6485 = vrot.slane %v6365, 1
        %v6486 = vsel %vm6426, %v6483, %v6485
        %v6487 = vrot.slane %v6366, 1
        %v6488 = vrot.slane %v6367, 1
        %v6489 = vsel %vm6426, %v6487, %v6488
        %v6490 = vrot.slane %v6368, 1
        %v6491 = vsel %vm6426, %v6488, %v6490
        %v6492 = vrot.slane %v6369, 1
        %v6493 = vrot.slane %v6370, 1
        %v6494 = vsel %vm6426, %v6492, %v6493
        %v6495 = vrot.slane %v6371, 1
        %v6496 = vsel %vm6426, %v6493, %v6495
        %v6497 = vrot.slane %v6372, 1
        %v6498 = vrot.slane %v6373, 1
        %v6499 = vsel %vm6426, %v6497, %v6498
        %v6500 = vrot.slane %v6374, 1
        %v6501 = vsel %vm6426, %v6498, %v6500
        %v6502 = vrot.slane %v6375, 1
        %v6503 = vrot.slane %v6376, 1
        %v6504 = vsel %vm6426, %v6502, %v6503
        %v6505 = vrot.slane %v6377, 1
        %v6506 = vsel %vm6426, %v6503, %v6505
        %v6539 = vadd.f32 %v6429, %v6250
        %v6540 = vadd.f32 %v6431, %v6251
        %v6541 = vadd.f32 %v6434, %v6252
        %v6542 = vadd.f32 %v6436, %v6253
        %v6543 = vadd.f32 %v6439, %v6254
        %v6544 = vadd.f32 %v6441, %v6255
        %v6545 = vadd.f32 %v6444, %v6256
        %v6546 = vadd.f32 %v6446, %v6257
        %v6547 = vadd.f32 %v6449, %v6258
        %v6548 = vadd.f32 %v6451, %v6259
        %v6549 = vadd.f32 %v6454, %v6260
        %v6550 = vadd.f32 %v6456, %v6261
        %v6551 = vadd.f32 %v6459, %v6262
        %v6552 = vadd.f32 %v6461, %v6263
        %v6553 = vadd.f32 %v6464, %v6264
        %v6554 = vadd.f32 %v6466, %v6265
        %v6555 = vadd.f32 %v6469, %v6266
        %v6556 = vadd.f32 %v6471, %v6267
        %v6557 = vadd.f32 %v6474, %v6268
        %v6558 = vadd.f32 %v6476, %v6269
        %v6559 = vadd.f32 %v6479, %v6270
        %v6560 = vadd.f32 %v6481, %v6271
        %v6561 = vadd.f32 %v6484, %v6272
        %v6562 = vadd.f32 %v6486, %v6273
        %v6563 = vadd.f32 %v6489, %v6274
        %v6564 = vadd.f32 %v6491, %v6275
        %v6565 = vadd.f32 %v6494, %v6276
        %v6566 = vadd.f32 %v6496, %v6277
        %v6567 = vadd.f32 %v6499, %v6278
        %v6568 = vadd.f32 %v6501, %v6279
        %v6569 = vadd.f32 %v6504, %v6280
        %v6570 = vadd.f32 %v6506, %v6281
        %6571 = vst [vmem:[%s163] sm:$0xff] %v6539
        %6572 = vst [vmem:[%s163 + $0x8] sm:$0xff] %v6540
        %6573 = vst [vmem:[%s163 + $0x10] sm:$0xff] %v6541
        %6574 = vst [vmem:[%s163 + $0x18] sm:$0xff] %v6542
        %6575 = vst [vmem:[%s163 + $0x20] sm:$0xff] %v6543
        %6576 = vst [vmem:[%s163 + $0x28] sm:$0xff] %v6544
        %6577 = vst [vmem:[%s163 + $0x30] sm:$0xff] %v6545
        %6578 = vst [vmem:[%s163 + $0x38] sm:$0xff] %v6546
        %6579 = vst [vmem:[%s163 + $0x40] sm:$0xff] %v6547
        %6580 = vst [vmem:[%s163 + $0x48] sm:$0xff] %v6548
        %6581 = vst [vmem:[%s163 + $0x50] sm:$0xff] %v6549
        %6582 = vst [vmem:[%s163 + $0x58] sm:$0xff] %v6550
        %6583 = vst [vmem:[%s163 + $0x60] sm:$0xff] %v6551
        %6584 = vst [vmem:[%s163 + $0x68] sm:$0xff] %v6552
        %6585 = vst [vmem:[%s163 + $0x70] sm:$0xff] %v6553
        %6586 = vst [vmem:[%s163 + $0x78] sm:$0xff] %v6554
        %6587 = vst [vmem:[%s163 + $0x80] sm:$0xff] %v6555
        %6588 = vst [vmem:[%s163 + $0x88] sm:$0xff] %v6556
        %6589 = vst [vmem:[%s163 + $0x90] sm:$0xff] %v6557
        %6590 = vst [vmem:[%s163 + $0x98] sm:$0xff] %v6558
        %6591 = vst [vmem:[%s163 + $0xa0] sm:$0xff] %v6559
        %6592 = vst [vmem:[%s163 + $0xa8] sm:$0xff] %v6560
        %6593 = vst [vmem:[%s163 + $0xb0] sm:$0xff] %v6561
        %6594 = vst [vmem:[%s163 + $0xb8] sm:$0xff] %v6562
        %6595 = vst [vmem:[%s163 + $0xc0] sm:$0xff] %v6563
        %6596 = vst [vmem:[%s163 + $0xc8] sm:$0xff] %v6564
        %6597 = vst [vmem:[%s163 + $0xd0] sm:$0xff] %v6565
        %6598 = vst [vmem:[%s163 + $0xd8] sm:$0xff] %v6566
        %6599 = vst [vmem:[%s163 + $0xe0] sm:$0xff] %v6567
        %6600 = vst [vmem:[%s163 + $0xe8] sm:$0xff] %v6568
        %6601 = vst [vmem:[%s163 + $0xf0] sm:$0xff] %v6569
        %6602 = vst [vmem:[%s163 + $0xf8] sm:$0xff] %v6570
        %s6603 = sand.u32 %s93, 1
        %s6604 = scalar_lea.sflag [#allocation5], %s6603
        %s6605 = sand.u32 %s93, 1
        %s6606 = smul.addr %s6605, 256
        %s6607 = scalar_lea.vmem [#allocation4], %s6606
        // Predicated region
        $region33: #{residual_block_forward.1} parent=31 // pred_check
          %p6608 = pneg %p103
        $region34: #{residual_block_forward.1} parent=31 // pred_check_branch
          %6610 = sbr.rel (%p6608) target = $region36
        $region35: #{residual_block_forward.1} parent=31 // pred_region
          %s6612 = ssub.s32 4096, 4096
          %6613 = vsyncadd %s6604, %s6612
          %s6614 = smul.addr %s17, 32
          %s6615 = smul.addr %s6614, 128
          %s6616 = scalar_lea.hbm %s3, %s6615
          %s6617 = sshll.u32 %s6607, 4
          %s6618 = int_to_ptr.vmem [resolvable:$true] %s6617
          %6623 = dma.vmem_to_hbm [thread:$0]  %s6618, 4096, %s6616, %s6604, 128, 128, 8
        $region36: #{residual_block_forward.1} parent=31 // pred_fallthru
          _
      $region32: #{residual_block_forward.1} parent=5 // pred_fallthru
        _
      %p6624 = scmp.le.s32.totalorder 2, %s12
      // Predicated region
      $region37: #{residual_block_forward.1} parent=5 // pred_check
        %p6625 = pneg %p6624
      $region38: #{residual_block_forward.1} parent=5 // pred_check_branch
        %6627 = sbr.rel (%p6625) target = $region40
      $region39: #{residual_block_forward.1} parent=5 // pred_region
        %s6628 = ssub.s32 %s12, 2
        // Predicated region
        $region41: #{residual_block_forward.1} parent=39 // pred_check
          %p6629 = pneg %p109
        $region42: #{residual_block_forward.1} parent=39 // pred_check_branch
          %6631 = sbr.rel (%p6629) target = $region44
        $region43: #{residual_block_forward.1} parent=39 // pred_region
          %s6632 = sand.u32 %s94, 1
          %s6633 = scalar_lea.sflag [#allocation5], %s6632
          %s6634 = sand.u32 %s94, 1
          %s6635 = smul.addr %s6634, 256
          %s6636 = scalar_lea.vmem [#allocation4], %s6635
          %6637 = dma.done %s6633, 4096
        $region44: #{residual_block_forward.1} parent=39 // pred_fallthru
          _
      $region40: #{residual_block_forward.1} parent=5 // pred_fallthru
        _
    $region6: #{residual_block_forward.1} parent=1 // loop_footer
      %s16 = sadd.s32 1, %s12
    $region7: #{residual_block_forward.1} parent=1 // loop_footer_branch
      %11 = sbr.rel target = $region3
    $region8: #{residual_block_forward.1} parent=1 // loop_exit
      _
    %6638 = vsyncpa [#allocation5], 1
    %s6639 = scalar_lea.sflag [#allocation5], 1
    %6640 = vsyncpa %s6639, 1

</llo_original>
